<compile_context>
chip_gen: v7x
topology: tpu7x:2x2x1
jax: 0.10.0
libtpu: 0.0.40
codegen_flags: <defaults>
</compile_context>

<pallas_src>
import functools

import jax
import jax.numpy as jnp
import numpy as np
from jax.experimental import pallas as pl
from jax.experimental.pallas import tpu as pltpu

LATENT = 1024
BATCH = 2

# ---- static layer geometry derived from the PyTorch module -----------------
C = 16                                   # channels inside the deconv stack
# layer2: ConvTranspose1d(16 -> 16, K=30, stride=2), input length 40
KH2, LIN2 = 15, 40
LH2 = LIN2 + KH2 - 1                     # 54 half-rate output positions
LB2, P2 = 128, KH2 - 1                   # per-batch lane block / left zero-pad
# layer3: ConvTranspose1d(16 -> 16, K=30, stride=2), input length 108
KH3, LIN3 = 15, 2 * LH2
LH3 = LIN3 + KH3 - 1                     # 122
LB3, P3 = 128, KH3 - 1
# layer4: ConvTranspose1d(16 -> 2, K=14, stride=2), input length 244
KH4, LIN4 = 7, 2 * LH3
LH4 = LIN4 + KH4 - 1                     # 250
LB4, P4 = 256, KH4 - 1
CP4 = 8                                  # 2 out-channels padded to 8 rows/parity
LOUT = 2 * LH4                           # 500


def _round_up(x, m):
    return ((x + m - 1) // m) * m


# ----------------------------------------------------------------------------
# In-kernel helpers (traced inline; all static shapes)
# ----------------------------------------------------------------------------
def _prelu(x, a):
    return jnp.where(x >= 0.0, x, a * x)


def _parity_select_mats(lhalf, lfull):
    """0/1 selection matrices Ue, Uo with Ue[p, 2p] = 1 and Uo[p, 2p+1] = 1."""
    p = jax.lax.broadcasted_iota(jnp.int32, (lhalf, lfull), 0)
    t = jax.lax.broadcasted_iota(jnp.int32, (lhalf, lfull), 1)
    d = t - 2 * p
    return (d == 0).astype(jnp.float32), (d == 1).astype(jnp.float32)


def _deconv_taps(x_scr, w_ref, b_ref, *, batch, kh, cpad, lb, pad):
    """Stride-2 ConvTranspose1d as kh accumulating shifted dots.

    x_scr holds the full-rate input with x[b, ci, l] at column pad + b*lb + l
    and zeros everywhere else.  Returns
        acc[r*cpad + o, b*lb + m] = bias[o] + sum_{ci,j} w[ci,o,2j+r] * x[b,ci,m-j]
    i.e. the layer output y[b, o, 2m + r] (pre-activation), parity-split.
    """
    cols = batch * lb
    acc = jnp.zeros((2 * cpad, cols), jnp.float32)
    for j in range(kh):
        wj = w_ref[j]                               # (2*cpad, C) tap matrix
        xs = x_scr[:, pad - j:pad - j + cols]       # (C, cols), input shifted by j
        acc = acc + jnp.dot(wj, xs, preferred_element_type=jnp.float32)
    return acc + b_ref[...]


# ----------------------------------------------------------------------------
# The single fused kernel
# ----------------------------------------------------------------------------
def _generator_kernel(alpha_ref, z_ref, w1_ref, b1_ref, w2_ref, b2_ref,
                      w3_ref, b3_ref, w4_ref, b4_ref, o_ref,
                      x2_scr, x3_scr, x4_scr, *, batch):
    a1 = alpha_ref[0:1, 0:1]
    a2 = alpha_ref[1:2, 0:1]
    a3 = alpha_ref[2:3, 0:1]

    # ---- layer1: Linear(1024, 640) + PReLU ---------------------------------
    w1 = w1_ref[...].astype(jnp.float32)            # bf16 storage -> f32 MACs
    h1 = jnp.dot(z_ref[...], w1, preferred_element_type=jnp.float32)
    h1 = _prelu(h1 + b1_ref[...], a1)               # (batch, 640)

    # ---- out.view(B, 16, 40) placed into layer-2 full-rate scratch ---------
    x2_scr[...] = jnp.zeros(x2_scr.shape, x2_scr.dtype)
    for b in range(batch):
        base = P2 + b * LB2
        for ci in range(C):
            x2_scr[ci:ci + 1, base:base + LIN2] = \
                h1[b:b + 1, LIN2 * ci:LIN2 * (ci + 1)]

    # ---- layer2: ConvTranspose1d(16,16,30,s=2) + PReLU ----------------------
    acc2 = _prelu(_deconv_taps(x2_scr, w2_ref, b2_ref, batch=batch, kh=KH2,
                               cpad=C, lb=LB2, pad=P2), a2)   # (32, batch*128)

    # ---- even/odd re-interleave -> layer-3 full-rate scratch ----------------
    ue2, uo2 = _parity_select_mats(LH2, LIN3)
    x3_scr[...] = jnp.zeros(x3_scr.shape, x3_scr.dtype)
    for b in range(batch):
        ev = acc2[0:C, b * LB2:b * LB2 + LH2]
        od = acc2[C:2 * C, b * LB2:b * LB2 + LH2]
        full = (jnp.dot(ev, ue2, preferred_element_type=jnp.float32)
                + jnp.dot(od, uo2, preferred_element_type=jnp.float32))
        x3_scr[:, P3 + b * LB3:P3 + b * LB3 + LIN3] = full

    # ---- layer3: ConvTranspose1d(16,16,30,s=2) + PReLU ----------------------
    acc3 = _prelu(_deconv_taps(x3_scr, w3_ref, b3_ref, batch=batch, kh=KH3,
                               cpad=C, lb=LB3, pad=P3), a3)   # (32, batch*128)

    ue3, uo3 = _parity_select_mats(LH3, LIN4)
    x4_scr[...] = jnp.zeros(x4_scr.shape, x4_scr.dtype)
    for b in range(batch):
        ev = acc3[0:C, b * LB3:b * LB3 + LH3]
        od = acc3[C:2 * C, b * LB3:b * LB3 + LH3]
        full = (jnp.dot(ev, ue3, preferred_element_type=jnp.float32)
                + jnp.dot(od, uo3, preferred_element_type=jnp.float32))
        x4_scr[:, P4 + b * LB4:P4 + b * LB4 + LIN4] = full

    # ---- layer4: ConvTranspose1d(16,2,14,s=2) + Sigmoid ---------------------
    y4 = jax.nn.sigmoid(_deconv_taps(x4_scr, w4_ref, b4_ref, batch=batch,
                                     kh=KH4, cpad=CP4, lb=LB4, pad=P4))

    # ---- final even/odd interleave -> (batch, 2, 500) -----------------------
    ue4, uo4 = _parity_select_mats(LH4, LOUT)
    for b in range(batch):
        ev = y4[0:2, b * LB4:b * LB4 + LH4]            # parity-0 rows, o = 0,1
        od = y4[CP4:CP4 + 2, b * LB4:b * LB4 + LH4]    # parity-1 rows, o = 0,1
        o_ref[b, :, :] = (jnp.dot(ev, ue4, preferred_element_type=jnp.float32)
                          + jnp.dot(od, uo4, preferred_element_type=jnp.float32))


# ----------------------------------------------------------------------------
# Wrapper: one pallas_call for the whole forward
# ----------------------------------------------------------------------------
def generator_forward(z, prep):
    batch = z.shape[0]
    w23 = _round_up(P2 + batch * LB2, 128)    # layer-2 / layer-3 scratch width
    w4s = _round_up(P4 + batch * LB4, 128)    # layer-4 scratch width

    flops = (2 * batch * LATENT * 640
             + 2 * (2 * C) * C * batch * LB2 * KH2
             + 2 * (2 * C) * C * batch * LB3 * KH3
             + 2 * (2 * CP4) * C * batch * LB4 * KH4
             + 2 * batch * (C * LH2 * LIN3 + C * LH3 * LIN4 + 2 * LH4 * LOUT) * 2)
    bytes_accessed = int(
        z.size * 4 + prep["W1"].size * 2
        + sum(prep[k].size * 4 for k in
              ("alphas", "b1", "w2", "b2", "w3", "b3", "w4", "b4"))
        + batch * 2 * LOUT * 4)

    kernel = functools.partial(_generator_kernel, batch=batch)
    vmem = pl.BlockSpec(memory_space=pltpu.MemorySpace.VMEM)
    return pl.pallas_call(
        kernel,
        out_shape=jax.ShapeDtypeStruct((batch, 2, LOUT), jnp.float32),
        in_specs=[vmem] * 10,
        out_specs=vmem,
        scratch_shapes=[
            pltpu.VMEM((C, w23), jnp.float32),    # layer-2 full-rate input
            pltpu.VMEM((C, w23), jnp.float32),    # layer-3 full-rate input
            pltpu.VMEM((C, w4s), jnp.float32),    # layer-4 full-rate input
        ],
        cost_estimate=pl.CostEstimate(
            flops=flops,
            transcendentals=2 * CP4 * batch * LB4,
            bytes_accessed=bytes_accessed),
    )(prep["alphas"], z, prep["W1"], prep["b1"], prep["w2"], prep["b2"],
      prep["w3"], prep["b3"], prep["w4"], prep["b4"])


# ----------------------------------------------------------------------------
# Parameter construction (host-side numpy glue, done once)
# ----------------------------------------------------------------------------
def make_params(key):
    ks = jax.random.split(key, 8)

    def u(k, shape, fan_in):
        s = 1.0 / np.sqrt(fan_in)
        return jax.random.uniform(k, shape, jnp.float32, -s, s)

    return {
        "W1": u(ks[0], (640, LATENT), LATENT),    # nn.Linear weight (out, in)
        "b1": u(ks[1], (640,), LATENT),
        "a1": jnp.float32(0.25),                  # learnable nn.PReLU() scalars
        "a2": jnp.float32(0.15),
        "a3": jnp.float32(0.30),
        "w2": u(ks[2], (16, 16, 30), 16 * 30),    # ConvTranspose1d (in, out, K)
        "b2": u(ks[3], (16,), 16 * 30),
        "w3": u(ks[4], (16, 16, 30), 16 * 30),
        "b3": u(ks[5], (16,), 16 * 30),
        "w4": u(ks[6], (16, 2, 14), 16 * 14),
        "b4": u(ks[7], (2,), 16 * 14),
    }


def _tap_matrix(w, cpad):
    """PyTorch ConvTranspose1d weight (Cin, Cout, K) -> (K//2, 2*cpad, Cin)
    with taps[j, r*cpad + o, ci] = w[ci, o, 2j + r]."""
    w = np.asarray(w, np.float32)
    cin, cout, K = w.shape
    kh = K // 2
    taps = np.zeros((kh, 2, cpad, cin), np.float32)
    for r in range(2):
        taps[:, r, :cout, :] = np.transpose(w[:, :, r::2], (2, 1, 0))
    return taps.reshape(kh, 2 * cpad, cin)


def _bias_column(b, cpad):
    b = np.asarray(b, np.float32)
    col = np.zeros((2, cpad), np.float32)
    col[:, :b.shape[0]] = b
    return col.reshape(2 * cpad, 1)


def prepare_params(p):
    return {
        "alphas": jnp.asarray(np.array([p["a1"], p["a2"], p["a3"]],
                                       np.float32).reshape(3, 1)),
        # Only non-trivial weight stream -> bf16 storage (halves its DMA bytes).
        "W1": jnp.asarray(np.asarray(p["W1"]).T, jnp.bfloat16),       # (1024, 640)
        "b1": jnp.asarray(np.asarray(p["b1"])[None, :], jnp.float32),  # (1, 640)
        "w2": jnp.asarray(_tap_matrix(p["w2"], C)),
        "b2": jnp.asarray(_bias_column(p["b2"], C)),
        "w3": jnp.asarray(_tap_matrix(p["w3"], C)),
        "b3": jnp.asarray(_bias_column(p["b3"], C)),
        "w4": jnp.asarray(_tap_matrix(p["w4"], CP4)),
        "b4": jnp.asarray(_bias_column(p["b4"], CP4)),
    }


# ----------------------------------------------------------------------------
# Pure-JAX reference (direct ConvTranspose1d semantics)
# ----------------------------------------------------------------------------
def _prelu_ref(x, a):
    return jnp.where(x >= 0, x, a * x)


def _conv_transpose1d_ref(x, w, b, stride):
    Bsz, Cin, L = x.shape
    _, Cout, K = w.shape
    Lout = (L - 1) * stride + K
    y = jnp.zeros((Bsz, Cout, Lout), jnp.float32)
    for l in range(L):
        y = y.at[:, :, l * stride:l * stride + K].add(
            jnp.einsum("bi,iok->bok", x[:, :, l], w))
    return y + b[None, :, None]


def reference_forward(z, p):
    h = _prelu_ref(z @ p["W1"].T + p["b1"], p["a1"])
    h = h.reshape(z.shape[0], 16, 40)
    h = _prelu_ref(_conv_transpose1d_ref(h, p["w2"], p["b2"], 2), p["a2"])
    h = _prelu_ref(_conv_transpose1d_ref(h, p["w3"], p["b3"], 2), p["a3"])
    return jax.nn.sigmoid(_conv_transpose1d_ref(h, p["w4"], p["b4"], 2))


if __name__ == "__main__":
    key = jax.random.PRNGKey(0)
    pkey, zkey = jax.random.split(key)
    params = make_params(pkey)
    prep = prepare_params(params)

    z = jax.random.normal(zkey, (BATCH, LATENT), jnp.float32)

    fwd = jax.jit(generator_forward)
    out = jax.block_until_ready(fwd(z, prep))
    assert out.shape == (BATCH, 2, LOUT), out.shape

    ref = jax.block_until_ready(reference_forward(z, params))
    np.testing.assert_allclose(np.asarray(out), np.asarray(ref), atol=2e-2, rtol=0)

    print("KERNEL_OK")
</pallas_src>

<mosaic_0001>
module attributes {stable_mosaic.version = 11 : i64} {
  func.func @_generator_kernel(%arg0: memref<3x1xf32, #tpu.memory_space<vmem>>, %arg1: memref<2x1024xf32, #tpu.memory_space<vmem>>, %arg2: memref<1024x640xbf16, #tpu.memory_space<vmem>>, %arg3: memref<1x640xf32, #tpu.memory_space<vmem>>, %arg4: memref<15x32x16xf32, #tpu.memory_space<vmem>>, %arg5: memref<32x1xf32, #tpu.memory_space<vmem>>, %arg6: memref<15x32x16xf32, #tpu.memory_space<vmem>>, %arg7: memref<32x1xf32, #tpu.memory_space<vmem>>, %arg8: memref<7x16x16xf32, #tpu.memory_space<vmem>>, %arg9: memref<16x1xf32, #tpu.memory_space<vmem>>, %arg10: memref<2x2x500xf32, #tpu.memory_space<vmem>>, %arg11: memref<16x384xf32, #tpu.memory_space<vmem>>, %arg12: memref<16x384xf32, #tpu.memory_space<vmem>>, %arg13: memref<16x640xf32, #tpu.memory_space<vmem>>) attributes {dimension_semantics = [], scalar_prefetch = 0 : i64, scratch_operands = 3 : i64, tpu.core_type = #tpu.core_type<tc>} {
    %c0 = arith.constant 0 : index
    %c0_0 = arith.constant 0 : index
    %0 = vector.load %arg0[%c0, %c0_0] : memref<3x1xf32, #tpu.memory_space<vmem>>, vector<1x1xf32>
    %c1 = arith.constant 1 : index
    %c0_1 = arith.constant 0 : index
    %1 = vector.load %arg0[%c1, %c0_1] : memref<3x1xf32, #tpu.memory_space<vmem>>, vector<1x1xf32>
    %c2 = arith.constant 2 : index
    %c0_2 = arith.constant 0 : index
    %2 = vector.load %arg0[%c2, %c0_2] : memref<3x1xf32, #tpu.memory_space<vmem>>, vector<1x1xf32>
    %c0_3 = arith.constant 0 : index
    %c0_4 = arith.constant 0 : index
    %3 = vector.load %arg2[%c0_3, %c0_4] : memref<1024x640xbf16, #tpu.memory_space<vmem>>, vector<1024x640xbf16>
    %4 = arith.extf %3 : vector<1024x640xbf16> to vector<1024x640xf32>
    %c0_5 = arith.constant 0 : index
    %c0_6 = arith.constant 0 : index
    %5 = vector.load %arg1[%c0_5, %c0_6] : memref<2x1024xf32, #tpu.memory_space<vmem>>, vector<2x1024xf32>
    %cst = arith.constant dense<0.000000e+00> : vector<2x640xf32>
    %6 = tpu.matmul %5, %4, %cst {dimension_numbers = #tpu.dot_dimension_numbers<[1], [0], [0], [1], [0, 0, 1, 1], [], []>} : vector<2x1024xf32>, vector<1024x640xf32>, vector<2x640xf32> -> vector<2x640xf32>
    %c0_7 = arith.constant 0 : index
    %c0_8 = arith.constant 0 : index
    %7 = vector.load %arg3[%c0_7, %c0_8] : memref<1x640xf32, #tpu.memory_space<vmem>>, vector<1x640xf32>
    %8 = vector.broadcast %7 : vector<1x640xf32> to vector<2x640xf32>
    %9 = arith.addf %6, %8 : vector<2x640xf32>
    %cst_9 = arith.constant 0.000000e+00 : f32
    %10 = vector.broadcast %cst_9 : f32 to vector<2x640xf32>
    %11 = arith.cmpf oge, %9, %10 : vector<2x640xf32>
    %12 = vector.broadcast %0 : vector<1x1xf32> to vector<2x640xf32>
    %13 = arith.mulf %12, %9 : vector<2x640xf32>
    %14 = arith.select %11, %9, %13 : vector<2x640xi1>, vector<2x640xf32>
    %cst_10 = arith.constant 0.000000e+00 : f32
    %15 = vector.broadcast %cst_10 : f32 to vector<16x384xf32>
    %c0_11 = arith.constant 0 : index
    %c0_12 = arith.constant 0 : index
    %16 = vector.load %arg11[%c0_11, %c0_12] : memref<16x384xf32, #tpu.memory_space<vmem>>, vector<16x384xf32>
    tpu.vector_store %arg11[%c0_11, %c0_12], %15 {strides = array<i32>} : memref<16x384xf32, #tpu.memory_space<vmem>>, vector<16x384xf32>,
    %17 = vector.extract_strided_slice %14 {offsets = [0, 0], sizes = [1, 40], strides = [1, 1]} : vector<2x640xf32> to vector<1x40xf32>
    %c0_13 = arith.constant 0 : index
    %c14 = arith.constant 14 : index
    %18 = vector.load %arg11[%c0_13, %c14] : memref<16x384xf32, #tpu.memory_space<vmem>>, vector<1x40xf32>
    tpu.vector_store %arg11[%c0_13, %c14], %17 {strides = array<i32>} : memref<16x384xf32, #tpu.memory_space<vmem>>, vector<1x40xf32>,
    %19 = vector.extract_strided_slice %14 {offsets = [0, 40], sizes = [1, 40], strides = [1, 1]} : vector<2x640xf32> to vector<1x40xf32>
    %c1_14 = arith.constant 1 : index
    %c14_15 = arith.constant 14 : index
    %20 = vector.load %arg11[%c1_14, %c14_15] : memref<16x384xf32, #tpu.memory_space<vmem>>, vector<1x40xf32>
    tpu.vector_store %arg11[%c1_14, %c14_15], %19 {strides = array<i32>} : memref<16x384xf32, #tpu.memory_space<vmem>>, vector<1x40xf32>,
    %21 = vector.extract_strided_slice %14 {offsets = [0, 80], sizes = [1, 40], strides = [1, 1]} : vector<2x640xf32> to vector<1x40xf32>
    %c2_16 = arith.constant 2 : index
    %c14_17 = arith.constant 14 : index
    %22 = vector.load %arg11[%c2_16, %c14_17] : memref<16x384xf32, #tpu.memory_space<vmem>>, vector<1x40xf32>
    tpu.vector_store %arg11[%c2_16, %c14_17], %21 {strides = array<i32>} : memref<16x384xf32, #tpu.memory_space<vmem>>, vector<1x40xf32>,
    %23 = vector.extract_strided_slice %14 {offsets = [0, 120], sizes = [1, 40], strides = [1, 1]} : vector<2x640xf32> to vector<1x40xf32>
    %c3 = arith.constant 3 : index
    %c14_18 = arith.constant 14 : index
    %24 = vector.load %arg11[%c3, %c14_18] : memref<16x384xf32, #tpu.memory_space<vmem>>, vector<1x40xf32>
    tpu.vector_store %arg11[%c3, %c14_18], %23 {strides = array<i32>} : memref<16x384xf32, #tpu.memory_space<vmem>>, vector<1x40xf32>,
    %25 = vector.extract_strided_slice %14 {offsets = [0, 160], sizes = [1, 40], strides = [1, 1]} : vector<2x640xf32> to vector<1x40xf32>
    %c4 = arith.constant 4 : index
    %c14_19 = arith.constant 14 : index
    %26 = vector.load %arg11[%c4, %c14_19] : memref<16x384xf32, #tpu.memory_space<vmem>>, vector<1x40xf32>
    tpu.vector_store %arg11[%c4, %c14_19], %25 {strides = array<i32>} : memref<16x384xf32, #tpu.memory_space<vmem>>, vector<1x40xf32>,
    %27 = vector.extract_strided_slice %14 {offsets = [0, 200], sizes = [1, 40], strides = [1, 1]} : vector<2x640xf32> to vector<1x40xf32>
    %c5 = arith.constant 5 : index
    %c14_20 = arith.constant 14 : index
    %28 = vector.load %arg11[%c5, %c14_20] : memref<16x384xf32, #tpu.memory_space<vmem>>, vector<1x40xf32>
    tpu.vector_store %arg11[%c5, %c14_20], %27 {strides = array<i32>} : memref<16x384xf32, #tpu.memory_space<vmem>>, vector<1x40xf32>,
    %29 = vector.extract_strided_slice %14 {offsets = [0, 240], sizes = [1, 40], strides = [1, 1]} : vector<2x640xf32> to vector<1x40xf32>
    %c6 = arith.constant 6 : index
    %c14_21 = arith.constant 14 : index
    %30 = vector.load %arg11[%c6, %c14_21] : memref<16x384xf32, #tpu.memory_space<vmem>>, vector<1x40xf32>
    tpu.vector_store %arg11[%c6, %c14_21], %29 {strides = array<i32>} : memref<16x384xf32, #tpu.memory_space<vmem>>, vector<1x40xf32>,
    %31 = vector.extract_strided_slice %14 {offsets = [0, 280], sizes = [1, 40], strides = [1, 1]} : vector<2x640xf32> to vector<1x40xf32>
    %c7 = arith.constant 7 : index
    %c14_22 = arith.constant 14 : index
    %32 = vector.load %arg11[%c7, %c14_22] : memref<16x384xf32, #tpu.memory_space<vmem>>, vector<1x40xf32>
    tpu.vector_store %arg11[%c7, %c14_22], %31 {strides = array<i32>} : memref<16x384xf32, #tpu.memory_space<vmem>>, vector<1x40xf32>,
    %33 = vector.extract_strided_slice %14 {offsets = [0, 320], sizes = [1, 40], strides = [1, 1]} : vector<2x640xf32> to vector<1x40xf32>
    %c8 = arith.constant 8 : index
    %c14_23 = arith.constant 14 : index
    %34 = vector.load %arg11[%c8, %c14_23] : memref<16x384xf32, #tpu.memory_space<vmem>>, vector<1x40xf32>
    tpu.vector_store %arg11[%c8, %c14_23], %33 {strides = array<i32>} : memref<16x384xf32, #tpu.memory_space<vmem>>, vector<1x40xf32>,
    %35 = vector.extract_strided_slice %14 {offsets = [0, 360], sizes = [1, 40], strides = [1, 1]} : vector<2x640xf32> to vector<1x40xf32>
    %c9 = arith.constant 9 : index
    %c14_24 = arith.constant 14 : index
    %36 = vector.load %arg11[%c9, %c14_24] : memref<16x384xf32, #tpu.memory_space<vmem>>, vector<1x40xf32>
    tpu.vector_store %arg11[%c9, %c14_24], %35 {strides = array<i32>} : memref<16x384xf32, #tpu.memory_space<vmem>>, vector<1x40xf32>,
    %37 = vector.extract_strided_slice %14 {offsets = [0, 400], sizes = [1, 40], strides = [1, 1]} : vector<2x640xf32> to vector<1x40xf32>
    %c10 = arith.constant 10 : index
    %c14_25 = arith.constant 14 : index
    %38 = vector.load %arg11[%c10, %c14_25] : memref<16x384xf32, #tpu.memory_space<vmem>>, vector<1x40xf32>
    tpu.vector_store %arg11[%c10, %c14_25], %37 {strides = array<i32>} : memref<16x384xf32, #tpu.memory_space<vmem>>, vector<1x40xf32>,
    %39 = vector.extract_strided_slice %14 {offsets = [0, 440], sizes = [1, 40], strides = [1, 1]} : vector<2x640xf32> to vector<1x40xf32>
    %c11 = arith.constant 11 : index
    %c14_26 = arith.constant 14 : index
    %40 = vector.load %arg11[%c11, %c14_26] : memref<16x384xf32, #tpu.memory_space<vmem>>, vector<1x40xf32>
    tpu.vector_store %arg11[%c11, %c14_26], %39 {strides = array<i32>} : memref<16x384xf32, #tpu.memory_space<vmem>>, vector<1x40xf32>,
    %41 = vector.extract_strided_slice %14 {offsets = [0, 480], sizes = [1, 40], strides = [1, 1]} : vector<2x640xf32> to vector<1x40xf32>
    %c12 = arith.constant 12 : index
    %c14_27 = arith.constant 14 : index
    %42 = vector.load %arg11[%c12, %c14_27] : memref<16x384xf32, #tpu.memory_space<vmem>>, vector<1x40xf32>
    tpu.vector_store %arg11[%c12, %c14_27], %41 {strides = array<i32>} : memref<16x384xf32, #tpu.memory_space<vmem>>, vector<1x40xf32>,
    %43 = vector.extract_strided_slice %14 {offsets = [0, 520], sizes = [1, 40], strides = [1, 1]} : vector<2x640xf32> to vector<1x40xf32>
    %c13 = arith.constant 13 : index
    %c14_28 = arith.constant 14 : index
    %44 = vector.load %arg11[%c13, %c14_28] : memref<16x384xf32, #tpu.memory_space<vmem>>, vector<1x40xf32>
    tpu.vector_store %arg11[%c13, %c14_28], %43 {strides = array<i32>} : memref<16x384xf32, #tpu.memory_space<vmem>>, vector<1x40xf32>,
    %45 = vector.extract_strided_slice %14 {offsets = [0, 560], sizes = [1, 40], strides = [1, 1]} : vector<2x640xf32> to vector<1x40xf32>
    %c14_29 = arith.constant 14 : index
    %c14_30 = arith.constant 14 : index
    %46 = vector.load %arg11[%c14_29, %c14_30] : memref<16x384xf32, #tpu.memory_space<vmem>>, vector<1x40xf32>
    tpu.vector_store %arg11[%c14_29, %c14_30], %45 {strides = array<i32>} : memref<16x384xf32, #tpu.memory_space<vmem>>, vector<1x40xf32>,
    %47 = vector.extract_strided_slice %14 {offsets = [0, 600], sizes = [1, 40], strides = [1, 1]} : vector<2x640xf32> to vector<1x40xf32>
    %c15 = arith.constant 15 : index
    %c14_31 = arith.constant 14 : index
    %48 = vector.load %arg11[%c15, %c14_31] : memref<16x384xf32, #tpu.memory_space<vmem>>, vector<1x40xf32>
    tpu.vector_store %arg11[%c15, %c14_31], %47 {strides = array<i32>} : memref<16x384xf32, #tpu.memory_space<vmem>>, vector<1x40xf32>,
    %49 = vector.extract_strided_slice %14 {offsets = [1, 0], sizes = [1, 40], strides = [1, 1]} : vector<2x640xf32> to vector<1x40xf32>
    %c0_32 = arith.constant 0 : index
    %c142 = arith.constant 142 : index
    %50 = vector.load %arg11[%c0_32, %c142] : memref<16x384xf32, #tpu.memory_space<vmem>>, vector<1x40xf32>
    tpu.vector_store %arg11[%c0_32, %c142], %49 {strides = array<i32>} : memref<16x384xf32, #tpu.memory_space<vmem>>, vector<1x40xf32>,
    %51 = vector.extract_strided_slice %14 {offsets = [1, 40], sizes = [1, 40], strides = [1, 1]} : vector<2x640xf32> to vector<1x40xf32>
    %c1_33 = arith.constant 1 : index
    %c142_34 = arith.constant 142 : index
    %52 = vector.load %arg11[%c1_33, %c142_34] : memref<16x384xf32, #tpu.memory_space<vmem>>, vector<1x40xf32>
    tpu.vector_store %arg11[%c1_33, %c142_34], %51 {strides = array<i32>} : memref<16x384xf32, #tpu.memory_space<vmem>>, vector<1x40xf32>,
    %53 = vector.extract_strided_slice %14 {offsets = [1, 80], sizes = [1, 40], strides = [1, 1]} : vector<2x640xf32> to vector<1x40xf32>
    %c2_35 = arith.constant 2 : index
    %c142_36 = arith.constant 142 : index
    %54 = vector.load %arg11[%c2_35, %c142_36] : memref<16x384xf32, #tpu.memory_space<vmem>>, vector<1x40xf32>
    tpu.vector_store %arg11[%c2_35, %c142_36], %53 {strides = array<i32>} : memref<16x384xf32, #tpu.memory_space<vmem>>, vector<1x40xf32>,
    %55 = vector.extract_strided_slice %14 {offsets = [1, 120], sizes = [1, 40], strides = [1, 1]} : vector<2x640xf32> to vector<1x40xf32>
    %c3_37 = arith.constant 3 : index
    %c142_38 = arith.constant 142 : index
    %56 = vector.load %arg11[%c3_37, %c142_38] : memref<16x384xf32, #tpu.memory_space<vmem>>, vector<1x40xf32>
    tpu.vector_store %arg11[%c3_37, %c142_38], %55 {strides = array<i32>} : memref<16x384xf32, #tpu.memory_space<vmem>>, vector<1x40xf32>,
    %57 = vector.extract_strided_slice %14 {offsets = [1, 160], sizes = [1, 40], strides = [1, 1]} : vector<2x640xf32> to vector<1x40xf32>
    %c4_39 = arith.constant 4 : index
    %c142_40 = arith.constant 142 : index
    %58 = vector.load %arg11[%c4_39, %c142_40] : memref<16x384xf32, #tpu.memory_space<vmem>>, vector<1x40xf32>
    tpu.vector_store %arg11[%c4_39, %c142_40], %57 {strides = array<i32>} : memref<16x384xf32, #tpu.memory_space<vmem>>, vector<1x40xf32>,
    %59 = vector.extract_strided_slice %14 {offsets = [1, 200], sizes = [1, 40], strides = [1, 1]} : vector<2x640xf32> to vector<1x40xf32>
    %c5_41 = arith.constant 5 : index
    %c142_42 = arith.constant 142 : index
    %60 = vector.load %arg11[%c5_41, %c142_42] : memref<16x384xf32, #tpu.memory_space<vmem>>, vector<1x40xf32>
    tpu.vector_store %arg11[%c5_41, %c142_42], %59 {strides = array<i32>} : memref<16x384xf32, #tpu.memory_space<vmem>>, vector<1x40xf32>,
    %61 = vector.extract_strided_slice %14 {offsets = [1, 240], sizes = [1, 40], strides = [1, 1]} : vector<2x640xf32> to vector<1x40xf32>
    %c6_43 = arith.constant 6 : index
    %c142_44 = arith.constant 142 : index
    %62 = vector.load %arg11[%c6_43, %c142_44] : memref<16x384xf32, #tpu.memory_space<vmem>>, vector<1x40xf32>
    tpu.vector_store %arg11[%c6_43, %c142_44], %61 {strides = array<i32>} : memref<16x384xf32, #tpu.memory_space<vmem>>, vector<1x40xf32>,
    %63 = vector.extract_strided_slice %14 {offsets = [1, 280], sizes = [1, 40], strides = [1, 1]} : vector<2x640xf32> to vector<1x40xf32>
    %c7_45 = arith.constant 7 : index
    %c142_46 = arith.constant 142 : index
    %64 = vector.load %arg11[%c7_45, %c142_46] : memref<16x384xf32, #tpu.memory_space<vmem>>, vector<1x40xf32>
    tpu.vector_store %arg11[%c7_45, %c142_46], %63 {strides = array<i32>} : memref<16x384xf32, #tpu.memory_space<vmem>>, vector<1x40xf32>,
    %65 = vector.extract_strided_slice %14 {offsets = [1, 320], sizes = [1, 40], strides = [1, 1]} : vector<2x640xf32> to vector<1x40xf32>
    %c8_47 = arith.constant 8 : index
    %c142_48 = arith.constant 142 : index
    %66 = vector.load %arg11[%c8_47, %c142_48] : memref<16x384xf32, #tpu.memory_space<vmem>>, vector<1x40xf32>
    tpu.vector_store %arg11[%c8_47, %c142_48], %65 {strides = array<i32>} : memref<16x384xf32, #tpu.memory_space<vmem>>, vector<1x40xf32>,
    %67 = vector.extract_strided_slice %14 {offsets = [1, 360], sizes = [1, 40], strides = [1, 1]} : vector<2x640xf32> to vector<1x40xf32>
    %c9_49 = arith.constant 9 : index
    %c142_50 = arith.constant 142 : index
    %68 = vector.load %arg11[%c9_49, %c142_50] : memref<16x384xf32, #tpu.memory_space<vmem>>, vector<1x40xf32>
    tpu.vector_store %arg11[%c9_49, %c142_50], %67 {strides = array<i32>} : memref<16x384xf32, #tpu.memory_space<vmem>>, vector<1x40xf32>,
    %69 = vector.extract_strided_slice %14 {offsets = [1, 400], sizes = [1, 40], strides = [1, 1]} : vector<2x640xf32> to vector<1x40xf32>
    %c10_51 = arith.constant 10 : index
    %c142_52 = arith.constant 142 : index
    %70 = vector.load %arg11[%c10_51, %c142_52] : memref<16x384xf32, #tpu.memory_space<vmem>>, vector<1x40xf32>
    tpu.vector_store %arg11[%c10_51, %c142_52], %69 {strides = array<i32>} : memref<16x384xf32, #tpu.memory_space<vmem>>, vector<1x40xf32>,
    %71 = vector.extract_strided_slice %14 {offsets = [1, 440], sizes = [1, 40], strides = [1, 1]} : vector<2x640xf32> to vector<1x40xf32>
    %c11_53 = arith.constant 11 : index
    %c142_54 = arith.constant 142 : index
    %72 = vector.load %arg11[%c11_53, %c142_54] : memref<16x384xf32, #tpu.memory_space<vmem>>, vector<1x40xf32>
    tpu.vector_store %arg11[%c11_53, %c142_54], %71 {strides = array<i32>} : memref<16x384xf32, #tpu.memory_space<vmem>>, vector<1x40xf32>,
    %73 = vector.extract_strided_slice %14 {offsets = [1, 480], sizes = [1, 40], strides = [1, 1]} : vector<2x640xf32> to vector<1x40xf32>
    %c12_55 = arith.constant 12 : index
    %c142_56 = arith.constant 142 : index
    %74 = vector.load %arg11[%c12_55, %c142_56] : memref<16x384xf32, #tpu.memory_space<vmem>>, vector<1x40xf32>
    tpu.vector_store %arg11[%c12_55, %c142_56], %73 {strides = array<i32>} : memref<16x384xf32, #tpu.memory_space<vmem>>, vector<1x40xf32>,
    %75 = vector.extract_strided_slice %14 {offsets = [1, 520], sizes = [1, 40], strides = [1, 1]} : vector<2x640xf32> to vector<1x40xf32>
    %c13_57 = arith.constant 13 : index
    %c142_58 = arith.constant 142 : index
    %76 = vector.load %arg11[%c13_57, %c142_58] : memref<16x384xf32, #tpu.memory_space<vmem>>, vector<1x40xf32>
    tpu.vector_store %arg11[%c13_57, %c142_58], %75 {strides = array<i32>} : memref<16x384xf32, #tpu.memory_space<vmem>>, vector<1x40xf32>,
    %77 = vector.extract_strided_slice %14 {offsets = [1, 560], sizes = [1, 40], strides = [1, 1]} : vector<2x640xf32> to vector<1x40xf32>
    %c14_59 = arith.constant 14 : index
    %c142_60 = arith.constant 142 : index
    %78 = vector.load %arg11[%c14_59, %c142_60] : memref<16x384xf32, #tpu.memory_space<vmem>>, vector<1x40xf32>
    tpu.vector_store %arg11[%c14_59, %c142_60], %77 {strides = array<i32>} : memref<16x384xf32, #tpu.memory_space<vmem>>, vector<1x40xf32>,
    %79 = vector.extract_strided_slice %14 {offsets = [1, 600], sizes = [1, 40], strides = [1, 1]} : vector<2x640xf32> to vector<1x40xf32>
    %c15_61 = arith.constant 15 : index
    %c142_62 = arith.constant 142 : index
    %80 = vector.load %arg11[%c15_61, %c142_62] : memref<16x384xf32, #tpu.memory_space<vmem>>, vector<1x40xf32>
    tpu.vector_store %arg11[%c15_61, %c142_62], %79 {strides = array<i32>} : memref<16x384xf32, #tpu.memory_space<vmem>>, vector<1x40xf32>,
    %cst_63 = arith.constant 0.000000e+00 : f32
    %81 = vector.broadcast %cst_63 : f32 to vector<32x256xf32>
    %c0_64 = arith.constant 0 : index
    %c0_65 = arith.constant 0 : index
    %c0_66 = arith.constant 0 : index
    %82 = vector.load %arg4[%c0_64, %c0_65, %c0_66] : memref<15x32x16xf32, #tpu.memory_space<vmem>>, vector<1x32x16xf32>
    %83 = vector.shape_cast %82 : vector<1x32x16xf32> to vector<32x16xf32>
    %c0_67 = arith.constant 0 : index
    %c14_68 = arith.constant 14 : index
    %84 = vector.load %arg11[%c0_67, %c14_68] : memref<16x384xf32, #tpu.memory_space<vmem>>, vector<16x256xf32>
    %cst_69 = arith.constant dense<0.000000e+00> : vector<32x256xf32>
    %85 = tpu.matmul %83, %84, %cst_69 {dimension_numbers = #tpu.dot_dimension_numbers<[1], [0], [0], [1], [0, 0, 1, 1], [], []>} : vector<32x16xf32>, vector<16x256xf32>, vector<32x256xf32> -> vector<32x256xf32>
    %86 = arith.addf %81, %85 : vector<32x256xf32>
    %c1_70 = arith.constant 1 : index
    %c0_71 = arith.constant 0 : index
    %c0_72 = arith.constant 0 : index
    %87 = vector.load %arg4[%c1_70, %c0_71, %c0_72] : memref<15x32x16xf32, #tpu.memory_space<vmem>>, vector<1x32x16xf32>
    %88 = vector.shape_cast %87 : vector<1x32x16xf32> to vector<32x16xf32>
    %c0_73 = arith.constant 0 : index
    %c13_74 = arith.constant 13 : index
    %89 = vector.load %arg11[%c0_73, %c13_74] : memref<16x384xf32, #tpu.memory_space<vmem>>, vector<16x256xf32>
    %cst_75 = arith.constant dense<0.000000e+00> : vector<32x256xf32>
    %90 = tpu.matmul %88, %89, %cst_75 {dimension_numbers = #tpu.dot_dimension_numbers<[1], [0], [0], [1], [0, 0, 1, 1], [], []>} : vector<32x16xf32>, vector<16x256xf32>, vector<32x256xf32> -> vector<32x256xf32>
    %91 = arith.addf %86, %90 : vector<32x256xf32>
    %c2_76 = arith.constant 2 : index
    %c0_77 = arith.constant 0 : index
    %c0_78 = arith.constant 0 : index
    %92 = vector.load %arg4[%c2_76, %c0_77, %c0_78] : memref<15x32x16xf32, #tpu.memory_space<vmem>>, vector<1x32x16xf32>
    %93 = vector.shape_cast %92 : vector<1x32x16xf32> to vector<32x16xf32>
    %c0_79 = arith.constant 0 : index
    %c12_80 = arith.constant 12 : index
    %94 = vector.load %arg11[%c0_79, %c12_80] : memref<16x384xf32, #tpu.memory_space<vmem>>, vector<16x256xf32>
    %cst_81 = arith.constant dense<0.000000e+00> : vector<32x256xf32>
    %95 = tpu.matmul %93, %94, %cst_81 {dimension_numbers = #tpu.dot_dimension_numbers<[1], [0], [0], [1], [0, 0, 1, 1], [], []>} : vector<32x16xf32>, vector<16x256xf32>, vector<32x256xf32> -> vector<32x256xf32>
    %96 = arith.addf %91, %95 : vector<32x256xf32>
    %c3_82 = arith.constant 3 : index
    %c0_83 = arith.constant 0 : index
    %c0_84 = arith.constant 0 : index
    %97 = vector.load %arg4[%c3_82, %c0_83, %c0_84] : memref<15x32x16xf32, #tpu.memory_space<vmem>>, vector<1x32x16xf32>
    %98 = vector.shape_cast %97 : vector<1x32x16xf32> to vector<32x16xf32>
    %c0_85 = arith.constant 0 : index
    %c11_86 = arith.constant 11 : index
    %99 = vector.load %arg11[%c0_85, %c11_86] : memref<16x384xf32, #tpu.memory_space<vmem>>, vector<16x256xf32>
    %cst_87 = arith.constant dense<0.000000e+00> : vector<32x256xf32>
    %100 = tpu.matmul %98, %99, %cst_87 {dimension_numbers = #tpu.dot_dimension_numbers<[1], [0], [0], [1], [0, 0, 1, 1], [], []>} : vector<32x16xf32>, vector<16x256xf32>, vector<32x256xf32> -> vector<32x256xf32>
    %101 = arith.addf %96, %100 : vector<32x256xf32>
    %c4_88 = arith.constant 4 : index
    %c0_89 = arith.constant 0 : index
    %c0_90 = arith.constant 0 : index
    %102 = vector.load %arg4[%c4_88, %c0_89, %c0_90] : memref<15x32x16xf32, #tpu.memory_space<vmem>>, vector<1x32x16xf32>
    %103 = vector.shape_cast %102 : vector<1x32x16xf32> to vector<32x16xf32>
    %c0_91 = arith.constant 0 : index
    %c10_92 = arith.constant 10 : index
    %104 = vector.load %arg11[%c0_91, %c10_92] : memref<16x384xf32, #tpu.memory_space<vmem>>, vector<16x256xf32>
    %cst_93 = arith.constant dense<0.000000e+00> : vector<32x256xf32>
    %105 = tpu.matmul %103, %104, %cst_93 {dimension_numbers = #tpu.dot_dimension_numbers<[1], [0], [0], [1], [0, 0, 1, 1], [], []>} : vector<32x16xf32>, vector<16x256xf32>, vector<32x256xf32> -> vector<32x256xf32>
    %106 = arith.addf %101, %105 : vector<32x256xf32>
    %c5_94 = arith.constant 5 : index
    %c0_95 = arith.constant 0 : index
    %c0_96 = arith.constant 0 : index
    %107 = vector.load %arg4[%c5_94, %c0_95, %c0_96] : memref<15x32x16xf32, #tpu.memory_space<vmem>>, vector<1x32x16xf32>
    %108 = vector.shape_cast %107 : vector<1x32x16xf32> to vector<32x16xf32>
    %c0_97 = arith.constant 0 : index
    %c9_98 = arith.constant 9 : index
    %109 = vector.load %arg11[%c0_97, %c9_98] : memref<16x384xf32, #tpu.memory_space<vmem>>, vector<16x256xf32>
    %cst_99 = arith.constant dense<0.000000e+00> : vector<32x256xf32>
    %110 = tpu.matmul %108, %109, %cst_99 {dimension_numbers = #tpu.dot_dimension_numbers<[1], [0], [0], [1], [0, 0, 1, 1], [], []>} : vector<32x16xf32>, vector<16x256xf32>, vector<32x256xf32> -> vector<32x256xf32>
    %111 = arith.addf %106, %110 : vector<32x256xf32>
    %c6_100 = arith.constant 6 : index
    %c0_101 = arith.constant 0 : index
    %c0_102 = arith.constant 0 : index
    %112 = vector.load %arg4[%c6_100, %c0_101, %c0_102] : memref<15x32x16xf32, #tpu.memory_space<vmem>>, vector<1x32x16xf32>
    %113 = vector.shape_cast %112 : vector<1x32x16xf32> to vector<32x16xf32>
    %c0_103 = arith.constant 0 : index
    %c8_104 = arith.constant 8 : index
    %114 = vector.load %arg11[%c0_103, %c8_104] : memref<16x384xf32, #tpu.memory_space<vmem>>, vector<16x256xf32>
    %cst_105 = arith.constant dense<0.000000e+00> : vector<32x256xf32>
    %115 = tpu.matmul %113, %114, %cst_105 {dimension_numbers = #tpu.dot_dimension_numbers<[1], [0], [0], [1], [0, 0, 1, 1], [], []>} : vector<32x16xf32>, vector<16x256xf32>, vector<32x256xf32> -> vector<32x256xf32>
    %116 = arith.addf %111, %115 : vector<32x256xf32>
    %c7_106 = arith.constant 7 : index
    %c0_107 = arith.constant 0 : index
    %c0_108 = arith.constant 0 : index
    %117 = vector.load %arg4[%c7_106, %c0_107, %c0_108] : memref<15x32x16xf32, #tpu.memory_space<vmem>>, vector<1x32x16xf32>
    %118 = vector.shape_cast %117 : vector<1x32x16xf32> to vector<32x16xf32>
    %c0_109 = arith.constant 0 : index
    %c7_110 = arith.constant 7 : index
    %119 = vector.load %arg11[%c0_109, %c7_110] : memref<16x384xf32, #tpu.memory_space<vmem>>, vector<16x256xf32>
    %cst_111 = arith.constant dense<0.000000e+00> : vector<32x256xf32>
    %120 = tpu.matmul %118, %119, %cst_111 {dimension_numbers = #tpu.dot_dimension_numbers<[1], [0], [0], [1], [0, 0, 1, 1], [], []>} : vector<32x16xf32>, vector<16x256xf32>, vector<32x256xf32> -> vector<32x256xf32>
    %121 = arith.addf %116, %120 : vector<32x256xf32>
    %c8_112 = arith.constant 8 : index
    %c0_113 = arith.constant 0 : index
    %c0_114 = arith.constant 0 : index
    %122 = vector.load %arg4[%c8_112, %c0_113, %c0_114] : memref<15x32x16xf32, #tpu.memory_space<vmem>>, vector<1x32x16xf32>
    %123 = vector.shape_cast %122 : vector<1x32x16xf32> to vector<32x16xf32>
    %c0_115 = arith.constant 0 : index
    %c6_116 = arith.constant 6 : index
    %124 = vector.load %arg11[%c0_115, %c6_116] : memref<16x384xf32, #tpu.memory_space<vmem>>, vector<16x256xf32>
    %cst_117 = arith.constant dense<0.000000e+00> : vector<32x256xf32>
    %125 = tpu.matmul %123, %124, %cst_117 {dimension_numbers = #tpu.dot_dimension_numbers<[1], [0], [0], [1], [0, 0, 1, 1], [], []>} : vector<32x16xf32>, vector<16x256xf32>, vector<32x256xf32> -> vector<32x256xf32>
    %126 = arith.addf %121, %125 : vector<32x256xf32>
    %c9_118 = arith.constant 9 : index
    %c0_119 = arith.constant 0 : index
    %c0_120 = arith.constant 0 : index
    %127 = vector.load %arg4[%c9_118, %c0_119, %c0_120] : memref<15x32x16xf32, #tpu.memory_space<vmem>>, vector<1x32x16xf32>
    %128 = vector.shape_cast %127 : vector<1x32x16xf32> to vector<32x16xf32>
    %c0_121 = arith.constant 0 : index
    %c5_122 = arith.constant 5 : index
    %129 = vector.load %arg11[%c0_121, %c5_122] : memref<16x384xf32, #tpu.memory_space<vmem>>, vector<16x256xf32>
    %cst_123 = arith.constant dense<0.000000e+00> : vector<32x256xf32>
    %130 = tpu.matmul %128, %129, %cst_123 {dimension_numbers = #tpu.dot_dimension_numbers<[1], [0], [0], [1], [0, 0, 1, 1], [], []>} : vector<32x16xf32>, vector<16x256xf32>, vector<32x256xf32> -> vector<32x256xf32>
    %131 = arith.addf %126, %130 : vector<32x256xf32>
    %c10_124 = arith.constant 10 : index
    %c0_125 = arith.constant 0 : index
    %c0_126 = arith.constant 0 : index
    %132 = vector.load %arg4[%c10_124, %c0_125, %c0_126] : memref<15x32x16xf32, #tpu.memory_space<vmem>>, vector<1x32x16xf32>
    %133 = vector.shape_cast %132 : vector<1x32x16xf32> to vector<32x16xf32>
    %c0_127 = arith.constant 0 : index
    %c4_128 = arith.constant 4 : index
    %134 = vector.load %arg11[%c0_127, %c4_128] : memref<16x384xf32, #tpu.memory_space<vmem>>, vector<16x256xf32>
    %cst_129 = arith.constant dense<0.000000e+00> : vector<32x256xf32>
    %135 = tpu.matmul %133, %134, %cst_129 {dimension_numbers = #tpu.dot_dimension_numbers<[1], [0], [0], [1], [0, 0, 1, 1], [], []>} : vector<32x16xf32>, vector<16x256xf32>, vector<32x256xf32> -> vector<32x256xf32>
    %136 = arith.addf %131, %135 : vector<32x256xf32>
    %c11_130 = arith.constant 11 : index
    %c0_131 = arith.constant 0 : index
    %c0_132 = arith.constant 0 : index
    %137 = vector.load %arg4[%c11_130, %c0_131, %c0_132] : memref<15x32x16xf32, #tpu.memory_space<vmem>>, vector<1x32x16xf32>
    %138 = vector.shape_cast %137 : vector<1x32x16xf32> to vector<32x16xf32>
    %c0_133 = arith.constant 0 : index
    %c3_134 = arith.constant 3 : index
    %139 = vector.load %arg11[%c0_133, %c3_134] : memref<16x384xf32, #tpu.memory_space<vmem>>, vector<16x256xf32>
    %cst_135 = arith.constant dense<0.000000e+00> : vector<32x256xf32>
    %140 = tpu.matmul %138, %139, %cst_135 {dimension_numbers = #tpu.dot_dimension_numbers<[1], [0], [0], [1], [0, 0, 1, 1], [], []>} : vector<32x16xf32>, vector<16x256xf32>, vector<32x256xf32> -> vector<32x256xf32>
    %141 = arith.addf %136, %140 : vector<32x256xf32>
    %c12_136 = arith.constant 12 : index
    %c0_137 = arith.constant 0 : index
    %c0_138 = arith.constant 0 : index
    %142 = vector.load %arg4[%c12_136, %c0_137, %c0_138] : memref<15x32x16xf32, #tpu.memory_space<vmem>>, vector<1x32x16xf32>
    %143 = vector.shape_cast %142 : vector<1x32x16xf32> to vector<32x16xf32>
    %c0_139 = arith.constant 0 : index
    %c2_140 = arith.constant 2 : index
    %144 = vector.load %arg11[%c0_139, %c2_140] : memref<16x384xf32, #tpu.memory_space<vmem>>, vector<16x256xf32>
    %cst_141 = arith.constant dense<0.000000e+00> : vector<32x256xf32>
    %145 = tpu.matmul %143, %144, %cst_141 {dimension_numbers = #tpu.dot_dimension_numbers<[1], [0], [0], [1], [0, 0, 1, 1], [], []>} : vector<32x16xf32>, vector<16x256xf32>, vector<32x256xf32> -> vector<32x256xf32>
    %146 = arith.addf %141, %145 : vector<32x256xf32>
    %c13_142 = arith.constant 13 : index
    %c0_143 = arith.constant 0 : index
    %c0_144 = arith.constant 0 : index
    %147 = vector.load %arg4[%c13_142, %c0_143, %c0_144] : memref<15x32x16xf32, #tpu.memory_space<vmem>>, vector<1x32x16xf32>
    %148 = vector.shape_cast %147 : vector<1x32x16xf32> to vector<32x16xf32>
    %c0_145 = arith.constant 0 : index
    %c1_146 = arith.constant 1 : index
    %149 = vector.load %arg11[%c0_145, %c1_146] : memref<16x384xf32, #tpu.memory_space<vmem>>, vector<16x256xf32>
    %cst_147 = arith.constant dense<0.000000e+00> : vector<32x256xf32>
    %150 = tpu.matmul %148, %149, %cst_147 {dimension_numbers = #tpu.dot_dimension_numbers<[1], [0], [0], [1], [0, 0, 1, 1], [], []>} : vector<32x16xf32>, vector<16x256xf32>, vector<32x256xf32> -> vector<32x256xf32>
    %151 = arith.addf %146, %150 : vector<32x256xf32>
    %c14_148 = arith.constant 14 : index
    %c0_149 = arith.constant 0 : index
    %c0_150 = arith.constant 0 : index
    %152 = vector.load %arg4[%c14_148, %c0_149, %c0_150] : memref<15x32x16xf32, #tpu.memory_space<vmem>>, vector<1x32x16xf32>
    %153 = vector.shape_cast %152 : vector<1x32x16xf32> to vector<32x16xf32>
    %c0_151 = arith.constant 0 : index
    %c0_152 = arith.constant 0 : index
    %154 = vector.load %arg11[%c0_151, %c0_152] : memref<16x384xf32, #tpu.memory_space<vmem>>, vector<16x256xf32>
    %cst_153 = arith.constant dense<0.000000e+00> : vector<32x256xf32>
    %155 = tpu.matmul %153, %154, %cst_153 {dimension_numbers = #tpu.dot_dimension_numbers<[1], [0], [0], [1], [0, 0, 1, 1], [], []>} : vector<32x16xf32>, vector<16x256xf32>, vector<32x256xf32> -> vector<32x256xf32>
    %156 = arith.addf %151, %155 : vector<32x256xf32>
    %c0_154 = arith.constant 0 : index
    %c0_155 = arith.constant 0 : index
    %157 = vector.load %arg5[%c0_154, %c0_155] : memref<32x1xf32, #tpu.memory_space<vmem>>, vector<32x1xf32>
    %158 = vector.broadcast %157 : vector<32x1xf32> to vector<32x256xf32>
    %159 = arith.addf %156, %158 : vector<32x256xf32>
    %cst_156 = arith.constant 0.000000e+00 : f32
    %160 = vector.broadcast %cst_156 : f32 to vector<32x256xf32>
    %161 = arith.cmpf oge, %159, %160 : vector<32x256xf32>
    %162 = vector.broadcast %1 : vector<1x1xf32> to vector<32x256xf32>
    %163 = arith.mulf %162, %159 : vector<32x256xf32>
    %164 = arith.select %161, %159, %163 : vector<32x256xi1>, vector<32x256xf32>
    %165 = tpu.iota {dimensions = array<i32: 0>} : vector<54x108xi32>
    %166 = tpu.iota {dimensions = array<i32: 1>} : vector<54x108xi32>
    %c2_i32 = arith.constant 2 : i32
    %167 = vector.broadcast %c2_i32 : i32 to vector<54x108xi32>
    %168 = arith.muli %167, %165 : vector<54x108xi32>
    %169 = arith.subi %166, %168 : vector<54x108xi32>
    %c0_i32 = arith.constant 0 : i32
    %170 = vector.broadcast %c0_i32 : i32 to vector<54x108xi32>
    %171 = arith.cmpi eq, %169, %170 : vector<54x108xi32>
    %172 = arith.extui %171 : vector<54x108xi1> to vector<54x108xi32>
    %173 = arith.sitofp %172 : vector<54x108xi32> to vector<54x108xf32>
    %c1_i32 = arith.constant 1 : i32
    %174 = vector.broadcast %c1_i32 : i32 to vector<54x108xi32>
    %175 = arith.cmpi eq, %169, %174 : vector<54x108xi32>
    %176 = arith.extui %175 : vector<54x108xi1> to vector<54x108xi32>
    %177 = arith.sitofp %176 : vector<54x108xi32> to vector<54x108xf32>
    %cst_157 = arith.constant 0.000000e+00 : f32
    %178 = vector.broadcast %cst_157 : f32 to vector<16x384xf32>
    %c0_158 = arith.constant 0 : index
    %c0_159 = arith.constant 0 : index
    %179 = vector.load %arg12[%c0_158, %c0_159] : memref<16x384xf32, #tpu.memory_space<vmem>>, vector<16x384xf32>
    tpu.vector_store %arg12[%c0_158, %c0_159], %178 {strides = array<i32>} : memref<16x384xf32, #tpu.memory_space<vmem>>, vector<16x384xf32>,
    %180 = vector.extract_strided_slice %164 {offsets = [0, 0], sizes = [16, 54], strides = [1, 1]} : vector<32x256xf32> to vector<16x54xf32>
    %181 = vector.extract_strided_slice %164 {offsets = [16, 0], sizes = [16, 54], strides = [1, 1]} : vector<32x256xf32> to vector<16x54xf32>
    %cst_160 = arith.constant dense<0.000000e+00> : vector<16x108xf32>
    %182 = tpu.matmul %180, %173, %cst_160 {dimension_numbers = #tpu.dot_dimension_numbers<[1], [0], [0], [1], [0, 0, 1, 1], [], []>} : vector<16x54xf32>, vector<54x108xf32>, vector<16x108xf32> -> vector<16x108xf32>
    %cst_161 = arith.constant dense<0.000000e+00> : vector<16x108xf32>
    %183 = tpu.matmul %181, %177, %cst_161 {dimension_numbers = #tpu.dot_dimension_numbers<[1], [0], [0], [1], [0, 0, 1, 1], [], []>} : vector<16x54xf32>, vector<54x108xf32>, vector<16x108xf32> -> vector<16x108xf32>
    %184 = arith.addf %182, %183 : vector<16x108xf32>
    %c0_162 = arith.constant 0 : index
    %c14_163 = arith.constant 14 : index
    %185 = vector.load %arg12[%c0_162, %c14_163] : memref<16x384xf32, #tpu.memory_space<vmem>>, vector<16x108xf32>
    tpu.vector_store %arg12[%c0_162, %c14_163], %184 {strides = array<i32>} : memref<16x384xf32, #tpu.memory_space<vmem>>, vector<16x108xf32>,
    %186 = vector.extract_strided_slice %164 {offsets = [0, 128], sizes = [16, 54], strides = [1, 1]} : vector<32x256xf32> to vector<16x54xf32>
    %187 = vector.extract_strided_slice %164 {offsets = [16, 128], sizes = [16, 54], strides = [1, 1]} : vector<32x256xf32> to vector<16x54xf32>
    %cst_164 = arith.constant dense<0.000000e+00> : vector<16x108xf32>
    %188 = tpu.matmul %186, %173, %cst_164 {dimension_numbers = #tpu.dot_dimension_numbers<[1], [0], [0], [1], [0, 0, 1, 1], [], []>} : vector<16x54xf32>, vector<54x108xf32>, vector<16x108xf32> -> vector<16x108xf32>
    %cst_165 = arith.constant dense<0.000000e+00> : vector<16x108xf32>
    %189 = tpu.matmul %187, %177, %cst_165 {dimension_numbers = #tpu.dot_dimension_numbers<[1], [0], [0], [1], [0, 0, 1, 1], [], []>} : vector<16x54xf32>, vector<54x108xf32>, vector<16x108xf32> -> vector<16x108xf32>
    %190 = arith.addf %188, %189 : vector<16x108xf32>
    %c0_166 = arith.constant 0 : index
    %c142_167 = arith.constant 142 : index
    %191 = vector.load %arg12[%c0_166, %c142_167] : memref<16x384xf32, #tpu.memory_space<vmem>>, vector<16x108xf32>
    tpu.vector_store %arg12[%c0_166, %c142_167], %190 {strides = array<i32>} : memref<16x384xf32, #tpu.memory_space<vmem>>, vector<16x108xf32>,
    %cst_168 = arith.constant 0.000000e+00 : f32
    %192 = vector.broadcast %cst_168 : f32 to vector<32x256xf32>
    %c0_169 = arith.constant 0 : index
    %c0_170 = arith.constant 0 : index
    %c0_171 = arith.constant 0 : index
    %193 = vector.load %arg6[%c0_169, %c0_170, %c0_171] : memref<15x32x16xf32, #tpu.memory_space<vmem>>, vector<1x32x16xf32>
    %194 = vector.shape_cast %193 : vector<1x32x16xf32> to vector<32x16xf32>
    %c0_172 = arith.constant 0 : index
    %c14_173 = arith.constant 14 : index
    %195 = vector.load %arg12[%c0_172, %c14_173] : memref<16x384xf32, #tpu.memory_space<vmem>>, vector<16x256xf32>
    %cst_174 = arith.constant dense<0.000000e+00> : vector<32x256xf32>
    %196 = tpu.matmul %194, %195, %cst_174 {dimension_numbers = #tpu.dot_dimension_numbers<[1], [0], [0], [1], [0, 0, 1, 1], [], []>} : vector<32x16xf32>, vector<16x256xf32>, vector<32x256xf32> -> vector<32x256xf32>
    %197 = arith.addf %192, %196 : vector<32x256xf32>
    %c1_175 = arith.constant 1 : index
    %c0_176 = arith.constant 0 : index
    %c0_177 = arith.constant 0 : index
    %198 = vector.load %arg6[%c1_175, %c0_176, %c0_177] : memref<15x32x16xf32, #tpu.memory_space<vmem>>, vector<1x32x16xf32>
    %199 = vector.shape_cast %198 : vector<1x32x16xf32> to vector<32x16xf32>
    %c0_178 = arith.constant 0 : index
    %c13_179 = arith.constant 13 : index
    %200 = vector.load %arg12[%c0_178, %c13_179] : memref<16x384xf32, #tpu.memory_space<vmem>>, vector<16x256xf32>
    %cst_180 = arith.constant dense<0.000000e+00> : vector<32x256xf32>
    %201 = tpu.matmul %199, %200, %cst_180 {dimension_numbers = #tpu.dot_dimension_numbers<[1], [0], [0], [1], [0, 0, 1, 1], [], []>} : vector<32x16xf32>, vector<16x256xf32>, vector<32x256xf32> -> vector<32x256xf32>
    %202 = arith.addf %197, %201 : vector<32x256xf32>
    %c2_181 = arith.constant 2 : index
    %c0_182 = arith.constant 0 : index
    %c0_183 = arith.constant 0 : index
    %203 = vector.load %arg6[%c2_181, %c0_182, %c0_183] : memref<15x32x16xf32, #tpu.memory_space<vmem>>, vector<1x32x16xf32>
    %204 = vector.shape_cast %203 : vector<1x32x16xf32> to vector<32x16xf32>
    %c0_184 = arith.constant 0 : index
    %c12_185 = arith.constant 12 : index
    %205 = vector.load %arg12[%c0_184, %c12_185] : memref<16x384xf32, #tpu.memory_space<vmem>>, vector<16x256xf32>
    %cst_186 = arith.constant dense<0.000000e+00> : vector<32x256xf32>
    %206 = tpu.matmul %204, %205, %cst_186 {dimension_numbers = #tpu.dot_dimension_numbers<[1], [0], [0], [1], [0, 0, 1, 1], [], []>} : vector<32x16xf32>, vector<16x256xf32>, vector<32x256xf32> -> vector<32x256xf32>
    %207 = arith.addf %202, %206 : vector<32x256xf32>
    %c3_187 = arith.constant 3 : index
    %c0_188 = arith.constant 0 : index
    %c0_189 = arith.constant 0 : index
    %208 = vector.load %arg6[%c3_187, %c0_188, %c0_189] : memref<15x32x16xf32, #tpu.memory_space<vmem>>, vector<1x32x16xf32>
    %209 = vector.shape_cast %208 : vector<1x32x16xf32> to vector<32x16xf32>
    %c0_190 = arith.constant 0 : index
    %c11_191 = arith.constant 11 : index
    %210 = vector.load %arg12[%c0_190, %c11_191] : memref<16x384xf32, #tpu.memory_space<vmem>>, vector<16x256xf32>
    %cst_192 = arith.constant dense<0.000000e+00> : vector<32x256xf32>
    %211 = tpu.matmul %209, %210, %cst_192 {dimension_numbers = #tpu.dot_dimension_numbers<[1], [0], [0], [1], [0, 0, 1, 1], [], []>} : vector<32x16xf32>, vector<16x256xf32>, vector<32x256xf32> -> vector<32x256xf32>
    %212 = arith.addf %207, %211 : vector<32x256xf32>
    %c4_193 = arith.constant 4 : index
    %c0_194 = arith.constant 0 : index
    %c0_195 = arith.constant 0 : index
    %213 = vector.load %arg6[%c4_193, %c0_194, %c0_195] : memref<15x32x16xf32, #tpu.memory_space<vmem>>, vector<1x32x16xf32>
    %214 = vector.shape_cast %213 : vector<1x32x16xf32> to vector<32x16xf32>
    %c0_196 = arith.constant 0 : index
    %c10_197 = arith.constant 10 : index
    %215 = vector.load %arg12[%c0_196, %c10_197] : memref<16x384xf32, #tpu.memory_space<vmem>>, vector<16x256xf32>
    %cst_198 = arith.constant dense<0.000000e+00> : vector<32x256xf32>
    %216 = tpu.matmul %214, %215, %cst_198 {dimension_numbers = #tpu.dot_dimension_numbers<[1], [0], [0], [1], [0, 0, 1, 1], [], []>} : vector<32x16xf32>, vector<16x256xf32>, vector<32x256xf32> -> vector<32x256xf32>
    %217 = arith.addf %212, %216 : vector<32x256xf32>
    %c5_199 = arith.constant 5 : index
    %c0_200 = arith.constant 0 : index
    %c0_201 = arith.constant 0 : index
    %218 = vector.load %arg6[%c5_199, %c0_200, %c0_201] : memref<15x32x16xf32, #tpu.memory_space<vmem>>, vector<1x32x16xf32>
    %219 = vector.shape_cast %218 : vector<1x32x16xf32> to vector<32x16xf32>
    %c0_202 = arith.constant 0 : index
    %c9_203 = arith.constant 9 : index
    %220 = vector.load %arg12[%c0_202, %c9_203] : memref<16x384xf32, #tpu.memory_space<vmem>>, vector<16x256xf32>
    %cst_204 = arith.constant dense<0.000000e+00> : vector<32x256xf32>
    %221 = tpu.matmul %219, %220, %cst_204 {dimension_numbers = #tpu.dot_dimension_numbers<[1], [0], [0], [1], [0, 0, 1, 1], [], []>} : vector<32x16xf32>, vector<16x256xf32>, vector<32x256xf32> -> vector<32x256xf32>
    %222 = arith.addf %217, %221 : vector<32x256xf32>
    %c6_205 = arith.constant 6 : index
    %c0_206 = arith.constant 0 : index
    %c0_207 = arith.constant 0 : index
    %223 = vector.load %arg6[%c6_205, %c0_206, %c0_207] : memref<15x32x16xf32, #tpu.memory_space<vmem>>, vector<1x32x16xf32>
    %224 = vector.shape_cast %223 : vector<1x32x16xf32> to vector<32x16xf32>
    %c0_208 = arith.constant 0 : index
    %c8_209 = arith.constant 8 : index
    %225 = vector.load %arg12[%c0_208, %c8_209] : memref<16x384xf32, #tpu.memory_space<vmem>>, vector<16x256xf32>
    %cst_210 = arith.constant dense<0.000000e+00> : vector<32x256xf32>
    %226 = tpu.matmul %224, %225, %cst_210 {dimension_numbers = #tpu.dot_dimension_numbers<[1], [0], [0], [1], [0, 0, 1, 1], [], []>} : vector<32x16xf32>, vector<16x256xf32>, vector<32x256xf32> -> vector<32x256xf32>
    %227 = arith.addf %222, %226 : vector<32x256xf32>
    %c7_211 = arith.constant 7 : index
    %c0_212 = arith.constant 0 : index
    %c0_213 = arith.constant 0 : index
    %228 = vector.load %arg6[%c7_211, %c0_212, %c0_213] : memref<15x32x16xf32, #tpu.memory_space<vmem>>, vector<1x32x16xf32>
    %229 = vector.shape_cast %228 : vector<1x32x16xf32> to vector<32x16xf32>
    %c0_214 = arith.constant 0 : index
    %c7_215 = arith.constant 7 : index
    %230 = vector.load %arg12[%c0_214, %c7_215] : memref<16x384xf32, #tpu.memory_space<vmem>>, vector<16x256xf32>
    %cst_216 = arith.constant dense<0.000000e+00> : vector<32x256xf32>
    %231 = tpu.matmul %229, %230, %cst_216 {dimension_numbers = #tpu.dot_dimension_numbers<[1], [0], [0], [1], [0, 0, 1, 1], [], []>} : vector<32x16xf32>, vector<16x256xf32>, vector<32x256xf32> -> vector<32x256xf32>
    %232 = arith.addf %227, %231 : vector<32x256xf32>
    %c8_217 = arith.constant 8 : index
    %c0_218 = arith.constant 0 : index
    %c0_219 = arith.constant 0 : index
    %233 = vector.load %arg6[%c8_217, %c0_218, %c0_219] : memref<15x32x16xf32, #tpu.memory_space<vmem>>, vector<1x32x16xf32>
    %234 = vector.shape_cast %233 : vector<1x32x16xf32> to vector<32x16xf32>
    %c0_220 = arith.constant 0 : index
    %c6_221 = arith.constant 6 : index
    %235 = vector.load %arg12[%c0_220, %c6_221] : memref<16x384xf32, #tpu.memory_space<vmem>>, vector<16x256xf32>
    %cst_222 = arith.constant dense<0.000000e+00> : vector<32x256xf32>
    %236 = tpu.matmul %234, %235, %cst_222 {dimension_numbers = #tpu.dot_dimension_numbers<[1], [0], [0], [1], [0, 0, 1, 1], [], []>} : vector<32x16xf32>, vector<16x256xf32>, vector<32x256xf32> -> vector<32x256xf32>
    %237 = arith.addf %232, %236 : vector<32x256xf32>
    %c9_223 = arith.constant 9 : index
    %c0_224 = arith.constant 0 : index
    %c0_225 = arith.constant 0 : index
    %238 = vector.load %arg6[%c9_223, %c0_224, %c0_225] : memref<15x32x16xf32, #tpu.memory_space<vmem>>, vector<1x32x16xf32>
    %239 = vector.shape_cast %238 : vector<1x32x16xf32> to vector<32x16xf32>
    %c0_226 = arith.constant 0 : index
    %c5_227 = arith.constant 5 : index
    %240 = vector.load %arg12[%c0_226, %c5_227] : memref<16x384xf32, #tpu.memory_space<vmem>>, vector<16x256xf32>
    %cst_228 = arith.constant dense<0.000000e+00> : vector<32x256xf32>
    %241 = tpu.matmul %239, %240, %cst_228 {dimension_numbers = #tpu.dot_dimension_numbers<[1], [0], [0], [1], [0, 0, 1, 1], [], []>} : vector<32x16xf32>, vector<16x256xf32>, vector<32x256xf32> -> vector<32x256xf32>
    %242 = arith.addf %237, %241 : vector<32x256xf32>
    %c10_229 = arith.constant 10 : index
    %c0_230 = arith.constant 0 : index
    %c0_231 = arith.constant 0 : index
    %243 = vector.load %arg6[%c10_229, %c0_230, %c0_231] : memref<15x32x16xf32, #tpu.memory_space<vmem>>, vector<1x32x16xf32>
    %244 = vector.shape_cast %243 : vector<1x32x16xf32> to vector<32x16xf32>
    %c0_232 = arith.constant 0 : index
    %c4_233 = arith.constant 4 : index
    %245 = vector.load %arg12[%c0_232, %c4_233] : memref<16x384xf32, #tpu.memory_space<vmem>>, vector<16x256xf32>
    %cst_234 = arith.constant dense<0.000000e+00> : vector<32x256xf32>
    %246 = tpu.matmul %244, %245, %cst_234 {dimension_numbers = #tpu.dot_dimension_numbers<[1], [0], [0], [1], [0, 0, 1, 1], [], []>} : vector<32x16xf32>, vector<16x256xf32>, vector<32x256xf32> -> vector<32x256xf32>
    %247 = arith.addf %242, %246 : vector<32x256xf32>
    %c11_235 = arith.constant 11 : index
    %c0_236 = arith.constant 0 : index
    %c0_237 = arith.constant 0 : index
    %248 = vector.load %arg6[%c11_235, %c0_236, %c0_237] : memref<15x32x16xf32, #tpu.memory_space<vmem>>, vector<1x32x16xf32>
    %249 = vector.shape_cast %248 : vector<1x32x16xf32> to vector<32x16xf32>
    %c0_238 = arith.constant 0 : index
    %c3_239 = arith.constant 3 : index
    %250 = vector.load %arg12[%c0_238, %c3_239] : memref<16x384xf32, #tpu.memory_space<vmem>>, vector<16x256xf32>
    %cst_240 = arith.constant dense<0.000000e+00> : vector<32x256xf32>
    %251 = tpu.matmul %249, %250, %cst_240 {dimension_numbers = #tpu.dot_dimension_numbers<[1], [0], [0], [1], [0, 0, 1, 1], [], []>} : vector<32x16xf32>, vector<16x256xf32>, vector<32x256xf32> -> vector<32x256xf32>
    %252 = arith.addf %247, %251 : vector<32x256xf32>
    %c12_241 = arith.constant 12 : index
    %c0_242 = arith.constant 0 : index
    %c0_243 = arith.constant 0 : index
    %253 = vector.load %arg6[%c12_241, %c0_242, %c0_243] : memref<15x32x16xf32, #tpu.memory_space<vmem>>, vector<1x32x16xf32>
    %254 = vector.shape_cast %253 : vector<1x32x16xf32> to vector<32x16xf32>
    %c0_244 = arith.constant 0 : index
    %c2_245 = arith.constant 2 : index
    %255 = vector.load %arg12[%c0_244, %c2_245] : memref<16x384xf32, #tpu.memory_space<vmem>>, vector<16x256xf32>
    %cst_246 = arith.constant dense<0.000000e+00> : vector<32x256xf32>
    %256 = tpu.matmul %254, %255, %cst_246 {dimension_numbers = #tpu.dot_dimension_numbers<[1], [0], [0], [1], [0, 0, 1, 1], [], []>} : vector<32x16xf32>, vector<16x256xf32>, vector<32x256xf32> -> vector<32x256xf32>
    %257 = arith.addf %252, %256 : vector<32x256xf32>
    %c13_247 = arith.constant 13 : index
    %c0_248 = arith.constant 0 : index
    %c0_249 = arith.constant 0 : index
    %258 = vector.load %arg6[%c13_247, %c0_248, %c0_249] : memref<15x32x16xf32, #tpu.memory_space<vmem>>, vector<1x32x16xf32>
    %259 = vector.shape_cast %258 : vector<1x32x16xf32> to vector<32x16xf32>
    %c0_250 = arith.constant 0 : index
    %c1_251 = arith.constant 1 : index
    %260 = vector.load %arg12[%c0_250, %c1_251] : memref<16x384xf32, #tpu.memory_space<vmem>>, vector<16x256xf32>
    %cst_252 = arith.constant dense<0.000000e+00> : vector<32x256xf32>
    %261 = tpu.matmul %259, %260, %cst_252 {dimension_numbers = #tpu.dot_dimension_numbers<[1], [0], [0], [1], [0, 0, 1, 1], [], []>} : vector<32x16xf32>, vector<16x256xf32>, vector<32x256xf32> -> vector<32x256xf32>
    %262 = arith.addf %257, %261 : vector<32x256xf32>
    %c14_253 = arith.constant 14 : index
    %c0_254 = arith.constant 0 : index
    %c0_255 = arith.constant 0 : index
    %263 = vector.load %arg6[%c14_253, %c0_254, %c0_255] : memref<15x32x16xf32, #tpu.memory_space<vmem>>, vector<1x32x16xf32>
    %264 = vector.shape_cast %263 : vector<1x32x16xf32> to vector<32x16xf32>
    %c0_256 = arith.constant 0 : index
    %c0_257 = arith.constant 0 : index
    %265 = vector.load %arg12[%c0_256, %c0_257] : memref<16x384xf32, #tpu.memory_space<vmem>>, vector<16x256xf32>
    %cst_258 = arith.constant dense<0.000000e+00> : vector<32x256xf32>
    %266 = tpu.matmul %264, %265, %cst_258 {dimension_numbers = #tpu.dot_dimension_numbers<[1], [0], [0], [1], [0, 0, 1, 1], [], []>} : vector<32x16xf32>, vector<16x256xf32>, vector<32x256xf32> -> vector<32x256xf32>
    %267 = arith.addf %262, %266 : vector<32x256xf32>
    %c0_259 = arith.constant 0 : index
    %c0_260 = arith.constant 0 : index
    %268 = vector.load %arg7[%c0_259, %c0_260] : memref<32x1xf32, #tpu.memory_space<vmem>>, vector<32x1xf32>
    %269 = vector.broadcast %268 : vector<32x1xf32> to vector<32x256xf32>
    %270 = arith.addf %267, %269 : vector<32x256xf32>
    %cst_261 = arith.constant 0.000000e+00 : f32
    %271 = vector.broadcast %cst_261 : f32 to vector<32x256xf32>
    %272 = arith.cmpf oge, %270, %271 : vector<32x256xf32>
    %273 = vector.broadcast %2 : vector<1x1xf32> to vector<32x256xf32>
    %274 = arith.mulf %273, %270 : vector<32x256xf32>
    %275 = arith.select %272, %270, %274 : vector<32x256xi1>, vector<32x256xf32>
    %276 = tpu.iota {dimensions = array<i32: 0>} : vector<122x244xi32>
    %277 = tpu.iota {dimensions = array<i32: 1>} : vector<122x244xi32>
    %c2_i32_262 = arith.constant 2 : i32
    %278 = vector.broadcast %c2_i32_262 : i32 to vector<122x244xi32>
    %279 = arith.muli %278, %276 : vector<122x244xi32>
    %280 = arith.subi %277, %279 : vector<122x244xi32>
    %c0_i32_263 = arith.constant 0 : i32
    %281 = vector.broadcast %c0_i32_263 : i32 to vector<122x244xi32>
    %282 = arith.cmpi eq, %280, %281 : vector<122x244xi32>
    %283 = arith.extui %282 : vector<122x244xi1> to vector<122x244xi32>
    %284 = arith.sitofp %283 : vector<122x244xi32> to vector<122x244xf32>
    %c1_i32_264 = arith.constant 1 : i32
    %285 = vector.broadcast %c1_i32_264 : i32 to vector<122x244xi32>
    %286 = arith.cmpi eq, %280, %285 : vector<122x244xi32>
    %287 = arith.extui %286 : vector<122x244xi1> to vector<122x244xi32>
    %288 = arith.sitofp %287 : vector<122x244xi32> to vector<122x244xf32>
    %cst_265 = arith.constant 0.000000e+00 : f32
    %289 = vector.broadcast %cst_265 : f32 to vector<16x640xf32>
    %c0_266 = arith.constant 0 : index
    %c0_267 = arith.constant 0 : index
    %290 = vector.load %arg13[%c0_266, %c0_267] : memref<16x640xf32, #tpu.memory_space<vmem>>, vector<16x640xf32>
    tpu.vector_store %arg13[%c0_266, %c0_267], %289 {strides = array<i32>} : memref<16x640xf32, #tpu.memory_space<vmem>>, vector<16x640xf32>,
    %291 = vector.extract_strided_slice %275 {offsets = [0, 0], sizes = [16, 122], strides = [1, 1]} : vector<32x256xf32> to vector<16x122xf32>
    %292 = vector.extract_strided_slice %275 {offsets = [16, 0], sizes = [16, 122], strides = [1, 1]} : vector<32x256xf32> to vector<16x122xf32>
    %cst_268 = arith.constant dense<0.000000e+00> : vector<16x244xf32>
    %293 = tpu.matmul %291, %284, %cst_268 {dimension_numbers = #tpu.dot_dimension_numbers<[1], [0], [0], [1], [0, 0, 1, 1], [], []>} : vector<16x122xf32>, vector<122x244xf32>, vector<16x244xf32> -> vector<16x244xf32>
    %cst_269 = arith.constant dense<0.000000e+00> : vector<16x244xf32>
    %294 = tpu.matmul %292, %288, %cst_269 {dimension_numbers = #tpu.dot_dimension_numbers<[1], [0], [0], [1], [0, 0, 1, 1], [], []>} : vector<16x122xf32>, vector<122x244xf32>, vector<16x244xf32> -> vector<16x244xf32>
    %295 = arith.addf %293, %294 : vector<16x244xf32>
    %c0_270 = arith.constant 0 : index
    %c6_271 = arith.constant 6 : index
    %296 = vector.load %arg13[%c0_270, %c6_271] : memref<16x640xf32, #tpu.memory_space<vmem>>, vector<16x244xf32>
    tpu.vector_store %arg13[%c0_270, %c6_271], %295 {strides = array<i32>} : memref<16x640xf32, #tpu.memory_space<vmem>>, vector<16x244xf32>,
    %297 = vector.extract_strided_slice %275 {offsets = [0, 128], sizes = [16, 122], strides = [1, 1]} : vector<32x256xf32> to vector<16x122xf32>
    %298 = vector.extract_strided_slice %275 {offsets = [16, 128], sizes = [16, 122], strides = [1, 1]} : vector<32x256xf32> to vector<16x122xf32>
    %cst_272 = arith.constant dense<0.000000e+00> : vector<16x244xf32>
    %299 = tpu.matmul %297, %284, %cst_272 {dimension_numbers = #tpu.dot_dimension_numbers<[1], [0], [0], [1], [0, 0, 1, 1], [], []>} : vector<16x122xf32>, vector<122x244xf32>, vector<16x244xf32> -> vector<16x244xf32>
    %cst_273 = arith.constant dense<0.000000e+00> : vector<16x244xf32>
    %300 = tpu.matmul %298, %288, %cst_273 {dimension_numbers = #tpu.dot_dimension_numbers<[1], [0], [0], [1], [0, 0, 1, 1], [], []>} : vector<16x122xf32>, vector<122x244xf32>, vector<16x244xf32> -> vector<16x244xf32>
    %301 = arith.addf %299, %300 : vector<16x244xf32>
    %c0_274 = arith.constant 0 : index
    %c262 = arith.constant 262 : index
    %302 = vector.load %arg13[%c0_274, %c262] : memref<16x640xf32, #tpu.memory_space<vmem>>, vector<16x244xf32>
    tpu.vector_store %arg13[%c0_274, %c262], %301 {strides = array<i32>} : memref<16x640xf32, #tpu.memory_space<vmem>>, vector<16x244xf32>,
    %cst_275 = arith.constant 0.000000e+00 : f32
    %303 = vector.broadcast %cst_275 : f32 to vector<16x512xf32>
    %c0_276 = arith.constant 0 : index
    %c0_277 = arith.constant 0 : index
    %c0_278 = arith.constant 0 : index
    %304 = vector.load %arg8[%c0_276, %c0_277, %c0_278] : memref<7x16x16xf32, #tpu.memory_space<vmem>>, vector<1x16x16xf32>
    %305 = vector.shape_cast %304 : vector<1x16x16xf32> to vector<16x16xf32>
    %c0_279 = arith.constant 0 : index
    %c6_280 = arith.constant 6 : index
    %306 = vector.load %arg13[%c0_279, %c6_280] : memref<16x640xf32, #tpu.memory_space<vmem>>, vector<16x512xf32>
    %cst_281 = arith.constant dense<0.000000e+00> : vector<16x512xf32>
    %307 = tpu.matmul %305, %306, %cst_281 {dimension_numbers = #tpu.dot_dimension_numbers<[1], [0], [0], [1], [0, 0, 1, 1], [], []>} : vector<16x16xf32>, vector<16x512xf32>, vector<16x512xf32> -> vector<16x512xf32>
    %308 = arith.addf %303, %307 : vector<16x512xf32>
    %c1_282 = arith.constant 1 : index
    %c0_283 = arith.constant 0 : index
    %c0_284 = arith.constant 0 : index
    %309 = vector.load %arg8[%c1_282, %c0_283, %c0_284] : memref<7x16x16xf32, #tpu.memory_space<vmem>>, vector<1x16x16xf32>
    %310 = vector.shape_cast %309 : vector<1x16x16xf32> to vector<16x16xf32>
    %c0_285 = arith.constant 0 : index
    %c5_286 = arith.constant 5 : index
    %311 = vector.load %arg13[%c0_285, %c5_286] : memref<16x640xf32, #tpu.memory_space<vmem>>, vector<16x512xf32>
    %cst_287 = arith.constant dense<0.000000e+00> : vector<16x512xf32>
    %312 = tpu.matmul %310, %311, %cst_287 {dimension_numbers = #tpu.dot_dimension_numbers<[1], [0], [0], [1], [0, 0, 1, 1], [], []>} : vector<16x16xf32>, vector<16x512xf32>, vector<16x512xf32> -> vector<16x512xf32>
    %313 = arith.addf %308, %312 : vector<16x512xf32>
    %c2_288 = arith.constant 2 : index
    %c0_289 = arith.constant 0 : index
    %c0_290 = arith.constant 0 : index
    %314 = vector.load %arg8[%c2_288, %c0_289, %c0_290] : memref<7x16x16xf32, #tpu.memory_space<vmem>>, vector<1x16x16xf32>
    %315 = vector.shape_cast %314 : vector<1x16x16xf32> to vector<16x16xf32>
    %c0_291 = arith.constant 0 : index
    %c4_292 = arith.constant 4 : index
    %316 = vector.load %arg13[%c0_291, %c4_292] : memref<16x640xf32, #tpu.memory_space<vmem>>, vector<16x512xf32>
    %cst_293 = arith.constant dense<0.000000e+00> : vector<16x512xf32>
    %317 = tpu.matmul %315, %316, %cst_293 {dimension_numbers = #tpu.dot_dimension_numbers<[1], [0], [0], [1], [0, 0, 1, 1], [], []>} : vector<16x16xf32>, vector<16x512xf32>, vector<16x512xf32> -> vector<16x512xf32>
    %318 = arith.addf %313, %317 : vector<16x512xf32>
    %c3_294 = arith.constant 3 : index
    %c0_295 = arith.constant 0 : index
    %c0_296 = arith.constant 0 : index
    %319 = vector.load %arg8[%c3_294, %c0_295, %c0_296] : memref<7x16x16xf32, #tpu.memory_space<vmem>>, vector<1x16x16xf32>
    %320 = vector.shape_cast %319 : vector<1x16x16xf32> to vector<16x16xf32>
    %c0_297 = arith.constant 0 : index
    %c3_298 = arith.constant 3 : index
    %321 = vector.load %arg13[%c0_297, %c3_298] : memref<16x640xf32, #tpu.memory_space<vmem>>, vector<16x512xf32>
    %cst_299 = arith.constant dense<0.000000e+00> : vector<16x512xf32>
    %322 = tpu.matmul %320, %321, %cst_299 {dimension_numbers = #tpu.dot_dimension_numbers<[1], [0], [0], [1], [0, 0, 1, 1], [], []>} : vector<16x16xf32>, vector<16x512xf32>, vector<16x512xf32> -> vector<16x512xf32>
    %323 = arith.addf %318, %322 : vector<16x512xf32>
    %c4_300 = arith.constant 4 : index
    %c0_301 = arith.constant 0 : index
    %c0_302 = arith.constant 0 : index
    %324 = vector.load %arg8[%c4_300, %c0_301, %c0_302] : memref<7x16x16xf32, #tpu.memory_space<vmem>>, vector<1x16x16xf32>
    %325 = vector.shape_cast %324 : vector<1x16x16xf32> to vector<16x16xf32>
    %c0_303 = arith.constant 0 : index
    %c2_304 = arith.constant 2 : index
    %326 = vector.load %arg13[%c0_303, %c2_304] : memref<16x640xf32, #tpu.memory_space<vmem>>, vector<16x512xf32>
    %cst_305 = arith.constant dense<0.000000e+00> : vector<16x512xf32>
    %327 = tpu.matmul %325, %326, %cst_305 {dimension_numbers = #tpu.dot_dimension_numbers<[1], [0], [0], [1], [0, 0, 1, 1], [], []>} : vector<16x16xf32>, vector<16x512xf32>, vector<16x512xf32> -> vector<16x512xf32>
    %328 = arith.addf %323, %327 : vector<16x512xf32>
    %c5_306 = arith.constant 5 : index
    %c0_307 = arith.constant 0 : index
    %c0_308 = arith.constant 0 : index
    %329 = vector.load %arg8[%c5_306, %c0_307, %c0_308] : memref<7x16x16xf32, #tpu.memory_space<vmem>>, vector<1x16x16xf32>
    %330 = vector.shape_cast %329 : vector<1x16x16xf32> to vector<16x16xf32>
    %c0_309 = arith.constant 0 : index
    %c1_310 = arith.constant 1 : index
    %331 = vector.load %arg13[%c0_309, %c1_310] : memref<16x640xf32, #tpu.memory_space<vmem>>, vector<16x512xf32>
    %cst_311 = arith.constant dense<0.000000e+00> : vector<16x512xf32>
    %332 = tpu.matmul %330, %331, %cst_311 {dimension_numbers = #tpu.dot_dimension_numbers<[1], [0], [0], [1], [0, 0, 1, 1], [], []>} : vector<16x16xf32>, vector<16x512xf32>, vector<16x512xf32> -> vector<16x512xf32>
    %333 = arith.addf %328, %332 : vector<16x512xf32>
    %c6_312 = arith.constant 6 : index
    %c0_313 = arith.constant 0 : index
    %c0_314 = arith.constant 0 : index
    %334 = vector.load %arg8[%c6_312, %c0_313, %c0_314] : memref<7x16x16xf32, #tpu.memory_space<vmem>>, vector<1x16x16xf32>
    %335 = vector.shape_cast %334 : vector<1x16x16xf32> to vector<16x16xf32>
    %c0_315 = arith.constant 0 : index
    %c0_316 = arith.constant 0 : index
    %336 = vector.load %arg13[%c0_315, %c0_316] : memref<16x640xf32, #tpu.memory_space<vmem>>, vector<16x512xf32>
    %cst_317 = arith.constant dense<0.000000e+00> : vector<16x512xf32>
    %337 = tpu.matmul %335, %336, %cst_317 {dimension_numbers = #tpu.dot_dimension_numbers<[1], [0], [0], [1], [0, 0, 1, 1], [], []>} : vector<16x16xf32>, vector<16x512xf32>, vector<16x512xf32> -> vector<16x512xf32>
    %338 = arith.addf %333, %337 : vector<16x512xf32>
    %c0_318 = arith.constant 0 : index
    %c0_319 = arith.constant 0 : index
    %339 = vector.load %arg9[%c0_318, %c0_319] : memref<16x1xf32, #tpu.memory_space<vmem>>, vector<16x1xf32>
    %340 = vector.broadcast %339 : vector<16x1xf32> to vector<16x512xf32>
    %341 = arith.addf %338, %340 : vector<16x512xf32>
    %342 = arith.negf %341 : vector<16x512xf32>
    %343 = math.exp %342 : vector<16x512xf32>
    %cst_320 = arith.constant 1.000000e+00 : f32
    %344 = vector.broadcast %cst_320 : f32 to vector<16x512xf32>
    %345 = arith.addf %344, %343 : vector<16x512xf32>
    %346 = arith.divf %344, %345 : vector<16x512xf32>
    %347 = tpu.iota {dimensions = array<i32: 0>} : vector<250x500xi32>
    %348 = tpu.iota {dimensions = array<i32: 1>} : vector<250x500xi32>
    %c2_i32_321 = arith.constant 2 : i32
    %349 = vector.broadcast %c2_i32_321 : i32 to vector<250x500xi32>
    %350 = arith.muli %349, %347 : vector<250x500xi32>
    %351 = arith.subi %348, %350 : vector<250x500xi32>
    %c0_i32_322 = arith.constant 0 : i32
    %352 = vector.broadcast %c0_i32_322 : i32 to vector<250x500xi32>
    %353 = arith.cmpi eq, %351, %352 : vector<250x500xi32>
    %354 = arith.extui %353 : vector<250x500xi1> to vector<250x500xi32>
    %355 = arith.sitofp %354 : vector<250x500xi32> to vector<250x500xf32>
    %c1_i32_323 = arith.constant 1 : i32
    %356 = vector.broadcast %c1_i32_323 : i32 to vector<250x500xi32>
    %357 = arith.cmpi eq, %351, %356 : vector<250x500xi32>
    %358 = arith.extui %357 : vector<250x500xi1> to vector<250x500xi32>
    %359 = arith.sitofp %358 : vector<250x500xi32> to vector<250x500xf32>
    %360 = vector.extract_strided_slice %346 {offsets = [0, 0], sizes = [2, 250], strides = [1, 1]} : vector<16x512xf32> to vector<2x250xf32>
    %361 = vector.extract_strided_slice %346 {offsets = [8, 0], sizes = [2, 250], strides = [1, 1]} : vector<16x512xf32> to vector<2x250xf32>
    %cst_324 = arith.constant dense<0.000000e+00> : vector<2x500xf32>
    %362 = tpu.matmul %360, %355, %cst_324 {dimension_numbers = #tpu.dot_dimension_numbers<[1], [0], [0], [1], [0, 0, 1, 1], [], []>} : vector<2x250xf32>, vector<250x500xf32>, vector<2x500xf32> -> vector<2x500xf32>
    %cst_325 = arith.constant dense<0.000000e+00> : vector<2x500xf32>
    %363 = tpu.matmul %361, %359, %cst_325 {dimension_numbers = #tpu.dot_dimension_numbers<[1], [0], [0], [1], [0, 0, 1, 1], [], []>} : vector<2x250xf32>, vector<250x500xf32>, vector<2x500xf32> -> vector<2x500xf32>
    %364 = arith.addf %362, %363 : vector<2x500xf32>
    %c0_326 = arith.constant 0 : index
    %c0_327 = arith.constant 0 : index
    %c0_328 = arith.constant 0 : index
    %365 = vector.load %arg10[%c0_326, %c0_327, %c0_328] : memref<2x2x500xf32, #tpu.memory_space<vmem>>, vector<1x2x500xf32>
    %366 = vector.shape_cast %365 : vector<1x2x500xf32> to vector<2x500xf32>
    %367 = vector.shape_cast %364 : vector<2x500xf32> to vector<1x2x500xf32>
    tpu.vector_store %arg10[%c0_326, %c0_327, %c0_328], %367 {strides = array<i32>} : memref<2x2x500xf32, #tpu.memory_space<vmem>>, vector<1x2x500xf32>,
    %368 = vector.extract_strided_slice %346 {offsets = [0, 256], sizes = [2, 250], strides = [1, 1]} : vector<16x512xf32> to vector<2x250xf32>
    %369 = vector.extract_strided_slice %346 {offsets = [8, 256], sizes = [2, 250], strides = [1, 1]} : vector<16x512xf32> to vector<2x250xf32>
    %cst_329 = arith.constant dense<0.000000e+00> : vector<2x500xf32>
    %370 = tpu.matmul %368, %355, %cst_329 {dimension_numbers = #tpu.dot_dimension_numbers<[1], [0], [0], [1], [0, 0, 1, 1], [], []>} : vector<2x250xf32>, vector<250x500xf32>, vector<2x500xf32> -> vector<2x500xf32>
    %cst_330 = arith.constant dense<0.000000e+00> : vector<2x500xf32>
    %371 = tpu.matmul %369, %359, %cst_330 {dimension_numbers = #tpu.dot_dimension_numbers<[1], [0], [0], [1], [0, 0, 1, 1], [], []>} : vector<2x250xf32>, vector<250x500xf32>, vector<2x500xf32> -> vector<2x500xf32>
    %372 = arith.addf %370, %371 : vector<2x500xf32>
    %c1_331 = arith.constant 1 : index
    %c0_332 = arith.constant 0 : index
    %c0_333 = arith.constant 0 : index
    %373 = vector.load %arg10[%c1_331, %c0_332, %c0_333] : memref<2x2x500xf32, #tpu.memory_space<vmem>>, vector<1x2x500xf32>
    %374 = vector.shape_cast %373 : vector<1x2x500xf32> to vector<2x500xf32>
    %375 = vector.shape_cast %372 : vector<2x500xf32> to vector<1x2x500xf32>
    tpu.vector_store %arg10[%c1_331, %c0_332, %c0_333], %375 {strides = array<i32>} : memref<2x2x500xf32, #tpu.memory_space<vmem>>, vector<1x2x500xf32>,
    return
  }
}

</mosaic_0001>

<llo_original>
// kernel: generator_forward.1
$region0: #{generator_forward.1}
  #allocation0 [shape = 'u32[]', space=smem, size = 0x4, offset = 0x4, fixed_abs, tag = 'smem constant byte address 0x4 - core index']
  #allocation1 [shape = 'u32[144,128]{1,0:T(1,128)}', space=vmem, size = 0x12000, scoped, tag = 'internal scratch']
  #allocation2 [shape = 'f32[16,384]{1,0:T(8,128)}', space=vmem, size = 0x6000, scoped, tag = 'scratch operand']
  #allocation3 [shape = 'f32[16,384]{1,0:T(8,128)}', space=vmem, size = 0x6000, scoped, tag = 'scratch operand']
  #allocation4 [shape = 'f32[16,640]{1,0:T(8,128)}', space=vmem, size = 0xa000, scoped, tag = 'scratch operand']
  %s0 = inlined_call_operand.vmem [shape: f32[3,1], index: 0, kind: input, shape index: {}]
  %s1 = inlined_call_operand.hbm [shape: f32[2,1024], index: 1, kind: input, shape index: {}]
  %s2 = inlined_call_operand.hbm [shape: bf16[1024,640], index: 2, kind: input, shape index: {}]
  %s3 = inlined_call_operand.hbm [shape: f32[1,640], index: 3, kind: input, shape index: {}]
  %s4 = inlined_call_operand.vmem [shape: f32[15,32,16], index: 4, kind: input, shape index: {}]
  %s5 = inlined_call_operand.vmem [shape: f32[32,1], index: 5, kind: input, shape index: {}]
  %s6 = inlined_call_operand.vmem [shape: f32[15,32,16], index: 6, kind: input, shape index: {}]
  %s7 = inlined_call_operand.vmem [shape: f32[32,1], index: 7, kind: input, shape index: {}]
  %s8 = inlined_call_operand.hbm [shape: f32[7,16,16], index: 8, kind: input, shape index: {}]
  %s9 = inlined_call_operand.vmem [shape: f32[16,1], index: 9, kind: input, shape index: {}]
  %s10 = inlined_call_operand.hbm [shape: f32[2,2,500], index: 10, kind: output, shape index: {}]
  %s11 = sld [smem:[#allocation0]]
  $region66: #{generator_forward.1} parent=0
    _
  %s13 = ssub.s32 1, %s11
  %s14 = scalar_select 0, %s13, %s11
  $region1: #{generator_forward.1} parent=0
    #allocation5 [shape = 'u8[8192]{0}', space=vmem, size = 0x2000, scoped, tag = 'input window, operand 1, single buffered']
    #allocation6 [shape = 's32[1]{0}', space=sflag, size = 0x4, scoped, tag = 'scoped memory for generator_forward.1']
    #allocation7 [shape = 's32[1]{0}', space=sflag, size = 0x4, scoped, tag = 'scoped memory for generator_forward.1']
    #allocation8 [shape = 'u8[1310720]{0}', space=vmem, size = 0x140000, scoped, tag = 'input window, operand 2, single buffered']
    #allocation9 [shape = 's32[1]{0}', space=sflag, size = 0x4, scoped, tag = 'scoped memory for generator_forward.1']
    #allocation10 [shape = 'u8[2560]{0}', space=vmem, size = 0xc00, scoped, tag = 'input window, operand 3, single buffered']
    #allocation11 [shape = 'u8[57344]{0}', space=vmem, size = 0xe000, scoped, tag = 'input window, operand 8, single buffered']
    #allocation12 [shape = 's32[1]{0}', space=sflag, size = 0x4, scoped, tag = 'scoped memory for generator_forward.1']
    #allocation13 [shape = 'u8[8192]{0}', space=vmem, size = 0x2000, scoped, tag = 'output window, operand 0, single buffered']
    %15 = vsyncpa [#allocation6], 0
    %16 = vsyncpa [#allocation9], 0
    %17 = vsyncpa [#allocation12], 0
    %18 = vsyncpa [#allocation7], 0
    // Predicated region
    $region2: #{generator_forward.1} parent=1 // pred_check
      _
    $region3: #{generator_forward.1} parent=1 // pred_check_branch
      %20 = sbr.rel (0) target = $region5
    $region4: #{generator_forward.1} parent=1 // pred_region
      _
    $region5: #{generator_forward.1} parent=1 // pred_fallthru
      _
    // Predicated region
    $region6: #{generator_forward.1} parent=1 // pred_check
      _
    $region7: #{generator_forward.1} parent=1 // pred_check_branch
      %22 = sbr.rel (0) target = $region9
    $region8: #{generator_forward.1} parent=1 // pred_region
      %s24 = ssub.s32 256, 256
      %25 = vsyncadd [#allocation6], %s24
      %s27 = sshll.u32 [#allocation5], 4
      %s28 = int_to_ptr.vmem [resolvable:$true] %s27
      %30 = dma.hbm_to_vmem [thread:$0]  %s1, 256, %s28, [#allocation6]
    $region9: #{generator_forward.1} parent=1 // pred_fallthru
      _
    // Predicated region
    $region10: #{generator_forward.1} parent=1 // pred_check
      _
    $region11: #{generator_forward.1} parent=1 // pred_check_branch
      %32 = sbr.rel (0) target = $region13
    $region12: #{generator_forward.1} parent=1 // pred_region
      %s34 = ssub.s32 40960, 40960
      %35 = vsyncadd [#allocation9], %s34
      %s36 = sshll.u32 [#allocation8], 4
      %s37 = int_to_ptr.vmem [resolvable:$true] %s36
      %42 = dma.hbm_to_vmem [thread:$0]  %s2, 40960, %s37, [#allocation9], 320, 320, 20
    $region13: #{generator_forward.1} parent=1 // pred_fallthru
      _
    // Predicated region
    $region14: #{generator_forward.1} parent=1 // pred_check
      _
    $region15: #{generator_forward.1} parent=1 // pred_check_branch
      %44 = sbr.rel (0) target = $region17
    $region16: #{generator_forward.1} parent=1 // pred_region
      %s46 = ssub.s32 80, 80
      %47 = vsyncadd [#allocation9], %s46
      %s49 = sshll.u32 [#allocation10], 4
      %s50 = int_to_ptr.vmem [resolvable:$true] %s49
      %52 = dma.hbm_to_vmem [thread:$0]  %s3, 80, %s50, [#allocation9]
    $region17: #{generator_forward.1} parent=1 // pred_fallthru
      _
    // Predicated region
    $region18: #{generator_forward.1} parent=1 // pred_check
      _
    $region19: #{generator_forward.1} parent=1 // pred_check_branch
      %54 = sbr.rel (0) target = $region21
    $region20: #{generator_forward.1} parent=1 // pred_region
      _
    $region21: #{generator_forward.1} parent=1 // pred_fallthru
      _
    // Predicated region
    $region22: #{generator_forward.1} parent=1 // pred_check
      _
    $region23: #{generator_forward.1} parent=1 // pred_check_branch
      %56 = sbr.rel (0) target = $region25
    $region24: #{generator_forward.1} parent=1 // pred_region
      _
    $region25: #{generator_forward.1} parent=1 // pred_fallthru
      _
    // Predicated region
    $region26: #{generator_forward.1} parent=1 // pred_check
      _
    $region27: #{generator_forward.1} parent=1 // pred_check_branch
      %58 = sbr.rel (0) target = $region29
    $region28: #{generator_forward.1} parent=1 // pred_region
      _
    $region29: #{generator_forward.1} parent=1 // pred_fallthru
      _
    // Predicated region
    $region30: #{generator_forward.1} parent=1 // pred_check
      _
    $region31: #{generator_forward.1} parent=1 // pred_check_branch
      %60 = sbr.rel (0) target = $region33
    $region32: #{generator_forward.1} parent=1 // pred_region
      _
    $region33: #{generator_forward.1} parent=1 // pred_fallthru
      _
    // Predicated region
    $region34: #{generator_forward.1} parent=1 // pred_check
      _
    $region35: #{generator_forward.1} parent=1 // pred_check_branch
      %62 = sbr.rel (0) target = $region37
    $region36: #{generator_forward.1} parent=1 // pred_region
      %s64 = ssub.s32 1792, 1792
      %65 = vsyncadd [#allocation12], %s64
      %s66 = sshll.u32 [#allocation11], 4
      %s67 = int_to_ptr.vmem [resolvable:$true] %s66
      %72 = dma.hbm_to_vmem [thread:$0]  %s8, 1792, %s67, [#allocation12], 128, 128, 8
    $region37: #{generator_forward.1} parent=1 // pred_fallthru
      _
    // Predicated region
    $region38: #{generator_forward.1} parent=1 // pred_check
      _
    $region39: #{generator_forward.1} parent=1 // pred_check_branch
      %74 = sbr.rel (0) target = $region41
    $region40: #{generator_forward.1} parent=1 // pred_region
      _
    $region41: #{generator_forward.1} parent=1 // pred_fallthru
      _
    // Predicated region
    $region42: #{generator_forward.1} parent=1 // pred_check
      _
    $region43: #{generator_forward.1} parent=1 // pred_check_branch
      %76 = sbr.rel (0) target = $region45
    $region44: #{generator_forward.1} parent=1 // pred_region
      %77 = dma.done [#allocation6], 256
    $region45: #{generator_forward.1} parent=1 // pred_fallthru
      _
    // Predicated region
    $region46: #{generator_forward.1} parent=1 // pred_check
      _
    $region47: #{generator_forward.1} parent=1 // pred_check_branch
      %79 = sbr.rel (0) target = $region49
    $region48: #{generator_forward.1} parent=1 // pred_region
      %80 = dma.done [#allocation9], 40960
    $region49: #{generator_forward.1} parent=1 // pred_fallthru
      _
    // Predicated region
    $region50: #{generator_forward.1} parent=1 // pred_check
      _
    $region51: #{generator_forward.1} parent=1 // pred_check_branch
      %82 = sbr.rel (0) target = $region53
    $region52: #{generator_forward.1} parent=1 // pred_region
      %83 = dma.done [#allocation9], 80
    $region53: #{generator_forward.1} parent=1 // pred_fallthru
      _
    // Predicated region
    $region54: #{generator_forward.1} parent=1 // pred_check
      _
    $region55: #{generator_forward.1} parent=1 // pred_check_branch
      %85 = sbr.rel (0) target = $region57
    $region56: #{generator_forward.1} parent=1 // pred_region
      %86 = dma.done [#allocation12], 1792
    $region57: #{generator_forward.1} parent=1 // pred_fallthru
      _
    %v87 = vld [vmem:[%s0] sm:$0x1]
    %v88 = vld [vmem:[%s0 + $0x1] sm:$0x1]
    %v89 = vld [vmem:[%s0 + $0x2] sm:$0x1]
    %v90 = vld [vmem:[#allocation8] sm:$0xff]
    %v91 = vld [vmem:[#allocation8 + $0x8] sm:$0xff]
    %v92 = vld [vmem:[#allocation8 + $0x10] sm:$0xf]
    %v93 = vld [vmem:[#allocation8 + $0x14] sm:$0xff]
    %v94 = vld [vmem:[#allocation8 + $0x1c] sm:$0xff]
    %v95 = vld [vmem:[#allocation8 + $0x24] sm:$0xf]
    %v96 = vld [vmem:[#allocation8 + $0x28] sm:$0xff]
    %v97 = vld [vmem:[#allocation8 + $0x30] sm:$0xff]
    %v98 = vld [vmem:[#allocation8 + $0x38] sm:$0xf]
    %v99 = vld [vmem:[#allocation8 + $0x3c] sm:$0xff]
    %v100 = vld [vmem:[#allocation8 + $0x44] sm:$0xff]
    %v101 = vld [vmem:[#allocation8 + $0x4c] sm:$0xf]
    %v102 = vld [vmem:[#allocation8 + $0x50] sm:$0xff]
    %v103 = vld [vmem:[#allocation8 + $0x58] sm:$0xff]
    %v104 = vld [vmem:[#allocation8 + $0x60] sm:$0xf]
    %v105 = vld [vmem:[#allocation8 + $0x64] sm:$0xff]
    %v106 = vld [vmem:[#allocation8 + $0x6c] sm:$0xff]
    %v107 = vld [vmem:[#allocation8 + $0x74] sm:$0xf]
    %v108 = vld [vmem:[#allocation8 + $0x78] sm:$0xff]
    %v109 = vld [vmem:[#allocation8 + $0x80] sm:$0xff]
    %v110 = vld [vmem:[#allocation8 + $0x88] sm:$0xf]
    %v111 = vld [vmem:[#allocation8 + $0x8c] sm:$0xff]
    %v112 = vld [vmem:[#allocation8 + $0x94] sm:$0xff]
    %v113 = vld [vmem:[#allocation8 + $0x9c] sm:$0xf]
    %v114 = vld [vmem:[#allocation8 + $0xa0] sm:$0xff]
    %v115 = vld [vmem:[#allocation8 + $0xa8] sm:$0xff]
    %v116 = vld [vmem:[#allocation8 + $0xb0] sm:$0xf]
    %v117 = vld [vmem:[#allocation8 + $0xb4] sm:$0xff]
    %v118 = vld [vmem:[#allocation8 + $0xbc] sm:$0xff]
    %v119 = vld [vmem:[#allocation8 + $0xc4] sm:$0xf]
    %v120 = vld [vmem:[#allocation8 + $0xc8] sm:$0xff]
    %v121 = vld [vmem:[#allocation8 + $0xd0] sm:$0xff]
    %v122 = vld [vmem:[#allocation8 + $0xd8] sm:$0xf]
    %v123 = vld [vmem:[#allocation8 + $0xdc] sm:$0xff]
    %v124 = vld [vmem:[#allocation8 + $0xe4] sm:$0xff]
    %v125 = vld [vmem:[#allocation8 + $0xec] sm:$0xf]
    %v126 = vld [vmem:[#allocation8 + $0xf0] sm:$0xff]
    %v127 = vld [vmem:[#allocation8 + $0xf8] sm:$0xff]
    %v128 = vld [vmem:[#allocation8 + $0x100] sm:$0xf]
    %v129 = vld [vmem:[#allocation8 + $0x104] sm:$0xff]
    %v130 = vld [vmem:[#allocation8 + $0x10c] sm:$0xff]
    %v131 = vld [vmem:[#allocation8 + $0x114] sm:$0xf]
    %v132 = vld [vmem:[#allocation8 + $0x118] sm:$0xff]
    %v133 = vld [vmem:[#allocation8 + $0x120] sm:$0xff]
    %v134 = vld [vmem:[#allocation8 + $0x128] sm:$0xf]
    %v135 = vld [vmem:[#allocation8 + $0x12c] sm:$0xff]
    %v136 = vld [vmem:[#allocation8 + $0x134] sm:$0xff]
    %v137 = vld [vmem:[#allocation8 + $0x13c] sm:$0xf]
    %v138 = vld [vmem:[#allocation8 + $0x140] sm:$0xff]
    %v139 = vld [vmem:[#allocation8 + $0x148] sm:$0xff]
    %v140 = vld [vmem:[#allocation8 + $0x150] sm:$0xf]
    %v141 = vld [vmem:[#allocation8 + $0x154] sm:$0xff]
    %v142 = vld [vmem:[#allocation8 + $0x15c] sm:$0xff]
    %v143 = vld [vmem:[#allocation8 + $0x164] sm:$0xf]
    %v144 = vld [vmem:[#allocation8 + $0x168] sm:$0xff]
    %v145 = vld [vmem:[#allocation8 + $0x170] sm:$0xff]
    %v146 = vld [vmem:[#allocation8 + $0x178] sm:$0xf]
    %v147 = vld [vmem:[#allocation8 + $0x17c] sm:$0xff]
    %v148 = vld [vmem:[#allocation8 + $0x184] sm:$0xff]
    %v149 = vld [vmem:[#allocation8 + $0x18c] sm:$0xf]
    %v150 = vld [vmem:[#allocation8 + $0x190] sm:$0xff]
    %v151 = vld [vmem:[#allocation8 + $0x198] sm:$0xff]
    %v152 = vld [vmem:[#allocation8 + $0x1a0] sm:$0xf]
    %v153 = vld [vmem:[#allocation8 + $0x1a4] sm:$0xff]
    %v154 = vld [vmem:[#allocation8 + $0x1ac] sm:$0xff]
    %v155 = vld [vmem:[#allocation8 + $0x1b4] sm:$0xf]
    %v156 = vld [vmem:[#allocation8 + $0x1b8] sm:$0xff]
    %v157 = vld [vmem:[#allocation8 + $0x1c0] sm:$0xff]
    %v158 = vld [vmem:[#allocation8 + $0x1c8] sm:$0xf]
    %v159 = vld [vmem:[#allocation8 + $0x1cc] sm:$0xff]
    %v160 = vld [vmem:[#allocation8 + $0x1d4] sm:$0xff]
    %v161 = vld [vmem:[#allocation8 + $0x1dc] sm:$0xf]
    %v162 = vld [vmem:[#allocation8 + $0x1e0] sm:$0xff]
    %v163 = vld [vmem:[#allocation8 + $0x1e8] sm:$0xff]
    %v164 = vld [vmem:[#allocation8 + $0x1f0] sm:$0xf]
    %v165 = vld [vmem:[#allocation8 + $0x1f4] sm:$0xff]
    %v166 = vld [vmem:[#allocation8 + $0x1fc] sm:$0xff]
    %v167 = vld [vmem:[#allocation8 + $0x204] sm:$0xf]
    %v168 = vld [vmem:[#allocation8 + $0x208] sm:$0xff]
    %v169 = vld [vmem:[#allocation8 + $0x210] sm:$0xff]
    %v170 = vld [vmem:[#allocation8 + $0x218] sm:$0xf]
    %v171 = vld [vmem:[#allocation8 + $0x21c] sm:$0xff]
    %v172 = vld [vmem:[#allocation8 + $0x224] sm:$0xff]
    %v173 = vld [vmem:[#allocation8 + $0x22c] sm:$0xf]
    %v174 = vld [vmem:[#allocation8 + $0x230] sm:$0xff]
    %v175 = vld [vmem:[#allocation8 + $0x238] sm:$0xff]
    %v176 = vld [vmem:[#allocation8 + $0x240] sm:$0xf]
    %v177 = vld [vmem:[#allocation8 + $0x244] sm:$0xff]
    %v178 = vld [vmem:[#allocation8 + $0x24c] sm:$0xff]
    %v179 = vld [vmem:[#allocation8 + $0x254] sm:$0xf]
    %v180 = vld [vmem:[#allocation8 + $0x258] sm:$0xff]
    %v181 = vld [vmem:[#allocation8 + $0x260] sm:$0xff]
    %v182 = vld [vmem:[#allocation8 + $0x268] sm:$0xf]
    %v183 = vld [vmem:[#allocation8 + $0x26c] sm:$0xff]
    %v184 = vld [vmem:[#allocation8 + $0x274] sm:$0xff]
    %v185 = vld [vmem:[#allocation8 + $0x27c] sm:$0xf]
    %v186 = vld [vmem:[#allocation8 + $0x280] sm:$0xff]
    %v187 = vld [vmem:[#allocation8 + $0x288] sm:$0xff]
    %v188 = vld [vmem:[#allocation8 + $0x290] sm:$0xf]
    %v189 = vld [vmem:[#allocation8 + $0x294] sm:$0xff]
    %v190 = vld [vmem:[#allocation8 + $0x29c] sm:$0xff]
    %v191 = vld [vmem:[#allocation8 + $0x2a4] sm:$0xf]
    %v192 = vld [vmem:[#allocation8 + $0x2a8] sm:$0xff]
    %v193 = vld [vmem:[#allocation8 + $0x2b0] sm:$0xff]
    %v194 = vld [vmem:[#allocation8 + $0x2b8] sm:$0xf]
    %v195 = vld [vmem:[#allocation8 + $0x2bc] sm:$0xff]
    %v196 = vld [vmem:[#allocation8 + $0x2c4] sm:$0xff]
    %v197 = vld [vmem:[#allocation8 + $0x2cc] sm:$0xf]
    %v198 = vld [vmem:[#allocation8 + $0x2d0] sm:$0xff]
    %v199 = vld [vmem:[#allocation8 + $0x2d8] sm:$0xff]
    %v200 = vld [vmem:[#allocation8 + $0x2e0] sm:$0xf]
    %v201 = vld [vmem:[#allocation8 + $0x2e4] sm:$0xff]
    %v202 = vld [vmem:[#allocation8 + $0x2ec] sm:$0xff]
    %v203 = vld [vmem:[#allocation8 + $0x2f4] sm:$0xf]
    %v204 = vld [vmem:[#allocation8 + $0x2f8] sm:$0xff]
    %v205 = vld [vmem:[#allocation8 + $0x300] sm:$0xff]
    %v206 = vld [vmem:[#allocation8 + $0x308] sm:$0xf]
    %v207 = vld [vmem:[#allocation8 + $0x30c] sm:$0xff]
    %v208 = vld [vmem:[#allocation8 + $0x314] sm:$0xff]
    %v209 = vld [vmem:[#allocation8 + $0x31c] sm:$0xf]
    %v210 = vld [vmem:[#allocation8 + $0x320] sm:$0xff]
    %v211 = vld [vmem:[#allocation8 + $0x328] sm:$0xff]
    %v212 = vld [vmem:[#allocation8 + $0x330] sm:$0xf]
    %v213 = vld [vmem:[#allocation8 + $0x334] sm:$0xff]
    %v214 = vld [vmem:[#allocation8 + $0x33c] sm:$0xff]
    %v215 = vld [vmem:[#allocation8 + $0x344] sm:$0xf]
    %v216 = vld [vmem:[#allocation8 + $0x348] sm:$0xff]
    %v217 = vld [vmem:[#allocation8 + $0x350] sm:$0xff]
    %v218 = vld [vmem:[#allocation8 + $0x358] sm:$0xf]
    %v219 = vld [vmem:[#allocation8 + $0x35c] sm:$0xff]
    %v220 = vld [vmem:[#allocation8 + $0x364] sm:$0xff]
    %v221 = vld [vmem:[#allocation8 + $0x36c] sm:$0xf]
    %v222 = vld [vmem:[#allocation8 + $0x370] sm:$0xff]
    %v223 = vld [vmem:[#allocation8 + $0x378] sm:$0xff]
    %v224 = vld [vmem:[#allocation8 + $0x380] sm:$0xf]
    %v225 = vld [vmem:[#allocation8 + $0x384] sm:$0xff]
    %v226 = vld [vmem:[#allocation8 + $0x38c] sm:$0xff]
    %v227 = vld [vmem:[#allocation8 + $0x394] sm:$0xf]
    %v228 = vld [vmem:[#allocation8 + $0x398] sm:$0xff]
    %v229 = vld [vmem:[#allocation8 + $0x3a0] sm:$0xff]
    %v230 = vld [vmem:[#allocation8 + $0x3a8] sm:$0xf]
    %v231 = vld [vmem:[#allocation8 + $0x3ac] sm:$0xff]
    %v232 = vld [vmem:[#allocation8 + $0x3b4] sm:$0xff]
    %v233 = vld [vmem:[#allocation8 + $0x3bc] sm:$0xf]
    %v234 = vld [vmem:[#allocation8 + $0x3c0] sm:$0xff]
    %v235 = vld [vmem:[#allocation8 + $0x3c8] sm:$0xff]
    %v236 = vld [vmem:[#allocation8 + $0x3d0] sm:$0xf]
    %v237 = vld [vmem:[#allocation8 + $0x3d4] sm:$0xff]
    %v238 = vld [vmem:[#allocation8 + $0x3dc] sm:$0xff]
    %v239 = vld [vmem:[#allocation8 + $0x3e4] sm:$0xf]
    %v240 = vld [vmem:[#allocation8 + $0x3e8] sm:$0xff]
    %v241 = vld [vmem:[#allocation8 + $0x3f0] sm:$0xff]
    %v242 = vld [vmem:[#allocation8 + $0x3f8] sm:$0xf]
    %v243 = vld [vmem:[#allocation8 + $0x3fc] sm:$0xff]
    %v244 = vld [vmem:[#allocation8 + $0x404] sm:$0xff]
    %v245 = vld [vmem:[#allocation8 + $0x40c] sm:$0xf]
    %v246 = vld [vmem:[#allocation8 + $0x410] sm:$0xff]
    %v247 = vld [vmem:[#allocation8 + $0x418] sm:$0xff]
    %v248 = vld [vmem:[#allocation8 + $0x420] sm:$0xf]
    %v249 = vld [vmem:[#allocation8 + $0x424] sm:$0xff]
    %v250 = vld [vmem:[#allocation8 + $0x42c] sm:$0xff]
    %v251 = vld [vmem:[#allocation8 + $0x434] sm:$0xf]
    %v252 = vld [vmem:[#allocation8 + $0x438] sm:$0xff]
    %v253 = vld [vmem:[#allocation8 + $0x440] sm:$0xff]
    %v254 = vld [vmem:[#allocation8 + $0x448] sm:$0xf]
    %v255 = vld [vmem:[#allocation8 + $0x44c] sm:$0xff]
    %v256 = vld [vmem:[#allocation8 + $0x454] sm:$0xff]
    %v257 = vld [vmem:[#allocation8 + $0x45c] sm:$0xf]
    %v258 = vld [vmem:[#allocation8 + $0x460] sm:$0xff]
    %v259 = vld [vmem:[#allocation8 + $0x468] sm:$0xff]
    %v260 = vld [vmem:[#allocation8 + $0x470] sm:$0xf]
    %v261 = vld [vmem:[#allocation8 + $0x474] sm:$0xff]
    %v262 = vld [vmem:[#allocation8 + $0x47c] sm:$0xff]
    %v263 = vld [vmem:[#allocation8 + $0x484] sm:$0xf]
    %v264 = vld [vmem:[#allocation8 + $0x488] sm:$0xff]
    %v265 = vld [vmem:[#allocation8 + $0x490] sm:$0xff]
    %v266 = vld [vmem:[#allocation8 + $0x498] sm:$0xf]
    %v267 = vld [vmem:[#allocation8 + $0x49c] sm:$0xff]
    %v268 = vld [vmem:[#allocation8 + $0x4a4] sm:$0xff]
    %v269 = vld [vmem:[#allocation8 + $0x4ac] sm:$0xf]
    %v270 = vld [vmem:[#allocation8 + $0x4b0] sm:$0xff]
    %v271 = vld [vmem:[#allocation8 + $0x4b8] sm:$0xff]
    %v272 = vld [vmem:[#allocation8 + $0x4c0] sm:$0xf]
    %v273 = vld [vmem:[#allocation8 + $0x4c4] sm:$0xff]
    %v274 = vld [vmem:[#allocation8 + $0x4cc] sm:$0xff]
    %v275 = vld [vmem:[#allocation8 + $0x4d4] sm:$0xf]
    %v276 = vld [vmem:[#allocation8 + $0x4d8] sm:$0xff]
    %v277 = vld [vmem:[#allocation8 + $0x4e0] sm:$0xff]
    %v278 = vld [vmem:[#allocation8 + $0x4e8] sm:$0xf]
    %v279 = vld [vmem:[#allocation8 + $0x4ec] sm:$0xff]
    %v280 = vld [vmem:[#allocation8 + $0x4f4] sm:$0xff]
    %v281 = vld [vmem:[#allocation8 + $0x4fc] sm:$0xf]
    %v282 = vld [vmem:[#allocation8 + $0x500] sm:$0xff]
    %v283 = vld [vmem:[#allocation8 + $0x508] sm:$0xff]
    %v284 = vld [vmem:[#allocation8 + $0x510] sm:$0xf]
    %v285 = vld [vmem:[#allocation8 + $0x514] sm:$0xff]
    %v286 = vld [vmem:[#allocation8 + $0x51c] sm:$0xff]
    %v287 = vld [vmem:[#allocation8 + $0x524] sm:$0xf]
    %v288 = vld [vmem:[#allocation8 + $0x528] sm:$0xff]
    %v289 = vld [vmem:[#allocation8 + $0x530] sm:$0xff]
    %v290 = vld [vmem:[#allocation8 + $0x538] sm:$0xf]
    %v291 = vld [vmem:[#allocation8 + $0x53c] sm:$0xff]
    %v292 = vld [vmem:[#allocation8 + $0x544] sm:$0xff]
    %v293 = vld [vmem:[#allocation8 + $0x54c] sm:$0xf]
    %v294 = vld [vmem:[#allocation8 + $0x550] sm:$0xff]
    %v295 = vld [vmem:[#allocation8 + $0x558] sm:$0xff]
    %v296 = vld [vmem:[#allocation8 + $0x560] sm:$0xf]
    %v297 = vld [vmem:[#allocation8 + $0x564] sm:$0xff]
    %v298 = vld [vmem:[#allocation8 + $0x56c] sm:$0xff]
    %v299 = vld [vmem:[#allocation8 + $0x574] sm:$0xf]
    %v300 = vld [vmem:[#allocation8 + $0x578] sm:$0xff]
    %v301 = vld [vmem:[#allocation8 + $0x580] sm:$0xff]
    %v302 = vld [vmem:[#allocation8 + $0x588] sm:$0xf]
    %v303 = vld [vmem:[#allocation8 + $0x58c] sm:$0xff]
    %v304 = vld [vmem:[#allocation8 + $0x594] sm:$0xff]
    %v305 = vld [vmem:[#allocation8 + $0x59c] sm:$0xf]
    %v306 = vld [vmem:[#allocation8 + $0x5a0] sm:$0xff]
    %v307 = vld [vmem:[#allocation8 + $0x5a8] sm:$0xff]
    %v308 = vld [vmem:[#allocation8 + $0x5b0] sm:$0xf]
    %v309 = vld [vmem:[#allocation8 + $0x5b4] sm:$0xff]
    %v310 = vld [vmem:[#allocation8 + $0x5bc] sm:$0xff]
    %v311 = vld [vmem:[#allocation8 + $0x5c4] sm:$0xf]
    %v312 = vld [vmem:[#allocation8 + $0x5c8] sm:$0xff]
    %v313 = vld [vmem:[#allocation8 + $0x5d0] sm:$0xff]
    %v314 = vld [vmem:[#allocation8 + $0x5d8] sm:$0xf]
    %v315 = vld [vmem:[#allocation8 + $0x5dc] sm:$0xff]
    %v316 = vld [vmem:[#allocation8 + $0x5e4] sm:$0xff]
    %v317 = vld [vmem:[#allocation8 + $0x5ec] sm:$0xf]
    %v318 = vld [vmem:[#allocation8 + $0x5f0] sm:$0xff]
    %v319 = vld [vmem:[#allocation8 + $0x5f8] sm:$0xff]
    %v320 = vld [vmem:[#allocation8 + $0x600] sm:$0xf]
    %v321 = vld [vmem:[#allocation8 + $0x604] sm:$0xff]
    %v322 = vld [vmem:[#allocation8 + $0x60c] sm:$0xff]
    %v323 = vld [vmem:[#allocation8 + $0x614] sm:$0xf]
    %v324 = vld [vmem:[#allocation8 + $0x618] sm:$0xff]
    %v325 = vld [vmem:[#allocation8 + $0x620] sm:$0xff]
    %v326 = vld [vmem:[#allocation8 + $0x628] sm:$0xf]
    %v327 = vld [vmem:[#allocation8 + $0x62c] sm:$0xff]
    %v328 = vld [vmem:[#allocation8 + $0x634] sm:$0xff]
    %v329 = vld [vmem:[#allocation8 + $0x63c] sm:$0xf]
    %v330 = vld [vmem:[#allocation8 + $0x640] sm:$0xff]
    %v331 = vld [vmem:[#allocation8 + $0x648] sm:$0xff]
    %v332 = vld [vmem:[#allocation8 + $0x650] sm:$0xf]
    %v333 = vld [vmem:[#allocation8 + $0x654] sm:$0xff]
    %v334 = vld [vmem:[#allocation8 + $0x65c] sm:$0xff]
    %v335 = vld [vmem:[#allocation8 + $0x664] sm:$0xf]
    %v336 = vld [vmem:[#allocation8 + $0x668] sm:$0xff]
    %v337 = vld [vmem:[#allocation8 + $0x670] sm:$0xff]
    %v338 = vld [vmem:[#allocation8 + $0x678] sm:$0xf]
    %v339 = vld [vmem:[#allocation8 + $0x67c] sm:$0xff]
    %v340 = vld [vmem:[#allocation8 + $0x684] sm:$0xff]
    %v341 = vld [vmem:[#allocation8 + $0x68c] sm:$0xf]
    %v342 = vld [vmem:[#allocation8 + $0x690] sm:$0xff]
    %v343 = vld [vmem:[#allocation8 + $0x698] sm:$0xff]
    %v344 = vld [vmem:[#allocation8 + $0x6a0] sm:$0xf]
    %v345 = vld [vmem:[#allocation8 + $0x6a4] sm:$0xff]
    %v346 = vld [vmem:[#allocation8 + $0x6ac] sm:$0xff]
    %v347 = vld [vmem:[#allocation8 + $0x6b4] sm:$0xf]
    %v348 = vld [vmem:[#allocation8 + $0x6b8] sm:$0xff]
    %v349 = vld [vmem:[#allocation8 + $0x6c0] sm:$0xff]
    %v350 = vld [vmem:[#allocation8 + $0x6c8] sm:$0xf]
    %v351 = vld [vmem:[#allocation8 + $0x6cc] sm:$0xff]
    %v352 = vld [vmem:[#allocation8 + $0x6d4] sm:$0xff]
    %v353 = vld [vmem:[#allocation8 + $0x6dc] sm:$0xf]
    %v354 = vld [vmem:[#allocation8 + $0x6e0] sm:$0xff]
    %v355 = vld [vmem:[#allocation8 + $0x6e8] sm:$0xff]
    %v356 = vld [vmem:[#allocation8 + $0x6f0] sm:$0xf]
    %v357 = vld [vmem:[#allocation8 + $0x6f4] sm:$0xff]
    %v358 = vld [vmem:[#allocation8 + $0x6fc] sm:$0xff]
    %v359 = vld [vmem:[#allocation8 + $0x704] sm:$0xf]
    %v360 = vld [vmem:[#allocation8 + $0x708] sm:$0xff]
    %v361 = vld [vmem:[#allocation8 + $0x710] sm:$0xff]
    %v362 = vld [vmem:[#allocation8 + $0x718] sm:$0xf]
    %v363 = vld [vmem:[#allocation8 + $0x71c] sm:$0xff]
    %v364 = vld [vmem:[#allocation8 + $0x724] sm:$0xff]
    %v365 = vld [vmem:[#allocation8 + $0x72c] sm:$0xf]
    %v366 = vld [vmem:[#allocation8 + $0x730] sm:$0xff]
    %v367 = vld [vmem:[#allocation8 + $0x738] sm:$0xff]
    %v368 = vld [vmem:[#allocation8 + $0x740] sm:$0xf]
    %v369 = vld [vmem:[#allocation8 + $0x744] sm:$0xff]
    %v370 = vld [vmem:[#allocation8 + $0x74c] sm:$0xff]
    %v371 = vld [vmem:[#allocation8 + $0x754] sm:$0xf]
    %v372 = vld [vmem:[#allocation8 + $0x758] sm:$0xff]
    %v373 = vld [vmem:[#allocation8 + $0x760] sm:$0xff]
    %v374 = vld [vmem:[#allocation8 + $0x768] sm:$0xf]
    %v375 = vld [vmem:[#allocation8 + $0x76c] sm:$0xff]
    %v376 = vld [vmem:[#allocation8 + $0x774] sm:$0xff]
    %v377 = vld [vmem:[#allocation8 + $0x77c] sm:$0xf]
    %v378 = vld [vmem:[#allocation8 + $0x780] sm:$0xff]
    %v379 = vld [vmem:[#allocation8 + $0x788] sm:$0xff]
    %v380 = vld [vmem:[#allocation8 + $0x790] sm:$0xf]
    %v381 = vld [vmem:[#allocation8 + $0x794] sm:$0xff]
    %v382 = vld [vmem:[#allocation8 + $0x79c] sm:$0xff]
    %v383 = vld [vmem:[#allocation8 + $0x7a4] sm:$0xf]
    %v384 = vld [vmem:[#allocation8 + $0x7a8] sm:$0xff]
    %v385 = vld [vmem:[#allocation8 + $0x7b0] sm:$0xff]
    %v386 = vld [vmem:[#allocation8 + $0x7b8] sm:$0xf]
    %v387 = vld [vmem:[#allocation8 + $0x7bc] sm:$0xff]
    %v388 = vld [vmem:[#allocation8 + $0x7c4] sm:$0xff]
    %v389 = vld [vmem:[#allocation8 + $0x7cc] sm:$0xf]
    %v390 = vld [vmem:[#allocation8 + $0x7d0] sm:$0xff]
    %v391 = vld [vmem:[#allocation8 + $0x7d8] sm:$0xff]
    %v392 = vld [vmem:[#allocation8 + $0x7e0] sm:$0xf]
    %v393 = vld [vmem:[#allocation8 + $0x7e4] sm:$0xff]
    %v394 = vld [vmem:[#allocation8 + $0x7ec] sm:$0xff]
    %v395 = vld [vmem:[#allocation8 + $0x7f4] sm:$0xf]
    %v396 = vld [vmem:[#allocation8 + $0x7f8] sm:$0xff]
    %v397 = vld [vmem:[#allocation8 + $0x800] sm:$0xff]
    %v398 = vld [vmem:[#allocation8 + $0x808] sm:$0xf]
    %v399 = vld [vmem:[#allocation8 + $0x80c] sm:$0xff]
    %v400 = vld [vmem:[#allocation8 + $0x814] sm:$0xff]
    %v401 = vld [vmem:[#allocation8 + $0x81c] sm:$0xf]
    %v402 = vld [vmem:[#allocation8 + $0x820] sm:$0xff]
    %v403 = vld [vmem:[#allocation8 + $0x828] sm:$0xff]
    %v404 = vld [vmem:[#allocation8 + $0x830] sm:$0xf]
    %v405 = vld [vmem:[#allocation8 + $0x834] sm:$0xff]
    %v406 = vld [vmem:[#allocation8 + $0x83c] sm:$0xff]
    %v407 = vld [vmem:[#allocation8 + $0x844] sm:$0xf]
    %v408 = vld [vmem:[#allocation8 + $0x848] sm:$0xff]
    %v409 = vld [vmem:[#allocation8 + $0x850] sm:$0xff]
    %v410 = vld [vmem:[#allocation8 + $0x858] sm:$0xf]
    %v411 = vld [vmem:[#allocation8 + $0x85c] sm:$0xff]
    %v412 = vld [vmem:[#allocation8 + $0x864] sm:$0xff]
    %v413 = vld [vmem:[#allocation8 + $0x86c] sm:$0xf]
    %v414 = vld [vmem:[#allocation8 + $0x870] sm:$0xff]
    %v415 = vld [vmem:[#allocation8 + $0x878] sm:$0xff]
    %v416 = vld [vmem:[#allocation8 + $0x880] sm:$0xf]
    %v417 = vld [vmem:[#allocation8 + $0x884] sm:$0xff]
    %v418 = vld [vmem:[#allocation8 + $0x88c] sm:$0xff]
    %v419 = vld [vmem:[#allocation8 + $0x894] sm:$0xf]
    %v420 = vld [vmem:[#allocation8 + $0x898] sm:$0xff]
    %v421 = vld [vmem:[#allocation8 + $0x8a0] sm:$0xff]
    %v422 = vld [vmem:[#allocation8 + $0x8a8] sm:$0xf]
    %v423 = vld [vmem:[#allocation8 + $0x8ac] sm:$0xff]
    %v424 = vld [vmem:[#allocation8 + $0x8b4] sm:$0xff]
    %v425 = vld [vmem:[#allocation8 + $0x8bc] sm:$0xf]
    %v426 = vld [vmem:[#allocation8 + $0x8c0] sm:$0xff]
    %v427 = vld [vmem:[#allocation8 + $0x8c8] sm:$0xff]
    %v428 = vld [vmem:[#allocation8 + $0x8d0] sm:$0xf]
    %v429 = vld [vmem:[#allocation8 + $0x8d4] sm:$0xff]
    %v430 = vld [vmem:[#allocation8 + $0x8dc] sm:$0xff]
    %v431 = vld [vmem:[#allocation8 + $0x8e4] sm:$0xf]
    %v432 = vld [vmem:[#allocation8 + $0x8e8] sm:$0xff]
    %v433 = vld [vmem:[#allocation8 + $0x8f0] sm:$0xff]
    %v434 = vld [vmem:[#allocation8 + $0x8f8] sm:$0xf]
    %v435 = vld [vmem:[#allocation8 + $0x8fc] sm:$0xff]
    %v436 = vld [vmem:[#allocation8 + $0x904] sm:$0xff]
    %v437 = vld [vmem:[#allocation8 + $0x90c] sm:$0xf]
    %v438 = vld [vmem:[#allocation8 + $0x910] sm:$0xff]
    %v439 = vld [vmem:[#allocation8 + $0x918] sm:$0xff]
    %v440 = vld [vmem:[#allocation8 + $0x920] sm:$0xf]
    %v441 = vld [vmem:[#allocation8 + $0x924] sm:$0xff]
    %v442 = vld [vmem:[#allocation8 + $0x92c] sm:$0xff]
    %v443 = vld [vmem:[#allocation8 + $0x934] sm:$0xf]
    %v444 = vld [vmem:[#allocation8 + $0x938] sm:$0xff]
    %v445 = vld [vmem:[#allocation8 + $0x940] sm:$0xff]
    %v446 = vld [vmem:[#allocation8 + $0x948] sm:$0xf]
    %v447 = vld [vmem:[#allocation8 + $0x94c] sm:$0xff]
    %v448 = vld [vmem:[#allocation8 + $0x954] sm:$0xff]
    %v449 = vld [vmem:[#allocation8 + $0x95c] sm:$0xf]
    %v450 = vld [vmem:[#allocation8 + $0x960] sm:$0xff]
    %v451 = vld [vmem:[#allocation8 + $0x968] sm:$0xff]
    %v452 = vld [vmem:[#allocation8 + $0x970] sm:$0xf]
    %v453 = vld [vmem:[#allocation8 + $0x974] sm:$0xff]
    %v454 = vld [vmem:[#allocation8 + $0x97c] sm:$0xff]
    %v455 = vld [vmem:[#allocation8 + $0x984] sm:$0xf]
    %v456 = vld [vmem:[#allocation8 + $0x988] sm:$0xff]
    %v457 = vld [vmem:[#allocation8 + $0x990] sm:$0xff]
    %v458 = vld [vmem:[#allocation8 + $0x998] sm:$0xf]
    %v459 = vld [vmem:[#allocation8 + $0x99c] sm:$0xff]
    %v460 = vld [vmem:[#allocation8 + $0x9a4] sm:$0xff]
    %v461 = vld [vmem:[#allocation8 + $0x9ac] sm:$0xf]
    %v462 = vld [vmem:[#allocation8 + $0x9b0] sm:$0xff]
    %v463 = vld [vmem:[#allocation8 + $0x9b8] sm:$0xff]
    %v464 = vld [vmem:[#allocation8 + $0x9c0] sm:$0xf]
    %v465 = vld [vmem:[#allocation8 + $0x9c4] sm:$0xff]
    %v466 = vld [vmem:[#allocation8 + $0x9cc] sm:$0xff]
    %v467 = vld [vmem:[#allocation8 + $0x9d4] sm:$0xf]
    %v468 = vld [vmem:[#allocation8 + $0x9d8] sm:$0xff]
    %v469 = vld [vmem:[#allocation8 + $0x9e0] sm:$0xff]
    %v470 = vld [vmem:[#allocation8 + $0x9e8] sm:$0xf]
    %v471 = vld [vmem:[#allocation8 + $0x9ec] sm:$0xff]
    %v472 = vld [vmem:[#allocation8 + $0x9f4] sm:$0xff]
    %v473 = vld [vmem:[#allocation8 + $0x9fc] sm:$0xf]
    %v474 = vunpack.c.l.bf16 %v90
    %v475 = vunpack.c.h.bf16 %v90
    %v476 = vunpack.c.l.bf16 %v91
    %v477 = vunpack.c.h.bf16 %v91
    %v478 = vunpack.c.l.bf16 %v92
    %v479 = vunpack.c.l.bf16 %v93
    %v480 = vunpack.c.h.bf16 %v93
    %v481 = vunpack.c.l.bf16 %v94
    %v482 = vunpack.c.h.bf16 %v94
    %v483 = vunpack.c.l.bf16 %v95
    %v484 = vunpack.c.l.bf16 %v96
    %v485 = vunpack.c.h.bf16 %v96
    %v486 = vunpack.c.l.bf16 %v97
    %v487 = vunpack.c.h.bf16 %v97
    %v488 = vunpack.c.l.bf16 %v98
    %v489 = vunpack.c.l.bf16 %v99
    %v490 = vunpack.c.h.bf16 %v99
    %v491 = vunpack.c.l.bf16 %v100
    %v492 = vunpack.c.h.bf16 %v100
    %v493 = vunpack.c.l.bf16 %v101
    %v494 = vunpack.c.l.bf16 %v102
    %v495 = vunpack.c.h.bf16 %v102
    %v496 = vunpack.c.l.bf16 %v103
    %v497 = vunpack.c.h.bf16 %v103
    %v498 = vunpack.c.l.bf16 %v104
    %v499 = vunpack.c.l.bf16 %v105
    %v500 = vunpack.c.h.bf16 %v105
    %v501 = vunpack.c.l.bf16 %v106
    %v502 = vunpack.c.h.bf16 %v106
    %v503 = vunpack.c.l.bf16 %v107
    %v504 = vunpack.c.l.bf16 %v108
    %v505 = vunpack.c.h.bf16 %v108
    %v506 = vunpack.c.l.bf16 %v109
    %v507 = vunpack.c.h.bf16 %v109
    %v508 = vunpack.c.l.bf16 %v110
    %v509 = vunpack.c.l.bf16 %v111
    %v510 = vunpack.c.h.bf16 %v111
    %v511 = vunpack.c.l.bf16 %v112
    %v512 = vunpack.c.h.bf16 %v112
    %v513 = vunpack.c.l.bf16 %v113
    %v514 = vunpack.c.l.bf16 %v114
    %v515 = vunpack.c.h.bf16 %v114
    %v516 = vunpack.c.l.bf16 %v115
    %v517 = vunpack.c.h.bf16 %v115
    %v518 = vunpack.c.l.bf16 %v116
    %v519 = vunpack.c.l.bf16 %v117
    %v520 = vunpack.c.h.bf16 %v117
    %v521 = vunpack.c.l.bf16 %v118
    %v522 = vunpack.c.h.bf16 %v118
    %v523 = vunpack.c.l.bf16 %v119
    %v524 = vunpack.c.l.bf16 %v120
    %v525 = vunpack.c.h.bf16 %v120
    %v526 = vunpack.c.l.bf16 %v121
    %v527 = vunpack.c.h.bf16 %v121
    %v528 = vunpack.c.l.bf16 %v122
    %v529 = vunpack.c.l.bf16 %v123
    %v530 = vunpack.c.h.bf16 %v123
    %v531 = vunpack.c.l.bf16 %v124
    %v532 = vunpack.c.h.bf16 %v124
    %v533 = vunpack.c.l.bf16 %v125
    %v534 = vunpack.c.l.bf16 %v126
    %v535 = vunpack.c.h.bf16 %v126
    %v536 = vunpack.c.l.bf16 %v127
    %v537 = vunpack.c.h.bf16 %v127
    %v538 = vunpack.c.l.bf16 %v128
    %v539 = vunpack.c.l.bf16 %v129
    %v540 = vunpack.c.h.bf16 %v129
    %v541 = vunpack.c.l.bf16 %v130
    %v542 = vunpack.c.h.bf16 %v130
    %v543 = vunpack.c.l.bf16 %v131
    %v544 = vunpack.c.l.bf16 %v132
    %v545 = vunpack.c.h.bf16 %v132
    %v546 = vunpack.c.l.bf16 %v133
    %v547 = vunpack.c.h.bf16 %v133
    %v548 = vunpack.c.l.bf16 %v134
    %v549 = vunpack.c.l.bf16 %v135
    %v550 = vunpack.c.h.bf16 %v135
    %v551 = vunpack.c.l.bf16 %v136
    %v552 = vunpack.c.h.bf16 %v136
    %v553 = vunpack.c.l.bf16 %v137
    %v554 = vunpack.c.l.bf16 %v138
    %v555 = vunpack.c.h.bf16 %v138
    %v556 = vunpack.c.l.bf16 %v139
    %v557 = vunpack.c.h.bf16 %v139
    %v558 = vunpack.c.l.bf16 %v140
    %v559 = vunpack.c.l.bf16 %v141
    %v560 = vunpack.c.h.bf16 %v141
    %v561 = vunpack.c.l.bf16 %v142
    %v562 = vunpack.c.h.bf16 %v142
    %v563 = vunpack.c.l.bf16 %v143
    %v564 = vunpack.c.l.bf16 %v144
    %v565 = vunpack.c.h.bf16 %v144
    %v566 = vunpack.c.l.bf16 %v145
    %v567 = vunpack.c.h.bf16 %v145
    %v568 = vunpack.c.l.bf16 %v146
    %v569 = vunpack.c.l.bf16 %v147
    %v570 = vunpack.c.h.bf16 %v147
    %v571 = vunpack.c.l.bf16 %v148
    %v572 = vunpack.c.h.bf16 %v148
    %v573 = vunpack.c.l.bf16 %v149
    %v574 = vunpack.c.l.bf16 %v150
    %v575 = vunpack.c.h.bf16 %v150
    %v576 = vunpack.c.l.bf16 %v151
    %v577 = vunpack.c.h.bf16 %v151
    %v578 = vunpack.c.l.bf16 %v152
    %v579 = vunpack.c.l.bf16 %v153
    %v580 = vunpack.c.h.bf16 %v153
    %v581 = vunpack.c.l.bf16 %v154
    %v582 = vunpack.c.h.bf16 %v154
    %v583 = vunpack.c.l.bf16 %v155
    %v584 = vunpack.c.l.bf16 %v156
    %v585 = vunpack.c.h.bf16 %v156
    %v586 = vunpack.c.l.bf16 %v157
    %v587 = vunpack.c.h.bf16 %v157
    %v588 = vunpack.c.l.bf16 %v158
    %v589 = vunpack.c.l.bf16 %v159
    %v590 = vunpack.c.h.bf16 %v159
    %v591 = vunpack.c.l.bf16 %v160
    %v592 = vunpack.c.h.bf16 %v160
    %v593 = vunpack.c.l.bf16 %v161
    %v594 = vunpack.c.l.bf16 %v162
    %v595 = vunpack.c.h.bf16 %v162
    %v596 = vunpack.c.l.bf16 %v163
    %v597 = vunpack.c.h.bf16 %v163
    %v598 = vunpack.c.l.bf16 %v164
    %v599 = vunpack.c.l.bf16 %v165
    %v600 = vunpack.c.h.bf16 %v165
    %v601 = vunpack.c.l.bf16 %v166
    %v602 = vunpack.c.h.bf16 %v166
    %v603 = vunpack.c.l.bf16 %v167
    %v604 = vunpack.c.l.bf16 %v168
    %v605 = vunpack.c.h.bf16 %v168
    %v606 = vunpack.c.l.bf16 %v169
    %v607 = vunpack.c.h.bf16 %v169
    %v608 = vunpack.c.l.bf16 %v170
    %v609 = vunpack.c.l.bf16 %v171
    %v610 = vunpack.c.h.bf16 %v171
    %v611 = vunpack.c.l.bf16 %v172
    %v612 = vunpack.c.h.bf16 %v172
    %v613 = vunpack.c.l.bf16 %v173
    %v614 = vunpack.c.l.bf16 %v174
    %v615 = vunpack.c.h.bf16 %v174
    %v616 = vunpack.c.l.bf16 %v175
    %v617 = vunpack.c.h.bf16 %v175
    %v618 = vunpack.c.l.bf16 %v176
    %v619 = vunpack.c.l.bf16 %v177
    %v620 = vunpack.c.h.bf16 %v177
    %v621 = vunpack.c.l.bf16 %v178
    %v622 = vunpack.c.h.bf16 %v178
    %v623 = vunpack.c.l.bf16 %v179
    %v624 = vunpack.c.l.bf16 %v180
    %v625 = vunpack.c.h.bf16 %v180
    %v626 = vunpack.c.l.bf16 %v181
    %v627 = vunpack.c.h.bf16 %v181
    %v628 = vunpack.c.l.bf16 %v182
    %v629 = vunpack.c.l.bf16 %v183
    %v630 = vunpack.c.h.bf16 %v183
    %v631 = vunpack.c.l.bf16 %v184
    %v632 = vunpack.c.h.bf16 %v184
    %v633 = vunpack.c.l.bf16 %v185
    %v634 = vunpack.c.l.bf16 %v186
    %v635 = vunpack.c.h.bf16 %v186
    %v636 = vunpack.c.l.bf16 %v187
    %v637 = vunpack.c.h.bf16 %v187
    %v638 = vunpack.c.l.bf16 %v188
    %v639 = vunpack.c.l.bf16 %v189
    %v640 = vunpack.c.h.bf16 %v189
    %v641 = vunpack.c.l.bf16 %v190
    %v642 = vunpack.c.h.bf16 %v190
    %v643 = vunpack.c.l.bf16 %v191
    %v644 = vunpack.c.l.bf16 %v192
    %v645 = vunpack.c.h.bf16 %v192
    %v646 = vunpack.c.l.bf16 %v193
    %v647 = vunpack.c.h.bf16 %v193
    %v648 = vunpack.c.l.bf16 %v194
    %v649 = vunpack.c.l.bf16 %v195
    %v650 = vunpack.c.h.bf16 %v195
    %v651 = vunpack.c.l.bf16 %v196
    %v652 = vunpack.c.h.bf16 %v196
    %v653 = vunpack.c.l.bf16 %v197
    %v654 = vunpack.c.l.bf16 %v198
    %v655 = vunpack.c.h.bf16 %v198
    %v656 = vunpack.c.l.bf16 %v199
    %v657 = vunpack.c.h.bf16 %v199
    %v658 = vunpack.c.l.bf16 %v200
    %v659 = vunpack.c.l.bf16 %v201
    %v660 = vunpack.c.h.bf16 %v201
    %v661 = vunpack.c.l.bf16 %v202
    %v662 = vunpack.c.h.bf16 %v202
    %v663 = vunpack.c.l.bf16 %v203
    %v664 = vunpack.c.l.bf16 %v204
    %v665 = vunpack.c.h.bf16 %v204
    %v666 = vunpack.c.l.bf16 %v205
    %v667 = vunpack.c.h.bf16 %v205
    %v668 = vunpack.c.l.bf16 %v206
    %v669 = vunpack.c.l.bf16 %v207
    %v670 = vunpack.c.h.bf16 %v207
    %v671 = vunpack.c.l.bf16 %v208
    %v672 = vunpack.c.h.bf16 %v208
    %v673 = vunpack.c.l.bf16 %v209
    %v674 = vunpack.c.l.bf16 %v210
    %v675 = vunpack.c.h.bf16 %v210
    %v676 = vunpack.c.l.bf16 %v211
    %v677 = vunpack.c.h.bf16 %v211
    %v678 = vunpack.c.l.bf16 %v212
    %v679 = vunpack.c.l.bf16 %v213
    %v680 = vunpack.c.h.bf16 %v213
    %v681 = vunpack.c.l.bf16 %v214
    %v682 = vunpack.c.h.bf16 %v214
    %v683 = vunpack.c.l.bf16 %v215
    %v684 = vunpack.c.l.bf16 %v216
    %v685 = vunpack.c.h.bf16 %v216
    %v686 = vunpack.c.l.bf16 %v217
    %v687 = vunpack.c.h.bf16 %v217
    %v688 = vunpack.c.l.bf16 %v218
    %v689 = vunpack.c.l.bf16 %v219
    %v690 = vunpack.c.h.bf16 %v219
    %v691 = vunpack.c.l.bf16 %v220
    %v692 = vunpack.c.h.bf16 %v220
    %v693 = vunpack.c.l.bf16 %v221
    %v694 = vunpack.c.l.bf16 %v222
    %v695 = vunpack.c.h.bf16 %v222
    %v696 = vunpack.c.l.bf16 %v223
    %v697 = vunpack.c.h.bf16 %v223
    %v698 = vunpack.c.l.bf16 %v224
    %v699 = vunpack.c.l.bf16 %v225
    %v700 = vunpack.c.h.bf16 %v225
    %v701 = vunpack.c.l.bf16 %v226
    %v702 = vunpack.c.h.bf16 %v226
    %v703 = vunpack.c.l.bf16 %v227
    %v704 = vunpack.c.l.bf16 %v228
    %v705 = vunpack.c.h.bf16 %v228
    %v706 = vunpack.c.l.bf16 %v229
    %v707 = vunpack.c.h.bf16 %v229
    %v708 = vunpack.c.l.bf16 %v230
    %v709 = vunpack.c.l.bf16 %v231
    %v710 = vunpack.c.h.bf16 %v231
    %v711 = vunpack.c.l.bf16 %v232
    %v712 = vunpack.c.h.bf16 %v232
    %v713 = vunpack.c.l.bf16 %v233
    %v714 = vunpack.c.l.bf16 %v234
    %v715 = vunpack.c.h.bf16 %v234
    %v716 = vunpack.c.l.bf16 %v235
    %v717 = vunpack.c.h.bf16 %v235
    %v718 = vunpack.c.l.bf16 %v236
    %v719 = vunpack.c.l.bf16 %v237
    %v720 = vunpack.c.h.bf16 %v237
    %v721 = vunpack.c.l.bf16 %v238
    %v722 = vunpack.c.h.bf16 %v238
    %v723 = vunpack.c.l.bf16 %v239
    %v724 = vunpack.c.l.bf16 %v240
    %v725 = vunpack.c.h.bf16 %v240
    %v726 = vunpack.c.l.bf16 %v241
    %v727 = vunpack.c.h.bf16 %v241
    %v728 = vunpack.c.l.bf16 %v242
    %v729 = vunpack.c.l.bf16 %v243
    %v730 = vunpack.c.h.bf16 %v243
    %v731 = vunpack.c.l.bf16 %v244
    %v732 = vunpack.c.h.bf16 %v244
    %v733 = vunpack.c.l.bf16 %v245
    %v734 = vunpack.c.l.bf16 %v246
    %v735 = vunpack.c.h.bf16 %v246
    %v736 = vunpack.c.l.bf16 %v247
    %v737 = vunpack.c.h.bf16 %v247
    %v738 = vunpack.c.l.bf16 %v248
    %v739 = vunpack.c.l.bf16 %v249
    %v740 = vunpack.c.h.bf16 %v249
    %v741 = vunpack.c.l.bf16 %v250
    %v742 = vunpack.c.h.bf16 %v250
    %v743 = vunpack.c.l.bf16 %v251
    %v744 = vunpack.c.l.bf16 %v252
    %v745 = vunpack.c.h.bf16 %v252
    %v746 = vunpack.c.l.bf16 %v253
    %v747 = vunpack.c.h.bf16 %v253
    %v748 = vunpack.c.l.bf16 %v254
    %v749 = vunpack.c.l.bf16 %v255
    %v750 = vunpack.c.h.bf16 %v255
    %v751 = vunpack.c.l.bf16 %v256
    %v752 = vunpack.c.h.bf16 %v256
    %v753 = vunpack.c.l.bf16 %v257
    %v754 = vunpack.c.l.bf16 %v258
    %v755 = vunpack.c.h.bf16 %v258
    %v756 = vunpack.c.l.bf16 %v259
    %v757 = vunpack.c.h.bf16 %v259
    %v758 = vunpack.c.l.bf16 %v260
    %v759 = vunpack.c.l.bf16 %v261
    %v760 = vunpack.c.h.bf16 %v261
    %v761 = vunpack.c.l.bf16 %v262
    %v762 = vunpack.c.h.bf16 %v262
    %v763 = vunpack.c.l.bf16 %v263
    %v764 = vunpack.c.l.bf16 %v264
    %v765 = vunpack.c.h.bf16 %v264
    %v766 = vunpack.c.l.bf16 %v265
    %v767 = vunpack.c.h.bf16 %v265
    %v768 = vunpack.c.l.bf16 %v266
    %v769 = vunpack.c.l.bf16 %v267
    %v770 = vunpack.c.h.bf16 %v267
    %v771 = vunpack.c.l.bf16 %v268
    %v772 = vunpack.c.h.bf16 %v268
    %v773 = vunpack.c.l.bf16 %v269
    %v774 = vunpack.c.l.bf16 %v270
    %v775 = vunpack.c.h.bf16 %v270
    %v776 = vunpack.c.l.bf16 %v271
    %v777 = vunpack.c.h.bf16 %v271
    %v778 = vunpack.c.l.bf16 %v272
    %v779 = vunpack.c.l.bf16 %v273
    %v780 = vunpack.c.h.bf16 %v273
    %v781 = vunpack.c.l.bf16 %v274
    %v782 = vunpack.c.h.bf16 %v274
    %v783 = vunpack.c.l.bf16 %v275
    %v784 = vunpack.c.l.bf16 %v276
    %v785 = vunpack.c.h.bf16 %v276
    %v786 = vunpack.c.l.bf16 %v277
    %v787 = vunpack.c.h.bf16 %v277
    %v788 = vunpack.c.l.bf16 %v278
    %v789 = vunpack.c.l.bf16 %v279
    %v790 = vunpack.c.h.bf16 %v279
    %v791 = vunpack.c.l.bf16 %v280
    %v792 = vunpack.c.h.bf16 %v280
    %v793 = vunpack.c.l.bf16 %v281
    %v794 = vunpack.c.l.bf16 %v282
    %v795 = vunpack.c.h.bf16 %v282
    %v796 = vunpack.c.l.bf16 %v283
    %v797 = vunpack.c.h.bf16 %v283
    %v798 = vunpack.c.l.bf16 %v284
    %v799 = vunpack.c.l.bf16 %v285
    %v800 = vunpack.c.h.bf16 %v285
    %v801 = vunpack.c.l.bf16 %v286
    %v802 = vunpack.c.h.bf16 %v286
    %v803 = vunpack.c.l.bf16 %v287
    %v804 = vunpack.c.l.bf16 %v288
    %v805 = vunpack.c.h.bf16 %v288
    %v806 = vunpack.c.l.bf16 %v289
    %v807 = vunpack.c.h.bf16 %v289
    %v808 = vunpack.c.l.bf16 %v290
    %v809 = vunpack.c.l.bf16 %v291
    %v810 = vunpack.c.h.bf16 %v291
    %v811 = vunpack.c.l.bf16 %v292
    %v812 = vunpack.c.h.bf16 %v292
    %v813 = vunpack.c.l.bf16 %v293
    %v814 = vunpack.c.l.bf16 %v294
    %v815 = vunpack.c.h.bf16 %v294
    %v816 = vunpack.c.l.bf16 %v295
    %v817 = vunpack.c.h.bf16 %v295
    %v818 = vunpack.c.l.bf16 %v296
    %v819 = vunpack.c.l.bf16 %v297
    %v820 = vunpack.c.h.bf16 %v297
    %v821 = vunpack.c.l.bf16 %v298
    %v822 = vunpack.c.h.bf16 %v298
    %v823 = vunpack.c.l.bf16 %v299
    %v824 = vunpack.c.l.bf16 %v300
    %v825 = vunpack.c.h.bf16 %v300
    %v826 = vunpack.c.l.bf16 %v301
    %v827 = vunpack.c.h.bf16 %v301
    %v828 = vunpack.c.l.bf16 %v302
    %v829 = vunpack.c.l.bf16 %v303
    %v830 = vunpack.c.h.bf16 %v303
    %v831 = vunpack.c.l.bf16 %v304
    %v832 = vunpack.c.h.bf16 %v304
    %v833 = vunpack.c.l.bf16 %v305
    %v834 = vunpack.c.l.bf16 %v306
    %v835 = vunpack.c.h.bf16 %v306
    %v836 = vunpack.c.l.bf16 %v307
    %v837 = vunpack.c.h.bf16 %v307
    %v838 = vunpack.c.l.bf16 %v308
    %v839 = vunpack.c.l.bf16 %v309
    %v840 = vunpack.c.h.bf16 %v309
    %v841 = vunpack.c.l.bf16 %v310
    %v842 = vunpack.c.h.bf16 %v310
    %v843 = vunpack.c.l.bf16 %v311
    %v844 = vunpack.c.l.bf16 %v312
    %v845 = vunpack.c.h.bf16 %v312
    %v846 = vunpack.c.l.bf16 %v313
    %v847 = vunpack.c.h.bf16 %v313
    %v848 = vunpack.c.l.bf16 %v314
    %v849 = vunpack.c.l.bf16 %v315
    %v850 = vunpack.c.h.bf16 %v315
    %v851 = vunpack.c.l.bf16 %v316
    %v852 = vunpack.c.h.bf16 %v316
    %v853 = vunpack.c.l.bf16 %v317
    %v854 = vunpack.c.l.bf16 %v318
    %v855 = vunpack.c.h.bf16 %v318
    %v856 = vunpack.c.l.bf16 %v319
    %v857 = vunpack.c.h.bf16 %v319
    %v858 = vunpack.c.l.bf16 %v320
    %v859 = vunpack.c.l.bf16 %v321
    %v860 = vunpack.c.h.bf16 %v321
    %v861 = vunpack.c.l.bf16 %v322
    %v862 = vunpack.c.h.bf16 %v322
    %v863 = vunpack.c.l.bf16 %v323
    %v864 = vunpack.c.l.bf16 %v324
    %v865 = vunpack.c.h.bf16 %v324
    %v866 = vunpack.c.l.bf16 %v325
    %v867 = vunpack.c.h.bf16 %v325
    %v868 = vunpack.c.l.bf16 %v326
    %v869 = vunpack.c.l.bf16 %v327
    %v870 = vunpack.c.h.bf16 %v327
    %v871 = vunpack.c.l.bf16 %v328
    %v872 = vunpack.c.h.bf16 %v328
    %v873 = vunpack.c.l.bf16 %v329
    %v874 = vunpack.c.l.bf16 %v330
    %v875 = vunpack.c.h.bf16 %v330
    %v876 = vunpack.c.l.bf16 %v331
    %v877 = vunpack.c.h.bf16 %v331
    %v878 = vunpack.c.l.bf16 %v332
    %v879 = vunpack.c.l.bf16 %v333
    %v880 = vunpack.c.h.bf16 %v333
    %v881 = vunpack.c.l.bf16 %v334
    %v882 = vunpack.c.h.bf16 %v334
    %v883 = vunpack.c.l.bf16 %v335
    %v884 = vunpack.c.l.bf16 %v336
    %v885 = vunpack.c.h.bf16 %v336
    %v886 = vunpack.c.l.bf16 %v337
    %v887 = vunpack.c.h.bf16 %v337
    %v888 = vunpack.c.l.bf16 %v338
    %v889 = vunpack.c.l.bf16 %v339
    %v890 = vunpack.c.h.bf16 %v339
    %v891 = vunpack.c.l.bf16 %v340
    %v892 = vunpack.c.h.bf16 %v340
    %v893 = vunpack.c.l.bf16 %v341
    %v894 = vunpack.c.l.bf16 %v342
    %v895 = vunpack.c.h.bf16 %v342
    %v896 = vunpack.c.l.bf16 %v343
    %v897 = vunpack.c.h.bf16 %v343
    %v898 = vunpack.c.l.bf16 %v344
    %v899 = vunpack.c.l.bf16 %v345
    %v900 = vunpack.c.h.bf16 %v345
    %v901 = vunpack.c.l.bf16 %v346
    %v902 = vunpack.c.h.bf16 %v346
    %v903 = vunpack.c.l.bf16 %v347
    %v904 = vunpack.c.l.bf16 %v348
    %v905 = vunpack.c.h.bf16 %v348
    %v906 = vunpack.c.l.bf16 %v349
    %v907 = vunpack.c.h.bf16 %v349
    %v908 = vunpack.c.l.bf16 %v350
    %v909 = vunpack.c.l.bf16 %v351
    %v910 = vunpack.c.h.bf16 %v351
    %v911 = vunpack.c.l.bf16 %v352
    %v912 = vunpack.c.h.bf16 %v352
    %v913 = vunpack.c.l.bf16 %v353
    %v914 = vunpack.c.l.bf16 %v354
    %v915 = vunpack.c.h.bf16 %v354
    %v916 = vunpack.c.l.bf16 %v355
    %v917 = vunpack.c.h.bf16 %v355
    %v918 = vunpack.c.l.bf16 %v356
    %v919 = vunpack.c.l.bf16 %v357
    %v920 = vunpack.c.h.bf16 %v357
    %v921 = vunpack.c.l.bf16 %v358
    %v922 = vunpack.c.h.bf16 %v358
    %v923 = vunpack.c.l.bf16 %v359
    %v924 = vunpack.c.l.bf16 %v360
    %v925 = vunpack.c.h.bf16 %v360
    %v926 = vunpack.c.l.bf16 %v361
    %v927 = vunpack.c.h.bf16 %v361
    %v928 = vunpack.c.l.bf16 %v362
    %v929 = vunpack.c.l.bf16 %v363
    %v930 = vunpack.c.h.bf16 %v363
    %v931 = vunpack.c.l.bf16 %v364
    %v932 = vunpack.c.h.bf16 %v364
    %v933 = vunpack.c.l.bf16 %v365
    %v934 = vunpack.c.l.bf16 %v366
    %v935 = vunpack.c.h.bf16 %v366
    %v936 = vunpack.c.l.bf16 %v367
    %v937 = vunpack.c.h.bf16 %v367
    %v938 = vunpack.c.l.bf16 %v368
    %v939 = vunpack.c.l.bf16 %v369
    %v940 = vunpack.c.h.bf16 %v369
    %v941 = vunpack.c.l.bf16 %v370
    %v942 = vunpack.c.h.bf16 %v370
    %v943 = vunpack.c.l.bf16 %v371
    %v944 = vunpack.c.l.bf16 %v372
    %v945 = vunpack.c.h.bf16 %v372
    %v946 = vunpack.c.l.bf16 %v373
    %v947 = vunpack.c.h.bf16 %v373
    %v948 = vunpack.c.l.bf16 %v374
    %v949 = vunpack.c.l.bf16 %v375
    %v950 = vunpack.c.h.bf16 %v375
    %v951 = vunpack.c.l.bf16 %v376
    %v952 = vunpack.c.h.bf16 %v376
    %v953 = vunpack.c.l.bf16 %v377
    %v954 = vunpack.c.l.bf16 %v378
    %v955 = vunpack.c.h.bf16 %v378
    %v956 = vunpack.c.l.bf16 %v379
    %v957 = vunpack.c.h.bf16 %v379
    %v958 = vunpack.c.l.bf16 %v380
    %v959 = vunpack.c.l.bf16 %v381
    %v960 = vunpack.c.h.bf16 %v381
    %v961 = vunpack.c.l.bf16 %v382
    %v962 = vunpack.c.h.bf16 %v382
    %v963 = vunpack.c.l.bf16 %v383
    %v964 = vunpack.c.l.bf16 %v384
    %v965 = vunpack.c.h.bf16 %v384
    %v966 = vunpack.c.l.bf16 %v385
    %v967 = vunpack.c.h.bf16 %v385
    %v968 = vunpack.c.l.bf16 %v386
    %v969 = vunpack.c.l.bf16 %v387
    %v970 = vunpack.c.h.bf16 %v387
    %v971 = vunpack.c.l.bf16 %v388
    %v972 = vunpack.c.h.bf16 %v388
    %v973 = vunpack.c.l.bf16 %v389
    %v974 = vunpack.c.l.bf16 %v390
    %v975 = vunpack.c.h.bf16 %v390
    %v976 = vunpack.c.l.bf16 %v391
    %v977 = vunpack.c.h.bf16 %v391
    %v978 = vunpack.c.l.bf16 %v392
    %v979 = vunpack.c.l.bf16 %v393
    %v980 = vunpack.c.h.bf16 %v393
    %v981 = vunpack.c.l.bf16 %v394
    %v982 = vunpack.c.h.bf16 %v394
    %v983 = vunpack.c.l.bf16 %v395
    %v984 = vunpack.c.l.bf16 %v396
    %v985 = vunpack.c.h.bf16 %v396
    %v986 = vunpack.c.l.bf16 %v397
    %v987 = vunpack.c.h.bf16 %v397
    %v988 = vunpack.c.l.bf16 %v398
    %v989 = vunpack.c.l.bf16 %v399
    %v990 = vunpack.c.h.bf16 %v399
    %v991 = vunpack.c.l.bf16 %v400
    %v992 = vunpack.c.h.bf16 %v400
    %v993 = vunpack.c.l.bf16 %v401
    %v994 = vunpack.c.l.bf16 %v402
    %v995 = vunpack.c.h.bf16 %v402
    %v996 = vunpack.c.l.bf16 %v403
    %v997 = vunpack.c.h.bf16 %v403
    %v998 = vunpack.c.l.bf16 %v404
    %v999 = vunpack.c.l.bf16 %v405
    %v1000 = vunpack.c.h.bf16 %v405
    %v1001 = vunpack.c.l.bf16 %v406
    %v1002 = vunpack.c.h.bf16 %v406
    %v1003 = vunpack.c.l.bf16 %v407
    %v1004 = vunpack.c.l.bf16 %v408
    %v1005 = vunpack.c.h.bf16 %v408
    %v1006 = vunpack.c.l.bf16 %v409
    %v1007 = vunpack.c.h.bf16 %v409
    %v1008 = vunpack.c.l.bf16 %v410
    %v1009 = vunpack.c.l.bf16 %v411
    %v1010 = vunpack.c.h.bf16 %v411
    %v1011 = vunpack.c.l.bf16 %v412
    %v1012 = vunpack.c.h.bf16 %v412
    %v1013 = vunpack.c.l.bf16 %v413
    %v1014 = vunpack.c.l.bf16 %v414
    %v1015 = vunpack.c.h.bf16 %v414
    %v1016 = vunpack.c.l.bf16 %v415
    %v1017 = vunpack.c.h.bf16 %v415
    %v1018 = vunpack.c.l.bf16 %v416
    %v1019 = vunpack.c.l.bf16 %v417
    %v1020 = vunpack.c.h.bf16 %v417
    %v1021 = vunpack.c.l.bf16 %v418
    %v1022 = vunpack.c.h.bf16 %v418
    %v1023 = vunpack.c.l.bf16 %v419
    %v1024 = vunpack.c.l.bf16 %v420
    %v1025 = vunpack.c.h.bf16 %v420
    %v1026 = vunpack.c.l.bf16 %v421
    %v1027 = vunpack.c.h.bf16 %v421
    %v1028 = vunpack.c.l.bf16 %v422
    %v1029 = vunpack.c.l.bf16 %v423
    %v1030 = vunpack.c.h.bf16 %v423
    %v1031 = vunpack.c.l.bf16 %v424
    %v1032 = vunpack.c.h.bf16 %v424
    %v1033 = vunpack.c.l.bf16 %v425
    %v1034 = vunpack.c.l.bf16 %v426
    %v1035 = vunpack.c.h.bf16 %v426
    %v1036 = vunpack.c.l.bf16 %v427
    %v1037 = vunpack.c.h.bf16 %v427
    %v1038 = vunpack.c.l.bf16 %v428
    %v1039 = vunpack.c.l.bf16 %v429
    %v1040 = vunpack.c.h.bf16 %v429
    %v1041 = vunpack.c.l.bf16 %v430
    %v1042 = vunpack.c.h.bf16 %v430
    %v1043 = vunpack.c.l.bf16 %v431
    %v1044 = vunpack.c.l.bf16 %v432
    %v1045 = vunpack.c.h.bf16 %v432
    %v1046 = vunpack.c.l.bf16 %v433
    %v1047 = vunpack.c.h.bf16 %v433
    %v1048 = vunpack.c.l.bf16 %v434
    %v1049 = vunpack.c.l.bf16 %v435
    %v1050 = vunpack.c.h.bf16 %v435
    %v1051 = vunpack.c.l.bf16 %v436
    %v1052 = vunpack.c.h.bf16 %v436
    %v1053 = vunpack.c.l.bf16 %v437
    %v1054 = vunpack.c.l.bf16 %v438
    %v1055 = vunpack.c.h.bf16 %v438
    %v1056 = vunpack.c.l.bf16 %v439
    %v1057 = vunpack.c.h.bf16 %v439
    %v1058 = vunpack.c.l.bf16 %v440
    %v1059 = vunpack.c.l.bf16 %v441
    %v1060 = vunpack.c.h.bf16 %v441
    %v1061 = vunpack.c.l.bf16 %v442
    %v1062 = vunpack.c.h.bf16 %v442
    %v1063 = vunpack.c.l.bf16 %v443
    %v1064 = vunpack.c.l.bf16 %v444
    %v1065 = vunpack.c.h.bf16 %v444
    %v1066 = vunpack.c.l.bf16 %v445
    %v1067 = vunpack.c.h.bf16 %v445
    %v1068 = vunpack.c.l.bf16 %v446
    %v1069 = vunpack.c.l.bf16 %v447
    %v1070 = vunpack.c.h.bf16 %v447
    %v1071 = vunpack.c.l.bf16 %v448
    %v1072 = vunpack.c.h.bf16 %v448
    %v1073 = vunpack.c.l.bf16 %v449
    %v1074 = vunpack.c.l.bf16 %v450
    %v1075 = vunpack.c.h.bf16 %v450
    %v1076 = vunpack.c.l.bf16 %v451
    %v1077 = vunpack.c.h.bf16 %v451
    %v1078 = vunpack.c.l.bf16 %v452
    %v1079 = vunpack.c.l.bf16 %v453
    %v1080 = vunpack.c.h.bf16 %v453
    %v1081 = vunpack.c.l.bf16 %v454
    %v1082 = vunpack.c.h.bf16 %v454
    %v1083 = vunpack.c.l.bf16 %v455
    %v1084 = vunpack.c.l.bf16 %v456
    %v1085 = vunpack.c.h.bf16 %v456
    %v1086 = vunpack.c.l.bf16 %v457
    %v1087 = vunpack.c.h.bf16 %v457
    %v1088 = vunpack.c.l.bf16 %v458
    %v1089 = vunpack.c.l.bf16 %v459
    %v1090 = vunpack.c.h.bf16 %v459
    %v1091 = vunpack.c.l.bf16 %v460
    %v1092 = vunpack.c.h.bf16 %v460
    %v1093 = vunpack.c.l.bf16 %v461
    %v1094 = vunpack.c.l.bf16 %v462
    %v1095 = vunpack.c.h.bf16 %v462
    %v1096 = vunpack.c.l.bf16 %v463
    %v1097 = vunpack.c.h.bf16 %v463
    %v1098 = vunpack.c.l.bf16 %v464
    %v1099 = vunpack.c.l.bf16 %v465
    %v1100 = vunpack.c.h.bf16 %v465
    %v1101 = vunpack.c.l.bf16 %v466
    %v1102 = vunpack.c.h.bf16 %v466
    %v1103 = vunpack.c.l.bf16 %v467
    %v1104 = vunpack.c.l.bf16 %v468
    %v1105 = vunpack.c.h.bf16 %v468
    %v1106 = vunpack.c.l.bf16 %v469
    %v1107 = vunpack.c.h.bf16 %v469
    %v1108 = vunpack.c.l.bf16 %v470
    %v1109 = vunpack.c.l.bf16 %v471
    %v1110 = vunpack.c.h.bf16 %v471
    %v1111 = vunpack.c.l.bf16 %v472
    %v1112 = vunpack.c.h.bf16 %v472
    %v1113 = vunpack.c.l.bf16 %v473
    %v1114 = vld [vmem:[#allocation5] sm:$0xff]
    %v1115 = vld [vmem:[#allocation5 + $0x8] sm:$0xff]
    %v1116 = vld [vmem:[#allocation10] sm:$0x1f]
    %v1118 = vlaneseq
    %v1119 = vshrl.u32 %v1118, 7
    %v1120 = vsub.s32 0, %v1119
    %v1121 = vrot.slane %v1116, %v1120
    %v1122 = vlaneseq
    %v1123 = vshrl.u32 %v1122, 7
    %v1124 = vsub.s32 1, %v1123
    %v1125 = vrot.slane %v1116, %v1124
    %v1126 = vlaneseq
    %v1127 = vshrl.u32 %v1126, 7
    %v1128 = vsub.s32 2, %v1127
    %v1129 = vrot.slane %v1116, %v1128
    %v1130 = vlaneseq
    %v1131 = vshrl.u32 %v1130, 7
    %v1132 = vsub.s32 3, %v1131
    %v1133 = vrot.slane %v1116, %v1132
    %v1134 = vlaneseq
    %v1135 = vshrl.u32 %v1134, 7
    %v1136 = vsub.s32 4, %v1135
    %v1137 = vrot.slane %v1116, %v1136
    %v1145 = vcombine.high %v1114, %v1114
    %v1147 = vunpack.c.l.s4 1983009808
    %v1148 = vunpack.c.0.s8 %v1147
    %v1149 = vlaneseq
    %v1150 = vshrl.u32 %v1149, 7
    %v1151 = vsub.s32 %v1148, %v1150
    %v1152 = vrot.slane %v1114, %v1151
    %v1154 = vunpack.c.l.s4 1983009808
    %v1155 = vunpack.c.0.s8 %v1154
    %v1156 = vlaneseq
    %v1157 = vshrl.u32 %v1156, 7
    %v1158 = vsub.s32 %v1155, %v1157
    %v1159 = vrot.slane %v1145, %v1158
    %v1160 = vcombine.high %v1152, %v1152
    %v1161 = vcombine.high %v1159, %v1159
    %v1162 = vcombine.high %v1115, %v1115
    %v1164 = vunpack.c.l.s4 1983009808
    %v1165 = vunpack.c.0.s8 %v1164
    %v1166 = vlaneseq
    %v1167 = vshrl.u32 %v1166, 7
    %v1168 = vsub.s32 %v1165, %v1167
    %v1169 = vrot.slane %v1115, %v1168
    %v1171 = vunpack.c.l.s4 1983009808
    %v1172 = vunpack.c.0.s8 %v1171
    %v1173 = vlaneseq
    %v1174 = vshrl.u32 %v1173, 7
    %v1175 = vsub.s32 %v1172, %v1174
    %v1176 = vrot.slane %v1162, %v1175
    %v1177 = vcombine.high %v1169, %v1169
    %v1178 = vcombine.high %v1176, %v1176
    %1187 = vmatprep.subr.mxu0 %v475
    %1188 = vmatpush1.msra.mxu0 %v474
    %1189 = vmatprep.subr.mxu0 %v480
    %1190 = vmatpush1.msra.mxu0 %v479
    %1191 = vmatprep.subr.mxu0 %v485
    %1192 = vmatpush1.msra.mxu0 %v484
    %1193 = vmatprep.subr.mxu0 %v490
    %1194 = vmatpush1.msra.mxu0 %v489
    %1195 = vmatprep.subr.mxu0 %v495
    %1196 = vmatpush1.msra.mxu0 %v494
    %1197 = vmatprep.subr.mxu0 %v500
    %1198 = vmatpush1.msra.mxu0 %v499
    %1199 = vmatprep.subr.mxu0 %v505
    %1200 = vmatpush1.msra.mxu0 %v504
    %1201 = vmatprep.subr.mxu0 %v510
    %1202 = vmatpush1.msra.mxu0 %v509
    %1203 = vmatprep.subr.mxu0 %v515
    %1204 = vmatpush1.msra.mxu0 %v514
    %1205 = vmatprep.subr.mxu0 %v520
    %1206 = vmatpush1.msra.mxu0 %v519
    %1207 = vmatprep.subr.mxu0 %v525
    %1208 = vmatpush1.msra.mxu0 %v524
    %1209 = vmatprep.subr.mxu0 %v530
    %1210 = vmatpush1.msra.mxu0 %v529
    %1211 = vmatprep.subr.mxu0 %v535
    %1212 = vmatpush1.msra.mxu0 %v534
    %1213 = vmatprep.subr.mxu0 %v540
    %1214 = vmatpush1.msra.mxu0 %v539
    %1215 = vmatprep.subr.mxu0 %v545
    %1216 = vmatpush1.msra.mxu0 %v544
    %1217 = vmatprep.subr.mxu0 %v550
    %1218 = vmatpush1.msra.mxu0 %v549
    %1219 = vmatprep.subr.mxu0 %v555
    %1220 = vmatpush1.msra.mxu0 %v554
    %1221 = vmatprep.subr.mxu0 %v560
    %1222 = vmatpush1.msra.mxu0 %v559
    %1223 = vmatprep.subr.mxu0 %v565
    %1224 = vmatpush1.msra.mxu0 %v564
    %1225 = vmatprep.subr.mxu0 %v570
    %1226 = vmatpush1.msra.mxu0 %v569
    %1227 = vmatprep.subr.mxu0 %v575
    %1228 = vmatpush1.msra.mxu0 %v574
    %1229 = vmatprep.subr.mxu0 %v580
    %1230 = vmatpush1.msra.mxu0 %v579
    %1231 = vmatprep.subr.mxu0 %v585
    %1232 = vmatpush1.msra.mxu0 %v584
    %1233 = vmatprep.subr.mxu0 %v590
    %1234 = vmatpush1.msra.mxu0 %v589
    %1235 = vmatprep.subr.mxu0 %v595
    %1236 = vmatpush1.msra.mxu0 %v594
    %1237 = vmatprep.subr.mxu0 %v600
    %1238 = vmatpush1.msra.mxu0 %v599
    %1239 = vmatprep.subr.mxu0 %v605
    %1240 = vmatpush1.msra.mxu0 %v604
    %1241 = vmatprep.subr.mxu0 %v610
    %1242 = vmatpush1.msra.mxu0 %v609
    %1243 = vmatprep.subr.mxu0 %v615
    %1244 = vmatpush1.msra.mxu0 %v614
    %1245 = vmatprep.subr.mxu0 %v620
    %1246 = vmatpush1.msra.mxu0 %v619
    %1247 = vmatprep.subr.mxu0 %v625
    %1248 = vmatpush1.msra.mxu0 %v624
    %1249 = vmatprep.subr.mxu0 %v630
    %1250 = vmatpush1.msra.mxu0 %v629
    %1251 = vmatprep.mubr.f32.mxu0 %v1160
    %1252 = vmatmul.mubr.f32.gmra.mrb[0].mxu0 %v1152
    %v1253 = vpop.f32.mrb[0].mxu0
    %v1254 = vadd.f32 %v1121, %v1253
    %v1255 = vpop.f32.mrb[0].mxu0
    %v1256 = vadd.f32 %v1125, %v1255
    %1257 = vdwg.mxu0
    %1258 = vmatprep.subr.mxu0 %v635
    %1259 = vmatpush1.msra.mxu0 %v634
    %1260 = vmatprep.subr.mxu0 %v640
    %1261 = vmatpush1.msra.mxu0 %v639
    %1262 = vmatprep.subr.mxu0 %v645
    %1263 = vmatpush1.msra.mxu0 %v644
    %1264 = vmatprep.subr.mxu0 %v650
    %1265 = vmatpush1.msra.mxu0 %v649
    %1266 = vmatprep.subr.mxu0 %v655
    %1267 = vmatpush1.msra.mxu0 %v654
    %1268 = vmatprep.subr.mxu0 %v660
    %1269 = vmatpush1.msra.mxu0 %v659
    %1270 = vmatprep.subr.mxu0 %v665
    %1271 = vmatpush1.msra.mxu0 %v664
    %1272 = vmatprep.subr.mxu0 %v670
    %1273 = vmatpush1.msra.mxu0 %v669
    %1274 = vmatprep.subr.mxu0 %v675
    %1275 = vmatpush1.msra.mxu0 %v674
    %1276 = vmatprep.subr.mxu0 %v680
    %1277 = vmatpush1.msra.mxu0 %v679
    %1278 = vmatprep.subr.mxu0 %v685
    %1279 = vmatpush1.msra.mxu0 %v684
    %1280 = vmatprep.subr.mxu0 %v690
    %1281 = vmatpush1.msra.mxu0 %v689
    %1282 = vmatprep.subr.mxu0 %v695
    %1283 = vmatpush1.msra.mxu0 %v694
    %1284 = vmatprep.subr.mxu0 %v700
    %1285 = vmatpush1.msra.mxu0 %v699
    %1286 = vmatprep.subr.mxu0 %v705
    %1287 = vmatpush1.msra.mxu0 %v704
    %1288 = vmatprep.subr.mxu0 %v710
    %1289 = vmatpush1.msra.mxu0 %v709
    %1290 = vmatprep.subr.mxu0 %v715
    %1291 = vmatpush1.msra.mxu0 %v714
    %1292 = vmatprep.subr.mxu0 %v720
    %1293 = vmatpush1.msra.mxu0 %v719
    %1294 = vmatprep.subr.mxu0 %v725
    %1295 = vmatpush1.msra.mxu0 %v724
    %1296 = vmatprep.subr.mxu0 %v730
    %1297 = vmatpush1.msra.mxu0 %v729
    %1298 = vmatprep.subr.mxu0 %v735
    %1299 = vmatpush1.msra.mxu0 %v734
    %1300 = vmatprep.subr.mxu0 %v740
    %1301 = vmatpush1.msra.mxu0 %v739
    %1302 = vmatprep.subr.mxu0 %v745
    %1303 = vmatpush1.msra.mxu0 %v744
    %1304 = vmatprep.subr.mxu0 %v750
    %1305 = vmatpush1.msra.mxu0 %v749
    %1306 = vmatprep.subr.mxu0 %v755
    %1307 = vmatpush1.msra.mxu0 %v754
    %1308 = vmatprep.subr.mxu0 %v760
    %1309 = vmatpush1.msra.mxu0 %v759
    %1310 = vmatprep.subr.mxu0 %v765
    %1311 = vmatpush1.msra.mxu0 %v764
    %1312 = vmatprep.subr.mxu0 %v770
    %1313 = vmatpush1.msra.mxu0 %v769
    %1314 = vmatprep.subr.mxu0 %v775
    %1315 = vmatpush1.msra.mxu0 %v774
    %1316 = vmatprep.subr.mxu0 %v780
    %1317 = vmatpush1.msra.mxu0 %v779
    %1318 = vmatprep.subr.mxu0 %v785
    %1319 = vmatpush1.msra.mxu0 %v784
    %1320 = vmatprep.subr.mxu0 %v790
    %1321 = vmatpush1.msra.mxu0 %v789
    %1322 = vmatprep.mubr.f32.mxu0 %v1161
    %1323 = vmatmul.mubr.f32.gmra.mrb[0].mxu0 %v1159
    %v1324 = vpop.f32.mrb[0].mxu0
    %v1325 = vadd.f32 %v1254, %v1324
    %v1326 = vpop.f32.mrb[0].mxu0
    %v1327 = vadd.f32 %v1256, %v1326
    %1328 = vdwg.mxu0
    %1329 = vmatprep.subr.mxu0 %v795
    %1330 = vmatpush1.msra.mxu0 %v794
    %1331 = vmatprep.subr.mxu0 %v800
    %1332 = vmatpush1.msra.mxu0 %v799
    %1333 = vmatprep.subr.mxu0 %v805
    %1334 = vmatpush1.msra.mxu0 %v804
    %1335 = vmatprep.subr.mxu0 %v810
    %1336 = vmatpush1.msra.mxu0 %v809
    %1337 = vmatprep.subr.mxu0 %v815
    %1338 = vmatpush1.msra.mxu0 %v814
    %1339 = vmatprep.subr.mxu0 %v820
    %1340 = vmatpush1.msra.mxu0 %v819
    %1341 = vmatprep.subr.mxu0 %v825
    %1342 = vmatpush1.msra.mxu0 %v824
    %1343 = vmatprep.subr.mxu0 %v830
    %1344 = vmatpush1.msra.mxu0 %v829
    %1345 = vmatprep.subr.mxu0 %v835
    %1346 = vmatpush1.msra.mxu0 %v834
    %1347 = vmatprep.subr.mxu0 %v840
    %1348 = vmatpush1.msra.mxu0 %v839
    %1349 = vmatprep.subr.mxu0 %v845
    %1350 = vmatpush1.msra.mxu0 %v844
    %1351 = vmatprep.subr.mxu0 %v850
    %1352 = vmatpush1.msra.mxu0 %v849
    %1353 = vmatprep.subr.mxu0 %v855
    %1354 = vmatpush1.msra.mxu0 %v854
    %1355 = vmatprep.subr.mxu0 %v860
    %1356 = vmatpush1.msra.mxu0 %v859
    %1357 = vmatprep.subr.mxu0 %v865
    %1358 = vmatpush1.msra.mxu0 %v864
    %1359 = vmatprep.subr.mxu0 %v870
    %1360 = vmatpush1.msra.mxu0 %v869
    %1361 = vmatprep.subr.mxu0 %v875
    %1362 = vmatpush1.msra.mxu0 %v874
    %1363 = vmatprep.subr.mxu0 %v880
    %1364 = vmatpush1.msra.mxu0 %v879
    %1365 = vmatprep.subr.mxu0 %v885
    %1366 = vmatpush1.msra.mxu0 %v884
    %1367 = vmatprep.subr.mxu0 %v890
    %1368 = vmatpush1.msra.mxu0 %v889
    %1369 = vmatprep.subr.mxu0 %v895
    %1370 = vmatpush1.msra.mxu0 %v894
    %1371 = vmatprep.subr.mxu0 %v900
    %1372 = vmatpush1.msra.mxu0 %v899
    %1373 = vmatprep.subr.mxu0 %v905
    %1374 = vmatpush1.msra.mxu0 %v904
    %1375 = vmatprep.subr.mxu0 %v910
    %1376 = vmatpush1.msra.mxu0 %v909
    %1377 = vmatprep.subr.mxu0 %v915
    %1378 = vmatpush1.msra.mxu0 %v914
    %1379 = vmatprep.subr.mxu0 %v920
    %1380 = vmatpush1.msra.mxu0 %v919
    %1381 = vmatprep.subr.mxu0 %v925
    %1382 = vmatpush1.msra.mxu0 %v924
    %1383 = vmatprep.subr.mxu0 %v930
    %1384 = vmatpush1.msra.mxu0 %v929
    %1385 = vmatprep.subr.mxu0 %v935
    %1386 = vmatpush1.msra.mxu0 %v934
    %1387 = vmatprep.subr.mxu0 %v940
    %1388 = vmatpush1.msra.mxu0 %v939
    %1389 = vmatprep.subr.mxu0 %v945
    %1390 = vmatpush1.msra.mxu0 %v944
    %1391 = vmatprep.subr.mxu0 %v950
    %1392 = vmatpush1.msra.mxu0 %v949
    %1393 = vmatprep.mubr.f32.mxu0 %v1177
    %1394 = vmatmul.mubr.f32.gmra.mrb[0].mxu0 %v1169
    %v1395 = vpop.f32.mrb[0].mxu0
    %v1396 = vadd.f32 %v1325, %v1395
    %v1397 = vpop.f32.mrb[0].mxu0
    %v1398 = vadd.f32 %v1327, %v1397
    %1399 = vdwg.mxu0
    %1400 = vmatprep.subr.mxu0 %v955
    %1401 = vmatpush1.msra.mxu0 %v954
    %1402 = vmatprep.subr.mxu0 %v960
    %1403 = vmatpush1.msra.mxu0 %v959
    %1404 = vmatprep.subr.mxu0 %v965
    %1405 = vmatpush1.msra.mxu0 %v964
    %1406 = vmatprep.subr.mxu0 %v970
    %1407 = vmatpush1.msra.mxu0 %v969
    %1408 = vmatprep.subr.mxu0 %v975
    %1409 = vmatpush1.msra.mxu0 %v974
    %1410 = vmatprep.subr.mxu0 %v980
    %1411 = vmatpush1.msra.mxu0 %v979
    %1412 = vmatprep.subr.mxu0 %v985
    %1413 = vmatpush1.msra.mxu0 %v984
    %1414 = vmatprep.subr.mxu0 %v990
    %1415 = vmatpush1.msra.mxu0 %v989
    %1416 = vmatprep.subr.mxu0 %v995
    %1417 = vmatpush1.msra.mxu0 %v994
    %1418 = vmatprep.subr.mxu0 %v1000
    %1419 = vmatpush1.msra.mxu0 %v999
    %1420 = vmatprep.subr.mxu0 %v1005
    %1421 = vmatpush1.msra.mxu0 %v1004
    %1422 = vmatprep.subr.mxu0 %v1010
    %1423 = vmatpush1.msra.mxu0 %v1009
    %1424 = vmatprep.subr.mxu0 %v1015
    %1425 = vmatpush1.msra.mxu0 %v1014
    %1426 = vmatprep.subr.mxu0 %v1020
    %1427 = vmatpush1.msra.mxu0 %v1019
    %1428 = vmatprep.subr.mxu0 %v1025
    %1429 = vmatpush1.msra.mxu0 %v1024
    %1430 = vmatprep.subr.mxu0 %v1030
    %1431 = vmatpush1.msra.mxu0 %v1029
    %1432 = vmatprep.subr.mxu0 %v1035
    %1433 = vmatpush1.msra.mxu0 %v1034
    %1434 = vmatprep.subr.mxu0 %v1040
    %1435 = vmatpush1.msra.mxu0 %v1039
    %1436 = vmatprep.subr.mxu0 %v1045
    %1437 = vmatpush1.msra.mxu0 %v1044
    %1438 = vmatprep.subr.mxu0 %v1050
    %1439 = vmatpush1.msra.mxu0 %v1049
    %1440 = vmatprep.subr.mxu0 %v1055
    %1441 = vmatpush1.msra.mxu0 %v1054
    %1442 = vmatprep.subr.mxu0 %v1060
    %1443 = vmatpush1.msra.mxu0 %v1059
    %1444 = vmatprep.subr.mxu0 %v1065
    %1445 = vmatpush1.msra.mxu0 %v1064
    %1446 = vmatprep.subr.mxu0 %v1070
    %1447 = vmatpush1.msra.mxu0 %v1069
    %1448 = vmatprep.subr.mxu0 %v1075
    %1449 = vmatpush1.msra.mxu0 %v1074
    %1450 = vmatprep.subr.mxu0 %v1080
    %1451 = vmatpush1.msra.mxu0 %v1079
    %1452 = vmatprep.subr.mxu0 %v1085
    %1453 = vmatpush1.msra.mxu0 %v1084
    %1454 = vmatprep.subr.mxu0 %v1090
    %1455 = vmatpush1.msra.mxu0 %v1089
    %1456 = vmatprep.subr.mxu0 %v1095
    %1457 = vmatpush1.msra.mxu0 %v1094
    %1458 = vmatprep.subr.mxu0 %v1100
    %1459 = vmatpush1.msra.mxu0 %v1099
    %1460 = vmatprep.subr.mxu0 %v1105
    %1461 = vmatpush1.msra.mxu0 %v1104
    %1462 = vmatprep.subr.mxu0 %v1110
    %1463 = vmatpush1.msra.mxu0 %v1109
    %1464 = vmatprep.mubr.f32.mxu0 %v1178
    %1465 = vmatmul.mubr.f32.gmra.mrb[0].mxu0 %v1176
    %v1466 = vpop.f32.mrb[0].mxu0
    %v1467 = vadd.f32 %v1396, %v1466
    %v1468 = vpop.f32.mrb[0].mxu0
    %v1469 = vadd.f32 %v1398, %v1468
    %1470 = vdwg.mxu0
    %1471 = vmatprep.subr.mxu0 %v477
    %1472 = vmatpush1.msra.mxu0 %v476
    %1473 = vmatprep.subr.mxu0 %v482
    %1474 = vmatpush1.msra.mxu0 %v481
    %1475 = vmatprep.subr.mxu0 %v487
    %1476 = vmatpush1.msra.mxu0 %v486
    %1477 = vmatprep.subr.mxu0 %v492
    %1478 = vmatpush1.msra.mxu0 %v491
    %1479 = vmatprep.subr.mxu0 %v497
    %1480 = vmatpush1.msra.mxu0 %v496
    %1481 = vmatprep.subr.mxu0 %v502
    %1482 = vmatpush1.msra.mxu0 %v501
    %1483 = vmatprep.subr.mxu0 %v507
    %1484 = vmatpush1.msra.mxu0 %v506
    %1485 = vmatprep.subr.mxu0 %v512
    %1486 = vmatpush1.msra.mxu0 %v511
    %1487 = vmatprep.subr.mxu0 %v517
    %1488 = vmatpush1.msra.mxu0 %v516
    %1489 = vmatprep.subr.mxu0 %v522
    %1490 = vmatpush1.msra.mxu0 %v521
    %1491 = vmatprep.subr.mxu0 %v527
    %1492 = vmatpush1.msra.mxu0 %v526
    %1493 = vmatprep.subr.mxu0 %v532
    %1494 = vmatpush1.msra.mxu0 %v531
    %1495 = vmatprep.subr.mxu0 %v537
    %1496 = vmatpush1.msra.mxu0 %v536
    %1497 = vmatprep.subr.mxu0 %v542
    %1498 = vmatpush1.msra.mxu0 %v541
    %1499 = vmatprep.subr.mxu0 %v547
    %1500 = vmatpush1.msra.mxu0 %v546
    %1501 = vmatprep.subr.mxu0 %v552
    %1502 = vmatpush1.msra.mxu0 %v551
    %1503 = vmatprep.subr.mxu0 %v557
    %1504 = vmatpush1.msra.mxu0 %v556
    %1505 = vmatprep.subr.mxu0 %v562
    %1506 = vmatpush1.msra.mxu0 %v561
    %1507 = vmatprep.subr.mxu0 %v567
    %1508 = vmatpush1.msra.mxu0 %v566
    %1509 = vmatprep.subr.mxu0 %v572
    %1510 = vmatpush1.msra.mxu0 %v571
    %1511 = vmatprep.subr.mxu0 %v577
    %1512 = vmatpush1.msra.mxu0 %v576
    %1513 = vmatprep.subr.mxu0 %v582
    %1514 = vmatpush1.msra.mxu0 %v581
    %1515 = vmatprep.subr.mxu0 %v587
    %1516 = vmatpush1.msra.mxu0 %v586
    %1517 = vmatprep.subr.mxu0 %v592
    %1518 = vmatpush1.msra.mxu0 %v591
    %1519 = vmatprep.subr.mxu0 %v597
    %1520 = vmatpush1.msra.mxu0 %v596
    %1521 = vmatprep.subr.mxu0 %v602
    %1522 = vmatpush1.msra.mxu0 %v601
    %1523 = vmatprep.subr.mxu0 %v607
    %1524 = vmatpush1.msra.mxu0 %v606
    %1525 = vmatprep.subr.mxu0 %v612
    %1526 = vmatpush1.msra.mxu0 %v611
    %1527 = vmatprep.subr.mxu0 %v617
    %1528 = vmatpush1.msra.mxu0 %v616
    %1529 = vmatprep.subr.mxu0 %v622
    %1530 = vmatpush1.msra.mxu0 %v621
    %1531 = vmatprep.subr.mxu0 %v627
    %1532 = vmatpush1.msra.mxu0 %v626
    %1533 = vmatprep.subr.mxu0 %v632
    %1534 = vmatpush1.msra.mxu0 %v631
    %1535 = vmatprep.mubr.f32.mxu0 %v1160
    %1536 = vmatmul.mubr.f32.gmra.mrb[0].mxu0 %v1152
    %v1537 = vpop.f32.mrb[0].mxu0
    %v1538 = vadd.f32 %v1129, %v1537
    %v1539 = vpop.f32.mrb[0].mxu0
    %v1540 = vadd.f32 %v1133, %v1539
    %1541 = vdwg.mxu0
    %1542 = vmatprep.subr.mxu0 %v637
    %1543 = vmatpush1.msra.mxu0 %v636
    %1544 = vmatprep.subr.mxu0 %v642
    %1545 = vmatpush1.msra.mxu0 %v641
    %1546 = vmatprep.subr.mxu0 %v647
    %1547 = vmatpush1.msra.mxu0 %v646
    %1548 = vmatprep.subr.mxu0 %v652
    %1549 = vmatpush1.msra.mxu0 %v651
    %1550 = vmatprep.subr.mxu0 %v657
    %1551 = vmatpush1.msra.mxu0 %v656
    %1552 = vmatprep.subr.mxu0 %v662
    %1553 = vmatpush1.msra.mxu0 %v661
    %1554 = vmatprep.subr.mxu0 %v667
    %1555 = vmatpush1.msra.mxu0 %v666
    %1556 = vmatprep.subr.mxu0 %v672
    %1557 = vmatpush1.msra.mxu0 %v671
    %1558 = vmatprep.subr.mxu0 %v677
    %1559 = vmatpush1.msra.mxu0 %v676
    %1560 = vmatprep.subr.mxu0 %v682
    %1561 = vmatpush1.msra.mxu0 %v681
    %1562 = vmatprep.subr.mxu0 %v687
    %1563 = vmatpush1.msra.mxu0 %v686
    %1564 = vmatprep.subr.mxu0 %v692
    %1565 = vmatpush1.msra.mxu0 %v691
    %1566 = vmatprep.subr.mxu0 %v697
    %1567 = vmatpush1.msra.mxu0 %v696
    %1568 = vmatprep.subr.mxu0 %v702
    %1569 = vmatpush1.msra.mxu0 %v701
    %1570 = vmatprep.subr.mxu0 %v707
    %1571 = vmatpush1.msra.mxu0 %v706
    %1572 = vmatprep.subr.mxu0 %v712
    %1573 = vmatpush1.msra.mxu0 %v711
    %1574 = vmatprep.subr.mxu0 %v717
    %1575 = vmatpush1.msra.mxu0 %v716
    %1576 = vmatprep.subr.mxu0 %v722
    %1577 = vmatpush1.msra.mxu0 %v721
    %1578 = vmatprep.subr.mxu0 %v727
    %1579 = vmatpush1.msra.mxu0 %v726
    %1580 = vmatprep.subr.mxu0 %v732
    %1581 = vmatpush1.msra.mxu0 %v731
    %1582 = vmatprep.subr.mxu0 %v737
    %1583 = vmatpush1.msra.mxu0 %v736
    %1584 = vmatprep.subr.mxu0 %v742
    %1585 = vmatpush1.msra.mxu0 %v741
    %1586 = vmatprep.subr.mxu0 %v747
    %1587 = vmatpush1.msra.mxu0 %v746
    %1588 = vmatprep.subr.mxu0 %v752
    %1589 = vmatpush1.msra.mxu0 %v751
    %1590 = vmatprep.subr.mxu0 %v757
    %1591 = vmatpush1.msra.mxu0 %v756
    %1592 = vmatprep.subr.mxu0 %v762
    %1593 = vmatpush1.msra.mxu0 %v761
    %1594 = vmatprep.subr.mxu0 %v767
    %1595 = vmatpush1.msra.mxu0 %v766
    %1596 = vmatprep.subr.mxu0 %v772
    %1597 = vmatpush1.msra.mxu0 %v771
    %1598 = vmatprep.subr.mxu0 %v777
    %1599 = vmatpush1.msra.mxu0 %v776
    %1600 = vmatprep.subr.mxu0 %v782
    %1601 = vmatpush1.msra.mxu0 %v781
    %1602 = vmatprep.subr.mxu0 %v787
    %1603 = vmatpush1.msra.mxu0 %v786
    %1604 = vmatprep.subr.mxu0 %v792
    %1605 = vmatpush1.msra.mxu0 %v791
    %1606 = vmatprep.mubr.f32.mxu0 %v1161
    %1607 = vmatmul.mubr.f32.gmra.mrb[0].mxu0 %v1159
    %v1608 = vpop.f32.mrb[0].mxu0
    %v1609 = vadd.f32 %v1538, %v1608
    %v1610 = vpop.f32.mrb[0].mxu0
    %v1611 = vadd.f32 %v1540, %v1610
    %1612 = vdwg.mxu0
    %1613 = vmatprep.subr.mxu0 %v797
    %1614 = vmatpush1.msra.mxu0 %v796
    %1615 = vmatprep.subr.mxu0 %v802
    %1616 = vmatpush1.msra.mxu0 %v801
    %1617 = vmatprep.subr.mxu0 %v807
    %1618 = vmatpush1.msra.mxu0 %v806
    %1619 = vmatprep.subr.mxu0 %v812
    %1620 = vmatpush1.msra.mxu0 %v811
    %1621 = vmatprep.subr.mxu0 %v817
    %1622 = vmatpush1.msra.mxu0 %v816
    %1623 = vmatprep.subr.mxu0 %v822
    %1624 = vmatpush1.msra.mxu0 %v821
    %1625 = vmatprep.subr.mxu0 %v827
    %1626 = vmatpush1.msra.mxu0 %v826
    %1627 = vmatprep.subr.mxu0 %v832
    %1628 = vmatpush1.msra.mxu0 %v831
    %1629 = vmatprep.subr.mxu0 %v837
    %1630 = vmatpush1.msra.mxu0 %v836
    %1631 = vmatprep.subr.mxu0 %v842
    %1632 = vmatpush1.msra.mxu0 %v841
    %1633 = vmatprep.subr.mxu0 %v847
    %1634 = vmatpush1.msra.mxu0 %v846
    %1635 = vmatprep.subr.mxu0 %v852
    %1636 = vmatpush1.msra.mxu0 %v851
    %1637 = vmatprep.subr.mxu0 %v857
    %1638 = vmatpush1.msra.mxu0 %v856
    %1639 = vmatprep.subr.mxu0 %v862
    %1640 = vmatpush1.msra.mxu0 %v861
    %1641 = vmatprep.subr.mxu0 %v867
    %1642 = vmatpush1.msra.mxu0 %v866
    %1643 = vmatprep.subr.mxu0 %v872
    %1644 = vmatpush1.msra.mxu0 %v871
    %1645 = vmatprep.subr.mxu0 %v877
    %1646 = vmatpush1.msra.mxu0 %v876
    %1647 = vmatprep.subr.mxu0 %v882
    %1648 = vmatpush1.msra.mxu0 %v881
    %1649 = vmatprep.subr.mxu0 %v887
    %1650 = vmatpush1.msra.mxu0 %v886
    %1651 = vmatprep.subr.mxu0 %v892
    %1652 = vmatpush1.msra.mxu0 %v891
    %1653 = vmatprep.subr.mxu0 %v897
    %1654 = vmatpush1.msra.mxu0 %v896
    %1655 = vmatprep.subr.mxu0 %v902
    %1656 = vmatpush1.msra.mxu0 %v901
    %1657 = vmatprep.subr.mxu0 %v907
    %1658 = vmatpush1.msra.mxu0 %v906
    %1659 = vmatprep.subr.mxu0 %v912
    %1660 = vmatpush1.msra.mxu0 %v911
    %1661 = vmatprep.subr.mxu0 %v917
    %1662 = vmatpush1.msra.mxu0 %v916
    %1663 = vmatprep.subr.mxu0 %v922
    %1664 = vmatpush1.msra.mxu0 %v921
    %1665 = vmatprep.subr.mxu0 %v927
    %1666 = vmatpush1.msra.mxu0 %v926
    %1667 = vmatprep.subr.mxu0 %v932
    %1668 = vmatpush1.msra.mxu0 %v931
    %1669 = vmatprep.subr.mxu0 %v937
    %1670 = vmatpush1.msra.mxu0 %v936
    %1671 = vmatprep.subr.mxu0 %v942
    %1672 = vmatpush1.msra.mxu0 %v941
    %1673 = vmatprep.subr.mxu0 %v947
    %1674 = vmatpush1.msra.mxu0 %v946
    %1675 = vmatprep.subr.mxu0 %v952
    %1676 = vmatpush1.msra.mxu0 %v951
    %1677 = vmatprep.mubr.f32.mxu0 %v1177
    %1678 = vmatmul.mubr.f32.gmra.mrb[0].mxu0 %v1169
    %v1679 = vpop.f32.mrb[0].mxu0
    %v1680 = vadd.f32 %v1609, %v1679
    %v1681 = vpop.f32.mrb[0].mxu0
    %v1682 = vadd.f32 %v1611, %v1681
    %1683 = vdwg.mxu0
    %1684 = vmatprep.subr.mxu0 %v957
    %1685 = vmatpush1.msra.mxu0 %v956
    %1686 = vmatprep.subr.mxu0 %v962
    %1687 = vmatpush1.msra.mxu0 %v961
    %1688 = vmatprep.subr.mxu0 %v967
    %1689 = vmatpush1.msra.mxu0 %v966
    %1690 = vmatprep.subr.mxu0 %v972
    %1691 = vmatpush1.msra.mxu0 %v971
    %1692 = vmatprep.subr.mxu0 %v977
    %1693 = vmatpush1.msra.mxu0 %v976
    %1694 = vmatprep.subr.mxu0 %v982
    %1695 = vmatpush1.msra.mxu0 %v981
    %1696 = vmatprep.subr.mxu0 %v987
    %1697 = vmatpush1.msra.mxu0 %v986
    %1698 = vmatprep.subr.mxu0 %v992
    %1699 = vmatpush1.msra.mxu0 %v991
    %1700 = vmatprep.subr.mxu0 %v997
    %1701 = vmatpush1.msra.mxu0 %v996
    %1702 = vmatprep.subr.mxu0 %v1002
    %1703 = vmatpush1.msra.mxu0 %v1001
    %1704 = vmatprep.subr.mxu0 %v1007
    %1705 = vmatpush1.msra.mxu0 %v1006
    %1706 = vmatprep.subr.mxu0 %v1012
    %1707 = vmatpush1.msra.mxu0 %v1011
    %1708 = vmatprep.subr.mxu0 %v1017
    %1709 = vmatpush1.msra.mxu0 %v1016
    %1710 = vmatprep.subr.mxu0 %v1022
    %1711 = vmatpush1.msra.mxu0 %v1021
    %1712 = vmatprep.subr.mxu0 %v1027
    %1713 = vmatpush1.msra.mxu0 %v1026
    %1714 = vmatprep.subr.mxu0 %v1032
    %1715 = vmatpush1.msra.mxu0 %v1031
    %1716 = vmatprep.subr.mxu0 %v1037
    %1717 = vmatpush1.msra.mxu0 %v1036
    %1718 = vmatprep.subr.mxu0 %v1042
    %1719 = vmatpush1.msra.mxu0 %v1041
    %1720 = vmatprep.subr.mxu0 %v1047
    %1721 = vmatpush1.msra.mxu0 %v1046
    %1722 = vmatprep.subr.mxu0 %v1052
    %1723 = vmatpush1.msra.mxu0 %v1051
    %1724 = vmatprep.subr.mxu0 %v1057
    %1725 = vmatpush1.msra.mxu0 %v1056
    %1726 = vmatprep.subr.mxu0 %v1062
    %1727 = vmatpush1.msra.mxu0 %v1061
    %1728 = vmatprep.subr.mxu0 %v1067
    %1729 = vmatpush1.msra.mxu0 %v1066
    %1730 = vmatprep.subr.mxu0 %v1072
    %1731 = vmatpush1.msra.mxu0 %v1071
    %1732 = vmatprep.subr.mxu0 %v1077
    %1733 = vmatpush1.msra.mxu0 %v1076
    %1734 = vmatprep.subr.mxu0 %v1082
    %1735 = vmatpush1.msra.mxu0 %v1081
    %1736 = vmatprep.subr.mxu0 %v1087
    %1737 = vmatpush1.msra.mxu0 %v1086
    %1738 = vmatprep.subr.mxu0 %v1092
    %1739 = vmatpush1.msra.mxu0 %v1091
    %1740 = vmatprep.subr.mxu0 %v1097
    %1741 = vmatpush1.msra.mxu0 %v1096
    %1742 = vmatprep.subr.mxu0 %v1102
    %1743 = vmatpush1.msra.mxu0 %v1101
    %1744 = vmatprep.subr.mxu0 %v1107
    %1745 = vmatpush1.msra.mxu0 %v1106
    %1746 = vmatprep.subr.mxu0 %v1112
    %1747 = vmatpush1.msra.mxu0 %v1111
    %1748 = vmatprep.mubr.f32.mxu0 %v1178
    %1749 = vmatmul.mubr.f32.gmra.mrb[0].mxu0 %v1176
    %v1750 = vpop.f32.mrb[0].mxu0
    %v1751 = vadd.f32 %v1680, %v1750
    %v1752 = vpop.f32.mrb[0].mxu0
    %v1753 = vadd.f32 %v1682, %v1752
    %1754 = vdwg.mxu0
    %1755 = vmatprep.subr.mxu0 0.0
    %1756 = vmatpush1.msra.mxu0 %v478
    %1757 = vmatprep.subr.mxu0 0.0
    %1758 = vmatpush1.msra.mxu0 %v483
    %1759 = vmatprep.subr.mxu0 0.0
    %1760 = vmatpush1.msra.mxu0 %v488
    %1761 = vmatprep.subr.mxu0 0.0
    %1762 = vmatpush1.msra.mxu0 %v493
    %1763 = vmatprep.subr.mxu0 0.0
    %1764 = vmatpush1.msra.mxu0 %v498
    %1765 = vmatprep.subr.mxu0 0.0
    %1766 = vmatpush1.msra.mxu0 %v503
    %1767 = vmatprep.subr.mxu0 0.0
    %1768 = vmatpush1.msra.mxu0 %v508
    %1769 = vmatprep.subr.mxu0 0.0
    %1770 = vmatpush1.msra.mxu0 %v513
    %1771 = vmatprep.subr.mxu0 0.0
    %1772 = vmatpush1.msra.mxu0 %v518
    %1773 = vmatprep.subr.mxu0 0.0
    %1774 = vmatpush1.msra.mxu0 %v523
    %1775 = vmatprep.subr.mxu0 0.0
    %1776 = vmatpush1.msra.mxu0 %v528
    %1777 = vmatprep.subr.mxu0 0.0
    %1778 = vmatpush1.msra.mxu0 %v533
    %1779 = vmatprep.subr.mxu0 0.0
    %1780 = vmatpush1.msra.mxu0 %v538
    %1781 = vmatprep.subr.mxu0 0.0
    %1782 = vmatpush1.msra.mxu0 %v543
    %1783 = vmatprep.subr.mxu0 0.0
    %1784 = vmatpush1.msra.mxu0 %v548
    %1785 = vmatprep.subr.mxu0 0.0
    %1786 = vmatpush1.msra.mxu0 %v553
    %1787 = vmatprep.subr.mxu0 0.0
    %1788 = vmatpush1.msra.mxu0 %v558
    %1789 = vmatprep.subr.mxu0 0.0
    %1790 = vmatpush1.msra.mxu0 %v563
    %1791 = vmatprep.subr.mxu0 0.0
    %1792 = vmatpush1.msra.mxu0 %v568
    %1793 = vmatprep.subr.mxu0 0.0
    %1794 = vmatpush1.msra.mxu0 %v573
    %1795 = vmatprep.subr.mxu0 0.0
    %1796 = vmatpush1.msra.mxu0 %v578
    %1797 = vmatprep.subr.mxu0 0.0
    %1798 = vmatpush1.msra.mxu0 %v583
    %1799 = vmatprep.subr.mxu0 0.0
    %1800 = vmatpush1.msra.mxu0 %v588
    %1801 = vmatprep.subr.mxu0 0.0
    %1802 = vmatpush1.msra.mxu0 %v593
    %1803 = vmatprep.subr.mxu0 0.0
    %1804 = vmatpush1.msra.mxu0 %v598
    %1805 = vmatprep.subr.mxu0 0.0
    %1806 = vmatpush1.msra.mxu0 %v603
    %1807 = vmatprep.subr.mxu0 0.0
    %1808 = vmatpush1.msra.mxu0 %v608
    %1809 = vmatprep.subr.mxu0 0.0
    %1810 = vmatpush1.msra.mxu0 %v613
    %1811 = vmatprep.subr.mxu0 0.0
    %1812 = vmatpush1.msra.mxu0 %v618
    %1813 = vmatprep.subr.mxu0 0.0
    %1814 = vmatpush1.msra.mxu0 %v623
    %1815 = vmatprep.subr.mxu0 0.0
    %1816 = vmatpush1.msra.mxu0 %v628
    %1817 = vmatprep.subr.mxu0 0.0
    %1818 = vmatpush1.msra.mxu0 %v633
    %1819 = vmatprep.mubr.f32.mxu0 %v1160
    %1820 = vmatmul.mubr.f32.gmra.mrb[0].mxu0 %v1152
    %v1821 = vpop.f32.mrb[0].mxu0
    %v1822 = vadd.f32 %v1137, %v1821
    %v1823 = vpop.f32.mrb[0].mxu0
    %1824 = vdwg.mxu0
    %1825 = vmatprep.subr.mxu0 0.0
    %1826 = vmatpush1.msra.mxu0 %v638
    %1827 = vmatprep.subr.mxu0 0.0
    %1828 = vmatpush1.msra.mxu0 %v643
    %1829 = vmatprep.subr.mxu0 0.0
    %1830 = vmatpush1.msra.mxu0 %v648
    %1831 = vmatprep.subr.mxu0 0.0
    %1832 = vmatpush1.msra.mxu0 %v653
    %1833 = vmatprep.subr.mxu0 0.0
    %1834 = vmatpush1.msra.mxu0 %v658
    %1835 = vmatprep.subr.mxu0 0.0
    %1836 = vmatpush1.msra.mxu0 %v663
    %1837 = vmatprep.subr.mxu0 0.0
    %1838 = vmatpush1.msra.mxu0 %v668
    %1839 = vmatprep.subr.mxu0 0.0
    %1840 = vmatpush1.msra.mxu0 %v673
    %1841 = vmatprep.subr.mxu0 0.0
    %1842 = vmatpush1.msra.mxu0 %v678
    %1843 = vmatprep.subr.mxu0 0.0
    %1844 = vmatpush1.msra.mxu0 %v683
    %1845 = vmatprep.subr.mxu0 0.0
    %1846 = vmatpush1.msra.mxu0 %v688
    %1847 = vmatprep.subr.mxu0 0.0
    %1848 = vmatpush1.msra.mxu0 %v693
    %1849 = vmatprep.subr.mxu0 0.0
    %1850 = vmatpush1.msra.mxu0 %v698
    %1851 = vmatprep.subr.mxu0 0.0
    %1852 = vmatpush1.msra.mxu0 %v703
    %1853 = vmatprep.subr.mxu0 0.0
    %1854 = vmatpush1.msra.mxu0 %v708
    %1855 = vmatprep.subr.mxu0 0.0
    %1856 = vmatpush1.msra.mxu0 %v713
    %1857 = vmatprep.subr.mxu0 0.0
    %1858 = vmatpush1.msra.mxu0 %v718
    %1859 = vmatprep.subr.mxu0 0.0
    %1860 = vmatpush1.msra.mxu0 %v723
    %1861 = vmatprep.subr.mxu0 0.0
    %1862 = vmatpush1.msra.mxu0 %v728
    %1863 = vmatprep.subr.mxu0 0.0
    %1864 = vmatpush1.msra.mxu0 %v733
    %1865 = vmatprep.subr.mxu0 0.0
    %1866 = vmatpush1.msra.mxu0 %v738
    %1867 = vmatprep.subr.mxu0 0.0
    %1868 = vmatpush1.msra.mxu0 %v743
    %1869 = vmatprep.subr.mxu0 0.0
    %1870 = vmatpush1.msra.mxu0 %v748
    %1871 = vmatprep.subr.mxu0 0.0
    %1872 = vmatpush1.msra.mxu0 %v753
    %1873 = vmatprep.subr.mxu0 0.0
    %1874 = vmatpush1.msra.mxu0 %v758
    %1875 = vmatprep.subr.mxu0 0.0
    %1876 = vmatpush1.msra.mxu0 %v763
    %1877 = vmatprep.subr.mxu0 0.0
    %1878 = vmatpush1.msra.mxu0 %v768
    %1879 = vmatprep.subr.mxu0 0.0
    %1880 = vmatpush1.msra.mxu0 %v773
    %1881 = vmatprep.subr.mxu0 0.0
    %1882 = vmatpush1.msra.mxu0 %v778
    %1883 = vmatprep.subr.mxu0 0.0
    %1884 = vmatpush1.msra.mxu0 %v783
    %1885 = vmatprep.subr.mxu0 0.0
    %1886 = vmatpush1.msra.mxu0 %v788
    %1887 = vmatprep.subr.mxu0 0.0
    %1888 = vmatpush1.msra.mxu0 %v793
    %1889 = vmatprep.mubr.f32.mxu0 %v1161
    %1890 = vmatmul.mubr.f32.gmra.mrb[0].mxu0 %v1159
    %v1891 = vpop.f32.mrb[0].mxu0
    %v1892 = vadd.f32 %v1822, %v1891
    %v1893 = vpop.f32.mrb[0].mxu0
    %1894 = vdwg.mxu0
    %1895 = vmatprep.subr.mxu0 0.0
    %1896 = vmatpush1.msra.mxu0 %v798
    %1897 = vmatprep.subr.mxu0 0.0
    %1898 = vmatpush1.msra.mxu0 %v803
    %1899 = vmatprep.subr.mxu0 0.0
    %1900 = vmatpush1.msra.mxu0 %v808
    %1901 = vmatprep.subr.mxu0 0.0
    %1902 = vmatpush1.msra.mxu0 %v813
    %1903 = vmatprep.subr.mxu0 0.0
    %1904 = vmatpush1.msra.mxu0 %v818
    %1905 = vmatprep.subr.mxu0 0.0
    %1906 = vmatpush1.msra.mxu0 %v823
    %1907 = vmatprep.subr.mxu0 0.0
    %1908 = vmatpush1.msra.mxu0 %v828
    %1909 = vmatprep.subr.mxu0 0.0
    %1910 = vmatpush1.msra.mxu0 %v833
    %1911 = vmatprep.subr.mxu0 0.0
    %1912 = vmatpush1.msra.mxu0 %v838
    %1913 = vmatprep.subr.mxu0 0.0
    %1914 = vmatpush1.msra.mxu0 %v843
    %1915 = vmatprep.subr.mxu0 0.0
    %1916 = vmatpush1.msra.mxu0 %v848
    %1917 = vmatprep.subr.mxu0 0.0
    %1918 = vmatpush1.msra.mxu0 %v853
    %1919 = vmatprep.subr.mxu0 0.0
    %1920 = vmatpush1.msra.mxu0 %v858
    %1921 = vmatprep.subr.mxu0 0.0
    %1922 = vmatpush1.msra.mxu0 %v863
    %1923 = vmatprep.subr.mxu0 0.0
    %1924 = vmatpush1.msra.mxu0 %v868
    %1925 = vmatprep.subr.mxu0 0.0
    %1926 = vmatpush1.msra.mxu0 %v873
    %1927 = vmatprep.subr.mxu0 0.0
    %1928 = vmatpush1.msra.mxu0 %v878
    %1929 = vmatprep.subr.mxu0 0.0
    %1930 = vmatpush1.msra.mxu0 %v883
    %1931 = vmatprep.subr.mxu0 0.0
    %1932 = vmatpush1.msra.mxu0 %v888
    %1933 = vmatprep.subr.mxu0 0.0
    %1934 = vmatpush1.msra.mxu0 %v893
    %1935 = vmatprep.subr.mxu0 0.0
    %1936 = vmatpush1.msra.mxu0 %v898
    %1937 = vmatprep.subr.mxu0 0.0
    %1938 = vmatpush1.msra.mxu0 %v903
    %1939 = vmatprep.subr.mxu0 0.0
    %1940 = vmatpush1.msra.mxu0 %v908
    %1941 = vmatprep.subr.mxu0 0.0
    %1942 = vmatpush1.msra.mxu0 %v913
    %1943 = vmatprep.subr.mxu0 0.0
    %1944 = vmatpush1.msra.mxu0 %v918
    %1945 = vmatprep.subr.mxu0 0.0
    %1946 = vmatpush1.msra.mxu0 %v923
    %1947 = vmatprep.subr.mxu0 0.0
    %1948 = vmatpush1.msra.mxu0 %v928
    %1949 = vmatprep.subr.mxu0 0.0
    %1950 = vmatpush1.msra.mxu0 %v933
    %1951 = vmatprep.subr.mxu0 0.0
    %1952 = vmatpush1.msra.mxu0 %v938
    %1953 = vmatprep.subr.mxu0 0.0
    %1954 = vmatpush1.msra.mxu0 %v943
    %1955 = vmatprep.subr.mxu0 0.0
    %1956 = vmatpush1.msra.mxu0 %v948
    %1957 = vmatprep.subr.mxu0 0.0
    %1958 = vmatpush1.msra.mxu0 %v953
    %1959 = vmatprep.mubr.f32.mxu0 %v1177
    %1960 = vmatmul.mubr.f32.gmra.mrb[0].mxu0 %v1169
    %v1961 = vpop.f32.mrb[0].mxu0
    %v1962 = vadd.f32 %v1892, %v1961
    %v1963 = vpop.f32.mrb[0].mxu0
    %1964 = vdwg.mxu0
    %1965 = vmatprep.subr.mxu0 0.0
    %1966 = vmatpush1.msra.mxu0 %v958
    %1967 = vmatprep.subr.mxu0 0.0
    %1968 = vmatpush1.msra.mxu0 %v963
    %1969 = vmatprep.subr.mxu0 0.0
    %1970 = vmatpush1.msra.mxu0 %v968
    %1971 = vmatprep.subr.mxu0 0.0
    %1972 = vmatpush1.msra.mxu0 %v973
    %1973 = vmatprep.subr.mxu0 0.0
    %1974 = vmatpush1.msra.mxu0 %v978
    %1975 = vmatprep.subr.mxu0 0.0
    %1976 = vmatpush1.msra.mxu0 %v983
    %1977 = vmatprep.subr.mxu0 0.0
    %1978 = vmatpush1.msra.mxu0 %v988
    %1979 = vmatprep.subr.mxu0 0.0
    %1980 = vmatpush1.msra.mxu0 %v993
    %1981 = vmatprep.subr.mxu0 0.0
    %1982 = vmatpush1.msra.mxu0 %v998
    %1983 = vmatprep.subr.mxu0 0.0
    %1984 = vmatpush1.msra.mxu0 %v1003
    %1985 = vmatprep.subr.mxu0 0.0
    %1986 = vmatpush1.msra.mxu0 %v1008
    %1987 = vmatprep.subr.mxu0 0.0
    %1988 = vmatpush1.msra.mxu0 %v1013
    %1989 = vmatprep.subr.mxu0 0.0
    %1990 = vmatpush1.msra.mxu0 %v1018
    %1991 = vmatprep.subr.mxu0 0.0
    %1992 = vmatpush1.msra.mxu0 %v1023
    %1993 = vmatprep.subr.mxu0 0.0
    %1994 = vmatpush1.msra.mxu0 %v1028
    %1995 = vmatprep.subr.mxu0 0.0
    %1996 = vmatpush1.msra.mxu0 %v1033
    %1997 = vmatprep.subr.mxu0 0.0
    %1998 = vmatpush1.msra.mxu0 %v1038
    %1999 = vmatprep.subr.mxu0 0.0
    %2000 = vmatpush1.msra.mxu0 %v1043
    %2001 = vmatprep.subr.mxu0 0.0
    %2002 = vmatpush1.msra.mxu0 %v1048
    %2003 = vmatprep.subr.mxu0 0.0
    %2004 = vmatpush1.msra.mxu0 %v1053
    %2005 = vmatprep.subr.mxu0 0.0
    %2006 = vmatpush1.msra.mxu0 %v1058
    %2007 = vmatprep.subr.mxu0 0.0
    %2008 = vmatpush1.msra.mxu0 %v1063
    %2009 = vmatprep.subr.mxu0 0.0
    %2010 = vmatpush1.msra.mxu0 %v1068
    %2011 = vmatprep.subr.mxu0 0.0
    %2012 = vmatpush1.msra.mxu0 %v1073
    %2013 = vmatprep.subr.mxu0 0.0
    %2014 = vmatpush1.msra.mxu0 %v1078
    %2015 = vmatprep.subr.mxu0 0.0
    %2016 = vmatpush1.msra.mxu0 %v1083
    %2017 = vmatprep.subr.mxu0 0.0
    %2018 = vmatpush1.msra.mxu0 %v1088
    %2019 = vmatprep.subr.mxu0 0.0
    %2020 = vmatpush1.msra.mxu0 %v1093
    %2021 = vmatprep.subr.mxu0 0.0
    %2022 = vmatpush1.msra.mxu0 %v1098
    %2023 = vmatprep.subr.mxu0 0.0
    %2024 = vmatpush1.msra.mxu0 %v1103
    %2025 = vmatprep.subr.mxu0 0.0
    %2026 = vmatpush1.msra.mxu0 %v1108
    %2027 = vmatprep.subr.mxu0 0.0
    %2028 = vmatpush1.msra.mxu0 %v1113
    %2029 = vmatprep.mubr.f32.mxu0 %v1178
    %2030 = vmatmul.mubr.f32.gmra.mrb[0].mxu0 %v1176
    %v2031 = vpop.f32.mrb[0].mxu0
    %v2032 = vadd.f32 %v1962, %v2031
    %v2033 = vpop.f32.mrb[0].mxu0
    %2034 = vdwg.mxu0
    %vm2035 = vcmp.ge.f32.partialorder %v1467, 0.0
    %vm2036 = vcmp.ge.f32.partialorder %v1469, 0.0
    %vm2037 = vcmp.ge.f32.partialorder %v1751, 0.0
    %vm2038 = vcmp.ge.f32.partialorder %v1753, 0.0
    %vm2039 = vcmp.ge.f32.partialorder %v2032, 0.0
    %s2041 = vtos %v87
    %v2042 = vstv %s2041
    %v2044 = vmul.f32 %v2042, %v1467
    %v2045 = vmul.f32 %v2042, %v1469
    %v2046 = vmul.f32 %v2042, %v1751
    %v2047 = vmul.f32 %v2042, %v1753
    %v2048 = vmul.f32 %v2042, %v2032
    %v2049 = vsel %vm2035, %v1467, %v2044
    %v2050 = vsel %vm2036, %v1469, %v2045
    %v2051 = vsel %vm2037, %v1751, %v2046
    %v2052 = vsel %vm2038, %v1753, %v2047
    %v2053 = vsel %vm2039, %v2032, %v2048
    %2054 = vst [vmem:[#allocation2] sm:$0xff] 0.0
    %2055 = vst [vmem:[#allocation2 + $0x8] sm:$0xff] 0.0
    %2056 = vst [vmem:[#allocation2 + $0x10] sm:$0xff] 0.0
    %2057 = vst [vmem:[#allocation2 + $0x18] sm:$0xff] 0.0
    %2058 = vst [vmem:[#allocation2 + $0x20] sm:$0xff] 0.0
    %2059 = vst [vmem:[#allocation2 + $0x28] sm:$0xff] 0.0
    %2061 = vrot.lane.b32.xlu0 %v2049, 14
    %v2062 = vpop.permute.xlu0 %2061
    %vm2064 = vcmask 434288
    %2065 = vst.msk [vmem:[#allocation2] sm:$0x1] %vm2064, %v2062
    %2066 = vrot.lane.b32.xlu0 %v2049, 102
    %v2067 = vpop.permute.xlu0 %2066
    %2069 = vst.msk [vmem:[#allocation2 + $0x1] sm:$0x1] %vm2064, %v2067
    %2070 = vrot.lane.b32.xlu0 %v2049, 62
    %v2071 = vpop.permute.xlu0 %2070
    %2073 = vst.msk [vmem:[#allocation2 + $0x2] sm:$0x1] %vm2064, %v2071
    %2075 = vrot.lane.b32.xlu0 %v2049, 22
    %v2076 = vpop.permute.xlu0 %2075
    %2077 = vrot.lane.b32.xlu0 %v2050, 22
    %v2078 = vpop.permute.xlu0 %2077
    %vm2079 = vcmask 179200
    %v2080 = vsel %vm2079, %v2076, %v2078
    %2082 = vst.msk [vmem:[#allocation2 + $0x3] sm:$0x1] %vm2064, %v2080
    %2083 = vrot.lane.b32.xlu0 %v2050, 110
    %v2084 = vpop.permute.xlu0 %2083
    %2086 = vst.msk [vmem:[#allocation2 + $0x4] sm:$0x1] %vm2064, %v2084
    %2087 = vrot.lane.b32.xlu0 %v2050, 70
    %v2088 = vpop.permute.xlu0 %2087
    %2090 = vst.msk [vmem:[#allocation2 + $0x5] sm:$0x1] %vm2064, %v2088
    %2092 = vrot.lane.b32.xlu0 %v2050, 30
    %v2093 = vpop.permute.xlu0 %2092
    %2094 = vrot.lane.b32.xlu0 %v2051, 30
    %v2095 = vpop.permute.xlu0 %2094
    %vm2096 = vcmask 244736
    %v2097 = vsel %vm2096, %v2093, %v2095
    %2099 = vst.msk [vmem:[#allocation2 + $0x6] sm:$0x1] %vm2064, %v2097
    %2100 = vrot.lane.b32.xlu0 %v2051, 118
    %v2101 = vpop.permute.xlu0 %2100
    %2103 = vst.msk [vmem:[#allocation2 + $0x7] sm:$0x1] %vm2064, %v2101
    %2104 = vrot.lane.b32.xlu0 %v2051, 78
    %v2105 = vpop.permute.xlu0 %2104
    %2107 = vst.msk [vmem:[#allocation2 + $0x18] sm:$0x1] %vm2064, %v2105
    %2109 = vrot.lane.b32.xlu0 %v2051, 38
    %v2110 = vpop.permute.xlu0 %2109
    %2111 = vrot.lane.b32.xlu0 %v2052, 38
    %v2112 = vpop.permute.xlu0 %2111
    %vm2113 = vcmask 310272
    %v2114 = vsel %vm2113, %v2110, %v2112
    %2116 = vst.msk [vmem:[#allocation2 + $0x19] sm:$0x1] %vm2064, %v2114
    %2117 = vrot.lane.b32.xlu0 %v2052, 126
    %v2118 = vpop.permute.xlu0 %2117
    %2120 = vst.msk [vmem:[#allocation2 + $0x1a] sm:$0x1] %vm2064, %v2118
    %2121 = vrot.lane.b32.xlu0 %v2052, 86
    %v2122 = vpop.permute.xlu0 %2121
    %2124 = vst.msk [vmem:[#allocation2 + $0x1b] sm:$0x1] %vm2064, %v2122
    %2126 = vrot.lane.b32.xlu0 %v2052, 46
    %v2127 = vpop.permute.xlu0 %2126
    %2128 = vrot.lane.b32.xlu0 %v2053, 46
    %v2129 = vpop.permute.xlu0 %2128
    %vm2130 = vcmask 375808
    %v2131 = vsel %vm2130, %v2127, %v2129
    %2133 = vst.msk [vmem:[#allocation2 + $0x1c] sm:$0x1] %vm2064, %v2131
    %2134 = vrot.lane.b32.xlu0 %v2053, 6
    %v2135 = vpop.permute.xlu0 %2134
    %2137 = vst.msk [vmem:[#allocation2 + $0x1d] sm:$0x1] %vm2064, %v2135
    %2138 = vrot.lane.b32.xlu0 %v2053, 94
    %v2139 = vpop.permute.xlu0 %2138
    %2141 = vst.msk [vmem:[#allocation2 + $0x1e] sm:$0x1] %vm2064, %v2139
    %2142 = vrot.lane.b32.xlu0 %v2053, 54
    %v2143 = vpop.permute.xlu0 %2142
    %2145 = vst.msk [vmem:[#allocation2 + $0x1f] sm:$0x1] %vm2064, %v2143
    %v2146 = vrot.slane %v2049, 1
    %2147 = vrot.lane.b32.xlu0 %v2146, 14
    %v2148 = vpop.permute.xlu0 %2147
    %2150 = vst.msk [vmem:[#allocation2 + $0x8] sm:$0x1] %vm2064, %v2148
    %2151 = vrot.lane.b32.xlu0 %v2146, 102
    %v2152 = vpop.permute.xlu0 %2151
    %2154 = vst.msk [vmem:[#allocation2 + $0x9] sm:$0x1] %vm2064, %v2152
    %2155 = vrot.lane.b32.xlu0 %v2146, 62
    %v2156 = vpop.permute.xlu0 %2155
    %2158 = vst.msk [vmem:[#allocation2 + $0xa] sm:$0x1] %vm2064, %v2156
    %v2159 = vrot.slane %v2050, 1
    %2160 = vrot.lane.b32.xlu0 %v2146, 22
    %v2161 = vpop.permute.xlu0 %2160
    %2162 = vrot.lane.b32.xlu0 %v2159, 22
    %v2163 = vpop.permute.xlu0 %2162
    %v2164 = vsel %vm2079, %v2161, %v2163
    %2166 = vst.msk [vmem:[#allocation2 + $0xb] sm:$0x1] %vm2064, %v2164
    %2167 = vrot.lane.b32.xlu0 %v2159, 110
    %v2168 = vpop.permute.xlu0 %2167
    %2170 = vst.msk [vmem:[#allocation2 + $0xc] sm:$0x1] %vm2064, %v2168
    %2171 = vrot.lane.b32.xlu0 %v2159, 70
    %v2172 = vpop.permute.xlu0 %2171
    %2174 = vst.msk [vmem:[#allocation2 + $0xd] sm:$0x1] %vm2064, %v2172
    %v2175 = vrot.slane %v2051, 1
    %2176 = vrot.lane.b32.xlu0 %v2159, 30
    %v2177 = vpop.permute.xlu0 %2176
    %2178 = vrot.lane.b32.xlu0 %v2175, 30
    %v2179 = vpop.permute.xlu0 %2178
    %v2180 = vsel %vm2096, %v2177, %v2179
    %2182 = vst.msk [vmem:[#allocation2 + $0xe] sm:$0x1] %vm2064, %v2180
    %2183 = vrot.lane.b32.xlu0 %v2175, 118
    %v2184 = vpop.permute.xlu0 %2183
    %2186 = vst.msk [vmem:[#allocation2 + $0xf] sm:$0x1] %vm2064, %v2184
    %2187 = vrot.lane.b32.xlu0 %v2175, 78
    %v2188 = vpop.permute.xlu0 %2187
    %2190 = vst.msk [vmem:[#allocation2 + $0x20] sm:$0x1] %vm2064, %v2188
    %v2191 = vrot.slane %v2052, 1
    %2192 = vrot.lane.b32.xlu0 %v2175, 38
    %v2193 = vpop.permute.xlu0 %2192
    %2194 = vrot.lane.b32.xlu0 %v2191, 38
    %v2195 = vpop.permute.xlu0 %2194
    %v2196 = vsel %vm2113, %v2193, %v2195
    %2198 = vst.msk [vmem:[#allocation2 + $0x21] sm:$0x1] %vm2064, %v2196
    %2199 = vrot.lane.b32.xlu0 %v2191, 126
    %v2200 = vpop.permute.xlu0 %2199
    %2202 = vst.msk [vmem:[#allocation2 + $0x22] sm:$0x1] %vm2064, %v2200
    %2203 = vrot.lane.b32.xlu0 %v2191, 86
    %v2204 = vpop.permute.xlu0 %2203
    %2206 = vst.msk [vmem:[#allocation2 + $0x23] sm:$0x1] %vm2064, %v2204
    %v2207 = vrot.slane %v2053, 1
    %2208 = vrot.lane.b32.xlu0 %v2191, 46
    %v2209 = vpop.permute.xlu0 %2208
    %2210 = vrot.lane.b32.xlu0 %v2207, 46
    %v2211 = vpop.permute.xlu0 %2210
    %v2212 = vsel %vm2130, %v2209, %v2211
    %2214 = vst.msk [vmem:[#allocation2 + $0x24] sm:$0x1] %vm2064, %v2212
    %2215 = vrot.lane.b32.xlu0 %v2207, 6
    %v2216 = vpop.permute.xlu0 %2215
    %2218 = vst.msk [vmem:[#allocation2 + $0x25] sm:$0x1] %vm2064, %v2216
    %2219 = vrot.lane.b32.xlu0 %v2207, 94
    %v2220 = vpop.permute.xlu0 %2219
    %2222 = vst.msk [vmem:[#allocation2 + $0x26] sm:$0x1] %vm2064, %v2220
    %2223 = vrot.lane.b32.xlu0 %v2207, 54
    %v2224 = vpop.permute.xlu0 %2223
    %2226 = vst.msk [vmem:[#allocation2 + $0x27] sm:$0x1] %vm2064, %v2224
    %v2227 = vld [vmem:[%s4] sm:$0xff]
    %v2228 = vld [vmem:[%s4 + $0x8] sm:$0xff]
    %v2229 = vld [vmem:[%s4 + $0x10] sm:$0xff]
    %v2230 = vld [vmem:[%s4 + $0x18] sm:$0xff]
    %v2231 = vld [vmem:[#allocation2] sm:$0xff]
    %v2232 = vld [vmem:[#allocation2 + $0x8] sm:$0xff]
    %v2233 = vld [vmem:[#allocation2 + $0x10] sm:$0xff]
    %v2234 = vld [vmem:[#allocation2 + $0x18] sm:$0xff]
    %v2235 = vld [vmem:[#allocation2 + $0x20] sm:$0xff]
    %v2236 = vld [vmem:[#allocation2 + $0x28] sm:$0xff]
    %s2237 = scalar_lea.vmem %s4, 32
    %v2238 = vld [vmem:[%s2237] sm:$0xff]
    %v2239 = vld [vmem:[%s2237 + $0x8] sm:$0xff]
    %v2240 = vld [vmem:[%s2237 + $0x10] sm:$0xff]
    %v2241 = vld [vmem:[%s2237 + $0x18] sm:$0xff]
    %2248 = vrot.lane.b32.xlu0 %v2231, 115
    %v2249 = vpop.permute.xlu0 %2248
    %2250 = vrot.lane.b32.xlu0 %v2232, 115
    %v2251 = vpop.permute.xlu0 %2250
    %2252 = vrot.lane.b32.xlu0 %v2233, 115
    %v2253 = vpop.permute.xlu0 %2252
    %2254 = vrot.lane.b32.xlu0 %v2234, 115
    %v2255 = vpop.permute.xlu0 %2254
    %2256 = vrot.lane.b32.xlu0 %v2235, 115
    %v2257 = vpop.permute.xlu0 %2256
    %2258 = vrot.lane.b32.xlu0 %v2236, 115
    %v2259 = vpop.permute.xlu0 %2258
    %vm2260 = vcmask 941056
    %v2261 = vsel %vm2260, %v2249, %v2251
    %v2262 = vsel %vm2260, %v2251, %v2253
    %v2263 = vsel %vm2260, %v2255, %v2257
    %v2264 = vsel %vm2260, %v2257, %v2259
    %vm2269 = vcmask 130048
    %v2271 = vsel %vm2269, %v2238, 0
    %v2274 = vsel %vm2269, %v2239, 0
    %v2277 = vsel %vm2269, %v2240, 0
    %v2280 = vsel %vm2269, %v2241, 0
    %2282 = vmatprep.subr.mxu0 %v2262
    %2283 = vmatpush1.msra.mxu0 %v2261
    %2284 = vmatprep.subr.mxu0 %v2264
    %2285 = vmatpush1.msra.mxu0 %v2263
    %2286 = vmatprep.subr.mxu0 0.0
    %2287 = vmatpush1.msra.mxu0 0.0
    %2288 = vmatprep.subr.mxu0 0.0
    %2289 = vmatpush1.msra.mxu0 0.0
    %2290 = vmatprep.subr.mxu0 0.0
    %2291 = vmatpush1.msra.mxu0 0.0
    %2292 = vmatprep.subr.mxu0 0.0
    %2293 = vmatpush1.msra.mxu0 0.0
    %2294 = vmatprep.subr.mxu0 0.0
    %2295 = vmatpush1.msra.mxu0 0.0
    %2296 = vmatprep.subr.mxu0 0.0
    %2297 = vmatpush1.msra.mxu0 0.0
    %2298 = vmatprep.subr.mxu0 0.0
    %2299 = vmatpush1.msra.mxu0 0.0
    %2300 = vmatprep.subr.mxu0 0.0
    %2301 = vmatpush1.msra.mxu0 0.0
    %2302 = vmatprep.subr.mxu0 0.0
    %2303 = vmatpush1.msra.mxu0 0.0
    %2304 = vmatprep.subr.mxu0 0.0
    %2305 = vmatpush1.msra.mxu0 0.0
    %2306 = vmatprep.subr.mxu0 0.0
    %2307 = vmatpush1.msra.mxu0 0.0
    %2308 = vmatprep.subr.mxu0 0.0
    %2309 = vmatpush1.msra.mxu0 0.0
    %2310 = vmatprep.subr.mxu0 0.0
    %2311 = vmatpush1.msra.mxu0 0.0
    %2312 = vmatprep.subr.mxu0 0.0
    %2313 = vmatpush1.msra.mxu0 0.0
    %2314 = vmatprep.subr.mxu0 0.0
    %2315 = vmatpush1.msra.mxu0 0.0
    %2316 = vmatprep.subr.mxu0 0.0
    %2317 = vmatpush1.msra.mxu0 0.0
    %2318 = vmatprep.subr.mxu0 0.0
    %2319 = vmatpush1.msra.mxu0 0.0
    %2320 = vmatprep.subr.mxu0 0.0
    %2321 = vmatpush1.msra.mxu0 0.0
    %2322 = vmatprep.subr.mxu0 0.0
    %2323 = vmatpush1.msra.mxu0 0.0
    %2324 = vmatprep.subr.mxu0 0.0
    %2325 = vmatpush1.msra.mxu0 0.0
    %2326 = vmatprep.subr.mxu0 0.0
    %2327 = vmatpush1.msra.mxu0 0.0
    %2328 = vmatprep.subr.mxu0 0.0
    %2329 = vmatpush1.msra.mxu0 0.0
    %2330 = vmatprep.subr.mxu0 0.0
    %2331 = vmatpush1.msra.mxu0 0.0
    %2332 = vmatprep.subr.mxu0 0.0
    %2333 = vmatpush1.msra.mxu0 0.0
    %2334 = vmatprep.subr.mxu0 0.0
    %2335 = vmatpush1.msra.mxu0 0.0
    %2336 = vmatprep.subr.mxu0 0.0
    %2337 = vmatpush1.msra.mxu0 0.0
    %2338 = vmatprep.subr.mxu0 0.0
    %2339 = vmatpush1.msra.mxu0 0.0
    %2340 = vmatprep.subr.mxu0 0.0
    %2341 = vmatpush1.msra.mxu0 0.0
    %2342 = vmatprep.subr.mxu0 0.0
    %2343 = vmatpush1.msra.mxu0 0.0
    %2344 = vmatprep.subr.mxu0 0.0
    %2345 = vmatpush1.msra.mxu0 0.0
    %2346 = vmatprep.mubr.f32.mxu0 0.0
    %2347 = vmatmul.mubr.f32.gmra.mrb[0].mxu0 %v2271
    %v2348 = vpop.f32.mrb[0].mxu0
    %v2349 = vadd.f32 0.0, %v2348
    %v2350 = vpop.f32.mrb[0].mxu0
    %v2351 = vadd.f32 0.0, %v2350
    %2352 = vmatprep.mubr.f32.mxu0 0.0
    %2353 = vmatmul.mubr.f32.gmra.mrb[0].mxu0 %v2274
    %v2354 = vpop.f32.mrb[0].mxu0
    %v2355 = vadd.f32 0.0, %v2354
    %v2356 = vpop.f32.mrb[0].mxu0
    %v2357 = vadd.f32 0.0, %v2356
    %2358 = vmatprep.mubr.f32.mxu0 0.0
    %2359 = vmatmul.mubr.f32.gmra.mrb[0].mxu0 %v2277
    %v2360 = vpop.f32.mrb[0].mxu0
    %v2361 = vadd.f32 0.0, %v2360
    %v2362 = vpop.f32.mrb[0].mxu0
    %v2363 = vadd.f32 0.0, %v2362
    %2364 = vmatprep.mubr.f32.mxu0 0.0
    %2365 = vmatmul.mubr.f32.gmra.mrb[0].mxu0 %v2280
    %v2366 = vpop.f32.mrb[0].mxu0
    %v2367 = vadd.f32 0.0, %v2366
    %v2368 = vpop.f32.mrb[0].mxu0
    %v2369 = vadd.f32 0.0, %v2368
    %2370 = vdwg.mxu0
    %2371 = vrot.lane.b32.xlu0 %v2231, 114
    %v2372 = vpop.permute.xlu0 %2371
    %2373 = vrot.lane.b32.xlu0 %v2232, 114
    %v2374 = vpop.permute.xlu0 %2373
    %2375 = vrot.lane.b32.xlu0 %v2233, 114
    %v2376 = vpop.permute.xlu0 %2375
    %2377 = vrot.lane.b32.xlu0 %v2234, 114
    %v2378 = vpop.permute.xlu0 %2377
    %2379 = vrot.lane.b32.xlu0 %v2235, 114
    %v2380 = vpop.permute.xlu0 %2379
    %2381 = vrot.lane.b32.xlu0 %v2236, 114
    %v2382 = vpop.permute.xlu0 %2381
    %vm2383 = vcmask 932864
    %v2384 = vsel %vm2383, %v2372, %v2374
    %v2385 = vsel %vm2383, %v2374, %v2376
    %v2386 = vsel %vm2383, %v2378, %v2380
    %v2387 = vsel %vm2383, %v2380, %v2382
    %v2393 = vsel %vm2269, %v2227, 0
    %v2396 = vsel %vm2269, %v2228, 0
    %v2399 = vsel %vm2269, %v2229, 0
    %v2402 = vsel %vm2269, %v2230, 0
    %2404 = vmatprep.subr.mxu0 %v2385
    %2405 = vmatpush1.msra.mxu0 %v2384
    %2406 = vmatprep.subr.mxu0 %v2387
    %2407 = vmatpush1.msra.mxu0 %v2386
    %2408 = vmatprep.subr.mxu0 0.0
    %2409 = vmatpush1.msra.mxu0 0.0
    %2410 = vmatprep.subr.mxu0 0.0
    %2411 = vmatpush1.msra.mxu0 0.0
    %2412 = vmatprep.subr.mxu0 0.0
    %2413 = vmatpush1.msra.mxu0 0.0
    %2414 = vmatprep.subr.mxu0 0.0
    %2415 = vmatpush1.msra.mxu0 0.0
    %2416 = vmatprep.subr.mxu0 0.0
    %2417 = vmatpush1.msra.mxu0 0.0
    %2418 = vmatprep.subr.mxu0 0.0
    %2419 = vmatpush1.msra.mxu0 0.0
    %2420 = vmatprep.subr.mxu0 0.0
    %2421 = vmatpush1.msra.mxu0 0.0
    %2422 = vmatprep.subr.mxu0 0.0
    %2423 = vmatpush1.msra.mxu0 0.0
    %2424 = vmatprep.subr.mxu0 0.0
    %2425 = vmatpush1.msra.mxu0 0.0
    %2426 = vmatprep.subr.mxu0 0.0
    %2427 = vmatpush1.msra.mxu0 0.0
    %2428 = vmatprep.subr.mxu0 0.0
    %2429 = vmatpush1.msra.mxu0 0.0
    %2430 = vmatprep.subr.mxu0 0.0
    %2431 = vmatpush1.msra.mxu0 0.0
    %2432 = vmatprep.subr.mxu0 0.0
    %2433 = vmatpush1.msra.mxu0 0.0
    %2434 = vmatprep.subr.mxu0 0.0
    %2435 = vmatpush1.msra.mxu0 0.0
    %2436 = vmatprep.subr.mxu0 0.0
    %2437 = vmatpush1.msra.mxu0 0.0
    %2438 = vmatprep.subr.mxu0 0.0
    %2439 = vmatpush1.msra.mxu0 0.0
    %2440 = vmatprep.subr.mxu0 0.0
    %2441 = vmatpush1.msra.mxu0 0.0
    %2442 = vmatprep.subr.mxu0 0.0
    %2443 = vmatpush1.msra.mxu0 0.0
    %2444 = vmatprep.subr.mxu0 0.0
    %2445 = vmatpush1.msra.mxu0 0.0
    %2446 = vmatprep.subr.mxu0 0.0
    %2447 = vmatpush1.msra.mxu0 0.0
    %2448 = vmatprep.subr.mxu0 0.0
    %2449 = vmatpush1.msra.mxu0 0.0
    %2450 = vmatprep.subr.mxu0 0.0
    %2451 = vmatpush1.msra.mxu0 0.0
    %2452 = vmatprep.subr.mxu0 0.0
    %2453 = vmatpush1.msra.mxu0 0.0
    %2454 = vmatprep.subr.mxu0 0.0
    %2455 = vmatpush1.msra.mxu0 0.0
    %2456 = vmatprep.subr.mxu0 0.0
    %2457 = vmatpush1.msra.mxu0 0.0
    %2458 = vmatprep.subr.mxu0 0.0
    %2459 = vmatpush1.msra.mxu0 0.0
    %2460 = vmatprep.subr.mxu0 0.0
    %2461 = vmatpush1.msra.mxu0 0.0
    %2462 = vmatprep.subr.mxu0 0.0
    %2463 = vmatpush1.msra.mxu0 0.0
    %2464 = vmatprep.subr.mxu0 0.0
    %2465 = vmatpush1.msra.mxu0 0.0
    %2466 = vmatprep.subr.mxu0 0.0
    %2467 = vmatpush1.msra.mxu0 0.0
    %2468 = vmatprep.mubr.f32.mxu0 0.0
    %2469 = vmatmul.mubr.f32.gmra.mrb[0].mxu0 %v2393
    %v2470 = vpop.f32.mrb[0].mxu0
    %v2471 = vadd.f32 %v2349, %v2470
    %v2472 = vpop.f32.mrb[0].mxu0
    %v2473 = vadd.f32 %v2351, %v2472
    %2474 = vmatprep.mubr.f32.mxu0 0.0
    %2475 = vmatmul.mubr.f32.gmra.mrb[0].mxu0 %v2396
    %v2476 = vpop.f32.mrb[0].mxu0
    %v2477 = vadd.f32 %v2355, %v2476
    %v2478 = vpop.f32.mrb[0].mxu0
    %v2479 = vadd.f32 %v2357, %v2478
    %2480 = vmatprep.mubr.f32.mxu0 0.0
    %2481 = vmatmul.mubr.f32.gmra.mrb[0].mxu0 %v2399
    %v2482 = vpop.f32.mrb[0].mxu0
    %v2483 = vadd.f32 %v2361, %v2482
    %v2484 = vpop.f32.mrb[0].mxu0
    %v2485 = vadd.f32 %v2363, %v2484
    %2486 = vmatprep.mubr.f32.mxu0 0.0
    %2487 = vmatmul.mubr.f32.gmra.mrb[0].mxu0 %v2402
    %v2488 = vpop.f32.mrb[0].mxu0
    %v2489 = vadd.f32 %v2367, %v2488
    %v2490 = vpop.f32.mrb[0].mxu0
    %v2491 = vadd.f32 %v2369, %v2490
    %2492 = vdwg.mxu0
    %s2493 = scalar_lea.vmem %s4, 64
    %v2494 = vld [vmem:[%s2493] sm:$0xff]
    %v2495 = vld [vmem:[%s2493 + $0x8] sm:$0xff]
    %v2496 = vld [vmem:[%s2493 + $0x10] sm:$0xff]
    %v2497 = vld [vmem:[%s2493 + $0x18] sm:$0xff]
    %2498 = vrot.lane.b32.xlu0 %v2231, 116
    %v2499 = vpop.permute.xlu0 %2498
    %2500 = vrot.lane.b32.xlu0 %v2232, 116
    %v2501 = vpop.permute.xlu0 %2500
    %2502 = vrot.lane.b32.xlu0 %v2233, 116
    %v2503 = vpop.permute.xlu0 %2502
    %2504 = vrot.lane.b32.xlu0 %v2234, 116
    %v2505 = vpop.permute.xlu0 %2504
    %2506 = vrot.lane.b32.xlu0 %v2235, 116
    %v2507 = vpop.permute.xlu0 %2506
    %2508 = vrot.lane.b32.xlu0 %v2236, 116
    %v2509 = vpop.permute.xlu0 %2508
    %vm2510 = vcmask 949248
    %v2511 = vsel %vm2510, %v2499, %v2501
    %v2512 = vsel %vm2510, %v2501, %v2503
    %v2513 = vsel %vm2510, %v2505, %v2507
    %v2514 = vsel %vm2510, %v2507, %v2509
    %v2520 = vsel %vm2269, %v2494, 0
    %v2523 = vsel %vm2269, %v2495, 0
    %v2526 = vsel %vm2269, %v2496, 0
    %v2529 = vsel %vm2269, %v2497, 0
    %2531 = vmatprep.subr.mxu0 %v2512
    %2532 = vmatpush1.msra.mxu0 %v2511
    %2533 = vmatprep.subr.mxu0 %v2514
    %2534 = vmatpush1.msra.mxu0 %v2513
    %2535 = vmatprep.subr.mxu0 0.0
    %2536 = vmatpush1.msra.mxu0 0.0
    %2537 = vmatprep.subr.mxu0 0.0
    %2538 = vmatpush1.msra.mxu0 0.0
    %2539 = vmatprep.subr.mxu0 0.0
    %2540 = vmatpush1.msra.mxu0 0.0
    %2541 = vmatprep.subr.mxu0 0.0
    %2542 = vmatpush1.msra.mxu0 0.0
    %2543 = vmatprep.subr.mxu0 0.0
    %2544 = vmatpush1.msra.mxu0 0.0
    %2545 = vmatprep.subr.mxu0 0.0
    %2546 = vmatpush1.msra.mxu0 0.0
    %2547 = vmatprep.subr.mxu0 0.0
    %2548 = vmatpush1.msra.mxu0 0.0
    %2549 = vmatprep.subr.mxu0 0.0
    %2550 = vmatpush1.msra.mxu0 0.0
    %2551 = vmatprep.subr.mxu0 0.0
    %2552 = vmatpush1.msra.mxu0 0.0
    %2553 = vmatprep.subr.mxu0 0.0
    %2554 = vmatpush1.msra.mxu0 0.0
    %2555 = vmatprep.subr.mxu0 0.0
    %2556 = vmatpush1.msra.mxu0 0.0
    %2557 = vmatprep.subr.mxu0 0.0
    %2558 = vmatpush1.msra.mxu0 0.0
    %2559 = vmatprep.subr.mxu0 0.0
    %2560 = vmatpush1.msra.mxu0 0.0
    %2561 = vmatprep.subr.mxu0 0.0
    %2562 = vmatpush1.msra.mxu0 0.0
    %2563 = vmatprep.subr.mxu0 0.0
    %2564 = vmatpush1.msra.mxu0 0.0
    %2565 = vmatprep.subr.mxu0 0.0
    %2566 = vmatpush1.msra.mxu0 0.0
    %2567 = vmatprep.subr.mxu0 0.0
    %2568 = vmatpush1.msra.mxu0 0.0
    %2569 = vmatprep.subr.mxu0 0.0
    %2570 = vmatpush1.msra.mxu0 0.0
    %2571 = vmatprep.subr.mxu0 0.0
    %2572 = vmatpush1.msra.mxu0 0.0
    %2573 = vmatprep.subr.mxu0 0.0
    %2574 = vmatpush1.msra.mxu0 0.0
    %2575 = vmatprep.subr.mxu0 0.0
    %2576 = vmatpush1.msra.mxu0 0.0
    %2577 = vmatprep.subr.mxu0 0.0
    %2578 = vmatpush1.msra.mxu0 0.0
    %2579 = vmatprep.subr.mxu0 0.0
    %2580 = vmatpush1.msra.mxu0 0.0
    %2581 = vmatprep.subr.mxu0 0.0
    %2582 = vmatpush1.msra.mxu0 0.0
    %2583 = vmatprep.subr.mxu0 0.0
    %2584 = vmatpush1.msra.mxu0 0.0
    %2585 = vmatprep.subr.mxu0 0.0
    %2586 = vmatpush1.msra.mxu0 0.0
    %2587 = vmatprep.subr.mxu0 0.0
    %2588 = vmatpush1.msra.mxu0 0.0
    %2589 = vmatprep.subr.mxu0 0.0
    %2590 = vmatpush1.msra.mxu0 0.0
    %2591 = vmatprep.subr.mxu0 0.0
    %2592 = vmatpush1.msra.mxu0 0.0
    %2593 = vmatprep.subr.mxu0 0.0
    %2594 = vmatpush1.msra.mxu0 0.0
    %2595 = vmatprep.mubr.f32.mxu0 0.0
    %2596 = vmatmul.mubr.f32.gmra.mrb[0].mxu0 %v2520
    %v2597 = vpop.f32.mrb[0].mxu0
    %v2598 = vadd.f32 0.0, %v2597
    %v2599 = vpop.f32.mrb[0].mxu0
    %v2600 = vadd.f32 0.0, %v2599
    %2601 = vmatprep.mubr.f32.mxu0 0.0
    %2602 = vmatmul.mubr.f32.gmra.mrb[0].mxu0 %v2523
    %v2603 = vpop.f32.mrb[0].mxu0
    %v2604 = vadd.f32 0.0, %v2603
    %v2605 = vpop.f32.mrb[0].mxu0
    %v2606 = vadd.f32 0.0, %v2605
    %2607 = vmatprep.mubr.f32.mxu0 0.0
    %2608 = vmatmul.mubr.f32.gmra.mrb[0].mxu0 %v2526
    %v2609 = vpop.f32.mrb[0].mxu0
    %v2610 = vadd.f32 0.0, %v2609
    %v2611 = vpop.f32.mrb[0].mxu0
    %v2612 = vadd.f32 0.0, %v2611
    %2613 = vmatprep.mubr.f32.mxu0 0.0
    %2614 = vmatmul.mubr.f32.gmra.mrb[0].mxu0 %v2529
    %v2615 = vpop.f32.mrb[0].mxu0
    %v2616 = vadd.f32 0.0, %v2615
    %v2617 = vpop.f32.mrb[0].mxu0
    %v2618 = vadd.f32 0.0, %v2617
    %2619 = vdwg.mxu0
    %v2620 = vadd.f32 %v2471, %v2598
    %v2621 = vadd.f32 %v2473, %v2600
    %v2622 = vadd.f32 %v2477, %v2604
    %v2623 = vadd.f32 %v2479, %v2606
    %v2624 = vadd.f32 %v2483, %v2610
    %v2625 = vadd.f32 %v2485, %v2612
    %v2626 = vadd.f32 %v2489, %v2616
    %v2627 = vadd.f32 %v2491, %v2618
    %s2628 = scalar_lea.vmem %s4, 96
    %v2629 = vld [vmem:[%s2628] sm:$0xff]
    %v2630 = vld [vmem:[%s2628 + $0x8] sm:$0xff]
    %v2631 = vld [vmem:[%s2628 + $0x10] sm:$0xff]
    %v2632 = vld [vmem:[%s2628 + $0x18] sm:$0xff]
    %2633 = vrot.lane.b32.xlu0 %v2231, 117
    %v2634 = vpop.permute.xlu0 %2633
    %2635 = vrot.lane.b32.xlu0 %v2232, 117
    %v2636 = vpop.permute.xlu0 %2635
    %2637 = vrot.lane.b32.xlu0 %v2233, 117
    %v2638 = vpop.permute.xlu0 %2637
    %2639 = vrot.lane.b32.xlu0 %v2234, 117
    %v2640 = vpop.permute.xlu0 %2639
    %2641 = vrot.lane.b32.xlu0 %v2235, 117
    %v2642 = vpop.permute.xlu0 %2641
    %2643 = vrot.lane.b32.xlu0 %v2236, 117
    %v2644 = vpop.permute.xlu0 %2643
    %vm2645 = vcmask 957440
    %v2646 = vsel %vm2645, %v2634, %v2636
    %v2647 = vsel %vm2645, %v2636, %v2638
    %v2648 = vsel %vm2645, %v2640, %v2642
    %v2649 = vsel %vm2645, %v2642, %v2644
    %v2655 = vsel %vm2269, %v2629, 0
    %v2658 = vsel %vm2269, %v2630, 0
    %v2661 = vsel %vm2269, %v2631, 0
    %v2664 = vsel %vm2269, %v2632, 0
    %2666 = vmatprep.subr.mxu0 %v2647
    %2667 = vmatpush1.msra.mxu0 %v2646
    %2668 = vmatprep.subr.mxu0 %v2649
    %2669 = vmatpush1.msra.mxu0 %v2648
    %2670 = vmatprep.subr.mxu0 0.0
    %2671 = vmatpush1.msra.mxu0 0.0
    %2672 = vmatprep.subr.mxu0 0.0
    %2673 = vmatpush1.msra.mxu0 0.0
    %2674 = vmatprep.subr.mxu0 0.0
    %2675 = vmatpush1.msra.mxu0 0.0
    %2676 = vmatprep.subr.mxu0 0.0
    %2677 = vmatpush1.msra.mxu0 0.0
    %2678 = vmatprep.subr.mxu0 0.0
    %2679 = vmatpush1.msra.mxu0 0.0
    %2680 = vmatprep.subr.mxu0 0.0
    %2681 = vmatpush1.msra.mxu0 0.0
    %2682 = vmatprep.subr.mxu0 0.0
    %2683 = vmatpush1.msra.mxu0 0.0
    %2684 = vmatprep.subr.mxu0 0.0
    %2685 = vmatpush1.msra.mxu0 0.0
    %2686 = vmatprep.subr.mxu0 0.0
    %2687 = vmatpush1.msra.mxu0 0.0
    %2688 = vmatprep.subr.mxu0 0.0
    %2689 = vmatpush1.msra.mxu0 0.0
    %2690 = vmatprep.subr.mxu0 0.0
    %2691 = vmatpush1.msra.mxu0 0.0
    %2692 = vmatprep.subr.mxu0 0.0
    %2693 = vmatpush1.msra.mxu0 0.0
    %2694 = vmatprep.subr.mxu0 0.0
    %2695 = vmatpush1.msra.mxu0 0.0
    %2696 = vmatprep.subr.mxu0 0.0
    %2697 = vmatpush1.msra.mxu0 0.0
    %2698 = vmatprep.subr.mxu0 0.0
    %2699 = vmatpush1.msra.mxu0 0.0
    %2700 = vmatprep.subr.mxu0 0.0
    %2701 = vmatpush1.msra.mxu0 0.0
    %2702 = vmatprep.subr.mxu0 0.0
    %2703 = vmatpush1.msra.mxu0 0.0
    %2704 = vmatprep.subr.mxu0 0.0
    %2705 = vmatpush1.msra.mxu0 0.0
    %2706 = vmatprep.subr.mxu0 0.0
    %2707 = vmatpush1.msra.mxu0 0.0
    %2708 = vmatprep.subr.mxu0 0.0
    %2709 = vmatpush1.msra.mxu0 0.0
    %2710 = vmatprep.subr.mxu0 0.0
    %2711 = vmatpush1.msra.mxu0 0.0
    %2712 = vmatprep.subr.mxu0 0.0
    %2713 = vmatpush1.msra.mxu0 0.0
    %2714 = vmatprep.subr.mxu0 0.0
    %2715 = vmatpush1.msra.mxu0 0.0
    %2716 = vmatprep.subr.mxu0 0.0
    %2717 = vmatpush1.msra.mxu0 0.0
    %2718 = vmatprep.subr.mxu0 0.0
    %2719 = vmatpush1.msra.mxu0 0.0
    %2720 = vmatprep.subr.mxu0 0.0
    %2721 = vmatpush1.msra.mxu0 0.0
    %2722 = vmatprep.subr.mxu0 0.0
    %2723 = vmatpush1.msra.mxu0 0.0
    %2724 = vmatprep.subr.mxu0 0.0
    %2725 = vmatpush1.msra.mxu0 0.0
    %2726 = vmatprep.subr.mxu0 0.0
    %2727 = vmatpush1.msra.mxu0 0.0
    %2728 = vmatprep.subr.mxu0 0.0
    %2729 = vmatpush1.msra.mxu0 0.0
    %2730 = vmatprep.mubr.f32.mxu0 0.0
    %2731 = vmatmul.mubr.f32.gmra.mrb[0].mxu0 %v2655
    %v2732 = vpop.f32.mrb[0].mxu0
    %v2733 = vadd.f32 0.0, %v2732
    %v2734 = vpop.f32.mrb[0].mxu0
    %v2735 = vadd.f32 0.0, %v2734
    %2736 = vmatprep.mubr.f32.mxu0 0.0
    %2737 = vmatmul.mubr.f32.gmra.mrb[0].mxu0 %v2658
    %v2738 = vpop.f32.mrb[0].mxu0
    %v2739 = vadd.f32 0.0, %v2738
    %v2740 = vpop.f32.mrb[0].mxu0
    %v2741 = vadd.f32 0.0, %v2740
    %2742 = vmatprep.mubr.f32.mxu0 0.0
    %2743 = vmatmul.mubr.f32.gmra.mrb[0].mxu0 %v2661
    %v2744 = vpop.f32.mrb[0].mxu0
    %v2745 = vadd.f32 0.0, %v2744
    %v2746 = vpop.f32.mrb[0].mxu0
    %v2747 = vadd.f32 0.0, %v2746
    %2748 = vmatprep.mubr.f32.mxu0 0.0
    %2749 = vmatmul.mubr.f32.gmra.mrb[0].mxu0 %v2664
    %v2750 = vpop.f32.mrb[0].mxu0
    %v2751 = vadd.f32 0.0, %v2750
    %v2752 = vpop.f32.mrb[0].mxu0
    %v2753 = vadd.f32 0.0, %v2752
    %2754 = vdwg.mxu0
    %v2755 = vadd.f32 %v2620, %v2733
    %v2756 = vadd.f32 %v2621, %v2735
    %v2757 = vadd.f32 %v2622, %v2739
    %v2758 = vadd.f32 %v2623, %v2741
    %v2759 = vadd.f32 %v2624, %v2745
    %v2760 = vadd.f32 %v2625, %v2747
    %v2761 = vadd.f32 %v2626, %v2751
    %v2762 = vadd.f32 %v2627, %v2753
    %s2763 = scalar_lea.vmem %s4, 128
    %v2764 = vld [vmem:[%s2763] sm:$0xff]
    %v2765 = vld [vmem:[%s2763 + $0x8] sm:$0xff]
    %v2766 = vld [vmem:[%s2763 + $0x10] sm:$0xff]
    %v2767 = vld [vmem:[%s2763 + $0x18] sm:$0xff]
    %2768 = vrot.lane.b32.xlu0 %v2231, 118
    %v2769 = vpop.permute.xlu0 %2768
    %2770 = vrot.lane.b32.xlu0 %v2232, 118
    %v2771 = vpop.permute.xlu0 %2770
    %2772 = vrot.lane.b32.xlu0 %v2233, 118
    %v2773 = vpop.permute.xlu0 %2772
    %2774 = vrot.lane.b32.xlu0 %v2234, 118
    %v2775 = vpop.permute.xlu0 %2774
    %2776 = vrot.lane.b32.xlu0 %v2235, 118
    %v2777 = vpop.permute.xlu0 %2776
    %2778 = vrot.lane.b32.xlu0 %v2236, 118
    %v2779 = vpop.permute.xlu0 %2778
    %vm2780 = vcmask 965632
    %v2781 = vsel %vm2780, %v2769, %v2771
    %v2782 = vsel %vm2780, %v2771, %v2773
    %v2783 = vsel %vm2780, %v2775, %v2777
    %v2784 = vsel %vm2780, %v2777, %v2779
    %v2790 = vsel %vm2269, %v2764, 0
    %v2793 = vsel %vm2269, %v2765, 0
    %v2796 = vsel %vm2269, %v2766, 0
    %v2799 = vsel %vm2269, %v2767, 0
    %2801 = vmatprep.subr.mxu0 %v2782
    %2802 = vmatpush1.msra.mxu0 %v2781
    %2803 = vmatprep.subr.mxu0 %v2784
    %2804 = vmatpush1.msra.mxu0 %v2783
    %2805 = vmatprep.subr.mxu0 0.0
    %2806 = vmatpush1.msra.mxu0 0.0
    %2807 = vmatprep.subr.mxu0 0.0
    %2808 = vmatpush1.msra.mxu0 0.0
    %2809 = vmatprep.subr.mxu0 0.0
    %2810 = vmatpush1.msra.mxu0 0.0
    %2811 = vmatprep.subr.mxu0 0.0
    %2812 = vmatpush1.msra.mxu0 0.0
    %2813 = vmatprep.subr.mxu0 0.0
    %2814 = vmatpush1.msra.mxu0 0.0
    %2815 = vmatprep.subr.mxu0 0.0
    %2816 = vmatpush1.msra.mxu0 0.0
    %2817 = vmatprep.subr.mxu0 0.0
    %2818 = vmatpush1.msra.mxu0 0.0
    %2819 = vmatprep.subr.mxu0 0.0
    %2820 = vmatpush1.msra.mxu0 0.0
    %2821 = vmatprep.subr.mxu0 0.0
    %2822 = vmatpush1.msra.mxu0 0.0
    %2823 = vmatprep.subr.mxu0 0.0
    %2824 = vmatpush1.msra.mxu0 0.0
    %2825 = vmatprep.subr.mxu0 0.0
    %2826 = vmatpush1.msra.mxu0 0.0
    %2827 = vmatprep.subr.mxu0 0.0
    %2828 = vmatpush1.msra.mxu0 0.0
    %2829 = vmatprep.subr.mxu0 0.0
    %2830 = vmatpush1.msra.mxu0 0.0
    %2831 = vmatprep.subr.mxu0 0.0
    %2832 = vmatpush1.msra.mxu0 0.0
    %2833 = vmatprep.subr.mxu0 0.0
    %2834 = vmatpush1.msra.mxu0 0.0
    %2835 = vmatprep.subr.mxu0 0.0
    %2836 = vmatpush1.msra.mxu0 0.0
    %2837 = vmatprep.subr.mxu0 0.0
    %2838 = vmatpush1.msra.mxu0 0.0
    %2839 = vmatprep.subr.mxu0 0.0
    %2840 = vmatpush1.msra.mxu0 0.0
    %2841 = vmatprep.subr.mxu0 0.0
    %2842 = vmatpush1.msra.mxu0 0.0
    %2843 = vmatprep.subr.mxu0 0.0
    %2844 = vmatpush1.msra.mxu0 0.0
    %2845 = vmatprep.subr.mxu0 0.0
    %2846 = vmatpush1.msra.mxu0 0.0
    %2847 = vmatprep.subr.mxu0 0.0
    %2848 = vmatpush1.msra.mxu0 0.0
    %2849 = vmatprep.subr.mxu0 0.0
    %2850 = vmatpush1.msra.mxu0 0.0
    %2851 = vmatprep.subr.mxu0 0.0
    %2852 = vmatpush1.msra.mxu0 0.0
    %2853 = vmatprep.subr.mxu0 0.0
    %2854 = vmatpush1.msra.mxu0 0.0
    %2855 = vmatprep.subr.mxu0 0.0
    %2856 = vmatpush1.msra.mxu0 0.0
    %2857 = vmatprep.subr.mxu0 0.0
    %2858 = vmatpush1.msra.mxu0 0.0
    %2859 = vmatprep.subr.mxu0 0.0
    %2860 = vmatpush1.msra.mxu0 0.0
    %2861 = vmatprep.subr.mxu0 0.0
    %2862 = vmatpush1.msra.mxu0 0.0
    %2863 = vmatprep.subr.mxu0 0.0
    %2864 = vmatpush1.msra.mxu0 0.0
    %2865 = vmatprep.mubr.f32.mxu0 0.0
    %2866 = vmatmul.mubr.f32.gmra.mrb[0].mxu0 %v2790
    %v2867 = vpop.f32.mrb[0].mxu0
    %v2868 = vadd.f32 0.0, %v2867
    %v2869 = vpop.f32.mrb[0].mxu0
    %v2870 = vadd.f32 0.0, %v2869
    %2871 = vmatprep.mubr.f32.mxu0 0.0
    %2872 = vmatmul.mubr.f32.gmra.mrb[0].mxu0 %v2793
    %v2873 = vpop.f32.mrb[0].mxu0
    %v2874 = vadd.f32 0.0, %v2873
    %v2875 = vpop.f32.mrb[0].mxu0
    %v2876 = vadd.f32 0.0, %v2875
    %2877 = vmatprep.mubr.f32.mxu0 0.0
    %2878 = vmatmul.mubr.f32.gmra.mrb[0].mxu0 %v2796
    %v2879 = vpop.f32.mrb[0].mxu0
    %v2880 = vadd.f32 0.0, %v2879
    %v2881 = vpop.f32.mrb[0].mxu0
    %v2882 = vadd.f32 0.0, %v2881
    %2883 = vmatprep.mubr.f32.mxu0 0.0
    %2884 = vmatmul.mubr.f32.gmra.mrb[0].mxu0 %v2799
    %v2885 = vpop.f32.mrb[0].mxu0
    %v2886 = vadd.f32 0.0, %v2885
    %v2887 = vpop.f32.mrb[0].mxu0
    %v2888 = vadd.f32 0.0, %v2887
    %2889 = vdwg.mxu0
    %v2890 = vadd.f32 %v2755, %v2868
    %v2891 = vadd.f32 %v2756, %v2870
    %v2892 = vadd.f32 %v2757, %v2874
    %v2893 = vadd.f32 %v2758, %v2876
    %v2894 = vadd.f32 %v2759, %v2880
    %v2895 = vadd.f32 %v2760, %v2882
    %v2896 = vadd.f32 %v2761, %v2886
    %v2897 = vadd.f32 %v2762, %v2888
    %s2898 = scalar_lea.vmem %s4, 160
    %v2899 = vld [vmem:[%s2898] sm:$0xff]
    %v2900 = vld [vmem:[%s2898 + $0x8] sm:$0xff]
    %v2901 = vld [vmem:[%s2898 + $0x10] sm:$0xff]
    %v2902 = vld [vmem:[%s2898 + $0x18] sm:$0xff]
    %2903 = vrot.lane.b32.xlu0 %v2231, 119
    %v2904 = vpop.permute.xlu0 %2903
    %2905 = vrot.lane.b32.xlu0 %v2232, 119
    %v2906 = vpop.permute.xlu0 %2905
    %2907 = vrot.lane.b32.xlu0 %v2233, 119
    %v2908 = vpop.permute.xlu0 %2907
    %2909 = vrot.lane.b32.xlu0 %v2234, 119
    %v2910 = vpop.permute.xlu0 %2909
    %2911 = vrot.lane.b32.xlu0 %v2235, 119
    %v2912 = vpop.permute.xlu0 %2911
    %2913 = vrot.lane.b32.xlu0 %v2236, 119
    %v2914 = vpop.permute.xlu0 %2913
    %vm2915 = vcmask 973824
    %v2916 = vsel %vm2915, %v2904, %v2906
    %v2917 = vsel %vm2915, %v2906, %v2908
    %v2918 = vsel %vm2915, %v2910, %v2912
    %v2919 = vsel %vm2915, %v2912, %v2914
    %v2925 = vsel %vm2269, %v2899, 0
    %v2928 = vsel %vm2269, %v2900, 0
    %v2931 = vsel %vm2269, %v2901, 0
    %v2934 = vsel %vm2269, %v2902, 0
    %2936 = vmatprep.subr.mxu0 %v2917
    %2937 = vmatpush1.msra.mxu0 %v2916
    %2938 = vmatprep.subr.mxu0 %v2919
    %2939 = vmatpush1.msra.mxu0 %v2918
    %2940 = vmatprep.subr.mxu0 0.0
    %2941 = vmatpush1.msra.mxu0 0.0
    %2942 = vmatprep.subr.mxu0 0.0
    %2943 = vmatpush1.msra.mxu0 0.0
    %2944 = vmatprep.subr.mxu0 0.0
    %2945 = vmatpush1.msra.mxu0 0.0
    %2946 = vmatprep.subr.mxu0 0.0
    %2947 = vmatpush1.msra.mxu0 0.0
    %2948 = vmatprep.subr.mxu0 0.0
    %2949 = vmatpush1.msra.mxu0 0.0
    %2950 = vmatprep.subr.mxu0 0.0
    %2951 = vmatpush1.msra.mxu0 0.0
    %2952 = vmatprep.subr.mxu0 0.0
    %2953 = vmatpush1.msra.mxu0 0.0
    %2954 = vmatprep.subr.mxu0 0.0
    %2955 = vmatpush1.msra.mxu0 0.0
    %2956 = vmatprep.subr.mxu0 0.0
    %2957 = vmatpush1.msra.mxu0 0.0
    %2958 = vmatprep.subr.mxu0 0.0
    %2959 = vmatpush1.msra.mxu0 0.0
    %2960 = vmatprep.subr.mxu0 0.0
    %2961 = vmatpush1.msra.mxu0 0.0
    %2962 = vmatprep.subr.mxu0 0.0
    %2963 = vmatpush1.msra.mxu0 0.0
    %2964 = vmatprep.subr.mxu0 0.0
    %2965 = vmatpush1.msra.mxu0 0.0
    %2966 = vmatprep.subr.mxu0 0.0
    %2967 = vmatpush1.msra.mxu0 0.0
    %2968 = vmatprep.subr.mxu0 0.0
    %2969 = vmatpush1.msra.mxu0 0.0
    %2970 = vmatprep.subr.mxu0 0.0
    %2971 = vmatpush1.msra.mxu0 0.0
    %2972 = vmatprep.subr.mxu0 0.0
    %2973 = vmatpush1.msra.mxu0 0.0
    %2974 = vmatprep.subr.mxu0 0.0
    %2975 = vmatpush1.msra.mxu0 0.0
    %2976 = vmatprep.subr.mxu0 0.0
    %2977 = vmatpush1.msra.mxu0 0.0
    %2978 = vmatprep.subr.mxu0 0.0
    %2979 = vmatpush1.msra.mxu0 0.0
    %2980 = vmatprep.subr.mxu0 0.0
    %2981 = vmatpush1.msra.mxu0 0.0
    %2982 = vmatprep.subr.mxu0 0.0
    %2983 = vmatpush1.msra.mxu0 0.0
    %2984 = vmatprep.subr.mxu0 0.0
    %2985 = vmatpush1.msra.mxu0 0.0
    %2986 = vmatprep.subr.mxu0 0.0
    %2987 = vmatpush1.msra.mxu0 0.0
    %2988 = vmatprep.subr.mxu0 0.0
    %2989 = vmatpush1.msra.mxu0 0.0
    %2990 = vmatprep.subr.mxu0 0.0
    %2991 = vmatpush1.msra.mxu0 0.0
    %2992 = vmatprep.subr.mxu0 0.0
    %2993 = vmatpush1.msra.mxu0 0.0
    %2994 = vmatprep.subr.mxu0 0.0
    %2995 = vmatpush1.msra.mxu0 0.0
    %2996 = vmatprep.subr.mxu0 0.0
    %2997 = vmatpush1.msra.mxu0 0.0
    %2998 = vmatprep.subr.mxu0 0.0
    %2999 = vmatpush1.msra.mxu0 0.0
    %3000 = vmatprep.mubr.f32.mxu0 0.0
    %3001 = vmatmul.mubr.f32.gmra.mrb[0].mxu0 %v2925
    %v3002 = vpop.f32.mrb[0].mxu0
    %v3003 = vadd.f32 0.0, %v3002
    %v3004 = vpop.f32.mrb[0].mxu0
    %v3005 = vadd.f32 0.0, %v3004
    %3006 = vmatprep.mubr.f32.mxu0 0.0
    %3007 = vmatmul.mubr.f32.gmra.mrb[0].mxu0 %v2928
    %v3008 = vpop.f32.mrb[0].mxu0
    %v3009 = vadd.f32 0.0, %v3008
    %v3010 = vpop.f32.mrb[0].mxu0
    %v3011 = vadd.f32 0.0, %v3010
    %3012 = vmatprep.mubr.f32.mxu0 0.0
    %3013 = vmatmul.mubr.f32.gmra.mrb[0].mxu0 %v2931
    %v3014 = vpop.f32.mrb[0].mxu0
    %v3015 = vadd.f32 0.0, %v3014
    %v3016 = vpop.f32.mrb[0].mxu0
    %v3017 = vadd.f32 0.0, %v3016
    %3018 = vmatprep.mubr.f32.mxu0 0.0
    %3019 = vmatmul.mubr.f32.gmra.mrb[0].mxu0 %v2934
    %v3020 = vpop.f32.mrb[0].mxu0
    %v3021 = vadd.f32 0.0, %v3020
    %v3022 = vpop.f32.mrb[0].mxu0
    %v3023 = vadd.f32 0.0, %v3022
    %3024 = vdwg.mxu0
    %v3025 = vadd.f32 %v2890, %v3003
    %v3026 = vadd.f32 %v2891, %v3005
    %v3027 = vadd.f32 %v2892, %v3009
    %v3028 = vadd.f32 %v2893, %v3011
    %v3029 = vadd.f32 %v2894, %v3015
    %v3030 = vadd.f32 %v2895, %v3017
    %v3031 = vadd.f32 %v2896, %v3021
    %v3032 = vadd.f32 %v2897, %v3023
    %s3033 = scalar_lea.vmem %s4, 192
    %v3034 = vld [vmem:[%s3033] sm:$0xff]
    %v3035 = vld [vmem:[%s3033 + $0x8] sm:$0xff]
    %v3036 = vld [vmem:[%s3033 + $0x10] sm:$0xff]
    %v3037 = vld [vmem:[%s3033 + $0x18] sm:$0xff]
    %3038 = vrot.lane.b32.xlu0 %v2231, 120
    %v3039 = vpop.permute.xlu0 %3038
    %3040 = vrot.lane.b32.xlu0 %v2232, 120
    %v3041 = vpop.permute.xlu0 %3040
    %3042 = vrot.lane.b32.xlu0 %v2233, 120
    %v3043 = vpop.permute.xlu0 %3042
    %3044 = vrot.lane.b32.xlu0 %v2234, 120
    %v3045 = vpop.permute.xlu0 %3044
    %3046 = vrot.lane.b32.xlu0 %v2235, 120
    %v3047 = vpop.permute.xlu0 %3046
    %3048 = vrot.lane.b32.xlu0 %v2236, 120
    %v3049 = vpop.permute.xlu0 %3048
    %vm3050 = vcmask 982016
    %v3051 = vsel %vm3050, %v3039, %v3041
    %v3052 = vsel %vm3050, %v3041, %v3043
    %v3053 = vsel %vm3050, %v3045, %v3047
    %v3054 = vsel %vm3050, %v3047, %v3049
    %v3060 = vsel %vm2269, %v3034, 0
    %v3063 = vsel %vm2269, %v3035, 0
    %v3066 = vsel %vm2269, %v3036, 0
    %v3069 = vsel %vm2269, %v3037, 0
    %3071 = vmatprep.subr.mxu0 %v3052
    %3072 = vmatpush1.msra.mxu0 %v3051
    %3073 = vmatprep.subr.mxu0 %v3054
    %3074 = vmatpush1.msra.mxu0 %v3053
    %3075 = vmatprep.subr.mxu0 0.0
    %3076 = vmatpush1.msra.mxu0 0.0
    %3077 = vmatprep.subr.mxu0 0.0
    %3078 = vmatpush1.msra.mxu0 0.0
    %3079 = vmatprep.subr.mxu0 0.0
    %3080 = vmatpush1.msra.mxu0 0.0
    %3081 = vmatprep.subr.mxu0 0.0
    %3082 = vmatpush1.msra.mxu0 0.0
    %3083 = vmatprep.subr.mxu0 0.0
    %3084 = vmatpush1.msra.mxu0 0.0
    %3085 = vmatprep.subr.mxu0 0.0
    %3086 = vmatpush1.msra.mxu0 0.0
    %3087 = vmatprep.subr.mxu0 0.0
    %3088 = vmatpush1.msra.mxu0 0.0
    %3089 = vmatprep.subr.mxu0 0.0
    %3090 = vmatpush1.msra.mxu0 0.0
    %3091 = vmatprep.subr.mxu0 0.0
    %3092 = vmatpush1.msra.mxu0 0.0
    %3093 = vmatprep.subr.mxu0 0.0
    %3094 = vmatpush1.msra.mxu0 0.0
    %3095 = vmatprep.subr.mxu0 0.0
    %3096 = vmatpush1.msra.mxu0 0.0
    %3097 = vmatprep.subr.mxu0 0.0
    %3098 = vmatpush1.msra.mxu0 0.0
    %3099 = vmatprep.subr.mxu0 0.0
    %3100 = vmatpush1.msra.mxu0 0.0
    %3101 = vmatprep.subr.mxu0 0.0
    %3102 = vmatpush1.msra.mxu0 0.0
    %3103 = vmatprep.subr.mxu0 0.0
    %3104 = vmatpush1.msra.mxu0 0.0
    %3105 = vmatprep.subr.mxu0 0.0
    %3106 = vmatpush1.msra.mxu0 0.0
    %3107 = vmatprep.subr.mxu0 0.0
    %3108 = vmatpush1.msra.mxu0 0.0
    %3109 = vmatprep.subr.mxu0 0.0
    %3110 = vmatpush1.msra.mxu0 0.0
    %3111 = vmatprep.subr.mxu0 0.0
    %3112 = vmatpush1.msra.mxu0 0.0
    %3113 = vmatprep.subr.mxu0 0.0
    %3114 = vmatpush1.msra.mxu0 0.0
    %3115 = vmatprep.subr.mxu0 0.0
    %3116 = vmatpush1.msra.mxu0 0.0
    %3117 = vmatprep.subr.mxu0 0.0
    %3118 = vmatpush1.msra.mxu0 0.0
    %3119 = vmatprep.subr.mxu0 0.0
    %3120 = vmatpush1.msra.mxu0 0.0
    %3121 = vmatprep.subr.mxu0 0.0
    %3122 = vmatpush1.msra.mxu0 0.0
    %3123 = vmatprep.subr.mxu0 0.0
    %3124 = vmatpush1.msra.mxu0 0.0
    %3125 = vmatprep.subr.mxu0 0.0
    %3126 = vmatpush1.msra.mxu0 0.0
    %3127 = vmatprep.subr.mxu0 0.0
    %3128 = vmatpush1.msra.mxu0 0.0
    %3129 = vmatprep.subr.mxu0 0.0
    %3130 = vmatpush1.msra.mxu0 0.0
    %3131 = vmatprep.subr.mxu0 0.0
    %3132 = vmatpush1.msra.mxu0 0.0
    %3133 = vmatprep.subr.mxu0 0.0
    %3134 = vmatpush1.msra.mxu0 0.0
    %3135 = vmatprep.mubr.f32.mxu0 0.0
    %3136 = vmatmul.mubr.f32.gmra.mrb[0].mxu0 %v3060
    %v3137 = vpop.f32.mrb[0].mxu0
    %v3138 = vadd.f32 0.0, %v3137
    %v3139 = vpop.f32.mrb[0].mxu0
    %v3140 = vadd.f32 0.0, %v3139
    %3141 = vmatprep.mubr.f32.mxu0 0.0
    %3142 = vmatmul.mubr.f32.gmra.mrb[0].mxu0 %v3063
    %v3143 = vpop.f32.mrb[0].mxu0
    %v3144 = vadd.f32 0.0, %v3143
    %v3145 = vpop.f32.mrb[0].mxu0
    %v3146 = vadd.f32 0.0, %v3145
    %3147 = vmatprep.mubr.f32.mxu0 0.0
    %3148 = vmatmul.mubr.f32.gmra.mrb[0].mxu0 %v3066
    %v3149 = vpop.f32.mrb[0].mxu0
    %v3150 = vadd.f32 0.0, %v3149
    %v3151 = vpop.f32.mrb[0].mxu0
    %v3152 = vadd.f32 0.0, %v3151
    %3153 = vmatprep.mubr.f32.mxu0 0.0
    %3154 = vmatmul.mubr.f32.gmra.mrb[0].mxu0 %v3069
    %v3155 = vpop.f32.mrb[0].mxu0
    %v3156 = vadd.f32 0.0, %v3155
    %v3157 = vpop.f32.mrb[0].mxu0
    %v3158 = vadd.f32 0.0, %v3157
    %3159 = vdwg.mxu0
    %v3160 = vadd.f32 %v3025, %v3138
    %v3161 = vadd.f32 %v3026, %v3140
    %v3162 = vadd.f32 %v3027, %v3144
    %v3163 = vadd.f32 %v3028, %v3146
    %v3164 = vadd.f32 %v3029, %v3150
    %v3165 = vadd.f32 %v3030, %v3152
    %v3166 = vadd.f32 %v3031, %v3156
    %v3167 = vadd.f32 %v3032, %v3158
    %s3168 = scalar_lea.vmem %s4, 224
    %v3169 = vld [vmem:[%s3168] sm:$0xff]
    %v3170 = vld [vmem:[%s3168 + $0x8] sm:$0xff]
    %v3171 = vld [vmem:[%s3168 + $0x10] sm:$0xff]
    %v3172 = vld [vmem:[%s3168 + $0x18] sm:$0xff]
    %3173 = vrot.lane.b32.xlu0 %v2231, 121
    %v3174 = vpop.permute.xlu0 %3173
    %3175 = vrot.lane.b32.xlu0 %v2232, 121
    %v3176 = vpop.permute.xlu0 %3175
    %3177 = vrot.lane.b32.xlu0 %v2233, 121
    %v3178 = vpop.permute.xlu0 %3177
    %3179 = vrot.lane.b32.xlu0 %v2234, 121
    %v3180 = vpop.permute.xlu0 %3179
    %3181 = vrot.lane.b32.xlu0 %v2235, 121
    %v3182 = vpop.permute.xlu0 %3181
    %3183 = vrot.lane.b32.xlu0 %v2236, 121
    %v3184 = vpop.permute.xlu0 %3183
    %vm3185 = vcmask 990208
    %v3186 = vsel %vm3185, %v3174, %v3176
    %v3187 = vsel %vm3185, %v3176, %v3178
    %v3188 = vsel %vm3185, %v3180, %v3182
    %v3189 = vsel %vm3185, %v3182, %v3184
    %v3195 = vsel %vm2269, %v3169, 0
    %v3198 = vsel %vm2269, %v3170, 0
    %v3201 = vsel %vm2269, %v3171, 0
    %v3204 = vsel %vm2269, %v3172, 0
    %3206 = vmatprep.subr.mxu0 %v3187
    %3207 = vmatpush1.msra.mxu0 %v3186
    %3208 = vmatprep.subr.mxu0 %v3189
    %3209 = vmatpush1.msra.mxu0 %v3188
    %3210 = vmatprep.subr.mxu0 0.0
    %3211 = vmatpush1.msra.mxu0 0.0
    %3212 = vmatprep.subr.mxu0 0.0
    %3213 = vmatpush1.msra.mxu0 0.0
    %3214 = vmatprep.subr.mxu0 0.0
    %3215 = vmatpush1.msra.mxu0 0.0
    %3216 = vmatprep.subr.mxu0 0.0
    %3217 = vmatpush1.msra.mxu0 0.0
    %3218 = vmatprep.subr.mxu0 0.0
    %3219 = vmatpush1.msra.mxu0 0.0
    %3220 = vmatprep.subr.mxu0 0.0
    %3221 = vmatpush1.msra.mxu0 0.0
    %3222 = vmatprep.subr.mxu0 0.0
    %3223 = vmatpush1.msra.mxu0 0.0
    %3224 = vmatprep.subr.mxu0 0.0
    %3225 = vmatpush1.msra.mxu0 0.0
    %3226 = vmatprep.subr.mxu0 0.0
    %3227 = vmatpush1.msra.mxu0 0.0
    %3228 = vmatprep.subr.mxu0 0.0
    %3229 = vmatpush1.msra.mxu0 0.0
    %3230 = vmatprep.subr.mxu0 0.0
    %3231 = vmatpush1.msra.mxu0 0.0
    %3232 = vmatprep.subr.mxu0 0.0
    %3233 = vmatpush1.msra.mxu0 0.0
    %3234 = vmatprep.subr.mxu0 0.0
    %3235 = vmatpush1.msra.mxu0 0.0
    %3236 = vmatprep.subr.mxu0 0.0
    %3237 = vmatpush1.msra.mxu0 0.0
    %3238 = vmatprep.subr.mxu0 0.0
    %3239 = vmatpush1.msra.mxu0 0.0
    %3240 = vmatprep.subr.mxu0 0.0
    %3241 = vmatpush1.msra.mxu0 0.0
    %3242 = vmatprep.subr.mxu0 0.0
    %3243 = vmatpush1.msra.mxu0 0.0
    %3244 = vmatprep.subr.mxu0 0.0
    %3245 = vmatpush1.msra.mxu0 0.0
    %3246 = vmatprep.subr.mxu0 0.0
    %3247 = vmatpush1.msra.mxu0 0.0
    %3248 = vmatprep.subr.mxu0 0.0
    %3249 = vmatpush1.msra.mxu0 0.0
    %3250 = vmatprep.subr.mxu0 0.0
    %3251 = vmatpush1.msra.mxu0 0.0
    %3252 = vmatprep.subr.mxu0 0.0
    %3253 = vmatpush1.msra.mxu0 0.0
    %3254 = vmatprep.subr.mxu0 0.0
    %3255 = vmatpush1.msra.mxu0 0.0
    %3256 = vmatprep.subr.mxu0 0.0
    %3257 = vmatpush1.msra.mxu0 0.0
    %3258 = vmatprep.subr.mxu0 0.0
    %3259 = vmatpush1.msra.mxu0 0.0
    %3260 = vmatprep.subr.mxu0 0.0
    %3261 = vmatpush1.msra.mxu0 0.0
    %3262 = vmatprep.subr.mxu0 0.0
    %3263 = vmatpush1.msra.mxu0 0.0
    %3264 = vmatprep.subr.mxu0 0.0
    %3265 = vmatpush1.msra.mxu0 0.0
    %3266 = vmatprep.subr.mxu0 0.0
    %3267 = vmatpush1.msra.mxu0 0.0
    %3268 = vmatprep.subr.mxu0 0.0
    %3269 = vmatpush1.msra.mxu0 0.0
    %3270 = vmatprep.mubr.f32.mxu0 0.0
    %3271 = vmatmul.mubr.f32.gmra.mrb[0].mxu0 %v3195
    %v3272 = vpop.f32.mrb[0].mxu0
    %v3273 = vadd.f32 0.0, %v3272
    %v3274 = vpop.f32.mrb[0].mxu0
    %v3275 = vadd.f32 0.0, %v3274
    %3276 = vmatprep.mubr.f32.mxu0 0.0
    %3277 = vmatmul.mubr.f32.gmra.mrb[0].mxu0 %v3198
    %v3278 = vpop.f32.mrb[0].mxu0
    %v3279 = vadd.f32 0.0, %v3278
    %v3280 = vpop.f32.mrb[0].mxu0
    %v3281 = vadd.f32 0.0, %v3280
    %3282 = vmatprep.mubr.f32.mxu0 0.0
    %3283 = vmatmul.mubr.f32.gmra.mrb[0].mxu0 %v3201
    %v3284 = vpop.f32.mrb[0].mxu0
    %v3285 = vadd.f32 0.0, %v3284
    %v3286 = vpop.f32.mrb[0].mxu0
    %v3287 = vadd.f32 0.0, %v3286
    %3288 = vmatprep.mubr.f32.mxu0 0.0
    %3289 = vmatmul.mubr.f32.gmra.mrb[0].mxu0 %v3204
    %v3290 = vpop.f32.mrb[0].mxu0
    %v3291 = vadd.f32 0.0, %v3290
    %v3292 = vpop.f32.mrb[0].mxu0
    %v3293 = vadd.f32 0.0, %v3292
    %3294 = vdwg.mxu0
    %v3295 = vadd.f32 %v3160, %v3273
    %v3296 = vadd.f32 %v3161, %v3275
    %v3297 = vadd.f32 %v3162, %v3279
    %v3298 = vadd.f32 %v3163, %v3281
    %v3299 = vadd.f32 %v3164, %v3285
    %v3300 = vadd.f32 %v3165, %v3287
    %v3301 = vadd.f32 %v3166, %v3291
    %v3302 = vadd.f32 %v3167, %v3293
    %s3303 = scalar_lea.vmem %s4, 256
    %v3304 = vld [vmem:[%s3303] sm:$0xff]
    %v3305 = vld [vmem:[%s3303 + $0x8] sm:$0xff]
    %v3306 = vld [vmem:[%s3303 + $0x10] sm:$0xff]
    %v3307 = vld [vmem:[%s3303 + $0x18] sm:$0xff]
    %3308 = vrot.lane.b32.xlu0 %v2231, 122
    %v3309 = vpop.permute.xlu0 %3308
    %3310 = vrot.lane.b32.xlu0 %v2232, 122
    %v3311 = vpop.permute.xlu0 %3310
    %3312 = vrot.lane.b32.xlu0 %v2233, 122
    %v3313 = vpop.permute.xlu0 %3312
    %3314 = vrot.lane.b32.xlu0 %v2234, 122
    %v3315 = vpop.permute.xlu0 %3314
    %3316 = vrot.lane.b32.xlu0 %v2235, 122
    %v3317 = vpop.permute.xlu0 %3316
    %3318 = vrot.lane.b32.xlu0 %v2236, 122
    %v3319 = vpop.permute.xlu0 %3318
    %vm3320 = vcmask 998400
    %v3321 = vsel %vm3320, %v3309, %v3311
    %v3322 = vsel %vm3320, %v3311, %v3313
    %v3323 = vsel %vm3320, %v3315, %v3317
    %v3324 = vsel %vm3320, %v3317, %v3319
    %v3330 = vsel %vm2269, %v3304, 0
    %v3333 = vsel %vm2269, %v3305, 0
    %v3336 = vsel %vm2269, %v3306, 0
    %v3339 = vsel %vm2269, %v3307, 0
    %3341 = vmatprep.subr.mxu0 %v3322
    %3342 = vmatpush1.msra.mxu0 %v3321
    %3343 = vmatprep.subr.mxu0 %v3324
    %3344 = vmatpush1.msra.mxu0 %v3323
    %3345 = vmatprep.subr.mxu0 0.0
    %3346 = vmatpush1.msra.mxu0 0.0
    %3347 = vmatprep.subr.mxu0 0.0
    %3348 = vmatpush1.msra.mxu0 0.0
    %3349 = vmatprep.subr.mxu0 0.0
    %3350 = vmatpush1.msra.mxu0 0.0
    %3351 = vmatprep.subr.mxu0 0.0
    %3352 = vmatpush1.msra.mxu0 0.0
    %3353 = vmatprep.subr.mxu0 0.0
    %3354 = vmatpush1.msra.mxu0 0.0
    %3355 = vmatprep.subr.mxu0 0.0
    %3356 = vmatpush1.msra.mxu0 0.0
    %3357 = vmatprep.subr.mxu0 0.0
    %3358 = vmatpush1.msra.mxu0 0.0
    %3359 = vmatprep.subr.mxu0 0.0
    %3360 = vmatpush1.msra.mxu0 0.0
    %3361 = vmatprep.subr.mxu0 0.0
    %3362 = vmatpush1.msra.mxu0 0.0
    %3363 = vmatprep.subr.mxu0 0.0
    %3364 = vmatpush1.msra.mxu0 0.0
    %3365 = vmatprep.subr.mxu0 0.0
    %3366 = vmatpush1.msra.mxu0 0.0
    %3367 = vmatprep.subr.mxu0 0.0
    %3368 = vmatpush1.msra.mxu0 0.0
    %3369 = vmatprep.subr.mxu0 0.0
    %3370 = vmatpush1.msra.mxu0 0.0
    %3371 = vmatprep.subr.mxu0 0.0
    %3372 = vmatpush1.msra.mxu0 0.0
    %3373 = vmatprep.subr.mxu0 0.0
    %3374 = vmatpush1.msra.mxu0 0.0
    %3375 = vmatprep.subr.mxu0 0.0
    %3376 = vmatpush1.msra.mxu0 0.0
    %3377 = vmatprep.subr.mxu0 0.0
    %3378 = vmatpush1.msra.mxu0 0.0
    %3379 = vmatprep.subr.mxu0 0.0
    %3380 = vmatpush1.msra.mxu0 0.0
    %3381 = vmatprep.subr.mxu0 0.0
    %3382 = vmatpush1.msra.mxu0 0.0
    %3383 = vmatprep.subr.mxu0 0.0
    %3384 = vmatpush1.msra.mxu0 0.0
    %3385 = vmatprep.subr.mxu0 0.0
    %3386 = vmatpush1.msra.mxu0 0.0
    %3387 = vmatprep.subr.mxu0 0.0
    %3388 = vmatpush1.msra.mxu0 0.0
    %3389 = vmatprep.subr.mxu0 0.0
    %3390 = vmatpush1.msra.mxu0 0.0
    %3391 = vmatprep.subr.mxu0 0.0
    %3392 = vmatpush1.msra.mxu0 0.0
    %3393 = vmatprep.subr.mxu0 0.0
    %3394 = vmatpush1.msra.mxu0 0.0
    %3395 = vmatprep.subr.mxu0 0.0
    %3396 = vmatpush1.msra.mxu0 0.0
    %3397 = vmatprep.subr.mxu0 0.0
    %3398 = vmatpush1.msra.mxu0 0.0
    %3399 = vmatprep.subr.mxu0 0.0
    %3400 = vmatpush1.msra.mxu0 0.0
    %3401 = vmatprep.subr.mxu0 0.0
    %3402 = vmatpush1.msra.mxu0 0.0
    %3403 = vmatprep.subr.mxu0 0.0
    %3404 = vmatpush1.msra.mxu0 0.0
    %3405 = vmatprep.mubr.f32.mxu0 0.0
    %3406 = vmatmul.mubr.f32.gmra.mrb[0].mxu0 %v3330
    %v3407 = vpop.f32.mrb[0].mxu0
    %v3408 = vadd.f32 0.0, %v3407
    %v3409 = vpop.f32.mrb[0].mxu0
    %v3410 = vadd.f32 0.0, %v3409
    %3411 = vmatprep.mubr.f32.mxu0 0.0
    %3412 = vmatmul.mubr.f32.gmra.mrb[0].mxu0 %v3333
    %v3413 = vpop.f32.mrb[0].mxu0
    %v3414 = vadd.f32 0.0, %v3413
    %v3415 = vpop.f32.mrb[0].mxu0
    %v3416 = vadd.f32 0.0, %v3415
    %3417 = vmatprep.mubr.f32.mxu0 0.0
    %3418 = vmatmul.mubr.f32.gmra.mrb[0].mxu0 %v3336
    %v3419 = vpop.f32.mrb[0].mxu0
    %v3420 = vadd.f32 0.0, %v3419
    %v3421 = vpop.f32.mrb[0].mxu0
    %v3422 = vadd.f32 0.0, %v3421
    %3423 = vmatprep.mubr.f32.mxu0 0.0
    %3424 = vmatmul.mubr.f32.gmra.mrb[0].mxu0 %v3339
    %v3425 = vpop.f32.mrb[0].mxu0
    %v3426 = vadd.f32 0.0, %v3425
    %v3427 = vpop.f32.mrb[0].mxu0
    %v3428 = vadd.f32 0.0, %v3427
    %3429 = vdwg.mxu0
    %v3430 = vadd.f32 %v3295, %v3408
    %v3431 = vadd.f32 %v3296, %v3410
    %v3432 = vadd.f32 %v3297, %v3414
    %v3433 = vadd.f32 %v3298, %v3416
    %v3434 = vadd.f32 %v3299, %v3420
    %v3435 = vadd.f32 %v3300, %v3422
    %v3436 = vadd.f32 %v3301, %v3426
    %v3437 = vadd.f32 %v3302, %v3428
    %s3438 = scalar_lea.vmem %s4, 288
    %v3439 = vld [vmem:[%s3438] sm:$0xff]
    %v3440 = vld [vmem:[%s3438 + $0x8] sm:$0xff]
    %v3441 = vld [vmem:[%s3438 + $0x10] sm:$0xff]
    %v3442 = vld [vmem:[%s3438 + $0x18] sm:$0xff]
    %3443 = vrot.lane.b32.xlu0 %v2231, 123
    %v3444 = vpop.permute.xlu0 %3443
    %3445 = vrot.lane.b32.xlu0 %v2232, 123
    %v3446 = vpop.permute.xlu0 %3445
    %3447 = vrot.lane.b32.xlu0 %v2233, 123
    %v3448 = vpop.permute.xlu0 %3447
    %3449 = vrot.lane.b32.xlu0 %v2234, 123
    %v3450 = vpop.permute.xlu0 %3449
    %3451 = vrot.lane.b32.xlu0 %v2235, 123
    %v3452 = vpop.permute.xlu0 %3451
    %3453 = vrot.lane.b32.xlu0 %v2236, 123
    %v3454 = vpop.permute.xlu0 %3453
    %vm3455 = vcmask 1006592
    %v3456 = vsel %vm3455, %v3444, %v3446
    %v3457 = vsel %vm3455, %v3446, %v3448
    %v3458 = vsel %vm3455, %v3450, %v3452
    %v3459 = vsel %vm3455, %v3452, %v3454
    %v3465 = vsel %vm2269, %v3439, 0
    %v3468 = vsel %vm2269, %v3440, 0
    %v3471 = vsel %vm2269, %v3441, 0
    %v3474 = vsel %vm2269, %v3442, 0
    %3476 = vmatprep.subr.mxu0 %v3457
    %3477 = vmatpush1.msra.mxu0 %v3456
    %3478 = vmatprep.subr.mxu0 %v3459
    %3479 = vmatpush1.msra.mxu0 %v3458
    %3480 = vmatprep.subr.mxu0 0.0
    %3481 = vmatpush1.msra.mxu0 0.0
    %3482 = vmatprep.subr.mxu0 0.0
    %3483 = vmatpush1.msra.mxu0 0.0
    %3484 = vmatprep.subr.mxu0 0.0
    %3485 = vmatpush1.msra.mxu0 0.0
    %3486 = vmatprep.subr.mxu0 0.0
    %3487 = vmatpush1.msra.mxu0 0.0
    %3488 = vmatprep.subr.mxu0 0.0
    %3489 = vmatpush1.msra.mxu0 0.0
    %3490 = vmatprep.subr.mxu0 0.0
    %3491 = vmatpush1.msra.mxu0 0.0
    %3492 = vmatprep.subr.mxu0 0.0
    %3493 = vmatpush1.msra.mxu0 0.0
    %3494 = vmatprep.subr.mxu0 0.0
    %3495 = vmatpush1.msra.mxu0 0.0
    %3496 = vmatprep.subr.mxu0 0.0
    %3497 = vmatpush1.msra.mxu0 0.0
    %3498 = vmatprep.subr.mxu0 0.0
    %3499 = vmatpush1.msra.mxu0 0.0
    %3500 = vmatprep.subr.mxu0 0.0
    %3501 = vmatpush1.msra.mxu0 0.0
    %3502 = vmatprep.subr.mxu0 0.0
    %3503 = vmatpush1.msra.mxu0 0.0
    %3504 = vmatprep.subr.mxu0 0.0
    %3505 = vmatpush1.msra.mxu0 0.0
    %3506 = vmatprep.subr.mxu0 0.0
    %3507 = vmatpush1.msra.mxu0 0.0
    %3508 = vmatprep.subr.mxu0 0.0
    %3509 = vmatpush1.msra.mxu0 0.0
    %3510 = vmatprep.subr.mxu0 0.0
    %3511 = vmatpush1.msra.mxu0 0.0
    %3512 = vmatprep.subr.mxu0 0.0
    %3513 = vmatpush1.msra.mxu0 0.0
    %3514 = vmatprep.subr.mxu0 0.0
    %3515 = vmatpush1.msra.mxu0 0.0
    %3516 = vmatprep.subr.mxu0 0.0
    %3517 = vmatpush1.msra.mxu0 0.0
    %3518 = vmatprep.subr.mxu0 0.0
    %3519 = vmatpush1.msra.mxu0 0.0
    %3520 = vmatprep.subr.mxu0 0.0
    %3521 = vmatpush1.msra.mxu0 0.0
    %3522 = vmatprep.subr.mxu0 0.0
    %3523 = vmatpush1.msra.mxu0 0.0
    %3524 = vmatprep.subr.mxu0 0.0
    %3525 = vmatpush1.msra.mxu0 0.0
    %3526 = vmatprep.subr.mxu0 0.0
    %3527 = vmatpush1.msra.mxu0 0.0
    %3528 = vmatprep.subr.mxu0 0.0
    %3529 = vmatpush1.msra.mxu0 0.0
    %3530 = vmatprep.subr.mxu0 0.0
    %3531 = vmatpush1.msra.mxu0 0.0
    %3532 = vmatprep.subr.mxu0 0.0
    %3533 = vmatpush1.msra.mxu0 0.0
    %3534 = vmatprep.subr.mxu0 0.0
    %3535 = vmatpush1.msra.mxu0 0.0
    %3536 = vmatprep.subr.mxu0 0.0
    %3537 = vmatpush1.msra.mxu0 0.0
    %3538 = vmatprep.subr.mxu0 0.0
    %3539 = vmatpush1.msra.mxu0 0.0
    %3540 = vmatprep.mubr.f32.mxu0 0.0
    %3541 = vmatmul.mubr.f32.gmra.mrb[0].mxu0 %v3465
    %v3542 = vpop.f32.mrb[0].mxu0
    %v3543 = vadd.f32 0.0, %v3542
    %v3544 = vpop.f32.mrb[0].mxu0
    %v3545 = vadd.f32 0.0, %v3544
    %3546 = vmatprep.mubr.f32.mxu0 0.0
    %3547 = vmatmul.mubr.f32.gmra.mrb[0].mxu0 %v3468
    %v3548 = vpop.f32.mrb[0].mxu0
    %v3549 = vadd.f32 0.0, %v3548
    %v3550 = vpop.f32.mrb[0].mxu0
    %v3551 = vadd.f32 0.0, %v3550
    %3552 = vmatprep.mubr.f32.mxu0 0.0
    %3553 = vmatmul.mubr.f32.gmra.mrb[0].mxu0 %v3471
    %v3554 = vpop.f32.mrb[0].mxu0
    %v3555 = vadd.f32 0.0, %v3554
    %v3556 = vpop.f32.mrb[0].mxu0
    %v3557 = vadd.f32 0.0, %v3556
    %3558 = vmatprep.mubr.f32.mxu0 0.0
    %3559 = vmatmul.mubr.f32.gmra.mrb[0].mxu0 %v3474
    %v3560 = vpop.f32.mrb[0].mxu0
    %v3561 = vadd.f32 0.0, %v3560
    %v3562 = vpop.f32.mrb[0].mxu0
    %v3563 = vadd.f32 0.0, %v3562
    %3564 = vdwg.mxu0
    %v3565 = vadd.f32 %v3430, %v3543
    %v3566 = vadd.f32 %v3431, %v3545
    %v3567 = vadd.f32 %v3432, %v3549
    %v3568 = vadd.f32 %v3433, %v3551
    %v3569 = vadd.f32 %v3434, %v3555
    %v3570 = vadd.f32 %v3435, %v3557
    %v3571 = vadd.f32 %v3436, %v3561
    %v3572 = vadd.f32 %v3437, %v3563
    %s3573 = scalar_lea.vmem %s4, 320
    %v3574 = vld [vmem:[%s3573] sm:$0xff]
    %v3575 = vld [vmem:[%s3573 + $0x8] sm:$0xff]
    %v3576 = vld [vmem:[%s3573 + $0x10] sm:$0xff]
    %v3577 = vld [vmem:[%s3573 + $0x18] sm:$0xff]
    %3578 = vrot.lane.b32.xlu0 %v2231, 124
    %v3579 = vpop.permute.xlu0 %3578
    %3580 = vrot.lane.b32.xlu0 %v2232, 124
    %v3581 = vpop.permute.xlu0 %3580
    %3582 = vrot.lane.b32.xlu0 %v2233, 124
    %v3583 = vpop.permute.xlu0 %3582
    %3584 = vrot.lane.b32.xlu0 %v2234, 124
    %v3585 = vpop.permute.xlu0 %3584
    %3586 = vrot.lane.b32.xlu0 %v2235, 124
    %v3587 = vpop.permute.xlu0 %3586
    %3588 = vrot.lane.b32.xlu0 %v2236, 124
    %v3589 = vpop.permute.xlu0 %3588
    %vm3590 = vcmask 1014784
    %v3591 = vsel %vm3590, %v3579, %v3581
    %v3592 = vsel %vm3590, %v3581, %v3583
    %v3593 = vsel %vm3590, %v3585, %v3587
    %v3594 = vsel %vm3590, %v3587, %v3589
    %v3600 = vsel %vm2269, %v3574, 0
    %v3603 = vsel %vm2269, %v3575, 0
    %v3606 = vsel %vm2269, %v3576, 0
    %v3609 = vsel %vm2269, %v3577, 0
    %3611 = vmatprep.subr.mxu0 %v3592
    %3612 = vmatpush1.msra.mxu0 %v3591
    %3613 = vmatprep.subr.mxu0 %v3594
    %3614 = vmatpush1.msra.mxu0 %v3593
    %3615 = vmatprep.subr.mxu0 0.0
    %3616 = vmatpush1.msra.mxu0 0.0
    %3617 = vmatprep.subr.mxu0 0.0
    %3618 = vmatpush1.msra.mxu0 0.0
    %3619 = vmatprep.subr.mxu0 0.0
    %3620 = vmatpush1.msra.mxu0 0.0
    %3621 = vmatprep.subr.mxu0 0.0
    %3622 = vmatpush1.msra.mxu0 0.0
    %3623 = vmatprep.subr.mxu0 0.0
    %3624 = vmatpush1.msra.mxu0 0.0
    %3625 = vmatprep.subr.mxu0 0.0
    %3626 = vmatpush1.msra.mxu0 0.0
    %3627 = vmatprep.subr.mxu0 0.0
    %3628 = vmatpush1.msra.mxu0 0.0
    %3629 = vmatprep.subr.mxu0 0.0
    %3630 = vmatpush1.msra.mxu0 0.0
    %3631 = vmatprep.subr.mxu0 0.0
    %3632 = vmatpush1.msra.mxu0 0.0
    %3633 = vmatprep.subr.mxu0 0.0
    %3634 = vmatpush1.msra.mxu0 0.0
    %3635 = vmatprep.subr.mxu0 0.0
    %3636 = vmatpush1.msra.mxu0 0.0
    %3637 = vmatprep.subr.mxu0 0.0
    %3638 = vmatpush1.msra.mxu0 0.0
    %3639 = vmatprep.subr.mxu0 0.0
    %3640 = vmatpush1.msra.mxu0 0.0
    %3641 = vmatprep.subr.mxu0 0.0
    %3642 = vmatpush1.msra.mxu0 0.0
    %3643 = vmatprep.subr.mxu0 0.0
    %3644 = vmatpush1.msra.mxu0 0.0
    %3645 = vmatprep.subr.mxu0 0.0
    %3646 = vmatpush1.msra.mxu0 0.0
    %3647 = vmatprep.subr.mxu0 0.0
    %3648 = vmatpush1.msra.mxu0 0.0
    %3649 = vmatprep.subr.mxu0 0.0
    %3650 = vmatpush1.msra.mxu0 0.0
    %3651 = vmatprep.subr.mxu0 0.0
    %3652 = vmatpush1.msra.mxu0 0.0
    %3653 = vmatprep.subr.mxu0 0.0
    %3654 = vmatpush1.msra.mxu0 0.0
    %3655 = vmatprep.subr.mxu0 0.0
    %3656 = vmatpush1.msra.mxu0 0.0
    %3657 = vmatprep.subr.mxu0 0.0
    %3658 = vmatpush1.msra.mxu0 0.0
    %3659 = vmatprep.subr.mxu0 0.0
    %3660 = vmatpush1.msra.mxu0 0.0
    %3661 = vmatprep.subr.mxu0 0.0
    %3662 = vmatpush1.msra.mxu0 0.0
    %3663 = vmatprep.subr.mxu0 0.0
    %3664 = vmatpush1.msra.mxu0 0.0
    %3665 = vmatprep.subr.mxu0 0.0
    %3666 = vmatpush1.msra.mxu0 0.0
    %3667 = vmatprep.subr.mxu0 0.0
    %3668 = vmatpush1.msra.mxu0 0.0
    %3669 = vmatprep.subr.mxu0 0.0
    %3670 = vmatpush1.msra.mxu0 0.0
    %3671 = vmatprep.subr.mxu0 0.0
    %3672 = vmatpush1.msra.mxu0 0.0
    %3673 = vmatprep.subr.mxu0 0.0
    %3674 = vmatpush1.msra.mxu0 0.0
    %3675 = vmatprep.mubr.f32.mxu0 0.0
    %3676 = vmatmul.mubr.f32.gmra.mrb[0].mxu0 %v3600
    %v3677 = vpop.f32.mrb[0].mxu0
    %v3678 = vadd.f32 0.0, %v3677
    %v3679 = vpop.f32.mrb[0].mxu0
    %v3680 = vadd.f32 0.0, %v3679
    %3681 = vmatprep.mubr.f32.mxu0 0.0
    %3682 = vmatmul.mubr.f32.gmra.mrb[0].mxu0 %v3603
    %v3683 = vpop.f32.mrb[0].mxu0
    %v3684 = vadd.f32 0.0, %v3683
    %v3685 = vpop.f32.mrb[0].mxu0
    %v3686 = vadd.f32 0.0, %v3685
    %3687 = vmatprep.mubr.f32.mxu0 0.0
    %3688 = vmatmul.mubr.f32.gmra.mrb[0].mxu0 %v3606
    %v3689 = vpop.f32.mrb[0].mxu0
    %v3690 = vadd.f32 0.0, %v3689
    %v3691 = vpop.f32.mrb[0].mxu0
    %v3692 = vadd.f32 0.0, %v3691
    %3693 = vmatprep.mubr.f32.mxu0 0.0
    %3694 = vmatmul.mubr.f32.gmra.mrb[0].mxu0 %v3609
    %v3695 = vpop.f32.mrb[0].mxu0
    %v3696 = vadd.f32 0.0, %v3695
    %v3697 = vpop.f32.mrb[0].mxu0
    %v3698 = vadd.f32 0.0, %v3697
    %3699 = vdwg.mxu0
    %v3700 = vadd.f32 %v3565, %v3678
    %v3701 = vadd.f32 %v3566, %v3680
    %v3702 = vadd.f32 %v3567, %v3684
    %v3703 = vadd.f32 %v3568, %v3686
    %v3704 = vadd.f32 %v3569, %v3690
    %v3705 = vadd.f32 %v3570, %v3692
    %v3706 = vadd.f32 %v3571, %v3696
    %v3707 = vadd.f32 %v3572, %v3698
    %s3708 = scalar_lea.vmem %s4, 352
    %v3709 = vld [vmem:[%s3708] sm:$0xff]
    %v3710 = vld [vmem:[%s3708 + $0x8] sm:$0xff]
    %v3711 = vld [vmem:[%s3708 + $0x10] sm:$0xff]
    %v3712 = vld [vmem:[%s3708 + $0x18] sm:$0xff]
    %3713 = vrot.lane.b32.xlu0 %v2231, 125
    %v3714 = vpop.permute.xlu0 %3713
    %3715 = vrot.lane.b32.xlu0 %v2232, 125
    %v3716 = vpop.permute.xlu0 %3715
    %3717 = vrot.lane.b32.xlu0 %v2233, 125
    %v3718 = vpop.permute.xlu0 %3717
    %3719 = vrot.lane.b32.xlu0 %v2234, 125
    %v3720 = vpop.permute.xlu0 %3719
    %3721 = vrot.lane.b32.xlu0 %v2235, 125
    %v3722 = vpop.permute.xlu0 %3721
    %3723 = vrot.lane.b32.xlu0 %v2236, 125
    %v3724 = vpop.permute.xlu0 %3723
    %vm3725 = vcmask 1022976
    %v3726 = vsel %vm3725, %v3714, %v3716
    %v3727 = vsel %vm3725, %v3716, %v3718
    %v3728 = vsel %vm3725, %v3720, %v3722
    %v3729 = vsel %vm3725, %v3722, %v3724
    %v3735 = vsel %vm2269, %v3709, 0
    %v3738 = vsel %vm2269, %v3710, 0
    %v3741 = vsel %vm2269, %v3711, 0
    %v3744 = vsel %vm2269, %v3712, 0
    %3746 = vmatprep.subr.mxu0 %v3727
    %3747 = vmatpush1.msra.mxu0 %v3726
    %3748 = vmatprep.subr.mxu0 %v3729
    %3749 = vmatpush1.msra.mxu0 %v3728
    %3750 = vmatprep.subr.mxu0 0.0
    %3751 = vmatpush1.msra.mxu0 0.0
    %3752 = vmatprep.subr.mxu0 0.0
    %3753 = vmatpush1.msra.mxu0 0.0
    %3754 = vmatprep.subr.mxu0 0.0
    %3755 = vmatpush1.msra.mxu0 0.0
    %3756 = vmatprep.subr.mxu0 0.0
    %3757 = vmatpush1.msra.mxu0 0.0
    %3758 = vmatprep.subr.mxu0 0.0
    %3759 = vmatpush1.msra.mxu0 0.0
    %3760 = vmatprep.subr.mxu0 0.0
    %3761 = vmatpush1.msra.mxu0 0.0
    %3762 = vmatprep.subr.mxu0 0.0
    %3763 = vmatpush1.msra.mxu0 0.0
    %3764 = vmatprep.subr.mxu0 0.0
    %3765 = vmatpush1.msra.mxu0 0.0
    %3766 = vmatprep.subr.mxu0 0.0
    %3767 = vmatpush1.msra.mxu0 0.0
    %3768 = vmatprep.subr.mxu0 0.0
    %3769 = vmatpush1.msra.mxu0 0.0
    %3770 = vmatprep.subr.mxu0 0.0
    %3771 = vmatpush1.msra.mxu0 0.0
    %3772 = vmatprep.subr.mxu0 0.0
    %3773 = vmatpush1.msra.mxu0 0.0
    %3774 = vmatprep.subr.mxu0 0.0
    %3775 = vmatpush1.msra.mxu0 0.0
    %3776 = vmatprep.subr.mxu0 0.0
    %3777 = vmatpush1.msra.mxu0 0.0
    %3778 = vmatprep.subr.mxu0 0.0
    %3779 = vmatpush1.msra.mxu0 0.0
    %3780 = vmatprep.subr.mxu0 0.0
    %3781 = vmatpush1.msra.mxu0 0.0
    %3782 = vmatprep.subr.mxu0 0.0
    %3783 = vmatpush1.msra.mxu0 0.0
    %3784 = vmatprep.subr.mxu0 0.0
    %3785 = vmatpush1.msra.mxu0 0.0
    %3786 = vmatprep.subr.mxu0 0.0
    %3787 = vmatpush1.msra.mxu0 0.0
    %3788 = vmatprep.subr.mxu0 0.0
    %3789 = vmatpush1.msra.mxu0 0.0
    %3790 = vmatprep.subr.mxu0 0.0
    %3791 = vmatpush1.msra.mxu0 0.0
    %3792 = vmatprep.subr.mxu0 0.0
    %3793 = vmatpush1.msra.mxu0 0.0
    %3794 = vmatprep.subr.mxu0 0.0
    %3795 = vmatpush1.msra.mxu0 0.0
    %3796 = vmatprep.subr.mxu0 0.0
    %3797 = vmatpush1.msra.mxu0 0.0
    %3798 = vmatprep.subr.mxu0 0.0
    %3799 = vmatpush1.msra.mxu0 0.0
    %3800 = vmatprep.subr.mxu0 0.0
    %3801 = vmatpush1.msra.mxu0 0.0
    %3802 = vmatprep.subr.mxu0 0.0
    %3803 = vmatpush1.msra.mxu0 0.0
    %3804 = vmatprep.subr.mxu0 0.0
    %3805 = vmatpush1.msra.mxu0 0.0
    %3806 = vmatprep.subr.mxu0 0.0
    %3807 = vmatpush1.msra.mxu0 0.0
    %3808 = vmatprep.subr.mxu0 0.0
    %3809 = vmatpush1.msra.mxu0 0.0
    %3810 = vmatprep.mubr.f32.mxu0 0.0
    %3811 = vmatmul.mubr.f32.gmra.mrb[0].mxu0 %v3735
    %v3812 = vpop.f32.mrb[0].mxu0
    %v3813 = vadd.f32 0.0, %v3812
    %v3814 = vpop.f32.mrb[0].mxu0
    %v3815 = vadd.f32 0.0, %v3814
    %3816 = vmatprep.mubr.f32.mxu0 0.0
    %3817 = vmatmul.mubr.f32.gmra.mrb[0].mxu0 %v3738
    %v3818 = vpop.f32.mrb[0].mxu0
    %v3819 = vadd.f32 0.0, %v3818
    %v3820 = vpop.f32.mrb[0].mxu0
    %v3821 = vadd.f32 0.0, %v3820
    %3822 = vmatprep.mubr.f32.mxu0 0.0
    %3823 = vmatmul.mubr.f32.gmra.mrb[0].mxu0 %v3741
    %v3824 = vpop.f32.mrb[0].mxu0
    %v3825 = vadd.f32 0.0, %v3824
    %v3826 = vpop.f32.mrb[0].mxu0
    %v3827 = vadd.f32 0.0, %v3826
    %3828 = vmatprep.mubr.f32.mxu0 0.0
    %3829 = vmatmul.mubr.f32.gmra.mrb[0].mxu0 %v3744
    %v3830 = vpop.f32.mrb[0].mxu0
    %v3831 = vadd.f32 0.0, %v3830
    %v3832 = vpop.f32.mrb[0].mxu0
    %v3833 = vadd.f32 0.0, %v3832
    %3834 = vdwg.mxu0
    %v3835 = vadd.f32 %v3700, %v3813
    %v3836 = vadd.f32 %v3701, %v3815
    %v3837 = vadd.f32 %v3702, %v3819
    %v3838 = vadd.f32 %v3703, %v3821
    %v3839 = vadd.f32 %v3704, %v3825
    %v3840 = vadd.f32 %v3705, %v3827
    %v3841 = vadd.f32 %v3706, %v3831
    %v3842 = vadd.f32 %v3707, %v3833
    %s3843 = scalar_lea.vmem %s4, 384
    %v3844 = vld [vmem:[%s3843] sm:$0xff]
    %v3845 = vld [vmem:[%s3843 + $0x8] sm:$0xff]
    %v3846 = vld [vmem:[%s3843 + $0x10] sm:$0xff]
    %v3847 = vld [vmem:[%s3843 + $0x18] sm:$0xff]
    %3848 = vrot.lane.b32.xlu0 %v2231, 126
    %v3849 = vpop.permute.xlu0 %3848
    %3850 = vrot.lane.b32.xlu0 %v2232, 126
    %v3851 = vpop.permute.xlu0 %3850
    %3852 = vrot.lane.b32.xlu0 %v2233, 126
    %v3853 = vpop.permute.xlu0 %3852
    %3854 = vrot.lane.b32.xlu0 %v2234, 126
    %v3855 = vpop.permute.xlu0 %3854
    %3856 = vrot.lane.b32.xlu0 %v2235, 126
    %v3857 = vpop.permute.xlu0 %3856
    %3858 = vrot.lane.b32.xlu0 %v2236, 126
    %v3859 = vpop.permute.xlu0 %3858
    %vm3860 = vcmask 1031168
    %v3861 = vsel %vm3860, %v3849, %v3851
    %v3862 = vsel %vm3860, %v3851, %v3853
    %v3863 = vsel %vm3860, %v3855, %v3857
    %v3864 = vsel %vm3860, %v3857, %v3859
    %v3870 = vsel %vm2269, %v3844, 0
    %v3873 = vsel %vm2269, %v3845, 0
    %v3876 = vsel %vm2269, %v3846, 0
    %v3879 = vsel %vm2269, %v3847, 0
    %3881 = vmatprep.subr.mxu0 %v3862
    %3882 = vmatpush1.msra.mxu0 %v3861
    %3883 = vmatprep.subr.mxu0 %v3864
    %3884 = vmatpush1.msra.mxu0 %v3863
    %3885 = vmatprep.subr.mxu0 0.0
    %3886 = vmatpush1.msra.mxu0 0.0
    %3887 = vmatprep.subr.mxu0 0.0
    %3888 = vmatpush1.msra.mxu0 0.0
    %3889 = vmatprep.subr.mxu0 0.0
    %3890 = vmatpush1.msra.mxu0 0.0
    %3891 = vmatprep.subr.mxu0 0.0
    %3892 = vmatpush1.msra.mxu0 0.0
    %3893 = vmatprep.subr.mxu0 0.0
    %3894 = vmatpush1.msra.mxu0 0.0
    %3895 = vmatprep.subr.mxu0 0.0
    %3896 = vmatpush1.msra.mxu0 0.0
    %3897 = vmatprep.subr.mxu0 0.0
    %3898 = vmatpush1.msra.mxu0 0.0
    %3899 = vmatprep.subr.mxu0 0.0
    %3900 = vmatpush1.msra.mxu0 0.0
    %3901 = vmatprep.subr.mxu0 0.0
    %3902 = vmatpush1.msra.mxu0 0.0
    %3903 = vmatprep.subr.mxu0 0.0
    %3904 = vmatpush1.msra.mxu0 0.0
    %3905 = vmatprep.subr.mxu0 0.0
    %3906 = vmatpush1.msra.mxu0 0.0
    %3907 = vmatprep.subr.mxu0 0.0
    %3908 = vmatpush1.msra.mxu0 0.0
    %3909 = vmatprep.subr.mxu0 0.0
    %3910 = vmatpush1.msra.mxu0 0.0
    %3911 = vmatprep.subr.mxu0 0.0
    %3912 = vmatpush1.msra.mxu0 0.0
    %3913 = vmatprep.subr.mxu0 0.0
    %3914 = vmatpush1.msra.mxu0 0.0
    %3915 = vmatprep.subr.mxu0 0.0
    %3916 = vmatpush1.msra.mxu0 0.0
    %3917 = vmatprep.subr.mxu0 0.0
    %3918 = vmatpush1.msra.mxu0 0.0
    %3919 = vmatprep.subr.mxu0 0.0
    %3920 = vmatpush1.msra.mxu0 0.0
    %3921 = vmatprep.subr.mxu0 0.0
    %3922 = vmatpush1.msra.mxu0 0.0
    %3923 = vmatprep.subr.mxu0 0.0
    %3924 = vmatpush1.msra.mxu0 0.0
    %3925 = vmatprep.subr.mxu0 0.0
    %3926 = vmatpush1.msra.mxu0 0.0
    %3927 = vmatprep.subr.mxu0 0.0
    %3928 = vmatpush1.msra.mxu0 0.0
    %3929 = vmatprep.subr.mxu0 0.0
    %3930 = vmatpush1.msra.mxu0 0.0
    %3931 = vmatprep.subr.mxu0 0.0
    %3932 = vmatpush1.msra.mxu0 0.0
    %3933 = vmatprep.subr.mxu0 0.0
    %3934 = vmatpush1.msra.mxu0 0.0
    %3935 = vmatprep.subr.mxu0 0.0
    %3936 = vmatpush1.msra.mxu0 0.0
    %3937 = vmatprep.subr.mxu0 0.0
    %3938 = vmatpush1.msra.mxu0 0.0
    %3939 = vmatprep.subr.mxu0 0.0
    %3940 = vmatpush1.msra.mxu0 0.0
    %3941 = vmatprep.subr.mxu0 0.0
    %3942 = vmatpush1.msra.mxu0 0.0
    %3943 = vmatprep.subr.mxu0 0.0
    %3944 = vmatpush1.msra.mxu0 0.0
    %3945 = vmatprep.mubr.f32.mxu0 0.0
    %3946 = vmatmul.mubr.f32.gmra.mrb[0].mxu0 %v3870
    %v3947 = vpop.f32.mrb[0].mxu0
    %v3948 = vadd.f32 0.0, %v3947
    %v3949 = vpop.f32.mrb[0].mxu0
    %v3950 = vadd.f32 0.0, %v3949
    %3951 = vmatprep.mubr.f32.mxu0 0.0
    %3952 = vmatmul.mubr.f32.gmra.mrb[0].mxu0 %v3873
    %v3953 = vpop.f32.mrb[0].mxu0
    %v3954 = vadd.f32 0.0, %v3953
    %v3955 = vpop.f32.mrb[0].mxu0
    %v3956 = vadd.f32 0.0, %v3955
    %3957 = vmatprep.mubr.f32.mxu0 0.0
    %3958 = vmatmul.mubr.f32.gmra.mrb[0].mxu0 %v3876
    %v3959 = vpop.f32.mrb[0].mxu0
    %v3960 = vadd.f32 0.0, %v3959
    %v3961 = vpop.f32.mrb[0].mxu0
    %v3962 = vadd.f32 0.0, %v3961
    %3963 = vmatprep.mubr.f32.mxu0 0.0
    %3964 = vmatmul.mubr.f32.gmra.mrb[0].mxu0 %v3879
    %v3965 = vpop.f32.mrb[0].mxu0
    %v3966 = vadd.f32 0.0, %v3965
    %v3967 = vpop.f32.mrb[0].mxu0
    %v3968 = vadd.f32 0.0, %v3967
    %3969 = vdwg.mxu0
    %v3970 = vadd.f32 %v3835, %v3948
    %v3971 = vadd.f32 %v3836, %v3950
    %v3972 = vadd.f32 %v3837, %v3954
    %v3973 = vadd.f32 %v3838, %v3956
    %v3974 = vadd.f32 %v3839, %v3960
    %v3975 = vadd.f32 %v3840, %v3962
    %v3976 = vadd.f32 %v3841, %v3966
    %v3977 = vadd.f32 %v3842, %v3968
    %s3978 = scalar_lea.vmem %s4, 416
    %v3979 = vld [vmem:[%s3978] sm:$0xff]
    %v3980 = vld [vmem:[%s3978 + $0x8] sm:$0xff]
    %v3981 = vld [vmem:[%s3978 + $0x10] sm:$0xff]
    %v3982 = vld [vmem:[%s3978 + $0x18] sm:$0xff]
    %3983 = vrot.lane.b32.xlu0 %v2231, 127
    %v3984 = vpop.permute.xlu0 %3983
    %3985 = vrot.lane.b32.xlu0 %v2232, 127
    %v3986 = vpop.permute.xlu0 %3985
    %3987 = vrot.lane.b32.xlu0 %v2233, 127
    %v3988 = vpop.permute.xlu0 %3987
    %3989 = vrot.lane.b32.xlu0 %v2234, 127
    %v3990 = vpop.permute.xlu0 %3989
    %3991 = vrot.lane.b32.xlu0 %v2235, 127
    %v3992 = vpop.permute.xlu0 %3991
    %3993 = vrot.lane.b32.xlu0 %v2236, 127
    %v3994 = vpop.permute.xlu0 %3993
    %vm3995 = vcmask 1039360
    %v3996 = vsel %vm3995, %v3984, %v3986
    %v3997 = vsel %vm3995, %v3986, %v3988
    %v3998 = vsel %vm3995, %v3990, %v3992
    %v3999 = vsel %vm3995, %v3992, %v3994
    %v4005 = vsel %vm2269, %v3979, 0
    %v4008 = vsel %vm2269, %v3980, 0
    %v4011 = vsel %vm2269, %v3981, 0
    %v4014 = vsel %vm2269, %v3982, 0
    %4016 = vmatprep.subr.mxu0 %v3997
    %4017 = vmatpush1.msra.mxu0 %v3996
    %4018 = vmatprep.subr.mxu0 %v3999
    %4019 = vmatpush1.msra.mxu0 %v3998
    %4020 = vmatprep.subr.mxu0 0.0
    %4021 = vmatpush1.msra.mxu0 0.0
    %4022 = vmatprep.subr.mxu0 0.0
    %4023 = vmatpush1.msra.mxu0 0.0
    %4024 = vmatprep.subr.mxu0 0.0
    %4025 = vmatpush1.msra.mxu0 0.0
    %4026 = vmatprep.subr.mxu0 0.0
    %4027 = vmatpush1.msra.mxu0 0.0
    %4028 = vmatprep.subr.mxu0 0.0
    %4029 = vmatpush1.msra.mxu0 0.0
    %4030 = vmatprep.subr.mxu0 0.0
    %4031 = vmatpush1.msra.mxu0 0.0
    %4032 = vmatprep.subr.mxu0 0.0
    %4033 = vmatpush1.msra.mxu0 0.0
    %4034 = vmatprep.subr.mxu0 0.0
    %4035 = vmatpush1.msra.mxu0 0.0
    %4036 = vmatprep.subr.mxu0 0.0
    %4037 = vmatpush1.msra.mxu0 0.0
    %4038 = vmatprep.subr.mxu0 0.0
    %4039 = vmatpush1.msra.mxu0 0.0
    %4040 = vmatprep.subr.mxu0 0.0
    %4041 = vmatpush1.msra.mxu0 0.0
    %4042 = vmatprep.subr.mxu0 0.0
    %4043 = vmatpush1.msra.mxu0 0.0
    %4044 = vmatprep.subr.mxu0 0.0
    %4045 = vmatpush1.msra.mxu0 0.0
    %4046 = vmatprep.subr.mxu0 0.0
    %4047 = vmatpush1.msra.mxu0 0.0
    %4048 = vmatprep.subr.mxu0 0.0
    %4049 = vmatpush1.msra.mxu0 0.0
    %4050 = vmatprep.subr.mxu0 0.0
    %4051 = vmatpush1.msra.mxu0 0.0
    %4052 = vmatprep.subr.mxu0 0.0
    %4053 = vmatpush1.msra.mxu0 0.0
    %4054 = vmatprep.subr.mxu0 0.0
    %4055 = vmatpush1.msra.mxu0 0.0
    %4056 = vmatprep.subr.mxu0 0.0
    %4057 = vmatpush1.msra.mxu0 0.0
    %4058 = vmatprep.subr.mxu0 0.0
    %4059 = vmatpush1.msra.mxu0 0.0
    %4060 = vmatprep.subr.mxu0 0.0
    %4061 = vmatpush1.msra.mxu0 0.0
    %4062 = vmatprep.subr.mxu0 0.0
    %4063 = vmatpush1.msra.mxu0 0.0
    %4064 = vmatprep.subr.mxu0 0.0
    %4065 = vmatpush1.msra.mxu0 0.0
    %4066 = vmatprep.subr.mxu0 0.0
    %4067 = vmatpush1.msra.mxu0 0.0
    %4068 = vmatprep.subr.mxu0 0.0
    %4069 = vmatpush1.msra.mxu0 0.0
    %4070 = vmatprep.subr.mxu0 0.0
    %4071 = vmatpush1.msra.mxu0 0.0
    %4072 = vmatprep.subr.mxu0 0.0
    %4073 = vmatpush1.msra.mxu0 0.0
    %4074 = vmatprep.subr.mxu0 0.0
    %4075 = vmatpush1.msra.mxu0 0.0
    %4076 = vmatprep.subr.mxu0 0.0
    %4077 = vmatpush1.msra.mxu0 0.0
    %4078 = vmatprep.subr.mxu0 0.0
    %4079 = vmatpush1.msra.mxu0 0.0
    %4080 = vmatprep.mubr.f32.mxu0 0.0
    %4081 = vmatmul.mubr.f32.gmra.mrb[0].mxu0 %v4005
    %v4082 = vpop.f32.mrb[0].mxu0
    %v4083 = vadd.f32 0.0, %v4082
    %v4084 = vpop.f32.mrb[0].mxu0
    %v4085 = vadd.f32 0.0, %v4084
    %4086 = vmatprep.mubr.f32.mxu0 0.0
    %4087 = vmatmul.mubr.f32.gmra.mrb[0].mxu0 %v4008
    %v4088 = vpop.f32.mrb[0].mxu0
    %v4089 = vadd.f32 0.0, %v4088
    %v4090 = vpop.f32.mrb[0].mxu0
    %v4091 = vadd.f32 0.0, %v4090
    %4092 = vmatprep.mubr.f32.mxu0 0.0
    %4093 = vmatmul.mubr.f32.gmra.mrb[0].mxu0 %v4011
    %v4094 = vpop.f32.mrb[0].mxu0
    %v4095 = vadd.f32 0.0, %v4094
    %v4096 = vpop.f32.mrb[0].mxu0
    %v4097 = vadd.f32 0.0, %v4096
    %4098 = vmatprep.mubr.f32.mxu0 0.0
    %4099 = vmatmul.mubr.f32.gmra.mrb[0].mxu0 %v4014
    %v4100 = vpop.f32.mrb[0].mxu0
    %v4101 = vadd.f32 0.0, %v4100
    %v4102 = vpop.f32.mrb[0].mxu0
    %v4103 = vadd.f32 0.0, %v4102
    %4104 = vdwg.mxu0
    %v4105 = vadd.f32 %v3970, %v4083
    %v4106 = vadd.f32 %v3971, %v4085
    %v4107 = vadd.f32 %v3972, %v4089
    %v4108 = vadd.f32 %v3973, %v4091
    %v4109 = vadd.f32 %v3974, %v4095
    %v4110 = vadd.f32 %v3975, %v4097
    %v4111 = vadd.f32 %v3976, %v4101
    %v4112 = vadd.f32 %v3977, %v4103
    %s4113 = scalar_lea.vmem %s4, 448
    %v4114 = vld [vmem:[%s4113] sm:$0xff]
    %v4115 = vld [vmem:[%s4113 + $0x8] sm:$0xff]
    %v4116 = vld [vmem:[%s4113 + $0x10] sm:$0xff]
    %v4117 = vld [vmem:[%s4113 + $0x18] sm:$0xff]
    %v4118 = vld [vmem:[#allocation2] sm:$0xff]
    %v4119 = vld [vmem:[#allocation2 + $0x8] sm:$0xff]
    %v4120 = vld [vmem:[#allocation2 + $0x18] sm:$0xff]
    %v4121 = vld [vmem:[#allocation2 + $0x20] sm:$0xff]
    %v4123 = vsel %vm2269, %v4114, 0
    %v4126 = vsel %vm2269, %v4115, 0
    %v4129 = vsel %vm2269, %v4116, 0
    %v4132 = vsel %vm2269, %v4117, 0
    %4134 = vmatprep.subr.mxu0 %v4119
    %4135 = vmatpush1.msra.mxu0 %v4118
    %4136 = vmatprep.subr.mxu0 %v4121
    %4137 = vmatpush1.msra.mxu0 %v4120
    %4138 = vmatprep.subr.mxu0 0.0
    %4139 = vmatpush1.msra.mxu0 0.0
    %4140 = vmatprep.subr.mxu0 0.0
    %4141 = vmatpush1.msra.mxu0 0.0
    %4142 = vmatprep.subr.mxu0 0.0
    %4143 = vmatpush1.msra.mxu0 0.0
    %4144 = vmatprep.subr.mxu0 0.0
    %4145 = vmatpush1.msra.mxu0 0.0
    %4146 = vmatprep.subr.mxu0 0.0
    %4147 = vmatpush1.msra.mxu0 0.0
    %4148 = vmatprep.subr.mxu0 0.0
    %4149 = vmatpush1.msra.mxu0 0.0
    %4150 = vmatprep.subr.mxu0 0.0
    %4151 = vmatpush1.msra.mxu0 0.0
    %4152 = vmatprep.subr.mxu0 0.0
    %4153 = vmatpush1.msra.mxu0 0.0
    %4154 = vmatprep.subr.mxu0 0.0
    %4155 = vmatpush1.msra.mxu0 0.0
    %4156 = vmatprep.subr.mxu0 0.0
    %4157 = vmatpush1.msra.mxu0 0.0
    %4158 = vmatprep.subr.mxu0 0.0
    %4159 = vmatpush1.msra.mxu0 0.0
    %4160 = vmatprep.subr.mxu0 0.0
    %4161 = vmatpush1.msra.mxu0 0.0
    %4162 = vmatprep.subr.mxu0 0.0
    %4163 = vmatpush1.msra.mxu0 0.0
    %4164 = vmatprep.subr.mxu0 0.0
    %4165 = vmatpush1.msra.mxu0 0.0
    %4166 = vmatprep.subr.mxu0 0.0
    %4167 = vmatpush1.msra.mxu0 0.0
    %4168 = vmatprep.subr.mxu0 0.0
    %4169 = vmatpush1.msra.mxu0 0.0
    %4170 = vmatprep.subr.mxu0 0.0
    %4171 = vmatpush1.msra.mxu0 0.0
    %4172 = vmatprep.subr.mxu0 0.0
    %4173 = vmatpush1.msra.mxu0 0.0
    %4174 = vmatprep.subr.mxu0 0.0
    %4175 = vmatpush1.msra.mxu0 0.0
    %4176 = vmatprep.subr.mxu0 0.0
    %4177 = vmatpush1.msra.mxu0 0.0
    %4178 = vmatprep.subr.mxu0 0.0
    %4179 = vmatpush1.msra.mxu0 0.0
    %4180 = vmatprep.subr.mxu0 0.0
    %4181 = vmatpush1.msra.mxu0 0.0
    %4182 = vmatprep.subr.mxu0 0.0
    %4183 = vmatpush1.msra.mxu0 0.0
    %4184 = vmatprep.subr.mxu0 0.0
    %4185 = vmatpush1.msra.mxu0 0.0
    %4186 = vmatprep.subr.mxu0 0.0
    %4187 = vmatpush1.msra.mxu0 0.0
    %4188 = vmatprep.subr.mxu0 0.0
    %4189 = vmatpush1.msra.mxu0 0.0
    %4190 = vmatprep.subr.mxu0 0.0
    %4191 = vmatpush1.msra.mxu0 0.0
    %4192 = vmatprep.subr.mxu0 0.0
    %4193 = vmatpush1.msra.mxu0 0.0
    %4194 = vmatprep.subr.mxu0 0.0
    %4195 = vmatpush1.msra.mxu0 0.0
    %4196 = vmatprep.subr.mxu0 0.0
    %4197 = vmatpush1.msra.mxu0 0.0
    %4198 = vmatprep.mubr.f32.mxu0 0.0
    %4199 = vmatmul.mubr.f32.gmra.mrb[0].mxu0 %v4123
    %v4200 = vpop.f32.mrb[0].mxu0
    %v4201 = vadd.f32 0.0, %v4200
    %v4202 = vpop.f32.mrb[0].mxu0
    %v4203 = vadd.f32 0.0, %v4202
    %4204 = vmatprep.mubr.f32.mxu0 0.0
    %4205 = vmatmul.mubr.f32.gmra.mrb[0].mxu0 %v4126
    %v4206 = vpop.f32.mrb[0].mxu0
    %v4207 = vadd.f32 0.0, %v4206
    %v4208 = vpop.f32.mrb[0].mxu0
    %v4209 = vadd.f32 0.0, %v4208
    %4210 = vmatprep.mubr.f32.mxu0 0.0
    %4211 = vmatmul.mubr.f32.gmra.mrb[0].mxu0 %v4129
    %v4212 = vpop.f32.mrb[0].mxu0
    %v4213 = vadd.f32 0.0, %v4212
    %v4214 = vpop.f32.mrb[0].mxu0
    %v4215 = vadd.f32 0.0, %v4214
    %4216 = vmatprep.mubr.f32.mxu0 0.0
    %4217 = vmatmul.mubr.f32.gmra.mrb[0].mxu0 %v4132
    %v4218 = vpop.f32.mrb[0].mxu0
    %v4219 = vadd.f32 0.0, %v4218
    %v4220 = vpop.f32.mrb[0].mxu0
    %v4221 = vadd.f32 0.0, %v4220
    %4222 = vdwg.mxu0
    %v4223 = vadd.f32 %v4105, %v4201
    %v4224 = vadd.f32 %v4106, %v4203
    %v4225 = vadd.f32 %v4107, %v4207
    %v4226 = vadd.f32 %v4108, %v4209
    %v4227 = vadd.f32 %v4109, %v4213
    %v4228 = vadd.f32 %v4110, %v4215
    %v4229 = vadd.f32 %v4111, %v4219
    %v4230 = vadd.f32 %v4112, %v4221
    %v4231 = vld [vmem:[%s5] sm:$0xff]
    %v4232 = vld [vmem:[%s5 + $0x8] sm:$0xff]
    %v4233 = vld [vmem:[%s5 + $0x10] sm:$0xff]
    %v4234 = vld [vmem:[%s5 + $0x18] sm:$0xff]
    %4236 = vset.pattern.permute.xlu0 0
    %4237 = vperm.xlu0 %4236, %v4231
    %v4238 = vpop.permute.xlu0 %4237
    %4241 = vset.pattern.permute.xlu0 0
    %4242 = vperm.xlu0 %4241, %v4232
    %v4243 = vpop.permute.xlu0 %4242
    %4246 = vset.pattern.permute.xlu0 0
    %4247 = vperm.xlu0 %4246, %v4233
    %v4248 = vpop.permute.xlu0 %4247
    %4251 = vset.pattern.permute.xlu0 0
    %4252 = vperm.xlu0 %4251, %v4234
    %v4253 = vpop.permute.xlu0 %4252
    %v4255 = vadd.f32 %v4223, %v4238
    %v4256 = vadd.f32 %v4224, %v4238
    %v4257 = vadd.f32 %v4225, %v4243
    %v4258 = vadd.f32 %v4226, %v4243
    %v4259 = vadd.f32 %v4227, %v4248
    %v4260 = vadd.f32 %v4228, %v4248
    %v4261 = vadd.f32 %v4229, %v4253
    %v4262 = vadd.f32 %v4230, %v4253
    %vm4263 = vcmp.ge.f32.partialorder %v4255, 0.0
    %vm4264 = vcmp.ge.f32.partialorder %v4256, 0.0
    %vm4265 = vcmp.ge.f32.partialorder %v4257, 0.0
    %vm4266 = vcmp.ge.f32.partialorder %v4258, 0.0
    %vm4267 = vcmp.ge.f32.partialorder %v4259, 0.0
    %vm4268 = vcmp.ge.f32.partialorder %v4260, 0.0
    %vm4269 = vcmp.ge.f32.partialorder %v4261, 0.0
    %vm4270 = vcmp.ge.f32.partialorder %v4262, 0.0
    %s4272 = vtos %v88
    %v4273 = vstv %s4272
    %v4275 = vmul.f32 %v4273, %v4255
    %v4276 = vmul.f32 %v4273, %v4256
    %v4277 = vmul.f32 %v4273, %v4257
    %v4278 = vmul.f32 %v4273, %v4258
    %v4279 = vmul.f32 %v4273, %v4259
    %v4280 = vmul.f32 %v4273, %v4260
    %v4281 = vmul.f32 %v4273, %v4261
    %v4282 = vmul.f32 %v4273, %v4262
    %v4283 = vsel %vm4263, %v4255, %v4275
    %v4284 = vsel %vm4264, %v4256, %v4276
    %v4285 = vsel %vm4265, %v4257, %v4277
    %v4286 = vsel %vm4266, %v4258, %v4278
    %v4287 = vsel %vm4267, %v4259, %v4279
    %v4288 = vsel %vm4268, %v4260, %v4280
    %v4289 = vsel %vm4269, %v4261, %v4281
    %v4290 = vsel %vm4270, %v4262, %v4282
    %v4291 = vlaneseq
    %v4292 = vshrl.u32 %v4291, 7
    %v4293 = vadd.s32 %v4292, 8
    %v4294 = vadd.s32 %v4292, 16
    %v4295 = vadd.s32 %v4292, 24
    %v4296 = vadd.s32 %v4292, 32
    %v4297 = vadd.s32 %v4292, 40
    %v4298 = vadd.s32 %v4292, 48
    %v4299 = vlaneseq
    %v4300 = vand.u32 %v4299, 127
    %v4301 = vmul.u32 %v4292, 2
    %v4302 = vmul.u32 %v4293, 2
    %v4303 = vmul.u32 %v4294, 2
    %v4304 = vmul.u32 %v4295, 2
    %v4305 = vmul.u32 %v4296, 2
    %v4306 = vmul.u32 %v4297, 2
    %v4307 = vmul.u32 %v4298, 2
    %v4308 = vsub.s32 %v4300, %v4301
    %v4309 = vsub.s32 %v4300, %v4302
    %v4310 = vsub.s32 %v4300, %v4303
    %v4311 = vsub.s32 %v4300, %v4304
    %v4312 = vsub.s32 %v4300, %v4305
    %v4313 = vsub.s32 %v4300, %v4306
    %v4314 = vsub.s32 %v4300, %v4307
    %vm4315 = vcmp.eq.s32.totalorder %v4308, 0
    %vm4316 = vcmp.eq.s32.totalorder %v4309, 0
    %vm4317 = vcmp.eq.s32.totalorder %v4310, 0
    %vm4318 = vcmp.eq.s32.totalorder %v4311, 0
    %vm4319 = vcmp.eq.s32.totalorder %v4312, 0
    %vm4320 = vcmp.eq.s32.totalorder %v4313, 0
    %vm4321 = vcmp.eq.s32.totalorder %v4314, 0
    %v4322 = vsel %vm4315, 1, 0
    %v4323 = vsel %vm4316, 1, 0
    %v4324 = vsel %vm4317, 1, 0
    %v4325 = vsel %vm4318, 1, 0
    %v4326 = vsel %vm4319, 1, 0
    %v4327 = vsel %vm4320, 1, 0
    %v4328 = vsel %vm4321, 1, 0
    %v4329 = vcvt.s32.f32 %v4322
    %v4330 = vcvt.s32.f32 %v4323
    %v4331 = vcvt.s32.f32 %v4324
    %v4332 = vcvt.s32.f32 %v4325
    %v4333 = vcvt.s32.f32 %v4326
    %v4334 = vcvt.s32.f32 %v4327
    %v4335 = vcvt.s32.f32 %v4328
    %vm4336 = vcmp.eq.s32.totalorder %v4308, 1
    %vm4337 = vcmp.eq.s32.totalorder %v4309, 1
    %vm4338 = vcmp.eq.s32.totalorder %v4310, 1
    %vm4339 = vcmp.eq.s32.totalorder %v4311, 1
    %vm4340 = vcmp.eq.s32.totalorder %v4312, 1
    %vm4341 = vcmp.eq.s32.totalorder %v4313, 1
    %vm4342 = vcmp.eq.s32.totalorder %v4314, 1
    %v4343 = vsel %vm4336, 1, 0
    %v4344 = vsel %vm4337, 1, 0
    %v4345 = vsel %vm4338, 1, 0
    %v4346 = vsel %vm4339, 1, 0
    %v4347 = vsel %vm4340, 1, 0
    %v4348 = vsel %vm4341, 1, 0
    %v4349 = vsel %vm4342, 1, 0
    %v4350 = vcvt.s32.f32 %v4343
    %v4351 = vcvt.s32.f32 %v4344
    %v4352 = vcvt.s32.f32 %v4345
    %v4353 = vcvt.s32.f32 %v4346
    %v4354 = vcvt.s32.f32 %v4347
    %v4355 = vcvt.s32.f32 %v4348
    %v4356 = vcvt.s32.f32 %v4349
    %4357 = vst [vmem:[#allocation3] sm:$0xff] 0.0
    %4358 = vst [vmem:[#allocation3 + $0x8] sm:$0xff] 0.0
    %4359 = vst [vmem:[#allocation3 + $0x10] sm:$0xff] 0.0
    %4360 = vst [vmem:[#allocation3 + $0x18] sm:$0xff] 0.0
    %4361 = vst [vmem:[#allocation3 + $0x20] sm:$0xff] 0.0
    %4362 = vst [vmem:[#allocation3 + $0x28] sm:$0xff] 0.0
    %vm4363 = vcmask 441344
    %v4365 = vsel %vm4363, %v4287, 0
    %v4368 = vsel %vm4363, %v4289, 0
    %vm4370 = vcmask 1045504
    %v4372 = vsel %vm4370, %v4356, 0
    %4374 = vmatprep.subr.mxu0 0.0
    %4375 = vmatpush1.msra.mxu0 %v4350
    %4376 = vmatprep.subr.mxu0 0.0
    %4377 = vmatpush1.msra.mxu0 %v4351
    %4378 = vmatprep.subr.mxu0 0.0
    %4379 = vmatpush1.msra.mxu0 %v4352
    %4380 = vmatprep.subr.mxu0 0.0
    %4381 = vmatpush1.msra.mxu0 %v4353
    %4382 = vmatprep.subr.mxu0 0.0
    %4383 = vmatpush1.msra.mxu0 %v4354
    %4384 = vmatprep.subr.mxu0 0.0
    %4385 = vmatpush1.msra.mxu0 %v4355
    %4386 = vmatprep.subr.mxu0 0.0
    %4387 = vmatpush1.msra.mxu0 %v4372
    %4388 = vmatprep.subr.mxu0 0.0
    %4389 = vmatpush1.msra.mxu0 0.0
    %4390 = vmatprep.subr.mxu0 0.0
    %4391 = vmatpush1.msra.mxu0 0.0
    %4392 = vmatprep.subr.mxu0 0.0
    %4393 = vmatpush1.msra.mxu0 0.0
    %4394 = vmatprep.subr.mxu0 0.0
    %4395 = vmatpush1.msra.mxu0 0.0
    %4396 = vmatprep.subr.mxu0 0.0
    %4397 = vmatpush1.msra.mxu0 0.0
    %4398 = vmatprep.subr.mxu0 0.0
    %4399 = vmatpush1.msra.mxu0 0.0
    %4400 = vmatprep.subr.mxu0 0.0
    %4401 = vmatpush1.msra.mxu0 0.0
    %4402 = vmatprep.subr.mxu0 0.0
    %4403 = vmatpush1.msra.mxu0 0.0
    %4404 = vmatprep.subr.mxu0 0.0
    %4405 = vmatpush1.msra.mxu0 0.0
    %4406 = vmatprep.subr.mxu0 0.0
    %4407 = vmatpush1.msra.mxu0 0.0
    %4408 = vmatprep.subr.mxu0 0.0
    %4409 = vmatpush1.msra.mxu0 0.0
    %4410 = vmatprep.subr.mxu0 0.0
    %4411 = vmatpush1.msra.mxu0 0.0
    %4412 = vmatprep.subr.mxu0 0.0
    %4413 = vmatpush1.msra.mxu0 0.0
    %4414 = vmatprep.subr.mxu0 0.0
    %4415 = vmatpush1.msra.mxu0 0.0
    %4416 = vmatprep.subr.mxu0 0.0
    %4417 = vmatpush1.msra.mxu0 0.0
    %4418 = vmatprep.subr.mxu0 0.0
    %4419 = vmatpush1.msra.mxu0 0.0
    %4420 = vmatprep.subr.mxu0 0.0
    %4421 = vmatpush1.msra.mxu0 0.0
    %4422 = vmatprep.subr.mxu0 0.0
    %4423 = vmatpush1.msra.mxu0 0.0
    %4424 = vmatprep.subr.mxu0 0.0
    %4425 = vmatpush1.msra.mxu0 0.0
    %4426 = vmatprep.subr.mxu0 0.0
    %4427 = vmatpush1.msra.mxu0 0.0
    %4428 = vmatprep.subr.mxu0 0.0
    %4429 = vmatpush1.msra.mxu0 0.0
    %4430 = vmatprep.subr.mxu0 0.0
    %4431 = vmatpush1.msra.mxu0 0.0
    %4432 = vmatprep.subr.mxu0 0.0
    %4433 = vmatpush1.msra.mxu0 0.0
    %4434 = vmatprep.subr.mxu0 0.0
    %4435 = vmatpush1.msra.mxu0 0.0
    %4436 = vmatprep.subr.mxu0 0.0
    %4437 = vmatpush1.msra.mxu0 0.0
    %4438 = vmatprep.mubr.f32.mxu0 0.0
    %4439 = vmatmul.mubr.f32.gmra.mrb[0].mxu0 %v4365
    %v4440 = vpop.f32.mrb[0].mxu0
    %v4441 = vadd.f32 0.0, %v4440
    %v4442 = vpop.f32.mrb[0].mxu0
    %4443 = vmatprep.mubr.f32.mxu0 0.0
    %4444 = vmatmul.mubr.f32.gmra.mrb[0].mxu0 %v4368
    %v4445 = vpop.f32.mrb[0].mxu0
    %v4446 = vadd.f32 0.0, %v4445
    %v4447 = vpop.f32.mrb[0].mxu0
    %4448 = vdwg.mxu0
    %v4450 = vsel %vm4363, %v4283, 0
    %v4453 = vsel %vm4363, %v4285, 0
    %v4456 = vsel %vm4370, %v4335, 0
    %4458 = vmatprep.subr.mxu0 0.0
    %4459 = vmatpush1.msra.mxu0 %v4329
    %4460 = vmatprep.subr.mxu0 0.0
    %4461 = vmatpush1.msra.mxu0 %v4330
    %4462 = vmatprep.subr.mxu0 0.0
    %4463 = vmatpush1.msra.mxu0 %v4331
    %4464 = vmatprep.subr.mxu0 0.0
    %4465 = vmatpush1.msra.mxu0 %v4332
    %4466 = vmatprep.subr.mxu0 0.0
    %4467 = vmatpush1.msra.mxu0 %v4333
    %4468 = vmatprep.subr.mxu0 0.0
    %4469 = vmatpush1.msra.mxu0 %v4334
    %4470 = vmatprep.subr.mxu0 0.0
    %4471 = vmatpush1.msra.mxu0 %v4456
    %4472 = vmatprep.subr.mxu0 0.0
    %4473 = vmatpush1.msra.mxu0 0.0
    %4474 = vmatprep.subr.mxu0 0.0
    %4475 = vmatpush1.msra.mxu0 0.0
    %4476 = vmatprep.subr.mxu0 0.0
    %4477 = vmatpush1.msra.mxu0 0.0
    %4478 = vmatprep.subr.mxu0 0.0
    %4479 = vmatpush1.msra.mxu0 0.0
    %4480 = vmatprep.subr.mxu0 0.0
    %4481 = vmatpush1.msra.mxu0 0.0
    %4482 = vmatprep.subr.mxu0 0.0
    %4483 = vmatpush1.msra.mxu0 0.0
    %4484 = vmatprep.subr.mxu0 0.0
    %4485 = vmatpush1.msra.mxu0 0.0
    %4486 = vmatprep.subr.mxu0 0.0
    %4487 = vmatpush1.msra.mxu0 0.0
    %4488 = vmatprep.subr.mxu0 0.0
    %4489 = vmatpush1.msra.mxu0 0.0
    %4490 = vmatprep.subr.mxu0 0.0
    %4491 = vmatpush1.msra.mxu0 0.0
    %4492 = vmatprep.subr.mxu0 0.0
    %4493 = vmatpush1.msra.mxu0 0.0
    %4494 = vmatprep.subr.mxu0 0.0
    %4495 = vmatpush1.msra.mxu0 0.0
    %4496 = vmatprep.subr.mxu0 0.0
    %4497 = vmatpush1.msra.mxu0 0.0
    %4498 = vmatprep.subr.mxu0 0.0
    %4499 = vmatpush1.msra.mxu0 0.0
    %4500 = vmatprep.subr.mxu0 0.0
    %4501 = vmatpush1.msra.mxu0 0.0
    %4502 = vmatprep.subr.mxu0 0.0
    %4503 = vmatpush1.msra.mxu0 0.0
    %4504 = vmatprep.subr.mxu0 0.0
    %4505 = vmatpush1.msra.mxu0 0.0
    %4506 = vmatprep.subr.mxu0 0.0
    %4507 = vmatpush1.msra.mxu0 0.0
    %4508 = vmatprep.subr.mxu0 0.0
    %4509 = vmatpush1.msra.mxu0 0.0
    %4510 = vmatprep.subr.mxu0 0.0
    %4511 = vmatpush1.msra.mxu0 0.0
    %4512 = vmatprep.subr.mxu0 0.0
    %4513 = vmatpush1.msra.mxu0 0.0
    %4514 = vmatprep.subr.mxu0 0.0
    %4515 = vmatpush1.msra.mxu0 0.0
    %4516 = vmatprep.subr.mxu0 0.0
    %4517 = vmatpush1.msra.mxu0 0.0
    %4518 = vmatprep.subr.mxu0 0.0
    %4519 = vmatpush1.msra.mxu0 0.0
    %4520 = vmatprep.subr.mxu0 0.0
    %4521 = vmatpush1.msra.mxu0 0.0
    %4522 = vmatprep.mubr.f32.mxu0 0.0
    %4523 = vmatmul.mubr.f32.gmra.mrb[0].mxu0 %v4450
    %v4524 = vpop.f32.mrb[0].mxu0
    %v4525 = vadd.f32 %v4441, %v4524
    %v4526 = vpop.f32.mrb[0].mxu0
    %4527 = vmatprep.mubr.f32.mxu0 0.0
    %4528 = vmatmul.mubr.f32.gmra.mrb[0].mxu0 %v4453
    %v4529 = vpop.f32.mrb[0].mxu0
    %v4530 = vadd.f32 %v4446, %v4529
    %v4531 = vpop.f32.mrb[0].mxu0
    %4532 = vdwg.mxu0
    %4535 = vrot.lane.b32.xlu0 %v4525, 14
    %v4536 = vpop.permute.xlu0 %4535
    %4537 = vrot.lane.b32.xlu0 %v4530, 14
    %v4538 = vpop.permute.xlu0 %4537
    %vm4541 = vcmask 998512
    %4542 = vst.msk [vmem:[#allocation3] sm:$0xff] %vm4541, %v4536
    %4543 = vst.msk [vmem:[#allocation3 + $0x18] sm:$0xff] %vm4541, %v4538
    %v4545 = vsel %vm4363, %v4288, 0
    %v4548 = vsel %vm4363, %v4290, 0
    %4550 = vmatprep.subr.mxu0 0.0
    %4551 = vmatpush1.msra.mxu0 %v4350
    %4552 = vmatprep.subr.mxu0 0.0
    %4553 = vmatpush1.msra.mxu0 %v4351
    %4554 = vmatprep.subr.mxu0 0.0
    %4555 = vmatpush1.msra.mxu0 %v4352
    %4556 = vmatprep.subr.mxu0 0.0
    %4557 = vmatpush1.msra.mxu0 %v4353
    %4558 = vmatprep.subr.mxu0 0.0
    %4559 = vmatpush1.msra.mxu0 %v4354
    %4560 = vmatprep.subr.mxu0 0.0
    %4561 = vmatpush1.msra.mxu0 %v4355
    %4562 = vmatprep.subr.mxu0 0.0
    %4563 = vmatpush1.msra.mxu0 %v4372
    %4564 = vmatprep.subr.mxu0 0.0
    %4565 = vmatpush1.msra.mxu0 0.0
    %4566 = vmatprep.subr.mxu0 0.0
    %4567 = vmatpush1.msra.mxu0 0.0
    %4568 = vmatprep.subr.mxu0 0.0
    %4569 = vmatpush1.msra.mxu0 0.0
    %4570 = vmatprep.subr.mxu0 0.0
    %4571 = vmatpush1.msra.mxu0 0.0
    %4572 = vmatprep.subr.mxu0 0.0
    %4573 = vmatpush1.msra.mxu0 0.0
    %4574 = vmatprep.subr.mxu0 0.0
    %4575 = vmatpush1.msra.mxu0 0.0
    %4576 = vmatprep.subr.mxu0 0.0
    %4577 = vmatpush1.msra.mxu0 0.0
    %4578 = vmatprep.subr.mxu0 0.0
    %4579 = vmatpush1.msra.mxu0 0.0
    %4580 = vmatprep.subr.mxu0 0.0
    %4581 = vmatpush1.msra.mxu0 0.0
    %4582 = vmatprep.subr.mxu0 0.0
    %4583 = vmatpush1.msra.mxu0 0.0
    %4584 = vmatprep.subr.mxu0 0.0
    %4585 = vmatpush1.msra.mxu0 0.0
    %4586 = vmatprep.subr.mxu0 0.0
    %4587 = vmatpush1.msra.mxu0 0.0
    %4588 = vmatprep.subr.mxu0 0.0
    %4589 = vmatpush1.msra.mxu0 0.0
    %4590 = vmatprep.subr.mxu0 0.0
    %4591 = vmatpush1.msra.mxu0 0.0
    %4592 = vmatprep.subr.mxu0 0.0
    %4593 = vmatpush1.msra.mxu0 0.0
    %4594 = vmatprep.subr.mxu0 0.0
    %4595 = vmatpush1.msra.mxu0 0.0
    %4596 = vmatprep.subr.mxu0 0.0
    %4597 = vmatpush1.msra.mxu0 0.0
    %4598 = vmatprep.subr.mxu0 0.0
    %4599 = vmatpush1.msra.mxu0 0.0
    %4600 = vmatprep.subr.mxu0 0.0
    %4601 = vmatpush1.msra.mxu0 0.0
    %4602 = vmatprep.subr.mxu0 0.0
    %4603 = vmatpush1.msra.mxu0 0.0
    %4604 = vmatprep.subr.mxu0 0.0
    %4605 = vmatpush1.msra.mxu0 0.0
    %4606 = vmatprep.subr.mxu0 0.0
    %4607 = vmatpush1.msra.mxu0 0.0
    %4608 = vmatprep.subr.mxu0 0.0
    %4609 = vmatpush1.msra.mxu0 0.0
    %4610 = vmatprep.subr.mxu0 0.0
    %4611 = vmatpush1.msra.mxu0 0.0
    %4612 = vmatprep.subr.mxu0 0.0
    %4613 = vmatpush1.msra.mxu0 0.0
    %4614 = vmatprep.mubr.f32.mxu0 0.0
    %4615 = vmatmul.mubr.f32.gmra.mrb[0].mxu0 %v4545
    %v4616 = vpop.f32.mrb[0].mxu0
    %v4617 = vadd.f32 0.0, %v4616
    %v4618 = vpop.f32.mrb[0].mxu0
    %4619 = vmatprep.mubr.f32.mxu0 0.0
    %4620 = vmatmul.mubr.f32.gmra.mrb[0].mxu0 %v4548
    %v4621 = vpop.f32.mrb[0].mxu0
    %v4622 = vadd.f32 0.0, %v4621
    %v4623 = vpop.f32.mrb[0].mxu0
    %4624 = vdwg.mxu0
    %v4626 = vsel %vm4363, %v4284, 0
    %v4629 = vsel %vm4363, %v4286, 0
    %4631 = vmatprep.subr.mxu0 0.0
    %4632 = vmatpush1.msra.mxu0 %v4329
    %4633 = vmatprep.subr.mxu0 0.0
    %4634 = vmatpush1.msra.mxu0 %v4330
    %4635 = vmatprep.subr.mxu0 0.0
    %4636 = vmatpush1.msra.mxu0 %v4331
    %4637 = vmatprep.subr.mxu0 0.0
    %4638 = vmatpush1.msra.mxu0 %v4332
    %4639 = vmatprep.subr.mxu0 0.0
    %4640 = vmatpush1.msra.mxu0 %v4333
    %4641 = vmatprep.subr.mxu0 0.0
    %4642 = vmatpush1.msra.mxu0 %v4334
    %4643 = vmatprep.subr.mxu0 0.0
    %4644 = vmatpush1.msra.mxu0 %v4456
    %4645 = vmatprep.subr.mxu0 0.0
    %4646 = vmatpush1.msra.mxu0 0.0
    %4647 = vmatprep.subr.mxu0 0.0
    %4648 = vmatpush1.msra.mxu0 0.0
    %4649 = vmatprep.subr.mxu0 0.0
    %4650 = vmatpush1.msra.mxu0 0.0
    %4651 = vmatprep.subr.mxu0 0.0
    %4652 = vmatpush1.msra.mxu0 0.0
    %4653 = vmatprep.subr.mxu0 0.0
    %4654 = vmatpush1.msra.mxu0 0.0
    %4655 = vmatprep.subr.mxu0 0.0
    %4656 = vmatpush1.msra.mxu0 0.0
    %4657 = vmatprep.subr.mxu0 0.0
    %4658 = vmatpush1.msra.mxu0 0.0
    %4659 = vmatprep.subr.mxu0 0.0
    %4660 = vmatpush1.msra.mxu0 0.0
    %4661 = vmatprep.subr.mxu0 0.0
    %4662 = vmatpush1.msra.mxu0 0.0
    %4663 = vmatprep.subr.mxu0 0.0
    %4664 = vmatpush1.msra.mxu0 0.0
    %4665 = vmatprep.subr.mxu0 0.0
    %4666 = vmatpush1.msra.mxu0 0.0
    %4667 = vmatprep.subr.mxu0 0.0
    %4668 = vmatpush1.msra.mxu0 0.0
    %4669 = vmatprep.subr.mxu0 0.0
    %4670 = vmatpush1.msra.mxu0 0.0
    %4671 = vmatprep.subr.mxu0 0.0
    %4672 = vmatpush1.msra.mxu0 0.0
    %4673 = vmatprep.subr.mxu0 0.0
    %4674 = vmatpush1.msra.mxu0 0.0
    %4675 = vmatprep.subr.mxu0 0.0
    %4676 = vmatpush1.msra.mxu0 0.0
    %4677 = vmatprep.subr.mxu0 0.0
    %4678 = vmatpush1.msra.mxu0 0.0
    %4679 = vmatprep.subr.mxu0 0.0
    %4680 = vmatpush1.msra.mxu0 0.0
    %4681 = vmatprep.subr.mxu0 0.0
    %4682 = vmatpush1.msra.mxu0 0.0
    %4683 = vmatprep.subr.mxu0 0.0
    %4684 = vmatpush1.msra.mxu0 0.0
    %4685 = vmatprep.subr.mxu0 0.0
    %4686 = vmatpush1.msra.mxu0 0.0
    %4687 = vmatprep.subr.mxu0 0.0
    %4688 = vmatpush1.msra.mxu0 0.0
    %4689 = vmatprep.subr.mxu0 0.0
    %4690 = vmatpush1.msra.mxu0 0.0
    %4691 = vmatprep.subr.mxu0 0.0
    %4692 = vmatpush1.msra.mxu0 0.0
    %4693 = vmatprep.subr.mxu0 0.0
    %4694 = vmatpush1.msra.mxu0 0.0
    %4695 = vmatprep.mubr.f32.mxu0 0.0
    %4696 = vmatmul.mubr.f32.gmra.mrb[0].mxu0 %v4626
    %v4697 = vpop.f32.mrb[0].mxu0
    %v4698 = vadd.f32 %v4617, %v4697
    %v4699 = vpop.f32.mrb[0].mxu0
    %4700 = vmatprep.mubr.f32.mxu0 0.0
    %4701 = vmatmul.mubr.f32.gmra.mrb[0].mxu0 %v4629
    %v4702 = vpop.f32.mrb[0].mxu0
    %v4703 = vadd.f32 %v4622, %v4702
    %v4704 = vpop.f32.mrb[0].mxu0
    %4705 = vdwg.mxu0
    %4708 = vrot.lane.b32.xlu0 %v4698, 14
    %v4709 = vpop.permute.xlu0 %4708
    %4710 = vrot.lane.b32.xlu0 %v4703, 14
    %v4711 = vpop.permute.xlu0 %4710
    %4714 = vst.msk [vmem:[#allocation3 + $0x8] sm:$0xff] %vm4541, %v4709
    %4715 = vst.msk [vmem:[#allocation3 + $0x20] sm:$0xff] %vm4541, %v4711
    %v4716 = vld [vmem:[%s6] sm:$0xff]
    %v4717 = vld [vmem:[%s6 + $0x8] sm:$0xff]
    %v4718 = vld [vmem:[%s6 + $0x10] sm:$0xff]
    %v4719 = vld [vmem:[%s6 + $0x18] sm:$0xff]
    %v4720 = vld [vmem:[#allocation3] sm:$0xff]
    %v4721 = vld [vmem:[#allocation3 + $0x8] sm:$0xff]
    %v4722 = vld [vmem:[#allocation3 + $0x10] sm:$0xff]
    %v4723 = vld [vmem:[#allocation3 + $0x18] sm:$0xff]
    %v4724 = vld [vmem:[#allocation3 + $0x20] sm:$0xff]
    %v4725 = vld [vmem:[#allocation3 + $0x28] sm:$0xff]
    %s4726 = scalar_lea.vmem %s6, 32
    %v4727 = vld [vmem:[%s4726] sm:$0xff]
    %v4728 = vld [vmem:[%s4726 + $0x8] sm:$0xff]
    %v4729 = vld [vmem:[%s4726 + $0x10] sm:$0xff]
    %v4730 = vld [vmem:[%s4726 + $0x18] sm:$0xff]
    %4737 = vrot.lane.b32.xlu0 %v4720, 115
    %v4738 = vpop.permute.xlu0 %4737
    %4739 = vrot.lane.b32.xlu0 %v4721, 115
    %v4740 = vpop.permute.xlu0 %4739
    %4741 = vrot.lane.b32.xlu0 %v4722, 115
    %v4742 = vpop.permute.xlu0 %4741
    %4743 = vrot.lane.b32.xlu0 %v4723, 115
    %v4744 = vpop.permute.xlu0 %4743
    %4745 = vrot.lane.b32.xlu0 %v4724, 115
    %v4746 = vpop.permute.xlu0 %4745
    %4747 = vrot.lane.b32.xlu0 %v4725, 115
    %v4748 = vpop.permute.xlu0 %4747
    %v4749 = vsel %vm2260, %v4738, %v4740
    %v4750 = vsel %vm2260, %v4740, %v4742
    %v4751 = vsel %vm2260, %v4744, %v4746
    %v4752 = vsel %vm2260, %v4746, %v4748
    %v4758 = vsel %vm2269, %v4727, 0
    %v4761 = vsel %vm2269, %v4728, 0
    %v4764 = vsel %vm2269, %v4729, 0
    %v4767 = vsel %vm2269, %v4730, 0
    %4769 = vmatprep.subr.mxu0 %v4750
    %4770 = vmatpush1.msra.mxu0 %v4749
    %4771 = vmatprep.subr.mxu0 %v4752
    %4772 = vmatpush1.msra.mxu0 %v4751
    %4773 = vmatprep.subr.mxu0 0.0
    %4774 = vmatpush1.msra.mxu0 0.0
    %4775 = vmatprep.subr.mxu0 0.0
    %4776 = vmatpush1.msra.mxu0 0.0
    %4777 = vmatprep.subr.mxu0 0.0
    %4778 = vmatpush1.msra.mxu0 0.0
    %4779 = vmatprep.subr.mxu0 0.0
    %4780 = vmatpush1.msra.mxu0 0.0
    %4781 = vmatprep.subr.mxu0 0.0
    %4782 = vmatpush1.msra.mxu0 0.0
    %4783 = vmatprep.subr.mxu0 0.0
    %4784 = vmatpush1.msra.mxu0 0.0
    %4785 = vmatprep.subr.mxu0 0.0
    %4786 = vmatpush1.msra.mxu0 0.0
    %4787 = vmatprep.subr.mxu0 0.0
    %4788 = vmatpush1.msra.mxu0 0.0
    %4789 = vmatprep.subr.mxu0 0.0
    %4790 = vmatpush1.msra.mxu0 0.0
    %4791 = vmatprep.subr.mxu0 0.0
    %4792 = vmatpush1.msra.mxu0 0.0
    %4793 = vmatprep.subr.mxu0 0.0
    %4794 = vmatpush1.msra.mxu0 0.0
    %4795 = vmatprep.subr.mxu0 0.0
    %4796 = vmatpush1.msra.mxu0 0.0
    %4797 = vmatprep.subr.mxu0 0.0
    %4798 = vmatpush1.msra.mxu0 0.0
    %4799 = vmatprep.subr.mxu0 0.0
    %4800 = vmatpush1.msra.mxu0 0.0
    %4801 = vmatprep.subr.mxu0 0.0
    %4802 = vmatpush1.msra.mxu0 0.0
    %4803 = vmatprep.subr.mxu0 0.0
    %4804 = vmatpush1.msra.mxu0 0.0
    %4805 = vmatprep.subr.mxu0 0.0
    %4806 = vmatpush1.msra.mxu0 0.0
    %4807 = vmatprep.subr.mxu0 0.0
    %4808 = vmatpush1.msra.mxu0 0.0
    %4809 = vmatprep.subr.mxu0 0.0
    %4810 = vmatpush1.msra.mxu0 0.0
    %4811 = vmatprep.subr.mxu0 0.0
    %4812 = vmatpush1.msra.mxu0 0.0
    %4813 = vmatprep.subr.mxu0 0.0
    %4814 = vmatpush1.msra.mxu0 0.0
    %4815 = vmatprep.subr.mxu0 0.0
    %4816 = vmatpush1.msra.mxu0 0.0
    %4817 = vmatprep.subr.mxu0 0.0
    %4818 = vmatpush1.msra.mxu0 0.0
    %4819 = vmatprep.subr.mxu0 0.0
    %4820 = vmatpush1.msra.mxu0 0.0
    %4821 = vmatprep.subr.mxu0 0.0
    %4822 = vmatpush1.msra.mxu0 0.0
    %4823 = vmatprep.subr.mxu0 0.0
    %4824 = vmatpush1.msra.mxu0 0.0
    %4825 = vmatprep.subr.mxu0 0.0
    %4826 = vmatpush1.msra.mxu0 0.0
    %4827 = vmatprep.subr.mxu0 0.0
    %4828 = vmatpush1.msra.mxu0 0.0
    %4829 = vmatprep.subr.mxu0 0.0
    %4830 = vmatpush1.msra.mxu0 0.0
    %4831 = vmatprep.subr.mxu0 0.0
    %4832 = vmatpush1.msra.mxu0 0.0
    %4833 = vmatprep.mubr.f32.mxu0 0.0
    %4834 = vmatmul.mubr.f32.gmra.mrb[0].mxu0 %v4758
    %v4835 = vpop.f32.mrb[0].mxu0
    %v4836 = vadd.f32 0.0, %v4835
    %v4837 = vpop.f32.mrb[0].mxu0
    %v4838 = vadd.f32 0.0, %v4837
    %4839 = vmatprep.mubr.f32.mxu0 0.0
    %4840 = vmatmul.mubr.f32.gmra.mrb[0].mxu0 %v4761
    %v4841 = vpop.f32.mrb[0].mxu0
    %v4842 = vadd.f32 0.0, %v4841
    %v4843 = vpop.f32.mrb[0].mxu0
    %v4844 = vadd.f32 0.0, %v4843
    %4845 = vmatprep.mubr.f32.mxu0 0.0
    %4846 = vmatmul.mubr.f32.gmra.mrb[0].mxu0 %v4764
    %v4847 = vpop.f32.mrb[0].mxu0
    %v4848 = vadd.f32 0.0, %v4847
    %v4849 = vpop.f32.mrb[0].mxu0
    %v4850 = vadd.f32 0.0, %v4849
    %4851 = vmatprep.mubr.f32.mxu0 0.0
    %4852 = vmatmul.mubr.f32.gmra.mrb[0].mxu0 %v4767
    %v4853 = vpop.f32.mrb[0].mxu0
    %v4854 = vadd.f32 0.0, %v4853
    %v4855 = vpop.f32.mrb[0].mxu0
    %v4856 = vadd.f32 0.0, %v4855
    %4857 = vdwg.mxu0
    %4858 = vrot.lane.b32.xlu0 %v4720, 114
    %v4859 = vpop.permute.xlu0 %4858
    %4860 = vrot.lane.b32.xlu0 %v4721, 114
    %v4861 = vpop.permute.xlu0 %4860
    %4862 = vrot.lane.b32.xlu0 %v4722, 114
    %v4863 = vpop.permute.xlu0 %4862
    %4864 = vrot.lane.b32.xlu0 %v4723, 114
    %v4865 = vpop.permute.xlu0 %4864
    %4866 = vrot.lane.b32.xlu0 %v4724, 114
    %v4867 = vpop.permute.xlu0 %4866
    %4868 = vrot.lane.b32.xlu0 %v4725, 114
    %v4869 = vpop.permute.xlu0 %4868
    %v4870 = vsel %vm2383, %v4859, %v4861
    %v4871 = vsel %vm2383, %v4861, %v4863
    %v4872 = vsel %vm2383, %v4865, %v4867
    %v4873 = vsel %vm2383, %v4867, %v4869
    %v4879 = vsel %vm2269, %v4716, 0
    %v4882 = vsel %vm2269, %v4717, 0
    %v4885 = vsel %vm2269, %v4718, 0
    %v4888 = vsel %vm2269, %v4719, 0
    %4890 = vmatprep.subr.mxu0 %v4871
    %4891 = vmatpush1.msra.mxu0 %v4870
    %4892 = vmatprep.subr.mxu0 %v4873
    %4893 = vmatpush1.msra.mxu0 %v4872
    %4894 = vmatprep.subr.mxu0 0.0
    %4895 = vmatpush1.msra.mxu0 0.0
    %4896 = vmatprep.subr.mxu0 0.0
    %4897 = vmatpush1.msra.mxu0 0.0
    %4898 = vmatprep.subr.mxu0 0.0
    %4899 = vmatpush1.msra.mxu0 0.0
    %4900 = vmatprep.subr.mxu0 0.0
    %4901 = vmatpush1.msra.mxu0 0.0
    %4902 = vmatprep.subr.mxu0 0.0
    %4903 = vmatpush1.msra.mxu0 0.0
    %4904 = vmatprep.subr.mxu0 0.0
    %4905 = vmatpush1.msra.mxu0 0.0
    %4906 = vmatprep.subr.mxu0 0.0
    %4907 = vmatpush1.msra.mxu0 0.0
    %4908 = vmatprep.subr.mxu0 0.0
    %4909 = vmatpush1.msra.mxu0 0.0
    %4910 = vmatprep.subr.mxu0 0.0
    %4911 = vmatpush1.msra.mxu0 0.0
    %4912 = vmatprep.subr.mxu0 0.0
    %4913 = vmatpush1.msra.mxu0 0.0
    %4914 = vmatprep.subr.mxu0 0.0
    %4915 = vmatpush1.msra.mxu0 0.0
    %4916 = vmatprep.subr.mxu0 0.0
    %4917 = vmatpush1.msra.mxu0 0.0
    %4918 = vmatprep.subr.mxu0 0.0
    %4919 = vmatpush1.msra.mxu0 0.0
    %4920 = vmatprep.subr.mxu0 0.0
    %4921 = vmatpush1.msra.mxu0 0.0
    %4922 = vmatprep.subr.mxu0 0.0
    %4923 = vmatpush1.msra.mxu0 0.0
    %4924 = vmatprep.subr.mxu0 0.0
    %4925 = vmatpush1.msra.mxu0 0.0
    %4926 = vmatprep.subr.mxu0 0.0
    %4927 = vmatpush1.msra.mxu0 0.0
    %4928 = vmatprep.subr.mxu0 0.0
    %4929 = vmatpush1.msra.mxu0 0.0
    %4930 = vmatprep.subr.mxu0 0.0
    %4931 = vmatpush1.msra.mxu0 0.0
    %4932 = vmatprep.subr.mxu0 0.0
    %4933 = vmatpush1.msra.mxu0 0.0
    %4934 = vmatprep.subr.mxu0 0.0
    %4935 = vmatpush1.msra.mxu0 0.0
    %4936 = vmatprep.subr.mxu0 0.0
    %4937 = vmatpush1.msra.mxu0 0.0
    %4938 = vmatprep.subr.mxu0 0.0
    %4939 = vmatpush1.msra.mxu0 0.0
    %4940 = vmatprep.subr.mxu0 0.0
    %4941 = vmatpush1.msra.mxu0 0.0
    %4942 = vmatprep.subr.mxu0 0.0
    %4943 = vmatpush1.msra.mxu0 0.0
    %4944 = vmatprep.subr.mxu0 0.0
    %4945 = vmatpush1.msra.mxu0 0.0
    %4946 = vmatprep.subr.mxu0 0.0
    %4947 = vmatpush1.msra.mxu0 0.0
    %4948 = vmatprep.subr.mxu0 0.0
    %4949 = vmatpush1.msra.mxu0 0.0
    %4950 = vmatprep.subr.mxu0 0.0
    %4951 = vmatpush1.msra.mxu0 0.0
    %4952 = vmatprep.subr.mxu0 0.0
    %4953 = vmatpush1.msra.mxu0 0.0
    %4954 = vmatprep.mubr.f32.mxu0 0.0
    %4955 = vmatmul.mubr.f32.gmra.mrb[0].mxu0 %v4879
    %v4956 = vpop.f32.mrb[0].mxu0
    %v4957 = vadd.f32 %v4836, %v4956
    %v4958 = vpop.f32.mrb[0].mxu0
    %v4959 = vadd.f32 %v4838, %v4958
    %4960 = vmatprep.mubr.f32.mxu0 0.0
    %4961 = vmatmul.mubr.f32.gmra.mrb[0].mxu0 %v4882
    %v4962 = vpop.f32.mrb[0].mxu0
    %v4963 = vadd.f32 %v4842, %v4962
    %v4964 = vpop.f32.mrb[0].mxu0
    %v4965 = vadd.f32 %v4844, %v4964
    %4966 = vmatprep.mubr.f32.mxu0 0.0
    %4967 = vmatmul.mubr.f32.gmra.mrb[0].mxu0 %v4885
    %v4968 = vpop.f32.mrb[0].mxu0
    %v4969 = vadd.f32 %v4848, %v4968
    %v4970 = vpop.f32.mrb[0].mxu0
    %v4971 = vadd.f32 %v4850, %v4970
    %4972 = vmatprep.mubr.f32.mxu0 0.0
    %4973 = vmatmul.mubr.f32.gmra.mrb[0].mxu0 %v4888
    %v4974 = vpop.f32.mrb[0].mxu0
    %v4975 = vadd.f32 %v4854, %v4974
    %v4976 = vpop.f32.mrb[0].mxu0
    %v4977 = vadd.f32 %v4856, %v4976
    %4978 = vdwg.mxu0
    %s4979 = scalar_lea.vmem %s6, 64
    %v4980 = vld [vmem:[%s4979] sm:$0xff]
    %v4981 = vld [vmem:[%s4979 + $0x8] sm:$0xff]
    %v4982 = vld [vmem:[%s4979 + $0x10] sm:$0xff]
    %v4983 = vld [vmem:[%s4979 + $0x18] sm:$0xff]
    %4984 = vrot.lane.b32.xlu0 %v4720, 116
    %v4985 = vpop.permute.xlu0 %4984
    %4986 = vrot.lane.b32.xlu0 %v4721, 116
    %v4987 = vpop.permute.xlu0 %4986
    %4988 = vrot.lane.b32.xlu0 %v4722, 116
    %v4989 = vpop.permute.xlu0 %4988
    %4990 = vrot.lane.b32.xlu0 %v4723, 116
    %v4991 = vpop.permute.xlu0 %4990
    %4992 = vrot.lane.b32.xlu0 %v4724, 116
    %v4993 = vpop.permute.xlu0 %4992
    %4994 = vrot.lane.b32.xlu0 %v4725, 116
    %v4995 = vpop.permute.xlu0 %4994
    %v4996 = vsel %vm2510, %v4985, %v4987
    %v4997 = vsel %vm2510, %v4987, %v4989
    %v4998 = vsel %vm2510, %v4991, %v4993
    %v4999 = vsel %vm2510, %v4993, %v4995
    %v5005 = vsel %vm2269, %v4980, 0
    %v5008 = vsel %vm2269, %v4981, 0
    %v5011 = vsel %vm2269, %v4982, 0
    %v5014 = vsel %vm2269, %v4983, 0
    %5016 = vmatprep.subr.mxu0 %v4997
    %5017 = vmatpush1.msra.mxu0 %v4996
    %5018 = vmatprep.subr.mxu0 %v4999
    %5019 = vmatpush1.msra.mxu0 %v4998
    %5020 = vmatprep.subr.mxu0 0.0
    %5021 = vmatpush1.msra.mxu0 0.0
    %5022 = vmatprep.subr.mxu0 0.0
    %5023 = vmatpush1.msra.mxu0 0.0
    %5024 = vmatprep.subr.mxu0 0.0
    %5025 = vmatpush1.msra.mxu0 0.0
    %5026 = vmatprep.subr.mxu0 0.0
    %5027 = vmatpush1.msra.mxu0 0.0
    %5028 = vmatprep.subr.mxu0 0.0
    %5029 = vmatpush1.msra.mxu0 0.0
    %5030 = vmatprep.subr.mxu0 0.0
    %5031 = vmatpush1.msra.mxu0 0.0
    %5032 = vmatprep.subr.mxu0 0.0
    %5033 = vmatpush1.msra.mxu0 0.0
    %5034 = vmatprep.subr.mxu0 0.0
    %5035 = vmatpush1.msra.mxu0 0.0
    %5036 = vmatprep.subr.mxu0 0.0
    %5037 = vmatpush1.msra.mxu0 0.0
    %5038 = vmatprep.subr.mxu0 0.0
    %5039 = vmatpush1.msra.mxu0 0.0
    %5040 = vmatprep.subr.mxu0 0.0
    %5041 = vmatpush1.msra.mxu0 0.0
    %5042 = vmatprep.subr.mxu0 0.0
    %5043 = vmatpush1.msra.mxu0 0.0
    %5044 = vmatprep.subr.mxu0 0.0
    %5045 = vmatpush1.msra.mxu0 0.0
    %5046 = vmatprep.subr.mxu0 0.0
    %5047 = vmatpush1.msra.mxu0 0.0
    %5048 = vmatprep.subr.mxu0 0.0
    %5049 = vmatpush1.msra.mxu0 0.0
    %5050 = vmatprep.subr.mxu0 0.0
    %5051 = vmatpush1.msra.mxu0 0.0
    %5052 = vmatprep.subr.mxu0 0.0
    %5053 = vmatpush1.msra.mxu0 0.0
    %5054 = vmatprep.subr.mxu0 0.0
    %5055 = vmatpush1.msra.mxu0 0.0
    %5056 = vmatprep.subr.mxu0 0.0
    %5057 = vmatpush1.msra.mxu0 0.0
    %5058 = vmatprep.subr.mxu0 0.0
    %5059 = vmatpush1.msra.mxu0 0.0
    %5060 = vmatprep.subr.mxu0 0.0
    %5061 = vmatpush1.msra.mxu0 0.0
    %5062 = vmatprep.subr.mxu0 0.0
    %5063 = vmatpush1.msra.mxu0 0.0
    %5064 = vmatprep.subr.mxu0 0.0
    %5065 = vmatpush1.msra.mxu0 0.0
    %5066 = vmatprep.subr.mxu0 0.0
    %5067 = vmatpush1.msra.mxu0 0.0
    %5068 = vmatprep.subr.mxu0 0.0
    %5069 = vmatpush1.msra.mxu0 0.0
    %5070 = vmatprep.subr.mxu0 0.0
    %5071 = vmatpush1.msra.mxu0 0.0
    %5072 = vmatprep.subr.mxu0 0.0
    %5073 = vmatpush1.msra.mxu0 0.0
    %5074 = vmatprep.subr.mxu0 0.0
    %5075 = vmatpush1.msra.mxu0 0.0
    %5076 = vmatprep.subr.mxu0 0.0
    %5077 = vmatpush1.msra.mxu0 0.0
    %5078 = vmatprep.subr.mxu0 0.0
    %5079 = vmatpush1.msra.mxu0 0.0
    %5080 = vmatprep.mubr.f32.mxu0 0.0
    %5081 = vmatmul.mubr.f32.gmra.mrb[0].mxu0 %v5005
    %v5082 = vpop.f32.mrb[0].mxu0
    %v5083 = vadd.f32 0.0, %v5082
    %v5084 = vpop.f32.mrb[0].mxu0
    %v5085 = vadd.f32 0.0, %v5084
    %5086 = vmatprep.mubr.f32.mxu0 0.0
    %5087 = vmatmul.mubr.f32.gmra.mrb[0].mxu0 %v5008
    %v5088 = vpop.f32.mrb[0].mxu0
    %v5089 = vadd.f32 0.0, %v5088
    %v5090 = vpop.f32.mrb[0].mxu0
    %v5091 = vadd.f32 0.0, %v5090
    %5092 = vmatprep.mubr.f32.mxu0 0.0
    %5093 = vmatmul.mubr.f32.gmra.mrb[0].mxu0 %v5011
    %v5094 = vpop.f32.mrb[0].mxu0
    %v5095 = vadd.f32 0.0, %v5094
    %v5096 = vpop.f32.mrb[0].mxu0
    %v5097 = vadd.f32 0.0, %v5096
    %5098 = vmatprep.mubr.f32.mxu0 0.0
    %5099 = vmatmul.mubr.f32.gmra.mrb[0].mxu0 %v5014
    %v5100 = vpop.f32.mrb[0].mxu0
    %v5101 = vadd.f32 0.0, %v5100
    %v5102 = vpop.f32.mrb[0].mxu0
    %v5103 = vadd.f32 0.0, %v5102
    %5104 = vdwg.mxu0
    %v5105 = vadd.f32 %v4957, %v5083
    %v5106 = vadd.f32 %v4959, %v5085
    %v5107 = vadd.f32 %v4963, %v5089
    %v5108 = vadd.f32 %v4965, %v5091
    %v5109 = vadd.f32 %v4969, %v5095
    %v5110 = vadd.f32 %v4971, %v5097
    %v5111 = vadd.f32 %v4975, %v5101
    %v5112 = vadd.f32 %v4977, %v5103
    %s5113 = scalar_lea.vmem %s6, 96
    %v5114 = vld [vmem:[%s5113] sm:$0xff]
    %v5115 = vld [vmem:[%s5113 + $0x8] sm:$0xff]
    %v5116 = vld [vmem:[%s5113 + $0x10] sm:$0xff]
    %v5117 = vld [vmem:[%s5113 + $0x18] sm:$0xff]
    %5118 = vrot.lane.b32.xlu0 %v4720, 117
    %v5119 = vpop.permute.xlu0 %5118
    %5120 = vrot.lane.b32.xlu0 %v4721, 117
    %v5121 = vpop.permute.xlu0 %5120
    %5122 = vrot.lane.b32.xlu0 %v4722, 117
    %v5123 = vpop.permute.xlu0 %5122
    %5124 = vrot.lane.b32.xlu0 %v4723, 117
    %v5125 = vpop.permute.xlu0 %5124
    %5126 = vrot.lane.b32.xlu0 %v4724, 117
    %v5127 = vpop.permute.xlu0 %5126
    %5128 = vrot.lane.b32.xlu0 %v4725, 117
    %v5129 = vpop.permute.xlu0 %5128
    %v5130 = vsel %vm2645, %v5119, %v5121
    %v5131 = vsel %vm2645, %v5121, %v5123
    %v5132 = vsel %vm2645, %v5125, %v5127
    %v5133 = vsel %vm2645, %v5127, %v5129
    %v5139 = vsel %vm2269, %v5114, 0
    %v5142 = vsel %vm2269, %v5115, 0
    %v5145 = vsel %vm2269, %v5116, 0
    %v5148 = vsel %vm2269, %v5117, 0
    %5150 = vmatprep.subr.mxu0 %v5131
    %5151 = vmatpush1.msra.mxu0 %v5130
    %5152 = vmatprep.subr.mxu0 %v5133
    %5153 = vmatpush1.msra.mxu0 %v5132
    %5154 = vmatprep.subr.mxu0 0.0
    %5155 = vmatpush1.msra.mxu0 0.0
    %5156 = vmatprep.subr.mxu0 0.0
    %5157 = vmatpush1.msra.mxu0 0.0
    %5158 = vmatprep.subr.mxu0 0.0
    %5159 = vmatpush1.msra.mxu0 0.0
    %5160 = vmatprep.subr.mxu0 0.0
    %5161 = vmatpush1.msra.mxu0 0.0
    %5162 = vmatprep.subr.mxu0 0.0
    %5163 = vmatpush1.msra.mxu0 0.0
    %5164 = vmatprep.subr.mxu0 0.0
    %5165 = vmatpush1.msra.mxu0 0.0
    %5166 = vmatprep.subr.mxu0 0.0
    %5167 = vmatpush1.msra.mxu0 0.0
    %5168 = vmatprep.subr.mxu0 0.0
    %5169 = vmatpush1.msra.mxu0 0.0
    %5170 = vmatprep.subr.mxu0 0.0
    %5171 = vmatpush1.msra.mxu0 0.0
    %5172 = vmatprep.subr.mxu0 0.0
    %5173 = vmatpush1.msra.mxu0 0.0
    %5174 = vmatprep.subr.mxu0 0.0
    %5175 = vmatpush1.msra.mxu0 0.0
    %5176 = vmatprep.subr.mxu0 0.0
    %5177 = vmatpush1.msra.mxu0 0.0
    %5178 = vmatprep.subr.mxu0 0.0
    %5179 = vmatpush1.msra.mxu0 0.0
    %5180 = vmatprep.subr.mxu0 0.0
    %5181 = vmatpush1.msra.mxu0 0.0
    %5182 = vmatprep.subr.mxu0 0.0
    %5183 = vmatpush1.msra.mxu0 0.0
    %5184 = vmatprep.subr.mxu0 0.0
    %5185 = vmatpush1.msra.mxu0 0.0
    %5186 = vmatprep.subr.mxu0 0.0
    %5187 = vmatpush1.msra.mxu0 0.0
    %5188 = vmatprep.subr.mxu0 0.0
    %5189 = vmatpush1.msra.mxu0 0.0
    %5190 = vmatprep.subr.mxu0 0.0
    %5191 = vmatpush1.msra.mxu0 0.0
    %5192 = vmatprep.subr.mxu0 0.0
    %5193 = vmatpush1.msra.mxu0 0.0
    %5194 = vmatprep.subr.mxu0 0.0
    %5195 = vmatpush1.msra.mxu0 0.0
    %5196 = vmatprep.subr.mxu0 0.0
    %5197 = vmatpush1.msra.mxu0 0.0
    %5198 = vmatprep.subr.mxu0 0.0
    %5199 = vmatpush1.msra.mxu0 0.0
    %5200 = vmatprep.subr.mxu0 0.0
    %5201 = vmatpush1.msra.mxu0 0.0
    %5202 = vmatprep.subr.mxu0 0.0
    %5203 = vmatpush1.msra.mxu0 0.0
    %5204 = vmatprep.subr.mxu0 0.0
    %5205 = vmatpush1.msra.mxu0 0.0
    %5206 = vmatprep.subr.mxu0 0.0
    %5207 = vmatpush1.msra.mxu0 0.0
    %5208 = vmatprep.subr.mxu0 0.0
    %5209 = vmatpush1.msra.mxu0 0.0
    %5210 = vmatprep.subr.mxu0 0.0
    %5211 = vmatpush1.msra.mxu0 0.0
    %5212 = vmatprep.subr.mxu0 0.0
    %5213 = vmatpush1.msra.mxu0 0.0
    %5214 = vmatprep.mubr.f32.mxu0 0.0
    %5215 = vmatmul.mubr.f32.gmra.mrb[0].mxu0 %v5139
    %v5216 = vpop.f32.mrb[0].mxu0
    %v5217 = vadd.f32 0.0, %v5216
    %v5218 = vpop.f32.mrb[0].mxu0
    %v5219 = vadd.f32 0.0, %v5218
    %5220 = vmatprep.mubr.f32.mxu0 0.0
    %5221 = vmatmul.mubr.f32.gmra.mrb[0].mxu0 %v5142
    %v5222 = vpop.f32.mrb[0].mxu0
    %v5223 = vadd.f32 0.0, %v5222
    %v5224 = vpop.f32.mrb[0].mxu0
    %v5225 = vadd.f32 0.0, %v5224
    %5226 = vmatprep.mubr.f32.mxu0 0.0
    %5227 = vmatmul.mubr.f32.gmra.mrb[0].mxu0 %v5145
    %v5228 = vpop.f32.mrb[0].mxu0
    %v5229 = vadd.f32 0.0, %v5228
    %v5230 = vpop.f32.mrb[0].mxu0
    %v5231 = vadd.f32 0.0, %v5230
    %5232 = vmatprep.mubr.f32.mxu0 0.0
    %5233 = vmatmul.mubr.f32.gmra.mrb[0].mxu0 %v5148
    %v5234 = vpop.f32.mrb[0].mxu0
    %v5235 = vadd.f32 0.0, %v5234
    %v5236 = vpop.f32.mrb[0].mxu0
    %v5237 = vadd.f32 0.0, %v5236
    %5238 = vdwg.mxu0
    %v5239 = vadd.f32 %v5105, %v5217
    %v5240 = vadd.f32 %v5106, %v5219
    %v5241 = vadd.f32 %v5107, %v5223
    %v5242 = vadd.f32 %v5108, %v5225
    %v5243 = vadd.f32 %v5109, %v5229
    %v5244 = vadd.f32 %v5110, %v5231
    %v5245 = vadd.f32 %v5111, %v5235
    %v5246 = vadd.f32 %v5112, %v5237
    %s5247 = scalar_lea.vmem %s6, 128
    %v5248 = vld [vmem:[%s5247] sm:$0xff]
    %v5249 = vld [vmem:[%s5247 + $0x8] sm:$0xff]
    %v5250 = vld [vmem:[%s5247 + $0x10] sm:$0xff]
    %v5251 = vld [vmem:[%s5247 + $0x18] sm:$0xff]
    %5252 = vrot.lane.b32.xlu0 %v4720, 118
    %v5253 = vpop.permute.xlu0 %5252
    %5254 = vrot.lane.b32.xlu0 %v4721, 118
    %v5255 = vpop.permute.xlu0 %5254
    %5256 = vrot.lane.b32.xlu0 %v4722, 118
    %v5257 = vpop.permute.xlu0 %5256
    %5258 = vrot.lane.b32.xlu0 %v4723, 118
    %v5259 = vpop.permute.xlu0 %5258
    %5260 = vrot.lane.b32.xlu0 %v4724, 118
    %v5261 = vpop.permute.xlu0 %5260
    %5262 = vrot.lane.b32.xlu0 %v4725, 118
    %v5263 = vpop.permute.xlu0 %5262
    %v5264 = vsel %vm2780, %v5253, %v5255
    %v5265 = vsel %vm2780, %v5255, %v5257
    %v5266 = vsel %vm2780, %v5259, %v5261
    %v5267 = vsel %vm2780, %v5261, %v5263
    %v5273 = vsel %vm2269, %v5248, 0
    %v5276 = vsel %vm2269, %v5249, 0
    %v5279 = vsel %vm2269, %v5250, 0
    %v5282 = vsel %vm2269, %v5251, 0
    %5284 = vmatprep.subr.mxu0 %v5265
    %5285 = vmatpush1.msra.mxu0 %v5264
    %5286 = vmatprep.subr.mxu0 %v5267
    %5287 = vmatpush1.msra.mxu0 %v5266
    %5288 = vmatprep.subr.mxu0 0.0
    %5289 = vmatpush1.msra.mxu0 0.0
    %5290 = vmatprep.subr.mxu0 0.0
    %5291 = vmatpush1.msra.mxu0 0.0
    %5292 = vmatprep.subr.mxu0 0.0
    %5293 = vmatpush1.msra.mxu0 0.0
    %5294 = vmatprep.subr.mxu0 0.0
    %5295 = vmatpush1.msra.mxu0 0.0
    %5296 = vmatprep.subr.mxu0 0.0
    %5297 = vmatpush1.msra.mxu0 0.0
    %5298 = vmatprep.subr.mxu0 0.0
    %5299 = vmatpush1.msra.mxu0 0.0
    %5300 = vmatprep.subr.mxu0 0.0
    %5301 = vmatpush1.msra.mxu0 0.0
    %5302 = vmatprep.subr.mxu0 0.0
    %5303 = vmatpush1.msra.mxu0 0.0
    %5304 = vmatprep.subr.mxu0 0.0
    %5305 = vmatpush1.msra.mxu0 0.0
    %5306 = vmatprep.subr.mxu0 0.0
    %5307 = vmatpush1.msra.mxu0 0.0
    %5308 = vmatprep.subr.mxu0 0.0
    %5309 = vmatpush1.msra.mxu0 0.0
    %5310 = vmatprep.subr.mxu0 0.0
    %5311 = vmatpush1.msra.mxu0 0.0
    %5312 = vmatprep.subr.mxu0 0.0
    %5313 = vmatpush1.msra.mxu0 0.0
    %5314 = vmatprep.subr.mxu0 0.0
    %5315 = vmatpush1.msra.mxu0 0.0
    %5316 = vmatprep.subr.mxu0 0.0
    %5317 = vmatpush1.msra.mxu0 0.0
    %5318 = vmatprep.subr.mxu0 0.0
    %5319 = vmatpush1.msra.mxu0 0.0
    %5320 = vmatprep.subr.mxu0 0.0
    %5321 = vmatpush1.msra.mxu0 0.0
    %5322 = vmatprep.subr.mxu0 0.0
    %5323 = vmatpush1.msra.mxu0 0.0
    %5324 = vmatprep.subr.mxu0 0.0
    %5325 = vmatpush1.msra.mxu0 0.0
    %5326 = vmatprep.subr.mxu0 0.0
    %5327 = vmatpush1.msra.mxu0 0.0
    %5328 = vmatprep.subr.mxu0 0.0
    %5329 = vmatpush1.msra.mxu0 0.0
    %5330 = vmatprep.subr.mxu0 0.0
    %5331 = vmatpush1.msra.mxu0 0.0
    %5332 = vmatprep.subr.mxu0 0.0
    %5333 = vmatpush1.msra.mxu0 0.0
    %5334 = vmatprep.subr.mxu0 0.0
    %5335 = vmatpush1.msra.mxu0 0.0
    %5336 = vmatprep.subr.mxu0 0.0
    %5337 = vmatpush1.msra.mxu0 0.0
    %5338 = vmatprep.subr.mxu0 0.0
    %5339 = vmatpush1.msra.mxu0 0.0
    %5340 = vmatprep.subr.mxu0 0.0
    %5341 = vmatpush1.msra.mxu0 0.0
    %5342 = vmatprep.subr.mxu0 0.0
    %5343 = vmatpush1.msra.mxu0 0.0
    %5344 = vmatprep.subr.mxu0 0.0
    %5345 = vmatpush1.msra.mxu0 0.0
    %5346 = vmatprep.subr.mxu0 0.0
    %5347 = vmatpush1.msra.mxu0 0.0
    %5348 = vmatprep.mubr.f32.mxu0 0.0
    %5349 = vmatmul.mubr.f32.gmra.mrb[0].mxu0 %v5273
    %v5350 = vpop.f32.mrb[0].mxu0
    %v5351 = vadd.f32 0.0, %v5350
    %v5352 = vpop.f32.mrb[0].mxu0
    %v5353 = vadd.f32 0.0, %v5352
    %5354 = vmatprep.mubr.f32.mxu0 0.0
    %5355 = vmatmul.mubr.f32.gmra.mrb[0].mxu0 %v5276
    %v5356 = vpop.f32.mrb[0].mxu0
    %v5357 = vadd.f32 0.0, %v5356
    %v5358 = vpop.f32.mrb[0].mxu0
    %v5359 = vadd.f32 0.0, %v5358
    %5360 = vmatprep.mubr.f32.mxu0 0.0
    %5361 = vmatmul.mubr.f32.gmra.mrb[0].mxu0 %v5279
    %v5362 = vpop.f32.mrb[0].mxu0
    %v5363 = vadd.f32 0.0, %v5362
    %v5364 = vpop.f32.mrb[0].mxu0
    %v5365 = vadd.f32 0.0, %v5364
    %5366 = vmatprep.mubr.f32.mxu0 0.0
    %5367 = vmatmul.mubr.f32.gmra.mrb[0].mxu0 %v5282
    %v5368 = vpop.f32.mrb[0].mxu0
    %v5369 = vadd.f32 0.0, %v5368
    %v5370 = vpop.f32.mrb[0].mxu0
    %v5371 = vadd.f32 0.0, %v5370
    %5372 = vdwg.mxu0
    %v5373 = vadd.f32 %v5239, %v5351
    %v5374 = vadd.f32 %v5240, %v5353
    %v5375 = vadd.f32 %v5241, %v5357
    %v5376 = vadd.f32 %v5242, %v5359
    %v5377 = vadd.f32 %v5243, %v5363
    %v5378 = vadd.f32 %v5244, %v5365
    %v5379 = vadd.f32 %v5245, %v5369
    %v5380 = vadd.f32 %v5246, %v5371
    %s5381 = scalar_lea.vmem %s6, 160
    %v5382 = vld [vmem:[%s5381] sm:$0xff]
    %v5383 = vld [vmem:[%s5381 + $0x8] sm:$0xff]
    %v5384 = vld [vmem:[%s5381 + $0x10] sm:$0xff]
    %v5385 = vld [vmem:[%s5381 + $0x18] sm:$0xff]
    %5386 = vrot.lane.b32.xlu0 %v4720, 119
    %v5387 = vpop.permute.xlu0 %5386
    %5388 = vrot.lane.b32.xlu0 %v4721, 119
    %v5389 = vpop.permute.xlu0 %5388
    %5390 = vrot.lane.b32.xlu0 %v4722, 119
    %v5391 = vpop.permute.xlu0 %5390
    %5392 = vrot.lane.b32.xlu0 %v4723, 119
    %v5393 = vpop.permute.xlu0 %5392
    %5394 = vrot.lane.b32.xlu0 %v4724, 119
    %v5395 = vpop.permute.xlu0 %5394
    %5396 = vrot.lane.b32.xlu0 %v4725, 119
    %v5397 = vpop.permute.xlu0 %5396
    %v5398 = vsel %vm2915, %v5387, %v5389
    %v5399 = vsel %vm2915, %v5389, %v5391
    %v5400 = vsel %vm2915, %v5393, %v5395
    %v5401 = vsel %vm2915, %v5395, %v5397
    %v5407 = vsel %vm2269, %v5382, 0
    %v5410 = vsel %vm2269, %v5383, 0
    %v5413 = vsel %vm2269, %v5384, 0
    %v5416 = vsel %vm2269, %v5385, 0
    %5418 = vmatprep.subr.mxu0 %v5399
    %5419 = vmatpush1.msra.mxu0 %v5398
    %5420 = vmatprep.subr.mxu0 %v5401
    %5421 = vmatpush1.msra.mxu0 %v5400
    %5422 = vmatprep.subr.mxu0 0.0
    %5423 = vmatpush1.msra.mxu0 0.0
    %5424 = vmatprep.subr.mxu0 0.0
    %5425 = vmatpush1.msra.mxu0 0.0
    %5426 = vmatprep.subr.mxu0 0.0
    %5427 = vmatpush1.msra.mxu0 0.0
    %5428 = vmatprep.subr.mxu0 0.0
    %5429 = vmatpush1.msra.mxu0 0.0
    %5430 = vmatprep.subr.mxu0 0.0
    %5431 = vmatpush1.msra.mxu0 0.0
    %5432 = vmatprep.subr.mxu0 0.0
    %5433 = vmatpush1.msra.mxu0 0.0
    %5434 = vmatprep.subr.mxu0 0.0
    %5435 = vmatpush1.msra.mxu0 0.0
    %5436 = vmatprep.subr.mxu0 0.0
    %5437 = vmatpush1.msra.mxu0 0.0
    %5438 = vmatprep.subr.mxu0 0.0
    %5439 = vmatpush1.msra.mxu0 0.0
    %5440 = vmatprep.subr.mxu0 0.0
    %5441 = vmatpush1.msra.mxu0 0.0
    %5442 = vmatprep.subr.mxu0 0.0
    %5443 = vmatpush1.msra.mxu0 0.0
    %5444 = vmatprep.subr.mxu0 0.0
    %5445 = vmatpush1.msra.mxu0 0.0
    %5446 = vmatprep.subr.mxu0 0.0
    %5447 = vmatpush1.msra.mxu0 0.0
    %5448 = vmatprep.subr.mxu0 0.0
    %5449 = vmatpush1.msra.mxu0 0.0
    %5450 = vmatprep.subr.mxu0 0.0
    %5451 = vmatpush1.msra.mxu0 0.0
    %5452 = vmatprep.subr.mxu0 0.0
    %5453 = vmatpush1.msra.mxu0 0.0
    %5454 = vmatprep.subr.mxu0 0.0
    %5455 = vmatpush1.msra.mxu0 0.0
    %5456 = vmatprep.subr.mxu0 0.0
    %5457 = vmatpush1.msra.mxu0 0.0
    %5458 = vmatprep.subr.mxu0 0.0
    %5459 = vmatpush1.msra.mxu0 0.0
    %5460 = vmatprep.subr.mxu0 0.0
    %5461 = vmatpush1.msra.mxu0 0.0
    %5462 = vmatprep.subr.mxu0 0.0
    %5463 = vmatpush1.msra.mxu0 0.0
    %5464 = vmatprep.subr.mxu0 0.0
    %5465 = vmatpush1.msra.mxu0 0.0
    %5466 = vmatprep.subr.mxu0 0.0
    %5467 = vmatpush1.msra.mxu0 0.0
    %5468 = vmatprep.subr.mxu0 0.0
    %5469 = vmatpush1.msra.mxu0 0.0
    %5470 = vmatprep.subr.mxu0 0.0
    %5471 = vmatpush1.msra.mxu0 0.0
    %5472 = vmatprep.subr.mxu0 0.0
    %5473 = vmatpush1.msra.mxu0 0.0
    %5474 = vmatprep.subr.mxu0 0.0
    %5475 = vmatpush1.msra.mxu0 0.0
    %5476 = vmatprep.subr.mxu0 0.0
    %5477 = vmatpush1.msra.mxu0 0.0
    %5478 = vmatprep.subr.mxu0 0.0
    %5479 = vmatpush1.msra.mxu0 0.0
    %5480 = vmatprep.subr.mxu0 0.0
    %5481 = vmatpush1.msra.mxu0 0.0
    %5482 = vmatprep.mubr.f32.mxu0 0.0
    %5483 = vmatmul.mubr.f32.gmra.mrb[0].mxu0 %v5407
    %v5484 = vpop.f32.mrb[0].mxu0
    %v5485 = vadd.f32 0.0, %v5484
    %v5486 = vpop.f32.mrb[0].mxu0
    %v5487 = vadd.f32 0.0, %v5486
    %5488 = vmatprep.mubr.f32.mxu0 0.0
    %5489 = vmatmul.mubr.f32.gmra.mrb[0].mxu0 %v5410
    %v5490 = vpop.f32.mrb[0].mxu0
    %v5491 = vadd.f32 0.0, %v5490
    %v5492 = vpop.f32.mrb[0].mxu0
    %v5493 = vadd.f32 0.0, %v5492
    %5494 = vmatprep.mubr.f32.mxu0 0.0
    %5495 = vmatmul.mubr.f32.gmra.mrb[0].mxu0 %v5413
    %v5496 = vpop.f32.mrb[0].mxu0
    %v5497 = vadd.f32 0.0, %v5496
    %v5498 = vpop.f32.mrb[0].mxu0
    %v5499 = vadd.f32 0.0, %v5498
    %5500 = vmatprep.mubr.f32.mxu0 0.0
    %5501 = vmatmul.mubr.f32.gmra.mrb[0].mxu0 %v5416
    %v5502 = vpop.f32.mrb[0].mxu0
    %v5503 = vadd.f32 0.0, %v5502
    %v5504 = vpop.f32.mrb[0].mxu0
    %v5505 = vadd.f32 0.0, %v5504
    %5506 = vdwg.mxu0
    %v5507 = vadd.f32 %v5373, %v5485
    %v5508 = vadd.f32 %v5374, %v5487
    %v5509 = vadd.f32 %v5375, %v5491
    %v5510 = vadd.f32 %v5376, %v5493
    %v5511 = vadd.f32 %v5377, %v5497
    %v5512 = vadd.f32 %v5378, %v5499
    %v5513 = vadd.f32 %v5379, %v5503
    %v5514 = vadd.f32 %v5380, %v5505
    %s5515 = scalar_lea.vmem %s6, 192
    %v5516 = vld [vmem:[%s5515] sm:$0xff]
    %v5517 = vld [vmem:[%s5515 + $0x8] sm:$0xff]
    %v5518 = vld [vmem:[%s5515 + $0x10] sm:$0xff]
    %v5519 = vld [vmem:[%s5515 + $0x18] sm:$0xff]
    %5520 = vrot.lane.b32.xlu0 %v4720, 120
    %v5521 = vpop.permute.xlu0 %5520
    %5522 = vrot.lane.b32.xlu0 %v4721, 120
    %v5523 = vpop.permute.xlu0 %5522
    %5524 = vrot.lane.b32.xlu0 %v4722, 120
    %v5525 = vpop.permute.xlu0 %5524
    %5526 = vrot.lane.b32.xlu0 %v4723, 120
    %v5527 = vpop.permute.xlu0 %5526
    %5528 = vrot.lane.b32.xlu0 %v4724, 120
    %v5529 = vpop.permute.xlu0 %5528
    %5530 = vrot.lane.b32.xlu0 %v4725, 120
    %v5531 = vpop.permute.xlu0 %5530
    %v5532 = vsel %vm3050, %v5521, %v5523
    %v5533 = vsel %vm3050, %v5523, %v5525
    %v5534 = vsel %vm3050, %v5527, %v5529
    %v5535 = vsel %vm3050, %v5529, %v5531
    %v5541 = vsel %vm2269, %v5516, 0
    %v5544 = vsel %vm2269, %v5517, 0
    %v5547 = vsel %vm2269, %v5518, 0
    %v5550 = vsel %vm2269, %v5519, 0
    %5552 = vmatprep.subr.mxu0 %v5533
    %5553 = vmatpush1.msra.mxu0 %v5532
    %5554 = vmatprep.subr.mxu0 %v5535
    %5555 = vmatpush1.msra.mxu0 %v5534
    %5556 = vmatprep.subr.mxu0 0.0
    %5557 = vmatpush1.msra.mxu0 0.0
    %5558 = vmatprep.subr.mxu0 0.0
    %5559 = vmatpush1.msra.mxu0 0.0
    %5560 = vmatprep.subr.mxu0 0.0
    %5561 = vmatpush1.msra.mxu0 0.0
    %5562 = vmatprep.subr.mxu0 0.0
    %5563 = vmatpush1.msra.mxu0 0.0
    %5564 = vmatprep.subr.mxu0 0.0
    %5565 = vmatpush1.msra.mxu0 0.0
    %5566 = vmatprep.subr.mxu0 0.0
    %5567 = vmatpush1.msra.mxu0 0.0
    %5568 = vmatprep.subr.mxu0 0.0
    %5569 = vmatpush1.msra.mxu0 0.0
    %5570 = vmatprep.subr.mxu0 0.0
    %5571 = vmatpush1.msra.mxu0 0.0
    %5572 = vmatprep.subr.mxu0 0.0
    %5573 = vmatpush1.msra.mxu0 0.0
    %5574 = vmatprep.subr.mxu0 0.0
    %5575 = vmatpush1.msra.mxu0 0.0
    %5576 = vmatprep.subr.mxu0 0.0
    %5577 = vmatpush1.msra.mxu0 0.0
    %5578 = vmatprep.subr.mxu0 0.0
    %5579 = vmatpush1.msra.mxu0 0.0
    %5580 = vmatprep.subr.mxu0 0.0
    %5581 = vmatpush1.msra.mxu0 0.0
    %5582 = vmatprep.subr.mxu0 0.0
    %5583 = vmatpush1.msra.mxu0 0.0
    %5584 = vmatprep.subr.mxu0 0.0
    %5585 = vmatpush1.msra.mxu0 0.0
    %5586 = vmatprep.subr.mxu0 0.0
    %5587 = vmatpush1.msra.mxu0 0.0
    %5588 = vmatprep.subr.mxu0 0.0
    %5589 = vmatpush1.msra.mxu0 0.0
    %5590 = vmatprep.subr.mxu0 0.0
    %5591 = vmatpush1.msra.mxu0 0.0
    %5592 = vmatprep.subr.mxu0 0.0
    %5593 = vmatpush1.msra.mxu0 0.0
    %5594 = vmatprep.subr.mxu0 0.0
    %5595 = vmatpush1.msra.mxu0 0.0
    %5596 = vmatprep.subr.mxu0 0.0
    %5597 = vmatpush1.msra.mxu0 0.0
    %5598 = vmatprep.subr.mxu0 0.0
    %5599 = vmatpush1.msra.mxu0 0.0
    %5600 = vmatprep.subr.mxu0 0.0
    %5601 = vmatpush1.msra.mxu0 0.0
    %5602 = vmatprep.subr.mxu0 0.0
    %5603 = vmatpush1.msra.mxu0 0.0
    %5604 = vmatprep.subr.mxu0 0.0
    %5605 = vmatpush1.msra.mxu0 0.0
    %5606 = vmatprep.subr.mxu0 0.0
    %5607 = vmatpush1.msra.mxu0 0.0
    %5608 = vmatprep.subr.mxu0 0.0
    %5609 = vmatpush1.msra.mxu0 0.0
    %5610 = vmatprep.subr.mxu0 0.0
    %5611 = vmatpush1.msra.mxu0 0.0
    %5612 = vmatprep.subr.mxu0 0.0
    %5613 = vmatpush1.msra.mxu0 0.0
    %5614 = vmatprep.subr.mxu0 0.0
    %5615 = vmatpush1.msra.mxu0 0.0
    %5616 = vmatprep.mubr.f32.mxu0 0.0
    %5617 = vmatmul.mubr.f32.gmra.mrb[0].mxu0 %v5541
    %v5618 = vpop.f32.mrb[0].mxu0
    %v5619 = vadd.f32 0.0, %v5618
    %v5620 = vpop.f32.mrb[0].mxu0
    %v5621 = vadd.f32 0.0, %v5620
    %5622 = vmatprep.mubr.f32.mxu0 0.0
    %5623 = vmatmul.mubr.f32.gmra.mrb[0].mxu0 %v5544
    %v5624 = vpop.f32.mrb[0].mxu0
    %v5625 = vadd.f32 0.0, %v5624
    %v5626 = vpop.f32.mrb[0].mxu0
    %v5627 = vadd.f32 0.0, %v5626
    %5628 = vmatprep.mubr.f32.mxu0 0.0
    %5629 = vmatmul.mubr.f32.gmra.mrb[0].mxu0 %v5547
    %v5630 = vpop.f32.mrb[0].mxu0
    %v5631 = vadd.f32 0.0, %v5630
    %v5632 = vpop.f32.mrb[0].mxu0
    %v5633 = vadd.f32 0.0, %v5632
    %5634 = vmatprep.mubr.f32.mxu0 0.0
    %5635 = vmatmul.mubr.f32.gmra.mrb[0].mxu0 %v5550
    %v5636 = vpop.f32.mrb[0].mxu0
    %v5637 = vadd.f32 0.0, %v5636
    %v5638 = vpop.f32.mrb[0].mxu0
    %v5639 = vadd.f32 0.0, %v5638
    %5640 = vdwg.mxu0
    %v5641 = vadd.f32 %v5507, %v5619
    %v5642 = vadd.f32 %v5508, %v5621
    %v5643 = vadd.f32 %v5509, %v5625
    %v5644 = vadd.f32 %v5510, %v5627
    %v5645 = vadd.f32 %v5511, %v5631
    %v5646 = vadd.f32 %v5512, %v5633
    %v5647 = vadd.f32 %v5513, %v5637
    %v5648 = vadd.f32 %v5514, %v5639
    %s5649 = scalar_lea.vmem %s6, 224
    %v5650 = vld [vmem:[%s5649] sm:$0xff]
    %v5651 = vld [vmem:[%s5649 + $0x8] sm:$0xff]
    %v5652 = vld [vmem:[%s5649 + $0x10] sm:$0xff]
    %v5653 = vld [vmem:[%s5649 + $0x18] sm:$0xff]
    %5654 = vrot.lane.b32.xlu0 %v4720, 121
    %v5655 = vpop.permute.xlu0 %5654
    %5656 = vrot.lane.b32.xlu0 %v4721, 121
    %v5657 = vpop.permute.xlu0 %5656
    %5658 = vrot.lane.b32.xlu0 %v4722, 121
    %v5659 = vpop.permute.xlu0 %5658
    %5660 = vrot.lane.b32.xlu0 %v4723, 121
    %v5661 = vpop.permute.xlu0 %5660
    %5662 = vrot.lane.b32.xlu0 %v4724, 121
    %v5663 = vpop.permute.xlu0 %5662
    %5664 = vrot.lane.b32.xlu0 %v4725, 121
    %v5665 = vpop.permute.xlu0 %5664
    %v5666 = vsel %vm3185, %v5655, %v5657
    %v5667 = vsel %vm3185, %v5657, %v5659
    %v5668 = vsel %vm3185, %v5661, %v5663
    %v5669 = vsel %vm3185, %v5663, %v5665
    %v5675 = vsel %vm2269, %v5650, 0
    %v5678 = vsel %vm2269, %v5651, 0
    %v5681 = vsel %vm2269, %v5652, 0
    %v5684 = vsel %vm2269, %v5653, 0
    %5686 = vmatprep.subr.mxu0 %v5667
    %5687 = vmatpush1.msra.mxu0 %v5666
    %5688 = vmatprep.subr.mxu0 %v5669
    %5689 = vmatpush1.msra.mxu0 %v5668
    %5690 = vmatprep.subr.mxu0 0.0
    %5691 = vmatpush1.msra.mxu0 0.0
    %5692 = vmatprep.subr.mxu0 0.0
    %5693 = vmatpush1.msra.mxu0 0.0
    %5694 = vmatprep.subr.mxu0 0.0
    %5695 = vmatpush1.msra.mxu0 0.0
    %5696 = vmatprep.subr.mxu0 0.0
    %5697 = vmatpush1.msra.mxu0 0.0
    %5698 = vmatprep.subr.mxu0 0.0
    %5699 = vmatpush1.msra.mxu0 0.0
    %5700 = vmatprep.subr.mxu0 0.0
    %5701 = vmatpush1.msra.mxu0 0.0
    %5702 = vmatprep.subr.mxu0 0.0
    %5703 = vmatpush1.msra.mxu0 0.0
    %5704 = vmatprep.subr.mxu0 0.0
    %5705 = vmatpush1.msra.mxu0 0.0
    %5706 = vmatprep.subr.mxu0 0.0
    %5707 = vmatpush1.msra.mxu0 0.0
    %5708 = vmatprep.subr.mxu0 0.0
    %5709 = vmatpush1.msra.mxu0 0.0
    %5710 = vmatprep.subr.mxu0 0.0
    %5711 = vmatpush1.msra.mxu0 0.0
    %5712 = vmatprep.subr.mxu0 0.0
    %5713 = vmatpush1.msra.mxu0 0.0
    %5714 = vmatprep.subr.mxu0 0.0
    %5715 = vmatpush1.msra.mxu0 0.0
    %5716 = vmatprep.subr.mxu0 0.0
    %5717 = vmatpush1.msra.mxu0 0.0
    %5718 = vmatprep.subr.mxu0 0.0
    %5719 = vmatpush1.msra.mxu0 0.0
    %5720 = vmatprep.subr.mxu0 0.0
    %5721 = vmatpush1.msra.mxu0 0.0
    %5722 = vmatprep.subr.mxu0 0.0
    %5723 = vmatpush1.msra.mxu0 0.0
    %5724 = vmatprep.subr.mxu0 0.0
    %5725 = vmatpush1.msra.mxu0 0.0
    %5726 = vmatprep.subr.mxu0 0.0
    %5727 = vmatpush1.msra.mxu0 0.0
    %5728 = vmatprep.subr.mxu0 0.0
    %5729 = vmatpush1.msra.mxu0 0.0
    %5730 = vmatprep.subr.mxu0 0.0
    %5731 = vmatpush1.msra.mxu0 0.0
    %5732 = vmatprep.subr.mxu0 0.0
    %5733 = vmatpush1.msra.mxu0 0.0
    %5734 = vmatprep.subr.mxu0 0.0
    %5735 = vmatpush1.msra.mxu0 0.0
    %5736 = vmatprep.subr.mxu0 0.0
    %5737 = vmatpush1.msra.mxu0 0.0
    %5738 = vmatprep.subr.mxu0 0.0
    %5739 = vmatpush1.msra.mxu0 0.0
    %5740 = vmatprep.subr.mxu0 0.0
    %5741 = vmatpush1.msra.mxu0 0.0
    %5742 = vmatprep.subr.mxu0 0.0
    %5743 = vmatpush1.msra.mxu0 0.0
    %5744 = vmatprep.subr.mxu0 0.0
    %5745 = vmatpush1.msra.mxu0 0.0
    %5746 = vmatprep.subr.mxu0 0.0
    %5747 = vmatpush1.msra.mxu0 0.0
    %5748 = vmatprep.subr.mxu0 0.0
    %5749 = vmatpush1.msra.mxu0 0.0
    %5750 = vmatprep.mubr.f32.mxu0 0.0
    %5751 = vmatmul.mubr.f32.gmra.mrb[0].mxu0 %v5675
    %v5752 = vpop.f32.mrb[0].mxu0
    %v5753 = vadd.f32 0.0, %v5752
    %v5754 = vpop.f32.mrb[0].mxu0
    %v5755 = vadd.f32 0.0, %v5754
    %5756 = vmatprep.mubr.f32.mxu0 0.0
    %5757 = vmatmul.mubr.f32.gmra.mrb[0].mxu0 %v5678
    %v5758 = vpop.f32.mrb[0].mxu0
    %v5759 = vadd.f32 0.0, %v5758
    %v5760 = vpop.f32.mrb[0].mxu0
    %v5761 = vadd.f32 0.0, %v5760
    %5762 = vmatprep.mubr.f32.mxu0 0.0
    %5763 = vmatmul.mubr.f32.gmra.mrb[0].mxu0 %v5681
    %v5764 = vpop.f32.mrb[0].mxu0
    %v5765 = vadd.f32 0.0, %v5764
    %v5766 = vpop.f32.mrb[0].mxu0
    %v5767 = vadd.f32 0.0, %v5766
    %5768 = vmatprep.mubr.f32.mxu0 0.0
    %5769 = vmatmul.mubr.f32.gmra.mrb[0].mxu0 %v5684
    %v5770 = vpop.f32.mrb[0].mxu0
    %v5771 = vadd.f32 0.0, %v5770
    %v5772 = vpop.f32.mrb[0].mxu0
    %v5773 = vadd.f32 0.0, %v5772
    %5774 = vdwg.mxu0
    %v5775 = vadd.f32 %v5641, %v5753
    %v5776 = vadd.f32 %v5642, %v5755
    %v5777 = vadd.f32 %v5643, %v5759
    %v5778 = vadd.f32 %v5644, %v5761
    %v5779 = vadd.f32 %v5645, %v5765
    %v5780 = vadd.f32 %v5646, %v5767
    %v5781 = vadd.f32 %v5647, %v5771
    %v5782 = vadd.f32 %v5648, %v5773
    %s5783 = scalar_lea.vmem %s6, 256
    %v5784 = vld [vmem:[%s5783] sm:$0xff]
    %v5785 = vld [vmem:[%s5783 + $0x8] sm:$0xff]
    %v5786 = vld [vmem:[%s5783 + $0x10] sm:$0xff]
    %v5787 = vld [vmem:[%s5783 + $0x18] sm:$0xff]
    %5788 = vrot.lane.b32.xlu0 %v4720, 122
    %v5789 = vpop.permute.xlu0 %5788
    %5790 = vrot.lane.b32.xlu0 %v4721, 122
    %v5791 = vpop.permute.xlu0 %5790
    %5792 = vrot.lane.b32.xlu0 %v4722, 122
    %v5793 = vpop.permute.xlu0 %5792
    %5794 = vrot.lane.b32.xlu0 %v4723, 122
    %v5795 = vpop.permute.xlu0 %5794
    %5796 = vrot.lane.b32.xlu0 %v4724, 122
    %v5797 = vpop.permute.xlu0 %5796
    %5798 = vrot.lane.b32.xlu0 %v4725, 122
    %v5799 = vpop.permute.xlu0 %5798
    %v5800 = vsel %vm3320, %v5789, %v5791
    %v5801 = vsel %vm3320, %v5791, %v5793
    %v5802 = vsel %vm3320, %v5795, %v5797
    %v5803 = vsel %vm3320, %v5797, %v5799
    %v5809 = vsel %vm2269, %v5784, 0
    %v5812 = vsel %vm2269, %v5785, 0
    %v5815 = vsel %vm2269, %v5786, 0
    %v5818 = vsel %vm2269, %v5787, 0
    %5820 = vmatprep.subr.mxu0 %v5801
    %5821 = vmatpush1.msra.mxu0 %v5800
    %5822 = vmatprep.subr.mxu0 %v5803
    %5823 = vmatpush1.msra.mxu0 %v5802
    %5824 = vmatprep.subr.mxu0 0.0
    %5825 = vmatpush1.msra.mxu0 0.0
    %5826 = vmatprep.subr.mxu0 0.0
    %5827 = vmatpush1.msra.mxu0 0.0
    %5828 = vmatprep.subr.mxu0 0.0
    %5829 = vmatpush1.msra.mxu0 0.0
    %5830 = vmatprep.subr.mxu0 0.0
    %5831 = vmatpush1.msra.mxu0 0.0
    %5832 = vmatprep.subr.mxu0 0.0
    %5833 = vmatpush1.msra.mxu0 0.0
    %5834 = vmatprep.subr.mxu0 0.0
    %5835 = vmatpush1.msra.mxu0 0.0
    %5836 = vmatprep.subr.mxu0 0.0
    %5837 = vmatpush1.msra.mxu0 0.0
    %5838 = vmatprep.subr.mxu0 0.0
    %5839 = vmatpush1.msra.mxu0 0.0
    %5840 = vmatprep.subr.mxu0 0.0
    %5841 = vmatpush1.msra.mxu0 0.0
    %5842 = vmatprep.subr.mxu0 0.0
    %5843 = vmatpush1.msra.mxu0 0.0
    %5844 = vmatprep.subr.mxu0 0.0
    %5845 = vmatpush1.msra.mxu0 0.0
    %5846 = vmatprep.subr.mxu0 0.0
    %5847 = vmatpush1.msra.mxu0 0.0
    %5848 = vmatprep.subr.mxu0 0.0
    %5849 = vmatpush1.msra.mxu0 0.0
    %5850 = vmatprep.subr.mxu0 0.0
    %5851 = vmatpush1.msra.mxu0 0.0
    %5852 = vmatprep.subr.mxu0 0.0
    %5853 = vmatpush1.msra.mxu0 0.0
    %5854 = vmatprep.subr.mxu0 0.0
    %5855 = vmatpush1.msra.mxu0 0.0
    %5856 = vmatprep.subr.mxu0 0.0
    %5857 = vmatpush1.msra.mxu0 0.0
    %5858 = vmatprep.subr.mxu0 0.0
    %5859 = vmatpush1.msra.mxu0 0.0
    %5860 = vmatprep.subr.mxu0 0.0
    %5861 = vmatpush1.msra.mxu0 0.0
    %5862 = vmatprep.subr.mxu0 0.0
    %5863 = vmatpush1.msra.mxu0 0.0
    %5864 = vmatprep.subr.mxu0 0.0
    %5865 = vmatpush1.msra.mxu0 0.0
    %5866 = vmatprep.subr.mxu0 0.0
    %5867 = vmatpush1.msra.mxu0 0.0
    %5868 = vmatprep.subr.mxu0 0.0
    %5869 = vmatpush1.msra.mxu0 0.0
    %5870 = vmatprep.subr.mxu0 0.0
    %5871 = vmatpush1.msra.mxu0 0.0
    %5872 = vmatprep.subr.mxu0 0.0
    %5873 = vmatpush1.msra.mxu0 0.0
    %5874 = vmatprep.subr.mxu0 0.0
    %5875 = vmatpush1.msra.mxu0 0.0
    %5876 = vmatprep.subr.mxu0 0.0
    %5877 = vmatpush1.msra.mxu0 0.0
    %5878 = vmatprep.subr.mxu0 0.0
    %5879 = vmatpush1.msra.mxu0 0.0
    %5880 = vmatprep.subr.mxu0 0.0
    %5881 = vmatpush1.msra.mxu0 0.0
    %5882 = vmatprep.subr.mxu0 0.0
    %5883 = vmatpush1.msra.mxu0 0.0
    %5884 = vmatprep.mubr.f32.mxu0 0.0
    %5885 = vmatmul.mubr.f32.gmra.mrb[0].mxu0 %v5809
    %v5886 = vpop.f32.mrb[0].mxu0
    %v5887 = vadd.f32 0.0, %v5886
    %v5888 = vpop.f32.mrb[0].mxu0
    %v5889 = vadd.f32 0.0, %v5888
    %5890 = vmatprep.mubr.f32.mxu0 0.0
    %5891 = vmatmul.mubr.f32.gmra.mrb[0].mxu0 %v5812
    %v5892 = vpop.f32.mrb[0].mxu0
    %v5893 = vadd.f32 0.0, %v5892
    %v5894 = vpop.f32.mrb[0].mxu0
    %v5895 = vadd.f32 0.0, %v5894
    %5896 = vmatprep.mubr.f32.mxu0 0.0
    %5897 = vmatmul.mubr.f32.gmra.mrb[0].mxu0 %v5815
    %v5898 = vpop.f32.mrb[0].mxu0
    %v5899 = vadd.f32 0.0, %v5898
    %v5900 = vpop.f32.mrb[0].mxu0
    %v5901 = vadd.f32 0.0, %v5900
    %5902 = vmatprep.mubr.f32.mxu0 0.0
    %5903 = vmatmul.mubr.f32.gmra.mrb[0].mxu0 %v5818
    %v5904 = vpop.f32.mrb[0].mxu0
    %v5905 = vadd.f32 0.0, %v5904
    %v5906 = vpop.f32.mrb[0].mxu0
    %v5907 = vadd.f32 0.0, %v5906
    %5908 = vdwg.mxu0
    %v5909 = vadd.f32 %v5775, %v5887
    %v5910 = vadd.f32 %v5776, %v5889
    %v5911 = vadd.f32 %v5777, %v5893
    %v5912 = vadd.f32 %v5778, %v5895
    %v5913 = vadd.f32 %v5779, %v5899
    %v5914 = vadd.f32 %v5780, %v5901
    %v5915 = vadd.f32 %v5781, %v5905
    %v5916 = vadd.f32 %v5782, %v5907
    %s5917 = scalar_lea.vmem %s6, 288
    %v5918 = vld [vmem:[%s5917] sm:$0xff]
    %v5919 = vld [vmem:[%s5917 + $0x8] sm:$0xff]
    %v5920 = vld [vmem:[%s5917 + $0x10] sm:$0xff]
    %v5921 = vld [vmem:[%s5917 + $0x18] sm:$0xff]
    %5922 = vrot.lane.b32.xlu0 %v4720, 123
    %v5923 = vpop.permute.xlu0 %5922
    %5924 = vrot.lane.b32.xlu0 %v4721, 123
    %v5925 = vpop.permute.xlu0 %5924
    %5926 = vrot.lane.b32.xlu0 %v4722, 123
    %v5927 = vpop.permute.xlu0 %5926
    %5928 = vrot.lane.b32.xlu0 %v4723, 123
    %v5929 = vpop.permute.xlu0 %5928
    %5930 = vrot.lane.b32.xlu0 %v4724, 123
    %v5931 = vpop.permute.xlu0 %5930
    %5932 = vrot.lane.b32.xlu0 %v4725, 123
    %v5933 = vpop.permute.xlu0 %5932
    %v5934 = vsel %vm3455, %v5923, %v5925
    %v5935 = vsel %vm3455, %v5925, %v5927
    %v5936 = vsel %vm3455, %v5929, %v5931
    %v5937 = vsel %vm3455, %v5931, %v5933
    %v5943 = vsel %vm2269, %v5918, 0
    %v5946 = vsel %vm2269, %v5919, 0
    %v5949 = vsel %vm2269, %v5920, 0
    %v5952 = vsel %vm2269, %v5921, 0
    %5954 = vmatprep.subr.mxu0 %v5935
    %5955 = vmatpush1.msra.mxu0 %v5934
    %5956 = vmatprep.subr.mxu0 %v5937
    %5957 = vmatpush1.msra.mxu0 %v5936
    %5958 = vmatprep.subr.mxu0 0.0
    %5959 = vmatpush1.msra.mxu0 0.0
    %5960 = vmatprep.subr.mxu0 0.0
    %5961 = vmatpush1.msra.mxu0 0.0
    %5962 = vmatprep.subr.mxu0 0.0
    %5963 = vmatpush1.msra.mxu0 0.0
    %5964 = vmatprep.subr.mxu0 0.0
    %5965 = vmatpush1.msra.mxu0 0.0
    %5966 = vmatprep.subr.mxu0 0.0
    %5967 = vmatpush1.msra.mxu0 0.0
    %5968 = vmatprep.subr.mxu0 0.0
    %5969 = vmatpush1.msra.mxu0 0.0
    %5970 = vmatprep.subr.mxu0 0.0
    %5971 = vmatpush1.msra.mxu0 0.0
    %5972 = vmatprep.subr.mxu0 0.0
    %5973 = vmatpush1.msra.mxu0 0.0
    %5974 = vmatprep.subr.mxu0 0.0
    %5975 = vmatpush1.msra.mxu0 0.0
    %5976 = vmatprep.subr.mxu0 0.0
    %5977 = vmatpush1.msra.mxu0 0.0
    %5978 = vmatprep.subr.mxu0 0.0
    %5979 = vmatpush1.msra.mxu0 0.0
    %5980 = vmatprep.subr.mxu0 0.0
    %5981 = vmatpush1.msra.mxu0 0.0
    %5982 = vmatprep.subr.mxu0 0.0
    %5983 = vmatpush1.msra.mxu0 0.0
    %5984 = vmatprep.subr.mxu0 0.0
    %5985 = vmatpush1.msra.mxu0 0.0
    %5986 = vmatprep.subr.mxu0 0.0
    %5987 = vmatpush1.msra.mxu0 0.0
    %5988 = vmatprep.subr.mxu0 0.0
    %5989 = vmatpush1.msra.mxu0 0.0
    %5990 = vmatprep.subr.mxu0 0.0
    %5991 = vmatpush1.msra.mxu0 0.0
    %5992 = vmatprep.subr.mxu0 0.0
    %5993 = vmatpush1.msra.mxu0 0.0
    %5994 = vmatprep.subr.mxu0 0.0
    %5995 = vmatpush1.msra.mxu0 0.0
    %5996 = vmatprep.subr.mxu0 0.0
    %5997 = vmatpush1.msra.mxu0 0.0
    %5998 = vmatprep.subr.mxu0 0.0
    %5999 = vmatpush1.msra.mxu0 0.0
    %6000 = vmatprep.subr.mxu0 0.0
    %6001 = vmatpush1.msra.mxu0 0.0
    %6002 = vmatprep.subr.mxu0 0.0
    %6003 = vmatpush1.msra.mxu0 0.0
    %6004 = vmatprep.subr.mxu0 0.0
    %6005 = vmatpush1.msra.mxu0 0.0
    %6006 = vmatprep.subr.mxu0 0.0
    %6007 = vmatpush1.msra.mxu0 0.0
    %6008 = vmatprep.subr.mxu0 0.0
    %6009 = vmatpush1.msra.mxu0 0.0
    %6010 = vmatprep.subr.mxu0 0.0
    %6011 = vmatpush1.msra.mxu0 0.0
    %6012 = vmatprep.subr.mxu0 0.0
    %6013 = vmatpush1.msra.mxu0 0.0
    %6014 = vmatprep.subr.mxu0 0.0
    %6015 = vmatpush1.msra.mxu0 0.0
    %6016 = vmatprep.subr.mxu0 0.0
    %6017 = vmatpush1.msra.mxu0 0.0
    %6018 = vmatprep.mubr.f32.mxu0 0.0
    %6019 = vmatmul.mubr.f32.gmra.mrb[0].mxu0 %v5943
    %v6020 = vpop.f32.mrb[0].mxu0
    %v6021 = vadd.f32 0.0, %v6020
    %v6022 = vpop.f32.mrb[0].mxu0
    %v6023 = vadd.f32 0.0, %v6022
    %6024 = vmatprep.mubr.f32.mxu0 0.0
    %6025 = vmatmul.mubr.f32.gmra.mrb[0].mxu0 %v5946
    %v6026 = vpop.f32.mrb[0].mxu0
    %v6027 = vadd.f32 0.0, %v6026
    %v6028 = vpop.f32.mrb[0].mxu0
    %v6029 = vadd.f32 0.0, %v6028
    %6030 = vmatprep.mubr.f32.mxu0 0.0
    %6031 = vmatmul.mubr.f32.gmra.mrb[0].mxu0 %v5949
    %v6032 = vpop.f32.mrb[0].mxu0
    %v6033 = vadd.f32 0.0, %v6032
    %v6034 = vpop.f32.mrb[0].mxu0
    %v6035 = vadd.f32 0.0, %v6034
    %6036 = vmatprep.mubr.f32.mxu0 0.0
    %6037 = vmatmul.mubr.f32.gmra.mrb[0].mxu0 %v5952
    %v6038 = vpop.f32.mrb[0].mxu0
    %v6039 = vadd.f32 0.0, %v6038
    %v6040 = vpop.f32.mrb[0].mxu0
    %v6041 = vadd.f32 0.0, %v6040
    %6042 = vdwg.mxu0
    %v6043 = vadd.f32 %v5909, %v6021
    %v6044 = vadd.f32 %v5910, %v6023
    %v6045 = vadd.f32 %v5911, %v6027
    %v6046 = vadd.f32 %v5912, %v6029
    %v6047 = vadd.f32 %v5913, %v6033
    %v6048 = vadd.f32 %v5914, %v6035
    %v6049 = vadd.f32 %v5915, %v6039
    %v6050 = vadd.f32 %v5916, %v6041
    %s6051 = scalar_lea.vmem %s6, 320
    %v6052 = vld [vmem:[%s6051] sm:$0xff]
    %v6053 = vld [vmem:[%s6051 + $0x8] sm:$0xff]
    %v6054 = vld [vmem:[%s6051 + $0x10] sm:$0xff]
    %v6055 = vld [vmem:[%s6051 + $0x18] sm:$0xff]
    %6056 = vrot.lane.b32.xlu0 %v4720, 124
    %v6057 = vpop.permute.xlu0 %6056
    %6058 = vrot.lane.b32.xlu0 %v4721, 124
    %v6059 = vpop.permute.xlu0 %6058
    %6060 = vrot.lane.b32.xlu0 %v4722, 124
    %v6061 = vpop.permute.xlu0 %6060
    %6062 = vrot.lane.b32.xlu0 %v4723, 124
    %v6063 = vpop.permute.xlu0 %6062
    %6064 = vrot.lane.b32.xlu0 %v4724, 124
    %v6065 = vpop.permute.xlu0 %6064
    %6066 = vrot.lane.b32.xlu0 %v4725, 124
    %v6067 = vpop.permute.xlu0 %6066
    %v6068 = vsel %vm3590, %v6057, %v6059
    %v6069 = vsel %vm3590, %v6059, %v6061
    %v6070 = vsel %vm3590, %v6063, %v6065
    %v6071 = vsel %vm3590, %v6065, %v6067
    %v6077 = vsel %vm2269, %v6052, 0
    %v6080 = vsel %vm2269, %v6053, 0
    %v6083 = vsel %vm2269, %v6054, 0
    %v6086 = vsel %vm2269, %v6055, 0
    %6088 = vmatprep.subr.mxu0 %v6069
    %6089 = vmatpush1.msra.mxu0 %v6068
    %6090 = vmatprep.subr.mxu0 %v6071
    %6091 = vmatpush1.msra.mxu0 %v6070
    %6092 = vmatprep.subr.mxu0 0.0
    %6093 = vmatpush1.msra.mxu0 0.0
    %6094 = vmatprep.subr.mxu0 0.0
    %6095 = vmatpush1.msra.mxu0 0.0
    %6096 = vmatprep.subr.mxu0 0.0
    %6097 = vmatpush1.msra.mxu0 0.0
    %6098 = vmatprep.subr.mxu0 0.0
    %6099 = vmatpush1.msra.mxu0 0.0
    %6100 = vmatprep.subr.mxu0 0.0
    %6101 = vmatpush1.msra.mxu0 0.0
    %6102 = vmatprep.subr.mxu0 0.0
    %6103 = vmatpush1.msra.mxu0 0.0
    %6104 = vmatprep.subr.mxu0 0.0
    %6105 = vmatpush1.msra.mxu0 0.0
    %6106 = vmatprep.subr.mxu0 0.0
    %6107 = vmatpush1.msra.mxu0 0.0
    %6108 = vmatprep.subr.mxu0 0.0
    %6109 = vmatpush1.msra.mxu0 0.0
    %6110 = vmatprep.subr.mxu0 0.0
    %6111 = vmatpush1.msra.mxu0 0.0
    %6112 = vmatprep.subr.mxu0 0.0
    %6113 = vmatpush1.msra.mxu0 0.0
    %6114 = vmatprep.subr.mxu0 0.0
    %6115 = vmatpush1.msra.mxu0 0.0
    %6116 = vmatprep.subr.mxu0 0.0
    %6117 = vmatpush1.msra.mxu0 0.0
    %6118 = vmatprep.subr.mxu0 0.0
    %6119 = vmatpush1.msra.mxu0 0.0
    %6120 = vmatprep.subr.mxu0 0.0
    %6121 = vmatpush1.msra.mxu0 0.0
    %6122 = vmatprep.subr.mxu0 0.0
    %6123 = vmatpush1.msra.mxu0 0.0
    %6124 = vmatprep.subr.mxu0 0.0
    %6125 = vmatpush1.msra.mxu0 0.0
    %6126 = vmatprep.subr.mxu0 0.0
    %6127 = vmatpush1.msra.mxu0 0.0
    %6128 = vmatprep.subr.mxu0 0.0
    %6129 = vmatpush1.msra.mxu0 0.0
    %6130 = vmatprep.subr.mxu0 0.0
    %6131 = vmatpush1.msra.mxu0 0.0
    %6132 = vmatprep.subr.mxu0 0.0
    %6133 = vmatpush1.msra.mxu0 0.0
    %6134 = vmatprep.subr.mxu0 0.0
    %6135 = vmatpush1.msra.mxu0 0.0
    %6136 = vmatprep.subr.mxu0 0.0
    %6137 = vmatpush1.msra.mxu0 0.0
    %6138 = vmatprep.subr.mxu0 0.0
    %6139 = vmatpush1.msra.mxu0 0.0
    %6140 = vmatprep.subr.mxu0 0.0
    %6141 = vmatpush1.msra.mxu0 0.0
    %6142 = vmatprep.subr.mxu0 0.0
    %6143 = vmatpush1.msra.mxu0 0.0
    %6144 = vmatprep.subr.mxu0 0.0
    %6145 = vmatpush1.msra.mxu0 0.0
    %6146 = vmatprep.subr.mxu0 0.0
    %6147 = vmatpush1.msra.mxu0 0.0
    %6148 = vmatprep.subr.mxu0 0.0
    %6149 = vmatpush1.msra.mxu0 0.0
    %6150 = vmatprep.subr.mxu0 0.0
    %6151 = vmatpush1.msra.mxu0 0.0
    %6152 = vmatprep.mubr.f32.mxu0 0.0
    %6153 = vmatmul.mubr.f32.gmra.mrb[0].mxu0 %v6077
    %v6154 = vpop.f32.mrb[0].mxu0
    %v6155 = vadd.f32 0.0, %v6154
    %v6156 = vpop.f32.mrb[0].mxu0
    %v6157 = vadd.f32 0.0, %v6156
    %6158 = vmatprep.mubr.f32.mxu0 0.0
    %6159 = vmatmul.mubr.f32.gmra.mrb[0].mxu0 %v6080
    %v6160 = vpop.f32.mrb[0].mxu0
    %v6161 = vadd.f32 0.0, %v6160
    %v6162 = vpop.f32.mrb[0].mxu0
    %v6163 = vadd.f32 0.0, %v6162
    %6164 = vmatprep.mubr.f32.mxu0 0.0
    %6165 = vmatmul.mubr.f32.gmra.mrb[0].mxu0 %v6083
    %v6166 = vpop.f32.mrb[0].mxu0
    %v6167 = vadd.f32 0.0, %v6166
    %v6168 = vpop.f32.mrb[0].mxu0
    %v6169 = vadd.f32 0.0, %v6168
    %6170 = vmatprep.mubr.f32.mxu0 0.0
    %6171 = vmatmul.mubr.f32.gmra.mrb[0].mxu0 %v6086
    %v6172 = vpop.f32.mrb[0].mxu0
    %v6173 = vadd.f32 0.0, %v6172
    %v6174 = vpop.f32.mrb[0].mxu0
    %v6175 = vadd.f32 0.0, %v6174
    %6176 = vdwg.mxu0
    %v6177 = vadd.f32 %v6043, %v6155
    %v6178 = vadd.f32 %v6044, %v6157
    %v6179 = vadd.f32 %v6045, %v6161
    %v6180 = vadd.f32 %v6046, %v6163
    %v6181 = vadd.f32 %v6047, %v6167
    %v6182 = vadd.f32 %v6048, %v6169
    %v6183 = vadd.f32 %v6049, %v6173
    %v6184 = vadd.f32 %v6050, %v6175
    %s6185 = scalar_lea.vmem %s6, 352
    %v6186 = vld [vmem:[%s6185] sm:$0xff]
    %v6187 = vld [vmem:[%s6185 + $0x8] sm:$0xff]
    %v6188 = vld [vmem:[%s6185 + $0x10] sm:$0xff]
    %v6189 = vld [vmem:[%s6185 + $0x18] sm:$0xff]
    %6190 = vrot.lane.b32.xlu0 %v4720, 125
    %v6191 = vpop.permute.xlu0 %6190
    %6192 = vrot.lane.b32.xlu0 %v4721, 125
    %v6193 = vpop.permute.xlu0 %6192
    %6194 = vrot.lane.b32.xlu0 %v4722, 125
    %v6195 = vpop.permute.xlu0 %6194
    %6196 = vrot.lane.b32.xlu0 %v4723, 125
    %v6197 = vpop.permute.xlu0 %6196
    %6198 = vrot.lane.b32.xlu0 %v4724, 125
    %v6199 = vpop.permute.xlu0 %6198
    %6200 = vrot.lane.b32.xlu0 %v4725, 125
    %v6201 = vpop.permute.xlu0 %6200
    %v6202 = vsel %vm3725, %v6191, %v6193
    %v6203 = vsel %vm3725, %v6193, %v6195
    %v6204 = vsel %vm3725, %v6197, %v6199
    %v6205 = vsel %vm3725, %v6199, %v6201
    %v6211 = vsel %vm2269, %v6186, 0
    %v6214 = vsel %vm2269, %v6187, 0
    %v6217 = vsel %vm2269, %v6188, 0
    %v6220 = vsel %vm2269, %v6189, 0
    %6222 = vmatprep.subr.mxu0 %v6203
    %6223 = vmatpush1.msra.mxu0 %v6202
    %6224 = vmatprep.subr.mxu0 %v6205
    %6225 = vmatpush1.msra.mxu0 %v6204
    %6226 = vmatprep.subr.mxu0 0.0
    %6227 = vmatpush1.msra.mxu0 0.0
    %6228 = vmatprep.subr.mxu0 0.0
    %6229 = vmatpush1.msra.mxu0 0.0
    %6230 = vmatprep.subr.mxu0 0.0
    %6231 = vmatpush1.msra.mxu0 0.0
    %6232 = vmatprep.subr.mxu0 0.0
    %6233 = vmatpush1.msra.mxu0 0.0
    %6234 = vmatprep.subr.mxu0 0.0
    %6235 = vmatpush1.msra.mxu0 0.0
    %6236 = vmatprep.subr.mxu0 0.0
    %6237 = vmatpush1.msra.mxu0 0.0
    %6238 = vmatprep.subr.mxu0 0.0
    %6239 = vmatpush1.msra.mxu0 0.0
    %6240 = vmatprep.subr.mxu0 0.0
    %6241 = vmatpush1.msra.mxu0 0.0
    %6242 = vmatprep.subr.mxu0 0.0
    %6243 = vmatpush1.msra.mxu0 0.0
    %6244 = vmatprep.subr.mxu0 0.0
    %6245 = vmatpush1.msra.mxu0 0.0
    %6246 = vmatprep.subr.mxu0 0.0
    %6247 = vmatpush1.msra.mxu0 0.0
    %6248 = vmatprep.subr.mxu0 0.0
    %6249 = vmatpush1.msra.mxu0 0.0
    %6250 = vmatprep.subr.mxu0 0.0
    %6251 = vmatpush1.msra.mxu0 0.0
    %6252 = vmatprep.subr.mxu0 0.0
    %6253 = vmatpush1.msra.mxu0 0.0
    %6254 = vmatprep.subr.mxu0 0.0
    %6255 = vmatpush1.msra.mxu0 0.0
    %6256 = vmatprep.subr.mxu0 0.0
    %6257 = vmatpush1.msra.mxu0 0.0
    %6258 = vmatprep.subr.mxu0 0.0
    %6259 = vmatpush1.msra.mxu0 0.0
    %6260 = vmatprep.subr.mxu0 0.0
    %6261 = vmatpush1.msra.mxu0 0.0
    %6262 = vmatprep.subr.mxu0 0.0
    %6263 = vmatpush1.msra.mxu0 0.0
    %6264 = vmatprep.subr.mxu0 0.0
    %6265 = vmatpush1.msra.mxu0 0.0
    %6266 = vmatprep.subr.mxu0 0.0
    %6267 = vmatpush1.msra.mxu0 0.0
    %6268 = vmatprep.subr.mxu0 0.0
    %6269 = vmatpush1.msra.mxu0 0.0
    %6270 = vmatprep.subr.mxu0 0.0
    %6271 = vmatpush1.msra.mxu0 0.0
    %6272 = vmatprep.subr.mxu0 0.0
    %6273 = vmatpush1.msra.mxu0 0.0
    %6274 = vmatprep.subr.mxu0 0.0
    %6275 = vmatpush1.msra.mxu0 0.0
    %6276 = vmatprep.subr.mxu0 0.0
    %6277 = vmatpush1.msra.mxu0 0.0
    %6278 = vmatprep.subr.mxu0 0.0
    %6279 = vmatpush1.msra.mxu0 0.0
    %6280 = vmatprep.subr.mxu0 0.0
    %6281 = vmatpush1.msra.mxu0 0.0
    %6282 = vmatprep.subr.mxu0 0.0
    %6283 = vmatpush1.msra.mxu0 0.0
    %6284 = vmatprep.subr.mxu0 0.0
    %6285 = vmatpush1.msra.mxu0 0.0
    %6286 = vmatprep.mubr.f32.mxu0 0.0
    %6287 = vmatmul.mubr.f32.gmra.mrb[0].mxu0 %v6211
    %v6288 = vpop.f32.mrb[0].mxu0
    %v6289 = vadd.f32 0.0, %v6288
    %v6290 = vpop.f32.mrb[0].mxu0
    %v6291 = vadd.f32 0.0, %v6290
    %6292 = vmatprep.mubr.f32.mxu0 0.0
    %6293 = vmatmul.mubr.f32.gmra.mrb[0].mxu0 %v6214
    %v6294 = vpop.f32.mrb[0].mxu0
    %v6295 = vadd.f32 0.0, %v6294
    %v6296 = vpop.f32.mrb[0].mxu0
    %v6297 = vadd.f32 0.0, %v6296
    %6298 = vmatprep.mubr.f32.mxu0 0.0
    %6299 = vmatmul.mubr.f32.gmra.mrb[0].mxu0 %v6217
    %v6300 = vpop.f32.mrb[0].mxu0
    %v6301 = vadd.f32 0.0, %v6300
    %v6302 = vpop.f32.mrb[0].mxu0
    %v6303 = vadd.f32 0.0, %v6302
    %6304 = vmatprep.mubr.f32.mxu0 0.0
    %6305 = vmatmul.mubr.f32.gmra.mrb[0].mxu0 %v6220
    %v6306 = vpop.f32.mrb[0].mxu0
    %v6307 = vadd.f32 0.0, %v6306
    %v6308 = vpop.f32.mrb[0].mxu0
    %v6309 = vadd.f32 0.0, %v6308
    %6310 = vdwg.mxu0
    %v6311 = vadd.f32 %v6177, %v6289
    %v6312 = vadd.f32 %v6178, %v6291
    %v6313 = vadd.f32 %v6179, %v6295
    %v6314 = vadd.f32 %v6180, %v6297
    %v6315 = vadd.f32 %v6181, %v6301
    %v6316 = vadd.f32 %v6182, %v6303
    %v6317 = vadd.f32 %v6183, %v6307
    %v6318 = vadd.f32 %v6184, %v6309
    %s6319 = scalar_lea.vmem %s6, 384
    %v6320 = vld [vmem:[%s6319] sm:$0xff]
    %v6321 = vld [vmem:[%s6319 + $0x8] sm:$0xff]
    %v6322 = vld [vmem:[%s6319 + $0x10] sm:$0xff]
    %v6323 = vld [vmem:[%s6319 + $0x18] sm:$0xff]
    %6324 = vrot.lane.b32.xlu0 %v4720, 126
    %v6325 = vpop.permute.xlu0 %6324
    %6326 = vrot.lane.b32.xlu0 %v4721, 126
    %v6327 = vpop.permute.xlu0 %6326
    %6328 = vrot.lane.b32.xlu0 %v4722, 126
    %v6329 = vpop.permute.xlu0 %6328
    %6330 = vrot.lane.b32.xlu0 %v4723, 126
    %v6331 = vpop.permute.xlu0 %6330
    %6332 = vrot.lane.b32.xlu0 %v4724, 126
    %v6333 = vpop.permute.xlu0 %6332
    %6334 = vrot.lane.b32.xlu0 %v4725, 126
    %v6335 = vpop.permute.xlu0 %6334
    %v6336 = vsel %vm3860, %v6325, %v6327
    %v6337 = vsel %vm3860, %v6327, %v6329
    %v6338 = vsel %vm3860, %v6331, %v6333
    %v6339 = vsel %vm3860, %v6333, %v6335
    %v6345 = vsel %vm2269, %v6320, 0
    %v6348 = vsel %vm2269, %v6321, 0
    %v6351 = vsel %vm2269, %v6322, 0
    %v6354 = vsel %vm2269, %v6323, 0
    %6356 = vmatprep.subr.mxu0 %v6337
    %6357 = vmatpush1.msra.mxu0 %v6336
    %6358 = vmatprep.subr.mxu0 %v6339
    %6359 = vmatpush1.msra.mxu0 %v6338
    %6360 = vmatprep.subr.mxu0 0.0
    %6361 = vmatpush1.msra.mxu0 0.0
    %6362 = vmatprep.subr.mxu0 0.0
    %6363 = vmatpush1.msra.mxu0 0.0
    %6364 = vmatprep.subr.mxu0 0.0
    %6365 = vmatpush1.msra.mxu0 0.0
    %6366 = vmatprep.subr.mxu0 0.0
    %6367 = vmatpush1.msra.mxu0 0.0
    %6368 = vmatprep.subr.mxu0 0.0
    %6369 = vmatpush1.msra.mxu0 0.0
    %6370 = vmatprep.subr.mxu0 0.0
    %6371 = vmatpush1.msra.mxu0 0.0
    %6372 = vmatprep.subr.mxu0 0.0
    %6373 = vmatpush1.msra.mxu0 0.0
    %6374 = vmatprep.subr.mxu0 0.0
    %6375 = vmatpush1.msra.mxu0 0.0
    %6376 = vmatprep.subr.mxu0 0.0
    %6377 = vmatpush1.msra.mxu0 0.0
    %6378 = vmatprep.subr.mxu0 0.0
    %6379 = vmatpush1.msra.mxu0 0.0
    %6380 = vmatprep.subr.mxu0 0.0
    %6381 = vmatpush1.msra.mxu0 0.0
    %6382 = vmatprep.subr.mxu0 0.0
    %6383 = vmatpush1.msra.mxu0 0.0
    %6384 = vmatprep.subr.mxu0 0.0
    %6385 = vmatpush1.msra.mxu0 0.0
    %6386 = vmatprep.subr.mxu0 0.0
    %6387 = vmatpush1.msra.mxu0 0.0
    %6388 = vmatprep.subr.mxu0 0.0
    %6389 = vmatpush1.msra.mxu0 0.0
    %6390 = vmatprep.subr.mxu0 0.0
    %6391 = vmatpush1.msra.mxu0 0.0
    %6392 = vmatprep.subr.mxu0 0.0
    %6393 = vmatpush1.msra.mxu0 0.0
    %6394 = vmatprep.subr.mxu0 0.0
    %6395 = vmatpush1.msra.mxu0 0.0
    %6396 = vmatprep.subr.mxu0 0.0
    %6397 = vmatpush1.msra.mxu0 0.0
    %6398 = vmatprep.subr.mxu0 0.0
    %6399 = vmatpush1.msra.mxu0 0.0
    %6400 = vmatprep.subr.mxu0 0.0
    %6401 = vmatpush1.msra.mxu0 0.0
    %6402 = vmatprep.subr.mxu0 0.0
    %6403 = vmatpush1.msra.mxu0 0.0
    %6404 = vmatprep.subr.mxu0 0.0
    %6405 = vmatpush1.msra.mxu0 0.0
    %6406 = vmatprep.subr.mxu0 0.0
    %6407 = vmatpush1.msra.mxu0 0.0
    %6408 = vmatprep.subr.mxu0 0.0
    %6409 = vmatpush1.msra.mxu0 0.0
    %6410 = vmatprep.subr.mxu0 0.0
    %6411 = vmatpush1.msra.mxu0 0.0
    %6412 = vmatprep.subr.mxu0 0.0
    %6413 = vmatpush1.msra.mxu0 0.0
    %6414 = vmatprep.subr.mxu0 0.0
    %6415 = vmatpush1.msra.mxu0 0.0
    %6416 = vmatprep.subr.mxu0 0.0
    %6417 = vmatpush1.msra.mxu0 0.0
    %6418 = vmatprep.subr.mxu0 0.0
    %6419 = vmatpush1.msra.mxu0 0.0
    %6420 = vmatprep.mubr.f32.mxu0 0.0
    %6421 = vmatmul.mubr.f32.gmra.mrb[0].mxu0 %v6345
    %v6422 = vpop.f32.mrb[0].mxu0
    %v6423 = vadd.f32 0.0, %v6422
    %v6424 = vpop.f32.mrb[0].mxu0
    %v6425 = vadd.f32 0.0, %v6424
    %6426 = vmatprep.mubr.f32.mxu0 0.0
    %6427 = vmatmul.mubr.f32.gmra.mrb[0].mxu0 %v6348
    %v6428 = vpop.f32.mrb[0].mxu0
    %v6429 = vadd.f32 0.0, %v6428
    %v6430 = vpop.f32.mrb[0].mxu0
    %v6431 = vadd.f32 0.0, %v6430
    %6432 = vmatprep.mubr.f32.mxu0 0.0
    %6433 = vmatmul.mubr.f32.gmra.mrb[0].mxu0 %v6351
    %v6434 = vpop.f32.mrb[0].mxu0
    %v6435 = vadd.f32 0.0, %v6434
    %v6436 = vpop.f32.mrb[0].mxu0
    %v6437 = vadd.f32 0.0, %v6436
    %6438 = vmatprep.mubr.f32.mxu0 0.0
    %6439 = vmatmul.mubr.f32.gmra.mrb[0].mxu0 %v6354
    %v6440 = vpop.f32.mrb[0].mxu0
    %v6441 = vadd.f32 0.0, %v6440
    %v6442 = vpop.f32.mrb[0].mxu0
    %v6443 = vadd.f32 0.0, %v6442
    %6444 = vdwg.mxu0
    %v6445 = vadd.f32 %v6311, %v6423
    %v6446 = vadd.f32 %v6312, %v6425
    %v6447 = vadd.f32 %v6313, %v6429
    %v6448 = vadd.f32 %v6314, %v6431
    %v6449 = vadd.f32 %v6315, %v6435
    %v6450 = vadd.f32 %v6316, %v6437
    %v6451 = vadd.f32 %v6317, %v6441
    %v6452 = vadd.f32 %v6318, %v6443
    %s6453 = scalar_lea.vmem %s6, 416
    %v6454 = vld [vmem:[%s6453] sm:$0xff]
    %v6455 = vld [vmem:[%s6453 + $0x8] sm:$0xff]
    %v6456 = vld [vmem:[%s6453 + $0x10] sm:$0xff]
    %v6457 = vld [vmem:[%s6453 + $0x18] sm:$0xff]
    %6458 = vrot.lane.b32.xlu0 %v4720, 127
    %v6459 = vpop.permute.xlu0 %6458
    %6460 = vrot.lane.b32.xlu0 %v4721, 127
    %v6461 = vpop.permute.xlu0 %6460
    %6462 = vrot.lane.b32.xlu0 %v4722, 127
    %v6463 = vpop.permute.xlu0 %6462
    %6464 = vrot.lane.b32.xlu0 %v4723, 127
    %v6465 = vpop.permute.xlu0 %6464
    %6466 = vrot.lane.b32.xlu0 %v4724, 127
    %v6467 = vpop.permute.xlu0 %6466
    %6468 = vrot.lane.b32.xlu0 %v4725, 127
    %v6469 = vpop.permute.xlu0 %6468
    %v6470 = vsel %vm3995, %v6459, %v6461
    %v6471 = vsel %vm3995, %v6461, %v6463
    %v6472 = vsel %vm3995, %v6465, %v6467
    %v6473 = vsel %vm3995, %v6467, %v6469
    %v6479 = vsel %vm2269, %v6454, 0
    %v6482 = vsel %vm2269, %v6455, 0
    %v6485 = vsel %vm2269, %v6456, 0
    %v6488 = vsel %vm2269, %v6457, 0
    %6490 = vmatprep.subr.mxu0 %v6471
    %6491 = vmatpush1.msra.mxu0 %v6470
    %6492 = vmatprep.subr.mxu0 %v6473
    %6493 = vmatpush1.msra.mxu0 %v6472
    %6494 = vmatprep.subr.mxu0 0.0
    %6495 = vmatpush1.msra.mxu0 0.0
    %6496 = vmatprep.subr.mxu0 0.0
    %6497 = vmatpush1.msra.mxu0 0.0
    %6498 = vmatprep.subr.mxu0 0.0
    %6499 = vmatpush1.msra.mxu0 0.0
    %6500 = vmatprep.subr.mxu0 0.0
    %6501 = vmatpush1.msra.mxu0 0.0
    %6502 = vmatprep.subr.mxu0 0.0
    %6503 = vmatpush1.msra.mxu0 0.0
    %6504 = vmatprep.subr.mxu0 0.0
    %6505 = vmatpush1.msra.mxu0 0.0
    %6506 = vmatprep.subr.mxu0 0.0
    %6507 = vmatpush1.msra.mxu0 0.0
    %6508 = vmatprep.subr.mxu0 0.0
    %6509 = vmatpush1.msra.mxu0 0.0
    %6510 = vmatprep.subr.mxu0 0.0
    %6511 = vmatpush1.msra.mxu0 0.0
    %6512 = vmatprep.subr.mxu0 0.0
    %6513 = vmatpush1.msra.mxu0 0.0
    %6514 = vmatprep.subr.mxu0 0.0
    %6515 = vmatpush1.msra.mxu0 0.0
    %6516 = vmatprep.subr.mxu0 0.0
    %6517 = vmatpush1.msra.mxu0 0.0
    %6518 = vmatprep.subr.mxu0 0.0
    %6519 = vmatpush1.msra.mxu0 0.0
    %6520 = vmatprep.subr.mxu0 0.0
    %6521 = vmatpush1.msra.mxu0 0.0
    %6522 = vmatprep.subr.mxu0 0.0
    %6523 = vmatpush1.msra.mxu0 0.0
    %6524 = vmatprep.subr.mxu0 0.0
    %6525 = vmatpush1.msra.mxu0 0.0
    %6526 = vmatprep.subr.mxu0 0.0
    %6527 = vmatpush1.msra.mxu0 0.0
    %6528 = vmatprep.subr.mxu0 0.0
    %6529 = vmatpush1.msra.mxu0 0.0
    %6530 = vmatprep.subr.mxu0 0.0
    %6531 = vmatpush1.msra.mxu0 0.0
    %6532 = vmatprep.subr.mxu0 0.0
    %6533 = vmatpush1.msra.mxu0 0.0
    %6534 = vmatprep.subr.mxu0 0.0
    %6535 = vmatpush1.msra.mxu0 0.0
    %6536 = vmatprep.subr.mxu0 0.0
    %6537 = vmatpush1.msra.mxu0 0.0
    %6538 = vmatprep.subr.mxu0 0.0
    %6539 = vmatpush1.msra.mxu0 0.0
    %6540 = vmatprep.subr.mxu0 0.0
    %6541 = vmatpush1.msra.mxu0 0.0
    %6542 = vmatprep.subr.mxu0 0.0
    %6543 = vmatpush1.msra.mxu0 0.0
    %6544 = vmatprep.subr.mxu0 0.0
    %6545 = vmatpush1.msra.mxu0 0.0
    %6546 = vmatprep.subr.mxu0 0.0
    %6547 = vmatpush1.msra.mxu0 0.0
    %6548 = vmatprep.subr.mxu0 0.0
    %6549 = vmatpush1.msra.mxu0 0.0
    %6550 = vmatprep.subr.mxu0 0.0
    %6551 = vmatpush1.msra.mxu0 0.0
    %6552 = vmatprep.subr.mxu0 0.0
    %6553 = vmatpush1.msra.mxu0 0.0
    %6554 = vmatprep.mubr.f32.mxu0 0.0
    %6555 = vmatmul.mubr.f32.gmra.mrb[0].mxu0 %v6479
    %v6556 = vpop.f32.mrb[0].mxu0
    %v6557 = vadd.f32 0.0, %v6556
    %v6558 = vpop.f32.mrb[0].mxu0
    %v6559 = vadd.f32 0.0, %v6558
    %6560 = vmatprep.mubr.f32.mxu0 0.0
    %6561 = vmatmul.mubr.f32.gmra.mrb[0].mxu0 %v6482
    %v6562 = vpop.f32.mrb[0].mxu0
    %v6563 = vadd.f32 0.0, %v6562
    %v6564 = vpop.f32.mrb[0].mxu0
    %v6565 = vadd.f32 0.0, %v6564
    %6566 = vmatprep.mubr.f32.mxu0 0.0
    %6567 = vmatmul.mubr.f32.gmra.mrb[0].mxu0 %v6485
    %v6568 = vpop.f32.mrb[0].mxu0
    %v6569 = vadd.f32 0.0, %v6568
    %v6570 = vpop.f32.mrb[0].mxu0
    %v6571 = vadd.f32 0.0, %v6570
    %6572 = vmatprep.mubr.f32.mxu0 0.0
    %6573 = vmatmul.mubr.f32.gmra.mrb[0].mxu0 %v6488
    %v6574 = vpop.f32.mrb[0].mxu0
    %v6575 = vadd.f32 0.0, %v6574
    %v6576 = vpop.f32.mrb[0].mxu0
    %v6577 = vadd.f32 0.0, %v6576
    %6578 = vdwg.mxu0
    %v6579 = vadd.f32 %v6445, %v6557
    %v6580 = vadd.f32 %v6446, %v6559
    %v6581 = vadd.f32 %v6447, %v6563
    %v6582 = vadd.f32 %v6448, %v6565
    %v6583 = vadd.f32 %v6449, %v6569
    %v6584 = vadd.f32 %v6450, %v6571
    %v6585 = vadd.f32 %v6451, %v6575
    %v6586 = vadd.f32 %v6452, %v6577
    %s6587 = scalar_lea.vmem %s6, 448
    %v6588 = vld [vmem:[%s6587] sm:$0xff]
    %v6589 = vld [vmem:[%s6587 + $0x8] sm:$0xff]
    %v6590 = vld [vmem:[%s6587 + $0x10] sm:$0xff]
    %v6591 = vld [vmem:[%s6587 + $0x18] sm:$0xff]
    %v6592 = vld [vmem:[#allocation3] sm:$0xff]
    %v6593 = vld [vmem:[#allocation3 + $0x8] sm:$0xff]
    %v6594 = vld [vmem:[#allocation3 + $0x18] sm:$0xff]
    %v6595 = vld [vmem:[#allocation3 + $0x20] sm:$0xff]
    %v6597 = vsel %vm2269, %v6588, 0
    %v6600 = vsel %vm2269, %v6589, 0
    %v6603 = vsel %vm2269, %v6590, 0
    %v6606 = vsel %vm2269, %v6591, 0
    %6608 = vmatprep.subr.mxu0 %v6593
    %6609 = vmatpush1.msra.mxu0 %v6592
    %6610 = vmatprep.subr.mxu0 %v6595
    %6611 = vmatpush1.msra.mxu0 %v6594
    %6612 = vmatprep.subr.mxu0 0.0
    %6613 = vmatpush1.msra.mxu0 0.0
    %6614 = vmatprep.subr.mxu0 0.0
    %6615 = vmatpush1.msra.mxu0 0.0
    %6616 = vmatprep.subr.mxu0 0.0
    %6617 = vmatpush1.msra.mxu0 0.0
    %6618 = vmatprep.subr.mxu0 0.0
    %6619 = vmatpush1.msra.mxu0 0.0
    %6620 = vmatprep.subr.mxu0 0.0
    %6621 = vmatpush1.msra.mxu0 0.0
    %6622 = vmatprep.subr.mxu0 0.0
    %6623 = vmatpush1.msra.mxu0 0.0
    %6624 = vmatprep.subr.mxu0 0.0
    %6625 = vmatpush1.msra.mxu0 0.0
    %6626 = vmatprep.subr.mxu0 0.0
    %6627 = vmatpush1.msra.mxu0 0.0
    %6628 = vmatprep.subr.mxu0 0.0
    %6629 = vmatpush1.msra.mxu0 0.0
    %6630 = vmatprep.subr.mxu0 0.0
    %6631 = vmatpush1.msra.mxu0 0.0
    %6632 = vmatprep.subr.mxu0 0.0
    %6633 = vmatpush1.msra.mxu0 0.0
    %6634 = vmatprep.subr.mxu0 0.0
    %6635 = vmatpush1.msra.mxu0 0.0
    %6636 = vmatprep.subr.mxu0 0.0
    %6637 = vmatpush1.msra.mxu0 0.0
    %6638 = vmatprep.subr.mxu0 0.0
    %6639 = vmatpush1.msra.mxu0 0.0
    %6640 = vmatprep.subr.mxu0 0.0
    %6641 = vmatpush1.msra.mxu0 0.0
    %6642 = vmatprep.subr.mxu0 0.0
    %6643 = vmatpush1.msra.mxu0 0.0
    %6644 = vmatprep.subr.mxu0 0.0
    %6645 = vmatpush1.msra.mxu0 0.0
    %6646 = vmatprep.subr.mxu0 0.0
    %6647 = vmatpush1.msra.mxu0 0.0
    %6648 = vmatprep.subr.mxu0 0.0
    %6649 = vmatpush1.msra.mxu0 0.0
    %6650 = vmatprep.subr.mxu0 0.0
    %6651 = vmatpush1.msra.mxu0 0.0
    %6652 = vmatprep.subr.mxu0 0.0
    %6653 = vmatpush1.msra.mxu0 0.0
    %6654 = vmatprep.subr.mxu0 0.0
    %6655 = vmatpush1.msra.mxu0 0.0
    %6656 = vmatprep.subr.mxu0 0.0
    %6657 = vmatpush1.msra.mxu0 0.0
    %6658 = vmatprep.subr.mxu0 0.0
    %6659 = vmatpush1.msra.mxu0 0.0
    %6660 = vmatprep.subr.mxu0 0.0
    %6661 = vmatpush1.msra.mxu0 0.0
    %6662 = vmatprep.subr.mxu0 0.0
    %6663 = vmatpush1.msra.mxu0 0.0
    %6664 = vmatprep.subr.mxu0 0.0
    %6665 = vmatpush1.msra.mxu0 0.0
    %6666 = vmatprep.subr.mxu0 0.0
    %6667 = vmatpush1.msra.mxu0 0.0
    %6668 = vmatprep.subr.mxu0 0.0
    %6669 = vmatpush1.msra.mxu0 0.0
    %6670 = vmatprep.subr.mxu0 0.0
    %6671 = vmatpush1.msra.mxu0 0.0
    %6672 = vmatprep.mubr.f32.mxu0 0.0
    %6673 = vmatmul.mubr.f32.gmra.mrb[0].mxu0 %v6597
    %v6674 = vpop.f32.mrb[0].mxu0
    %v6675 = vadd.f32 0.0, %v6674
    %v6676 = vpop.f32.mrb[0].mxu0
    %v6677 = vadd.f32 0.0, %v6676
    %6678 = vmatprep.mubr.f32.mxu0 0.0
    %6679 = vmatmul.mubr.f32.gmra.mrb[0].mxu0 %v6600
    %v6680 = vpop.f32.mrb[0].mxu0
    %v6681 = vadd.f32 0.0, %v6680
    %v6682 = vpop.f32.mrb[0].mxu0
    %v6683 = vadd.f32 0.0, %v6682
    %6684 = vmatprep.mubr.f32.mxu0 0.0
    %6685 = vmatmul.mubr.f32.gmra.mrb[0].mxu0 %v6603
    %v6686 = vpop.f32.mrb[0].mxu0
    %v6687 = vadd.f32 0.0, %v6686
    %v6688 = vpop.f32.mrb[0].mxu0
    %v6689 = vadd.f32 0.0, %v6688
    %6690 = vmatprep.mubr.f32.mxu0 0.0
    %6691 = vmatmul.mubr.f32.gmra.mrb[0].mxu0 %v6606
    %v6692 = vpop.f32.mrb[0].mxu0
    %v6693 = vadd.f32 0.0, %v6692
    %v6694 = vpop.f32.mrb[0].mxu0
    %v6695 = vadd.f32 0.0, %v6694
    %6696 = vdwg.mxu0
    %v6697 = vadd.f32 %v6579, %v6675
    %v6698 = vadd.f32 %v6580, %v6677
    %v6699 = vadd.f32 %v6581, %v6681
    %v6700 = vadd.f32 %v6582, %v6683
    %v6701 = vadd.f32 %v6583, %v6687
    %v6702 = vadd.f32 %v6584, %v6689
    %v6703 = vadd.f32 %v6585, %v6693
    %v6704 = vadd.f32 %v6586, %v6695
    %v6705 = vld [vmem:[%s7] sm:$0xff]
    %v6706 = vld [vmem:[%s7 + $0x8] sm:$0xff]
    %v6707 = vld [vmem:[%s7 + $0x10] sm:$0xff]
    %v6708 = vld [vmem:[%s7 + $0x18] sm:$0xff]
    %6710 = vset.pattern.permute.xlu0 0
    %6711 = vperm.xlu0 %6710, %v6705
    %v6712 = vpop.permute.xlu0 %6711
    %6715 = vset.pattern.permute.xlu0 0
    %6716 = vperm.xlu0 %6715, %v6706
    %v6717 = vpop.permute.xlu0 %6716
    %6720 = vset.pattern.permute.xlu0 0
    %6721 = vperm.xlu0 %6720, %v6707
    %v6722 = vpop.permute.xlu0 %6721
    %6725 = vset.pattern.permute.xlu0 0
    %6726 = vperm.xlu0 %6725, %v6708
    %v6727 = vpop.permute.xlu0 %6726
    %v6729 = vadd.f32 %v6697, %v6712
    %v6730 = vadd.f32 %v6698, %v6712
    %v6731 = vadd.f32 %v6699, %v6717
    %v6732 = vadd.f32 %v6700, %v6717
    %v6733 = vadd.f32 %v6701, %v6722
    %v6734 = vadd.f32 %v6702, %v6722
    %v6735 = vadd.f32 %v6703, %v6727
    %v6736 = vadd.f32 %v6704, %v6727
    %vm6737 = vcmp.ge.f32.partialorder %v6729, 0.0
    %vm6738 = vcmp.ge.f32.partialorder %v6730, 0.0
    %vm6739 = vcmp.ge.f32.partialorder %v6731, 0.0
    %vm6740 = vcmp.ge.f32.partialorder %v6732, 0.0
    %vm6741 = vcmp.ge.f32.partialorder %v6733, 0.0
    %vm6742 = vcmp.ge.f32.partialorder %v6734, 0.0
    %vm6743 = vcmp.ge.f32.partialorder %v6735, 0.0
    %vm6744 = vcmp.ge.f32.partialorder %v6736, 0.0
    %s6746 = vtos %v89
    %v6747 = vstv %s6746
    %v6749 = vmul.f32 %v6747, %v6729
    %v6750 = vmul.f32 %v6747, %v6730
    %v6751 = vmul.f32 %v6747, %v6731
    %v6752 = vmul.f32 %v6747, %v6732
    %v6753 = vmul.f32 %v6747, %v6733
    %v6754 = vmul.f32 %v6747, %v6734
    %v6755 = vmul.f32 %v6747, %v6735
    %v6756 = vmul.f32 %v6747, %v6736
    %v6757 = vsel %vm6737, %v6729, %v6749
    %v6758 = vsel %vm6738, %v6730, %v6750
    %v6759 = vsel %vm6739, %v6731, %v6751
    %v6760 = vsel %vm6740, %v6732, %v6752
    %v6761 = vsel %vm6741, %v6733, %v6753
    %v6762 = vsel %vm6742, %v6734, %v6754
    %v6763 = vsel %vm6743, %v6735, %v6755
    %v6764 = vsel %vm6744, %v6736, %v6756
    %v6765 = vadd.s32 %v4292, 56
    %v6766 = vadd.s32 %v4292, 64
    %v6767 = vadd.s32 %v4292, 72
    %v6768 = vadd.s32 %v4292, 80
    %v6769 = vadd.s32 %v4292, 88
    %v6770 = vadd.s32 %v4292, 96
    %v6771 = vadd.s32 %v4292, 104
    %v6772 = vadd.s32 %v4292, 112
    %v6773 = vadd.s32 %v4292, 120
    %v6774 = vadd.s32 %v4300, 128
    %v6775 = vmul.u32 %v6765, 2
    %v6776 = vmul.u32 %v6766, 2
    %v6777 = vmul.u32 %v6767, 2
    %v6778 = vmul.u32 %v6768, 2
    %v6779 = vmul.u32 %v6769, 2
    %v6780 = vmul.u32 %v6770, 2
    %v6781 = vmul.u32 %v6771, 2
    %v6782 = vmul.u32 %v6772, 2
    %v6783 = vmul.u32 %v6773, 2
    %v6784 = vsub.s32 %v6774, %v4301
    %v6785 = vsub.s32 %v6774, %v4302
    %v6786 = vsub.s32 %v6774, %v4303
    %v6787 = vsub.s32 %v6774, %v4304
    %v6788 = vsub.s32 %v6774, %v4305
    %v6789 = vsub.s32 %v6774, %v4306
    %v6790 = vsub.s32 %v6774, %v4307
    %v6791 = vsub.s32 %v4300, %v6775
    %v6792 = vsub.s32 %v6774, %v6775
    %v6793 = vsub.s32 %v4300, %v6776
    %v6794 = vsub.s32 %v6774, %v6776
    %v6795 = vsub.s32 %v4300, %v6777
    %v6796 = vsub.s32 %v6774, %v6777
    %v6797 = vsub.s32 %v4300, %v6778
    %v6798 = vsub.s32 %v6774, %v6778
    %v6799 = vsub.s32 %v4300, %v6779
    %v6800 = vsub.s32 %v6774, %v6779
    %v6801 = vsub.s32 %v4300, %v6780
    %v6802 = vsub.s32 %v6774, %v6780
    %v6803 = vsub.s32 %v4300, %v6781
    %v6804 = vsub.s32 %v6774, %v6781
    %v6805 = vsub.s32 %v4300, %v6782
    %v6806 = vsub.s32 %v6774, %v6782
    %v6807 = vsub.s32 %v4300, %v6783
    %v6808 = vsub.s32 %v6774, %v6783
    %vm6809 = vcmp.eq.s32.totalorder %v6784, 0
    %vm6810 = vcmp.eq.s32.totalorder %v6785, 0
    %vm6811 = vcmp.eq.s32.totalorder %v6786, 0
    %vm6812 = vcmp.eq.s32.totalorder %v6787, 0
    %vm6813 = vcmp.eq.s32.totalorder %v6788, 0
    %vm6814 = vcmp.eq.s32.totalorder %v6789, 0
    %vm6815 = vcmp.eq.s32.totalorder %v6790, 0
    %vm6816 = vcmp.eq.s32.totalorder %v6791, 0
    %vm6817 = vcmp.eq.s32.totalorder %v6792, 0
    %vm6818 = vcmp.eq.s32.totalorder %v6793, 0
    %vm6819 = vcmp.eq.s32.totalorder %v6794, 0
    %vm6820 = vcmp.eq.s32.totalorder %v6795, 0
    %vm6821 = vcmp.eq.s32.totalorder %v6796, 0
    %vm6822 = vcmp.eq.s32.totalorder %v6797, 0
    %vm6823 = vcmp.eq.s32.totalorder %v6798, 0
    %vm6824 = vcmp.eq.s32.totalorder %v6799, 0
    %vm6825 = vcmp.eq.s32.totalorder %v6800, 0
    %vm6826 = vcmp.eq.s32.totalorder %v6801, 0
    %vm6827 = vcmp.eq.s32.totalorder %v6802, 0
    %vm6828 = vcmp.eq.s32.totalorder %v6803, 0
    %vm6829 = vcmp.eq.s32.totalorder %v6804, 0
    %vm6830 = vcmp.eq.s32.totalorder %v6805, 0
    %vm6831 = vcmp.eq.s32.totalorder %v6806, 0
    %vm6832 = vcmp.eq.s32.totalorder %v6807, 0
    %vm6833 = vcmp.eq.s32.totalorder %v6808, 0
    %v6834 = vsel %vm6809, 1, 0
    %v6835 = vsel %vm6810, 1, 0
    %v6836 = vsel %vm6811, 1, 0
    %v6837 = vsel %vm6812, 1, 0
    %v6838 = vsel %vm6813, 1, 0
    %v6839 = vsel %vm6814, 1, 0
    %v6840 = vsel %vm6815, 1, 0
    %v6841 = vsel %vm6816, 1, 0
    %v6842 = vsel %vm6817, 1, 0
    %v6843 = vsel %vm6818, 1, 0
    %v6844 = vsel %vm6819, 1, 0
    %v6845 = vsel %vm6820, 1, 0
    %v6846 = vsel %vm6821, 1, 0
    %v6847 = vsel %vm6822, 1, 0
    %v6848 = vsel %vm6823, 1, 0
    %v6849 = vsel %vm6824, 1, 0
    %v6850 = vsel %vm6825, 1, 0
    %v6851 = vsel %vm6826, 1, 0
    %v6852 = vsel %vm6827, 1, 0
    %v6853 = vsel %vm6828, 1, 0
    %v6854 = vsel %vm6829, 1, 0
    %v6855 = vsel %vm6830, 1, 0
    %v6856 = vsel %vm6831, 1, 0
    %v6857 = vsel %vm6832, 1, 0
    %v6858 = vsel %vm6833, 1, 0
    %v6859 = vcvt.s32.f32 %v6834
    %v6860 = vcvt.s32.f32 %v6835
    %v6861 = vcvt.s32.f32 %v6836
    %v6862 = vcvt.s32.f32 %v6837
    %v6863 = vcvt.s32.f32 %v6838
    %v6864 = vcvt.s32.f32 %v6839
    %v6865 = vcvt.s32.f32 %v6840
    %v6866 = vcvt.s32.f32 %v6841
    %v6867 = vcvt.s32.f32 %v6842
    %v6868 = vcvt.s32.f32 %v6843
    %v6869 = vcvt.s32.f32 %v6844
    %v6870 = vcvt.s32.f32 %v6845
    %v6871 = vcvt.s32.f32 %v6846
    %v6872 = vcvt.s32.f32 %v6847
    %v6873 = vcvt.s32.f32 %v6848
    %v6874 = vcvt.s32.f32 %v6849
    %v6875 = vcvt.s32.f32 %v6850
    %v6876 = vcvt.s32.f32 %v6851
    %v6877 = vcvt.s32.f32 %v6852
    %v6878 = vcvt.s32.f32 %v6853
    %v6879 = vcvt.s32.f32 %v6854
    %v6880 = vcvt.s32.f32 %v6855
    %v6881 = vcvt.s32.f32 %v6856
    %v6882 = vcvt.s32.f32 %v6857
    %v6883 = vcvt.s32.f32 %v6858
    %vm6884 = vcmp.eq.s32.totalorder %v6784, 1
    %vm6885 = vcmp.eq.s32.totalorder %v6785, 1
    %vm6886 = vcmp.eq.s32.totalorder %v6786, 1
    %vm6887 = vcmp.eq.s32.totalorder %v6787, 1
    %vm6888 = vcmp.eq.s32.totalorder %v6788, 1
    %vm6889 = vcmp.eq.s32.totalorder %v6789, 1
    %vm6890 = vcmp.eq.s32.totalorder %v6790, 1
    %vm6891 = vcmp.eq.s32.totalorder %v6791, 1
    %vm6892 = vcmp.eq.s32.totalorder %v6792, 1
    %vm6893 = vcmp.eq.s32.totalorder %v6793, 1
    %vm6894 = vcmp.eq.s32.totalorder %v6794, 1
    %vm6895 = vcmp.eq.s32.totalorder %v6795, 1
    %vm6896 = vcmp.eq.s32.totalorder %v6796, 1
    %vm6897 = vcmp.eq.s32.totalorder %v6797, 1
    %vm6898 = vcmp.eq.s32.totalorder %v6798, 1
    %vm6899 = vcmp.eq.s32.totalorder %v6799, 1
    %vm6900 = vcmp.eq.s32.totalorder %v6800, 1
    %vm6901 = vcmp.eq.s32.totalorder %v6801, 1
    %vm6902 = vcmp.eq.s32.totalorder %v6802, 1
    %vm6903 = vcmp.eq.s32.totalorder %v6803, 1
    %vm6904 = vcmp.eq.s32.totalorder %v6804, 1
    %vm6905 = vcmp.eq.s32.totalorder %v6805, 1
    %vm6906 = vcmp.eq.s32.totalorder %v6806, 1
    %vm6907 = vcmp.eq.s32.totalorder %v6807, 1
    %vm6908 = vcmp.eq.s32.totalorder %v6808, 1
    %v6909 = vsel %vm6884, 1, 0
    %v6910 = vsel %vm6885, 1, 0
    %v6911 = vsel %vm6886, 1, 0
    %v6912 = vsel %vm6887, 1, 0
    %v6913 = vsel %vm6888, 1, 0
    %v6914 = vsel %vm6889, 1, 0
    %v6915 = vsel %vm6890, 1, 0
    %v6916 = vsel %vm6891, 1, 0
    %v6917 = vsel %vm6892, 1, 0
    %v6918 = vsel %vm6893, 1, 0
    %v6919 = vsel %vm6894, 1, 0
    %v6920 = vsel %vm6895, 1, 0
    %v6921 = vsel %vm6896, 1, 0
    %v6922 = vsel %vm6897, 1, 0
    %v6923 = vsel %vm6898, 1, 0
    %v6924 = vsel %vm6899, 1, 0
    %v6925 = vsel %vm6900, 1, 0
    %v6926 = vsel %vm6901, 1, 0
    %v6927 = vsel %vm6902, 1, 0
    %v6928 = vsel %vm6903, 1, 0
    %v6929 = vsel %vm6904, 1, 0
    %v6930 = vsel %vm6905, 1, 0
    %v6931 = vsel %vm6906, 1, 0
    %v6932 = vsel %vm6907, 1, 0
    %v6933 = vsel %vm6908, 1, 0
    %v6934 = vcvt.s32.f32 %v6909
    %v6935 = vcvt.s32.f32 %v6910
    %v6936 = vcvt.s32.f32 %v6911
    %v6937 = vcvt.s32.f32 %v6912
    %v6938 = vcvt.s32.f32 %v6913
    %v6939 = vcvt.s32.f32 %v6914
    %v6940 = vcvt.s32.f32 %v6915
    %v6941 = vcvt.s32.f32 %v6916
    %v6942 = vcvt.s32.f32 %v6917
    %v6943 = vcvt.s32.f32 %v6918
    %v6944 = vcvt.s32.f32 %v6919
    %v6945 = vcvt.s32.f32 %v6920
    %v6946 = vcvt.s32.f32 %v6921
    %v6947 = vcvt.s32.f32 %v6922
    %v6948 = vcvt.s32.f32 %v6923
    %v6949 = vcvt.s32.f32 %v6924
    %v6950 = vcvt.s32.f32 %v6925
    %v6951 = vcvt.s32.f32 %v6926
    %v6952 = vcvt.s32.f32 %v6927
    %v6953 = vcvt.s32.f32 %v6928
    %v6954 = vcvt.s32.f32 %v6929
    %v6955 = vcvt.s32.f32 %v6930
    %v6956 = vcvt.s32.f32 %v6931
    %v6957 = vcvt.s32.f32 %v6932
    %v6958 = vcvt.s32.f32 %v6933
    %6959 = vst [vmem:[#allocation4] sm:$0xff] 0.0
    %6960 = vst [vmem:[#allocation4 + $0x8] sm:$0xff] 0.0
    %6961 = vst [vmem:[#allocation4 + $0x10] sm:$0xff] 0.0
    %6962 = vst [vmem:[#allocation4 + $0x18] sm:$0xff] 0.0
    %6963 = vst [vmem:[#allocation4 + $0x20] sm:$0xff] 0.0
    %6964 = vst [vmem:[#allocation4 + $0x28] sm:$0xff] 0.0
    %6965 = vst [vmem:[#allocation4 + $0x30] sm:$0xff] 0.0
    %6966 = vst [vmem:[#allocation4 + $0x38] sm:$0xff] 0.0
    %6967 = vst [vmem:[#allocation4 + $0x40] sm:$0xff] 0.0
    %6968 = vst [vmem:[#allocation4 + $0x48] sm:$0xff] 0.0
    %v6970 = vsel %vm3320, %v6761, 0
    %v6973 = vsel %vm3320, %v6763, 0
    %vm6975 = vcmask 1041408
    %v6977 = vsel %vm6975, %v6957, 0
    %v6980 = vsel %vm6975, %v6958, 0
    %6982 = vmatprep.subr.mxu0 %v6934
    %6983 = vmatpush1.msra.mxu0 %v4350
    %6984 = vmatprep.subr.mxu0 %v6935
    %6985 = vmatpush1.msra.mxu0 %v4351
    %6986 = vmatprep.subr.mxu0 %v6936
    %6987 = vmatpush1.msra.mxu0 %v4352
    %6988 = vmatprep.subr.mxu0 %v6937
    %6989 = vmatpush1.msra.mxu0 %v4353
    %6990 = vmatprep.subr.mxu0 %v6938
    %6991 = vmatpush1.msra.mxu0 %v4354
    %6992 = vmatprep.subr.mxu0 %v6939
    %6993 = vmatpush1.msra.mxu0 %v4355
    %6994 = vmatprep.subr.mxu0 %v6940
    %6995 = vmatpush1.msra.mxu0 %v4356
    %6996 = vmatprep.subr.mxu0 %v6942
    %6997 = vmatpush1.msra.mxu0 %v6941
    %6998 = vmatprep.subr.mxu0 %v6944
    %6999 = vmatpush1.msra.mxu0 %v6943
    %7000 = vmatprep.subr.mxu0 %v6946
    %7001 = vmatpush1.msra.mxu0 %v6945
    %7002 = vmatprep.subr.mxu0 %v6948
    %7003 = vmatpush1.msra.mxu0 %v6947
    %7004 = vmatprep.subr.mxu0 %v6950
    %7005 = vmatpush1.msra.mxu0 %v6949
    %7006 = vmatprep.subr.mxu0 %v6952
    %7007 = vmatpush1.msra.mxu0 %v6951
    %7008 = vmatprep.subr.mxu0 %v6954
    %7009 = vmatpush1.msra.mxu0 %v6953
    %7010 = vmatprep.subr.mxu0 %v6956
    %7011 = vmatpush1.msra.mxu0 %v6955
    %7012 = vmatprep.subr.mxu0 %v6980
    %7013 = vmatpush1.msra.mxu0 %v6977
    %7014 = vmatprep.subr.mxu0 0.0
    %7015 = vmatpush1.msra.mxu0 0.0
    %7016 = vmatprep.subr.mxu0 0.0
    %7017 = vmatpush1.msra.mxu0 0.0
    %7018 = vmatprep.subr.mxu0 0.0
    %7019 = vmatpush1.msra.mxu0 0.0
    %7020 = vmatprep.subr.mxu0 0.0
    %7021 = vmatpush1.msra.mxu0 0.0
    %7022 = vmatprep.subr.mxu0 0.0
    %7023 = vmatpush1.msra.mxu0 0.0
    %7024 = vmatprep.subr.mxu0 0.0
    %7025 = vmatpush1.msra.mxu0 0.0
    %7026 = vmatprep.subr.mxu0 0.0
    %7027 = vmatpush1.msra.mxu0 0.0
    %7028 = vmatprep.subr.mxu0 0.0
    %7029 = vmatpush1.msra.mxu0 0.0
    %7030 = vmatprep.subr.mxu0 0.0
    %7031 = vmatpush1.msra.mxu0 0.0
    %7032 = vmatprep.subr.mxu0 0.0
    %7033 = vmatpush1.msra.mxu0 0.0
    %7034 = vmatprep.subr.mxu0 0.0
    %7035 = vmatpush1.msra.mxu0 0.0
    %7036 = vmatprep.subr.mxu0 0.0
    %7037 = vmatpush1.msra.mxu0 0.0
    %7038 = vmatprep.subr.mxu0 0.0
    %7039 = vmatpush1.msra.mxu0 0.0
    %7040 = vmatprep.subr.mxu0 0.0
    %7041 = vmatpush1.msra.mxu0 0.0
    %7042 = vmatprep.subr.mxu0 0.0
    %7043 = vmatpush1.msra.mxu0 0.0
    %7044 = vmatprep.subr.mxu0 0.0
    %7045 = vmatpush1.msra.mxu0 0.0
    %7046 = vmatprep.mubr.f32.mxu0 0.0
    %7047 = vmatmul.mubr.f32.gmra.mrb[0].mxu0 %v6970
    %v7048 = vpop.f32.mrb[0].mxu0
    %v7049 = vadd.f32 0.0, %v7048
    %v7050 = vpop.f32.mrb[0].mxu0
    %v7051 = vadd.f32 0.0, %v7050
    %7052 = vmatprep.mubr.f32.mxu0 0.0
    %7053 = vmatmul.mubr.f32.gmra.mrb[0].mxu0 %v6973
    %v7054 = vpop.f32.mrb[0].mxu0
    %v7055 = vadd.f32 0.0, %v7054
    %v7056 = vpop.f32.mrb[0].mxu0
    %v7057 = vadd.f32 0.0, %v7056
    %7058 = vdwg.mxu0
    %v7060 = vsel %vm3320, %v6757, 0
    %v7063 = vsel %vm3320, %v6759, 0
    %v7066 = vsel %vm6975, %v6882, 0
    %v7069 = vsel %vm6975, %v6883, 0
    %7071 = vmatprep.subr.mxu0 %v6859
    %7072 = vmatpush1.msra.mxu0 %v4329
    %7073 = vmatprep.subr.mxu0 %v6860
    %7074 = vmatpush1.msra.mxu0 %v4330
    %7075 = vmatprep.subr.mxu0 %v6861
    %7076 = vmatpush1.msra.mxu0 %v4331
    %7077 = vmatprep.subr.mxu0 %v6862
    %7078 = vmatpush1.msra.mxu0 %v4332
    %7079 = vmatprep.subr.mxu0 %v6863
    %7080 = vmatpush1.msra.mxu0 %v4333
    %7081 = vmatprep.subr.mxu0 %v6864
    %7082 = vmatpush1.msra.mxu0 %v4334
    %7083 = vmatprep.subr.mxu0 %v6865
    %7084 = vmatpush1.msra.mxu0 %v4335
    %7085 = vmatprep.subr.mxu0 %v6867
    %7086 = vmatpush1.msra.mxu0 %v6866
    %7087 = vmatprep.subr.mxu0 %v6869
    %7088 = vmatpush1.msra.mxu0 %v6868
    %7089 = vmatprep.subr.mxu0 %v6871
    %7090 = vmatpush1.msra.mxu0 %v6870
    %7091 = vmatprep.subr.mxu0 %v6873
    %7092 = vmatpush1.msra.mxu0 %v6872
    %7093 = vmatprep.subr.mxu0 %v6875
    %7094 = vmatpush1.msra.mxu0 %v6874
    %7095 = vmatprep.subr.mxu0 %v6877
    %7096 = vmatpush1.msra.mxu0 %v6876
    %7097 = vmatprep.subr.mxu0 %v6879
    %7098 = vmatpush1.msra.mxu0 %v6878
    %7099 = vmatprep.subr.mxu0 %v6881
    %7100 = vmatpush1.msra.mxu0 %v6880
    %7101 = vmatprep.subr.mxu0 %v7069
    %7102 = vmatpush1.msra.mxu0 %v7066
    %7103 = vmatprep.subr.mxu0 0.0
    %7104 = vmatpush1.msra.mxu0 0.0
    %7105 = vmatprep.subr.mxu0 0.0
    %7106 = vmatpush1.msra.mxu0 0.0
    %7107 = vmatprep.subr.mxu0 0.0
    %7108 = vmatpush1.msra.mxu0 0.0
    %7109 = vmatprep.subr.mxu0 0.0
    %7110 = vmatpush1.msra.mxu0 0.0
    %7111 = vmatprep.subr.mxu0 0.0
    %7112 = vmatpush1.msra.mxu0 0.0
    %7113 = vmatprep.subr.mxu0 0.0
    %7114 = vmatpush1.msra.mxu0 0.0
    %7115 = vmatprep.subr.mxu0 0.0
    %7116 = vmatpush1.msra.mxu0 0.0
    %7117 = vmatprep.subr.mxu0 0.0
    %7118 = vmatpush1.msra.mxu0 0.0
    %7119 = vmatprep.subr.mxu0 0.0
    %7120 = vmatpush1.msra.mxu0 0.0
    %7121 = vmatprep.subr.mxu0 0.0
    %7122 = vmatpush1.msra.mxu0 0.0
    %7123 = vmatprep.subr.mxu0 0.0
    %7124 = vmatpush1.msra.mxu0 0.0
    %7125 = vmatprep.subr.mxu0 0.0
    %7126 = vmatpush1.msra.mxu0 0.0
    %7127 = vmatprep.subr.mxu0 0.0
    %7128 = vmatpush1.msra.mxu0 0.0
    %7129 = vmatprep.subr.mxu0 0.0
    %7130 = vmatpush1.msra.mxu0 0.0
    %7131 = vmatprep.subr.mxu0 0.0
    %7132 = vmatpush1.msra.mxu0 0.0
    %7133 = vmatprep.subr.mxu0 0.0
    %7134 = vmatpush1.msra.mxu0 0.0
    %7135 = vmatprep.mubr.f32.mxu0 0.0
    %7136 = vmatmul.mubr.f32.gmra.mrb[0].mxu0 %v7060
    %v7137 = vpop.f32.mrb[0].mxu0
    %v7138 = vadd.f32 %v7049, %v7137
    %v7139 = vpop.f32.mrb[0].mxu0
    %v7140 = vadd.f32 %v7051, %v7139
    %7141 = vmatprep.mubr.f32.mxu0 0.0
    %7142 = vmatmul.mubr.f32.gmra.mrb[0].mxu0 %v7063
    %v7143 = vpop.f32.mrb[0].mxu0
    %v7144 = vadd.f32 %v7055, %v7143
    %v7145 = vpop.f32.mrb[0].mxu0
    %v7146 = vadd.f32 %v7057, %v7145
    %7147 = vdwg.mxu0
    %7152 = vrot.lane.b32.xlu0 %v7138, 6
    %v7153 = vpop.permute.xlu0 %7152
    %7154 = vrot.lane.b32.xlu0 %v7140, 6
    %v7155 = vpop.permute.xlu0 %7154
    %7156 = vrot.lane.b32.xlu0 %v7144, 6
    %v7157 = vpop.permute.xlu0 %7156
    %7158 = vrot.lane.b32.xlu0 %v7146, 6
    %v7159 = vpop.permute.xlu0 %7158
    %vm7160 = vcmask 48128
    %v7161 = vsel %vm7160, %v7153, %v7155
    %v7162 = vsel %vm7160, %v7157, %v7159
    %vm7167 = vcmask 1047600
    %7168 = vst.msk [vmem:[#allocation4] sm:$0xff] %vm7167, %v7153
    %7169 = vst.msk [vmem:[#allocation4 + $0x8] sm:$0xff] %vm3320, %v7161
    %7170 = vst.msk [vmem:[#allocation4 + $0x28] sm:$0xff] %vm7167, %v7157
    %7171 = vst.msk [vmem:[#allocation4 + $0x30] sm:$0xff] %vm3320, %v7162
    %v7173 = vsel %vm3320, %v6762, 0
    %v7176 = vsel %vm3320, %v6764, 0
    %7178 = vmatprep.subr.mxu0 %v6934
    %7179 = vmatpush1.msra.mxu0 %v4350
    %7180 = vmatprep.subr.mxu0 %v6935
    %7181 = vmatpush1.msra.mxu0 %v4351
    %7182 = vmatprep.subr.mxu0 %v6936
    %7183 = vmatpush1.msra.mxu0 %v4352
    %7184 = vmatprep.subr.mxu0 %v6937
    %7185 = vmatpush1.msra.mxu0 %v4353
    %7186 = vmatprep.subr.mxu0 %v6938
    %7187 = vmatpush1.msra.mxu0 %v4354
    %7188 = vmatprep.subr.mxu0 %v6939
    %7189 = vmatpush1.msra.mxu0 %v4355
    %7190 = vmatprep.subr.mxu0 %v6940
    %7191 = vmatpush1.msra.mxu0 %v4356
    %7192 = vmatprep.subr.mxu0 %v6942
    %7193 = vmatpush1.msra.mxu0 %v6941
    %7194 = vmatprep.subr.mxu0 %v6944
    %7195 = vmatpush1.msra.mxu0 %v6943
    %7196 = vmatprep.subr.mxu0 %v6946
    %7197 = vmatpush1.msra.mxu0 %v6945
    %7198 = vmatprep.subr.mxu0 %v6948
    %7199 = vmatpush1.msra.mxu0 %v6947
    %7200 = vmatprep.subr.mxu0 %v6950
    %7201 = vmatpush1.msra.mxu0 %v6949
    %7202 = vmatprep.subr.mxu0 %v6952
    %7203 = vmatpush1.msra.mxu0 %v6951
    %7204 = vmatprep.subr.mxu0 %v6954
    %7205 = vmatpush1.msra.mxu0 %v6953
    %7206 = vmatprep.subr.mxu0 %v6956
    %7207 = vmatpush1.msra.mxu0 %v6955
    %7208 = vmatprep.subr.mxu0 %v6980
    %7209 = vmatpush1.msra.mxu0 %v6977
    %7210 = vmatprep.subr.mxu0 0.0
    %7211 = vmatpush1.msra.mxu0 0.0
    %7212 = vmatprep.subr.mxu0 0.0
    %7213 = vmatpush1.msra.mxu0 0.0
    %7214 = vmatprep.subr.mxu0 0.0
    %7215 = vmatpush1.msra.mxu0 0.0
    %7216 = vmatprep.subr.mxu0 0.0
    %7217 = vmatpush1.msra.mxu0 0.0
    %7218 = vmatprep.subr.mxu0 0.0
    %7219 = vmatpush1.msra.mxu0 0.0
    %7220 = vmatprep.subr.mxu0 0.0
    %7221 = vmatpush1.msra.mxu0 0.0
    %7222 = vmatprep.subr.mxu0 0.0
    %7223 = vmatpush1.msra.mxu0 0.0
    %7224 = vmatprep.subr.mxu0 0.0
    %7225 = vmatpush1.msra.mxu0 0.0
    %7226 = vmatprep.subr.mxu0 0.0
    %7227 = vmatpush1.msra.mxu0 0.0
    %7228 = vmatprep.subr.mxu0 0.0
    %7229 = vmatpush1.msra.mxu0 0.0
    %7230 = vmatprep.subr.mxu0 0.0
    %7231 = vmatpush1.msra.mxu0 0.0
    %7232 = vmatprep.subr.mxu0 0.0
    %7233 = vmatpush1.msra.mxu0 0.0
    %7234 = vmatprep.subr.mxu0 0.0
    %7235 = vmatpush1.msra.mxu0 0.0
    %7236 = vmatprep.subr.mxu0 0.0
    %7237 = vmatpush1.msra.mxu0 0.0
    %7238 = vmatprep.subr.mxu0 0.0
    %7239 = vmatpush1.msra.mxu0 0.0
    %7240 = vmatprep.subr.mxu0 0.0
    %7241 = vmatpush1.msra.mxu0 0.0
    %7242 = vmatprep.mubr.f32.mxu0 0.0
    %7243 = vmatmul.mubr.f32.gmra.mrb[0].mxu0 %v7173
    %v7244 = vpop.f32.mrb[0].mxu0
    %v7245 = vadd.f32 0.0, %v7244
    %v7246 = vpop.f32.mrb[0].mxu0
    %v7247 = vadd.f32 0.0, %v7246
    %7248 = vmatprep.mubr.f32.mxu0 0.0
    %7249 = vmatmul.mubr.f32.gmra.mrb[0].mxu0 %v7176
    %v7250 = vpop.f32.mrb[0].mxu0
    %v7251 = vadd.f32 0.0, %v7250
    %v7252 = vpop.f32.mrb[0].mxu0
    %v7253 = vadd.f32 0.0, %v7252
    %7254 = vdwg.mxu0
    %v7256 = vsel %vm3320, %v6758, 0
    %v7259 = vsel %vm3320, %v6760, 0
    %7261 = vmatprep.subr.mxu0 %v6859
    %7262 = vmatpush1.msra.mxu0 %v4329
    %7263 = vmatprep.subr.mxu0 %v6860
    %7264 = vmatpush1.msra.mxu0 %v4330
    %7265 = vmatprep.subr.mxu0 %v6861
    %7266 = vmatpush1.msra.mxu0 %v4331
    %7267 = vmatprep.subr.mxu0 %v6862
    %7268 = vmatpush1.msra.mxu0 %v4332
    %7269 = vmatprep.subr.mxu0 %v6863
    %7270 = vmatpush1.msra.mxu0 %v4333
    %7271 = vmatprep.subr.mxu0 %v6864
    %7272 = vmatpush1.msra.mxu0 %v4334
    %7273 = vmatprep.subr.mxu0 %v6865
    %7274 = vmatpush1.msra.mxu0 %v4335
    %7275 = vmatprep.subr.mxu0 %v6867
    %7276 = vmatpush1.msra.mxu0 %v6866
    %7277 = vmatprep.subr.mxu0 %v6869
    %7278 = vmatpush1.msra.mxu0 %v6868
    %7279 = vmatprep.subr.mxu0 %v6871
    %7280 = vmatpush1.msra.mxu0 %v6870
    %7281 = vmatprep.subr.mxu0 %v6873
    %7282 = vmatpush1.msra.mxu0 %v6872
    %7283 = vmatprep.subr.mxu0 %v6875
    %7284 = vmatpush1.msra.mxu0 %v6874
    %7285 = vmatprep.subr.mxu0 %v6877
    %7286 = vmatpush1.msra.mxu0 %v6876
    %7287 = vmatprep.subr.mxu0 %v6879
    %7288 = vmatpush1.msra.mxu0 %v6878
    %7289 = vmatprep.subr.mxu0 %v6881
    %7290 = vmatpush1.msra.mxu0 %v6880
    %7291 = vmatprep.subr.mxu0 %v7069
    %7292 = vmatpush1.msra.mxu0 %v7066
    %7293 = vmatprep.subr.mxu0 0.0
    %7294 = vmatpush1.msra.mxu0 0.0
    %7295 = vmatprep.subr.mxu0 0.0
    %7296 = vmatpush1.msra.mxu0 0.0
    %7297 = vmatprep.subr.mxu0 0.0
    %7298 = vmatpush1.msra.mxu0 0.0
    %7299 = vmatprep.subr.mxu0 0.0
    %7300 = vmatpush1.msra.mxu0 0.0
    %7301 = vmatprep.subr.mxu0 0.0
    %7302 = vmatpush1.msra.mxu0 0.0
    %7303 = vmatprep.subr.mxu0 0.0
    %7304 = vmatpush1.msra.mxu0 0.0
    %7305 = vmatprep.subr.mxu0 0.0
    %7306 = vmatpush1.msra.mxu0 0.0
    %7307 = vmatprep.subr.mxu0 0.0
    %7308 = vmatpush1.msra.mxu0 0.0
    %7309 = vmatprep.subr.mxu0 0.0
    %7310 = vmatpush1.msra.mxu0 0.0
    %7311 = vmatprep.subr.mxu0 0.0
    %7312 = vmatpush1.msra.mxu0 0.0
    %7313 = vmatprep.subr.mxu0 0.0
    %7314 = vmatpush1.msra.mxu0 0.0
    %7315 = vmatprep.subr.mxu0 0.0
    %7316 = vmatpush1.msra.mxu0 0.0
    %7317 = vmatprep.subr.mxu0 0.0
    %7318 = vmatpush1.msra.mxu0 0.0
    %7319 = vmatprep.subr.mxu0 0.0
    %7320 = vmatpush1.msra.mxu0 0.0
    %7321 = vmatprep.subr.mxu0 0.0
    %7322 = vmatpush1.msra.mxu0 0.0
    %7323 = vmatprep.subr.mxu0 0.0
    %7324 = vmatpush1.msra.mxu0 0.0
    %7325 = vmatprep.mubr.f32.mxu0 0.0
    %7326 = vmatmul.mubr.f32.gmra.mrb[0].mxu0 %v7256
    %v7327 = vpop.f32.mrb[0].mxu0
    %v7328 = vadd.f32 %v7245, %v7327
    %v7329 = vpop.f32.mrb[0].mxu0
    %v7330 = vadd.f32 %v7247, %v7329
    %7331 = vmatprep.mubr.f32.mxu0 0.0
    %7332 = vmatmul.mubr.f32.gmra.mrb[0].mxu0 %v7259
    %v7333 = vpop.f32.mrb[0].mxu0
    %v7334 = vadd.f32 %v7251, %v7333
    %v7335 = vpop.f32.mrb[0].mxu0
    %v7336 = vadd.f32 %v7253, %v7335
    %7337 = vdwg.mxu0
    %7342 = vrot.lane.b32.xlu0 %v7328, 6
    %v7343 = vpop.permute.xlu0 %7342
    %7344 = vrot.lane.b32.xlu0 %v7330, 6
    %v7345 = vpop.permute.xlu0 %7344
    %7346 = vrot.lane.b32.xlu0 %v7334, 6
    %v7347 = vpop.permute.xlu0 %7346
    %7348 = vrot.lane.b32.xlu0 %v7336, 6
    %v7349 = vpop.permute.xlu0 %7348
    %v7350 = vsel %vm7160, %v7343, %v7345
    %v7351 = vsel %vm7160, %v7347, %v7349
    %7356 = vst.msk [vmem:[#allocation4 + $0x10] sm:$0xff] %vm7167, %v7343
    %7357 = vst.msk [vmem:[#allocation4 + $0x18] sm:$0xff] %vm3320, %v7350
    %7358 = vst.msk [vmem:[#allocation4 + $0x38] sm:$0xff] %vm7167, %v7347
    %7359 = vst.msk [vmem:[#allocation4 + $0x40] sm:$0xff] %vm3320, %v7351
    %v7360 = vld [vmem:[#allocation11] sm:$0xff]
    %v7361 = vld [vmem:[#allocation11 + $0x8] sm:$0xff]
    %v7362 = vld [vmem:[#allocation4] sm:$0xff]
    %v7363 = vld [vmem:[#allocation4 + $0x8] sm:$0xff]
    %v7364 = vld [vmem:[#allocation4 + $0x10] sm:$0xff]
    %v7365 = vld [vmem:[#allocation4 + $0x18] sm:$0xff]
    %v7366 = vld [vmem:[#allocation4 + $0x20] sm:$0xff]
    %v7367 = vld [vmem:[#allocation4 + $0x28] sm:$0xff]
    %v7368 = vld [vmem:[#allocation4 + $0x30] sm:$0xff]
    %v7369 = vld [vmem:[#allocation4 + $0x38] sm:$0xff]
    %v7370 = vld [vmem:[#allocation4 + $0x40] sm:$0xff]
    %v7371 = vld [vmem:[#allocation4 + $0x48] sm:$0xff]
    %s7372 = scalar_lea.vmem [#allocation11], 16
    %v7373 = vld [vmem:[%s7372] sm:$0xff]
    %v7374 = vld [vmem:[%s7372 + $0x8] sm:$0xff]
    %7385 = vrot.lane.b32.xlu0 %v7362, 123
    %v7386 = vpop.permute.xlu0 %7385
    %7387 = vrot.lane.b32.xlu0 %v7363, 123
    %v7388 = vpop.permute.xlu0 %7387
    %7389 = vrot.lane.b32.xlu0 %v7364, 123
    %v7390 = vpop.permute.xlu0 %7389
    %7391 = vrot.lane.b32.xlu0 %v7365, 123
    %v7392 = vpop.permute.xlu0 %7391
    %7393 = vrot.lane.b32.xlu0 %v7366, 123
    %v7394 = vpop.permute.xlu0 %7393
    %7395 = vrot.lane.b32.xlu0 %v7367, 123
    %v7396 = vpop.permute.xlu0 %7395
    %7397 = vrot.lane.b32.xlu0 %v7368, 123
    %v7398 = vpop.permute.xlu0 %7397
    %7399 = vrot.lane.b32.xlu0 %v7369, 123
    %v7400 = vpop.permute.xlu0 %7399
    %7401 = vrot.lane.b32.xlu0 %v7370, 123
    %v7402 = vpop.permute.xlu0 %7401
    %7403 = vrot.lane.b32.xlu0 %v7371, 123
    %v7404 = vpop.permute.xlu0 %7403
    %v7405 = vsel %vm3455, %v7386, %v7388
    %v7406 = vsel %vm3455, %v7388, %v7390
    %v7407 = vsel %vm3455, %v7390, %v7392
    %v7408 = vsel %vm3455, %v7392, %v7394
    %v7409 = vsel %vm3455, %v7396, %v7398
    %v7410 = vsel %vm3455, %v7398, %v7400
    %v7411 = vsel %vm3455, %v7400, %v7402
    %v7412 = vsel %vm3455, %v7402, %v7404
    %v7422 = vsel %vm2269, %v7373, 0
    %v7425 = vsel %vm2269, %v7374, 0
    %7427 = vmatprep.subr.mxu0 %v7406
    %7428 = vmatpush1.msra.mxu0 %v7405
    %7429 = vmatprep.subr.mxu0 %v7410
    %7430 = vmatpush1.msra.mxu0 %v7409
    %7431 = vmatprep.subr.mxu0 0.0
    %7432 = vmatpush1.msra.mxu0 0.0
    %7433 = vmatprep.subr.mxu0 0.0
    %7434 = vmatpush1.msra.mxu0 0.0
    %7435 = vmatprep.subr.mxu0 0.0
    %7436 = vmatpush1.msra.mxu0 0.0
    %7437 = vmatprep.subr.mxu0 0.0
    %7438 = vmatpush1.msra.mxu0 0.0
    %7439 = vmatprep.subr.mxu0 0.0
    %7440 = vmatpush1.msra.mxu0 0.0
    %7441 = vmatprep.subr.mxu0 0.0
    %7442 = vmatpush1.msra.mxu0 0.0
    %7443 = vmatprep.subr.mxu0 0.0
    %7444 = vmatpush1.msra.mxu0 0.0
    %7445 = vmatprep.subr.mxu0 0.0
    %7446 = vmatpush1.msra.mxu0 0.0
    %7447 = vmatprep.subr.mxu0 0.0
    %7448 = vmatpush1.msra.mxu0 0.0
    %7449 = vmatprep.subr.mxu0 0.0
    %7450 = vmatpush1.msra.mxu0 0.0
    %7451 = vmatprep.subr.mxu0 0.0
    %7452 = vmatpush1.msra.mxu0 0.0
    %7453 = vmatprep.subr.mxu0 0.0
    %7454 = vmatpush1.msra.mxu0 0.0
    %7455 = vmatprep.subr.mxu0 0.0
    %7456 = vmatpush1.msra.mxu0 0.0
    %7457 = vmatprep.subr.mxu0 0.0
    %7458 = vmatpush1.msra.mxu0 0.0
    %7459 = vmatprep.subr.mxu0 0.0
    %7460 = vmatpush1.msra.mxu0 0.0
    %7461 = vmatprep.subr.mxu0 0.0
    %7462 = vmatpush1.msra.mxu0 0.0
    %7463 = vmatprep.subr.mxu0 0.0
    %7464 = vmatpush1.msra.mxu0 0.0
    %7465 = vmatprep.subr.mxu0 0.0
    %7466 = vmatpush1.msra.mxu0 0.0
    %7467 = vmatprep.subr.mxu0 0.0
    %7468 = vmatpush1.msra.mxu0 0.0
    %7469 = vmatprep.subr.mxu0 0.0
    %7470 = vmatpush1.msra.mxu0 0.0
    %7471 = vmatprep.subr.mxu0 0.0
    %7472 = vmatpush1.msra.mxu0 0.0
    %7473 = vmatprep.subr.mxu0 0.0
    %7474 = vmatpush1.msra.mxu0 0.0
    %7475 = vmatprep.subr.mxu0 0.0
    %7476 = vmatpush1.msra.mxu0 0.0
    %7477 = vmatprep.subr.mxu0 0.0
    %7478 = vmatpush1.msra.mxu0 0.0
    %7479 = vmatprep.subr.mxu0 0.0
    %7480 = vmatpush1.msra.mxu0 0.0
    %7481 = vmatprep.subr.mxu0 0.0
    %7482 = vmatpush1.msra.mxu0 0.0
    %7483 = vmatprep.subr.mxu0 0.0
    %7484 = vmatpush1.msra.mxu0 0.0
    %7485 = vmatprep.subr.mxu0 0.0
    %7486 = vmatpush1.msra.mxu0 0.0
    %7487 = vmatprep.subr.mxu0 0.0
    %7488 = vmatpush1.msra.mxu0 0.0
    %7489 = vmatprep.subr.mxu0 0.0
    %7490 = vmatpush1.msra.mxu0 0.0
    %7491 = vmatprep.mubr.f32.mxu0 0.0
    %7492 = vmatmul.mubr.f32.gmra.mrb[0].mxu0 %v7422
    %v7493 = vpop.f32.mrb[0].mxu0
    %v7494 = vadd.f32 0.0, %v7493
    %v7495 = vpop.f32.mrb[0].mxu0
    %v7496 = vadd.f32 0.0, %v7495
    %7497 = vmatprep.mubr.f32.mxu0 0.0
    %7498 = vmatmul.mubr.f32.gmra.mrb[0].mxu0 %v7425
    %v7499 = vpop.f32.mrb[0].mxu0
    %v7500 = vadd.f32 0.0, %v7499
    %v7501 = vpop.f32.mrb[0].mxu0
    %v7502 = vadd.f32 0.0, %v7501
    %7503 = vdwg.mxu0
    %7504 = vmatprep.subr.mxu0 %v7408
    %7505 = vmatpush1.msra.mxu0 %v7407
    %7506 = vmatprep.subr.mxu0 %v7412
    %7507 = vmatpush1.msra.mxu0 %v7411
    %7508 = vmatprep.subr.mxu0 0.0
    %7509 = vmatpush1.msra.mxu0 0.0
    %7510 = vmatprep.subr.mxu0 0.0
    %7511 = vmatpush1.msra.mxu0 0.0
    %7512 = vmatprep.subr.mxu0 0.0
    %7513 = vmatpush1.msra.mxu0 0.0
    %7514 = vmatprep.subr.mxu0 0.0
    %7515 = vmatpush1.msra.mxu0 0.0
    %7516 = vmatprep.subr.mxu0 0.0
    %7517 = vmatpush1.msra.mxu0 0.0
    %7518 = vmatprep.subr.mxu0 0.0
    %7519 = vmatpush1.msra.mxu0 0.0
    %7520 = vmatprep.subr.mxu0 0.0
    %7521 = vmatpush1.msra.mxu0 0.0
    %7522 = vmatprep.subr.mxu0 0.0
    %7523 = vmatpush1.msra.mxu0 0.0
    %7524 = vmatprep.subr.mxu0 0.0
    %7525 = vmatpush1.msra.mxu0 0.0
    %7526 = vmatprep.subr.mxu0 0.0
    %7527 = vmatpush1.msra.mxu0 0.0
    %7528 = vmatprep.subr.mxu0 0.0
    %7529 = vmatpush1.msra.mxu0 0.0
    %7530 = vmatprep.subr.mxu0 0.0
    %7531 = vmatpush1.msra.mxu0 0.0
    %7532 = vmatprep.subr.mxu0 0.0
    %7533 = vmatpush1.msra.mxu0 0.0
    %7534 = vmatprep.subr.mxu0 0.0
    %7535 = vmatpush1.msra.mxu0 0.0
    %7536 = vmatprep.subr.mxu0 0.0
    %7537 = vmatpush1.msra.mxu0 0.0
    %7538 = vmatprep.subr.mxu0 0.0
    %7539 = vmatpush1.msra.mxu0 0.0
    %7540 = vmatprep.subr.mxu0 0.0
    %7541 = vmatpush1.msra.mxu0 0.0
    %7542 = vmatprep.subr.mxu0 0.0
    %7543 = vmatpush1.msra.mxu0 0.0
    %7544 = vmatprep.subr.mxu0 0.0
    %7545 = vmatpush1.msra.mxu0 0.0
    %7546 = vmatprep.subr.mxu0 0.0
    %7547 = vmatpush1.msra.mxu0 0.0
    %7548 = vmatprep.subr.mxu0 0.0
    %7549 = vmatpush1.msra.mxu0 0.0
    %7550 = vmatprep.subr.mxu0 0.0
    %7551 = vmatpush1.msra.mxu0 0.0
    %7552 = vmatprep.subr.mxu0 0.0
    %7553 = vmatpush1.msra.mxu0 0.0
    %7554 = vmatprep.subr.mxu0 0.0
    %7555 = vmatpush1.msra.mxu0 0.0
    %7556 = vmatprep.subr.mxu0 0.0
    %7557 = vmatpush1.msra.mxu0 0.0
    %7558 = vmatprep.subr.mxu0 0.0
    %7559 = vmatpush1.msra.mxu0 0.0
    %7560 = vmatprep.subr.mxu0 0.0
    %7561 = vmatpush1.msra.mxu0 0.0
    %7562 = vmatprep.subr.mxu0 0.0
    %7563 = vmatpush1.msra.mxu0 0.0
    %7564 = vmatprep.subr.mxu0 0.0
    %7565 = vmatpush1.msra.mxu0 0.0
    %7566 = vmatprep.subr.mxu0 0.0
    %7567 = vmatpush1.msra.mxu0 0.0
    %7568 = vmatprep.mubr.f32.mxu0 0.0
    %7569 = vmatmul.mubr.f32.gmra.mrb[0].mxu0 %v7422
    %v7570 = vpop.f32.mrb[0].mxu0
    %v7571 = vadd.f32 0.0, %v7570
    %v7572 = vpop.f32.mrb[0].mxu0
    %v7573 = vadd.f32 0.0, %v7572
    %7574 = vmatprep.mubr.f32.mxu0 0.0
    %7575 = vmatmul.mubr.f32.gmra.mrb[0].mxu0 %v7425
    %v7576 = vpop.f32.mrb[0].mxu0
    %v7577 = vadd.f32 0.0, %v7576
    %v7578 = vpop.f32.mrb[0].mxu0
    %v7579 = vadd.f32 0.0, %v7578
    %7580 = vdwg.mxu0
    %7581 = vrot.lane.b32.xlu0 %v7362, 122
    %v7582 = vpop.permute.xlu0 %7581
    %7583 = vrot.lane.b32.xlu0 %v7363, 122
    %v7584 = vpop.permute.xlu0 %7583
    %7585 = vrot.lane.b32.xlu0 %v7364, 122
    %v7586 = vpop.permute.xlu0 %7585
    %7587 = vrot.lane.b32.xlu0 %v7365, 122
    %v7588 = vpop.permute.xlu0 %7587
    %7589 = vrot.lane.b32.xlu0 %v7366, 122
    %v7590 = vpop.permute.xlu0 %7589
    %7591 = vrot.lane.b32.xlu0 %v7367, 122
    %v7592 = vpop.permute.xlu0 %7591
    %7593 = vrot.lane.b32.xlu0 %v7368, 122
    %v7594 = vpop.permute.xlu0 %7593
    %7595 = vrot.lane.b32.xlu0 %v7369, 122
    %v7596 = vpop.permute.xlu0 %7595
    %7597 = vrot.lane.b32.xlu0 %v7370, 122
    %v7598 = vpop.permute.xlu0 %7597
    %7599 = vrot.lane.b32.xlu0 %v7371, 122
    %v7600 = vpop.permute.xlu0 %7599
    %v7601 = vsel %vm3320, %v7582, %v7584
    %v7602 = vsel %vm3320, %v7584, %v7586
    %v7603 = vsel %vm3320, %v7586, %v7588
    %v7604 = vsel %vm3320, %v7588, %v7590
    %v7605 = vsel %vm3320, %v7592, %v7594
    %v7606 = vsel %vm3320, %v7594, %v7596
    %v7607 = vsel %vm3320, %v7596, %v7598
    %v7608 = vsel %vm3320, %v7598, %v7600
    %v7618 = vsel %vm2269, %v7360, 0
    %v7621 = vsel %vm2269, %v7361, 0
    %7623 = vmatprep.subr.mxu0 %v7602
    %7624 = vmatpush1.msra.mxu0 %v7601
    %7625 = vmatprep.subr.mxu0 %v7606
    %7626 = vmatpush1.msra.mxu0 %v7605
    %7627 = vmatprep.subr.mxu0 0.0
    %7628 = vmatpush1.msra.mxu0 0.0
    %7629 = vmatprep.subr.mxu0 0.0
    %7630 = vmatpush1.msra.mxu0 0.0
    %7631 = vmatprep.subr.mxu0 0.0
    %7632 = vmatpush1.msra.mxu0 0.0
    %7633 = vmatprep.subr.mxu0 0.0
    %7634 = vmatpush1.msra.mxu0 0.0
    %7635 = vmatprep.subr.mxu0 0.0
    %7636 = vmatpush1.msra.mxu0 0.0
    %7637 = vmatprep.subr.mxu0 0.0
    %7638 = vmatpush1.msra.mxu0 0.0
    %7639 = vmatprep.subr.mxu0 0.0
    %7640 = vmatpush1.msra.mxu0 0.0
    %7641 = vmatprep.subr.mxu0 0.0
    %7642 = vmatpush1.msra.mxu0 0.0
    %7643 = vmatprep.subr.mxu0 0.0
    %7644 = vmatpush1.msra.mxu0 0.0
    %7645 = vmatprep.subr.mxu0 0.0
    %7646 = vmatpush1.msra.mxu0 0.0
    %7647 = vmatprep.subr.mxu0 0.0
    %7648 = vmatpush1.msra.mxu0 0.0
    %7649 = vmatprep.subr.mxu0 0.0
    %7650 = vmatpush1.msra.mxu0 0.0
    %7651 = vmatprep.subr.mxu0 0.0
    %7652 = vmatpush1.msra.mxu0 0.0
    %7653 = vmatprep.subr.mxu0 0.0
    %7654 = vmatpush1.msra.mxu0 0.0
    %7655 = vmatprep.subr.mxu0 0.0
    %7656 = vmatpush1.msra.mxu0 0.0
    %7657 = vmatprep.subr.mxu0 0.0
    %7658 = vmatpush1.msra.mxu0 0.0
    %7659 = vmatprep.subr.mxu0 0.0
    %7660 = vmatpush1.msra.mxu0 0.0
    %7661 = vmatprep.subr.mxu0 0.0
    %7662 = vmatpush1.msra.mxu0 0.0
    %7663 = vmatprep.subr.mxu0 0.0
    %7664 = vmatpush1.msra.mxu0 0.0
    %7665 = vmatprep.subr.mxu0 0.0
    %7666 = vmatpush1.msra.mxu0 0.0
    %7667 = vmatprep.subr.mxu0 0.0
    %7668 = vmatpush1.msra.mxu0 0.0
    %7669 = vmatprep.subr.mxu0 0.0
    %7670 = vmatpush1.msra.mxu0 0.0
    %7671 = vmatprep.subr.mxu0 0.0
    %7672 = vmatpush1.msra.mxu0 0.0
    %7673 = vmatprep.subr.mxu0 0.0
    %7674 = vmatpush1.msra.mxu0 0.0
    %7675 = vmatprep.subr.mxu0 0.0
    %7676 = vmatpush1.msra.mxu0 0.0
    %7677 = vmatprep.subr.mxu0 0.0
    %7678 = vmatpush1.msra.mxu0 0.0
    %7679 = vmatprep.subr.mxu0 0.0
    %7680 = vmatpush1.msra.mxu0 0.0
    %7681 = vmatprep.subr.mxu0 0.0
    %7682 = vmatpush1.msra.mxu0 0.0
    %7683 = vmatprep.subr.mxu0 0.0
    %7684 = vmatpush1.msra.mxu0 0.0
    %7685 = vmatprep.subr.mxu0 0.0
    %7686 = vmatpush1.msra.mxu0 0.0
    %7687 = vmatprep.mubr.f32.mxu0 0.0
    %7688 = vmatmul.mubr.f32.gmra.mrb[0].mxu0 %v7618
    %v7689 = vpop.f32.mrb[0].mxu0
    %v7690 = vadd.f32 %v7494, %v7689
    %v7691 = vpop.f32.mrb[0].mxu0
    %v7692 = vadd.f32 %v7496, %v7691
    %7693 = vmatprep.mubr.f32.mxu0 0.0
    %7694 = vmatmul.mubr.f32.gmra.mrb[0].mxu0 %v7621
    %v7695 = vpop.f32.mrb[0].mxu0
    %v7696 = vadd.f32 %v7500, %v7695
    %v7697 = vpop.f32.mrb[0].mxu0
    %v7698 = vadd.f32 %v7502, %v7697
    %7699 = vdwg.mxu0
    %7700 = vmatprep.subr.mxu0 %v7604
    %7701 = vmatpush1.msra.mxu0 %v7603
    %7702 = vmatprep.subr.mxu0 %v7608
    %7703 = vmatpush1.msra.mxu0 %v7607
    %7704 = vmatprep.subr.mxu0 0.0
    %7705 = vmatpush1.msra.mxu0 0.0
    %7706 = vmatprep.subr.mxu0 0.0
    %7707 = vmatpush1.msra.mxu0 0.0
    %7708 = vmatprep.subr.mxu0 0.0
    %7709 = vmatpush1.msra.mxu0 0.0
    %7710 = vmatprep.subr.mxu0 0.0
    %7711 = vmatpush1.msra.mxu0 0.0
    %7712 = vmatprep.subr.mxu0 0.0
    %7713 = vmatpush1.msra.mxu0 0.0
    %7714 = vmatprep.subr.mxu0 0.0
    %7715 = vmatpush1.msra.mxu0 0.0
    %7716 = vmatprep.subr.mxu0 0.0
    %7717 = vmatpush1.msra.mxu0 0.0
    %7718 = vmatprep.subr.mxu0 0.0
    %7719 = vmatpush1.msra.mxu0 0.0
    %7720 = vmatprep.subr.mxu0 0.0
    %7721 = vmatpush1.msra.mxu0 0.0
    %7722 = vmatprep.subr.mxu0 0.0
    %7723 = vmatpush1.msra.mxu0 0.0
    %7724 = vmatprep.subr.mxu0 0.0
    %7725 = vmatpush1.msra.mxu0 0.0
    %7726 = vmatprep.subr.mxu0 0.0
    %7727 = vmatpush1.msra.mxu0 0.0
    %7728 = vmatprep.subr.mxu0 0.0
    %7729 = vmatpush1.msra.mxu0 0.0
    %7730 = vmatprep.subr.mxu0 0.0
    %7731 = vmatpush1.msra.mxu0 0.0
    %7732 = vmatprep.subr.mxu0 0.0
    %7733 = vmatpush1.msra.mxu0 0.0
    %7734 = vmatprep.subr.mxu0 0.0
    %7735 = vmatpush1.msra.mxu0 0.0
    %7736 = vmatprep.subr.mxu0 0.0
    %7737 = vmatpush1.msra.mxu0 0.0
    %7738 = vmatprep.subr.mxu0 0.0
    %7739 = vmatpush1.msra.mxu0 0.0
    %7740 = vmatprep.subr.mxu0 0.0
    %7741 = vmatpush1.msra.mxu0 0.0
    %7742 = vmatprep.subr.mxu0 0.0
    %7743 = vmatpush1.msra.mxu0 0.0
    %7744 = vmatprep.subr.mxu0 0.0
    %7745 = vmatpush1.msra.mxu0 0.0
    %7746 = vmatprep.subr.mxu0 0.0
    %7747 = vmatpush1.msra.mxu0 0.0
    %7748 = vmatprep.subr.mxu0 0.0
    %7749 = vmatpush1.msra.mxu0 0.0
    %7750 = vmatprep.subr.mxu0 0.0
    %7751 = vmatpush1.msra.mxu0 0.0
    %7752 = vmatprep.subr.mxu0 0.0
    %7753 = vmatpush1.msra.mxu0 0.0
    %7754 = vmatprep.subr.mxu0 0.0
    %7755 = vmatpush1.msra.mxu0 0.0
    %7756 = vmatprep.subr.mxu0 0.0
    %7757 = vmatpush1.msra.mxu0 0.0
    %7758 = vmatprep.subr.mxu0 0.0
    %7759 = vmatpush1.msra.mxu0 0.0
    %7760 = vmatprep.subr.mxu0 0.0
    %7761 = vmatpush1.msra.mxu0 0.0
    %7762 = vmatprep.subr.mxu0 0.0
    %7763 = vmatpush1.msra.mxu0 0.0
    %7764 = vmatprep.mubr.f32.mxu0 0.0
    %7765 = vmatmul.mubr.f32.gmra.mrb[0].mxu0 %v7618
    %v7766 = vpop.f32.mrb[0].mxu0
    %v7767 = vadd.f32 %v7571, %v7766
    %v7768 = vpop.f32.mrb[0].mxu0
    %v7769 = vadd.f32 %v7573, %v7768
    %7770 = vmatprep.mubr.f32.mxu0 0.0
    %7771 = vmatmul.mubr.f32.gmra.mrb[0].mxu0 %v7621
    %v7772 = vpop.f32.mrb[0].mxu0
    %v7773 = vadd.f32 %v7577, %v7772
    %v7774 = vpop.f32.mrb[0].mxu0
    %v7775 = vadd.f32 %v7579, %v7774
    %7776 = vdwg.mxu0
    %s7777 = scalar_lea.vmem [#allocation11], 32
    %v7778 = vld [vmem:[%s7777] sm:$0xff]
    %v7779 = vld [vmem:[%s7777 + $0x8] sm:$0xff]
    %7780 = vrot.lane.b32.xlu0 %v7362, 124
    %v7781 = vpop.permute.xlu0 %7780
    %7782 = vrot.lane.b32.xlu0 %v7363, 124
    %v7783 = vpop.permute.xlu0 %7782
    %7784 = vrot.lane.b32.xlu0 %v7364, 124
    %v7785 = vpop.permute.xlu0 %7784
    %7786 = vrot.lane.b32.xlu0 %v7365, 124
    %v7787 = vpop.permute.xlu0 %7786
    %7788 = vrot.lane.b32.xlu0 %v7366, 124
    %v7789 = vpop.permute.xlu0 %7788
    %7790 = vrot.lane.b32.xlu0 %v7367, 124
    %v7791 = vpop.permute.xlu0 %7790
    %7792 = vrot.lane.b32.xlu0 %v7368, 124
    %v7793 = vpop.permute.xlu0 %7792
    %7794 = vrot.lane.b32.xlu0 %v7369, 124
    %v7795 = vpop.permute.xlu0 %7794
    %7796 = vrot.lane.b32.xlu0 %v7370, 124
    %v7797 = vpop.permute.xlu0 %7796
    %7798 = vrot.lane.b32.xlu0 %v7371, 124
    %v7799 = vpop.permute.xlu0 %7798
    %v7800 = vsel %vm3590, %v7781, %v7783
    %v7801 = vsel %vm3590, %v7783, %v7785
    %v7802 = vsel %vm3590, %v7785, %v7787
    %v7803 = vsel %vm3590, %v7787, %v7789
    %v7804 = vsel %vm3590, %v7791, %v7793
    %v7805 = vsel %vm3590, %v7793, %v7795
    %v7806 = vsel %vm3590, %v7795, %v7797
    %v7807 = vsel %vm3590, %v7797, %v7799
    %v7817 = vsel %vm2269, %v7778, 0
    %v7820 = vsel %vm2269, %v7779, 0
    %7822 = vmatprep.subr.mxu0 %v7801
    %7823 = vmatpush1.msra.mxu0 %v7800
    %7824 = vmatprep.subr.mxu0 %v7805
    %7825 = vmatpush1.msra.mxu0 %v7804
    %7826 = vmatprep.subr.mxu0 0.0
    %7827 = vmatpush1.msra.mxu0 0.0
    %7828 = vmatprep.subr.mxu0 0.0
    %7829 = vmatpush1.msra.mxu0 0.0
    %7830 = vmatprep.subr.mxu0 0.0
    %7831 = vmatpush1.msra.mxu0 0.0
    %7832 = vmatprep.subr.mxu0 0.0
    %7833 = vmatpush1.msra.mxu0 0.0
    %7834 = vmatprep.subr.mxu0 0.0
    %7835 = vmatpush1.msra.mxu0 0.0
    %7836 = vmatprep.subr.mxu0 0.0
    %7837 = vmatpush1.msra.mxu0 0.0
    %7838 = vmatprep.subr.mxu0 0.0
    %7839 = vmatpush1.msra.mxu0 0.0
    %7840 = vmatprep.subr.mxu0 0.0
    %7841 = vmatpush1.msra.mxu0 0.0
    %7842 = vmatprep.subr.mxu0 0.0
    %7843 = vmatpush1.msra.mxu0 0.0
    %7844 = vmatprep.subr.mxu0 0.0
    %7845 = vmatpush1.msra.mxu0 0.0
    %7846 = vmatprep.subr.mxu0 0.0
    %7847 = vmatpush1.msra.mxu0 0.0
    %7848 = vmatprep.subr.mxu0 0.0
    %7849 = vmatpush1.msra.mxu0 0.0
    %7850 = vmatprep.subr.mxu0 0.0
    %7851 = vmatpush1.msra.mxu0 0.0
    %7852 = vmatprep.subr.mxu0 0.0
    %7853 = vmatpush1.msra.mxu0 0.0
    %7854 = vmatprep.subr.mxu0 0.0
    %7855 = vmatpush1.msra.mxu0 0.0
    %7856 = vmatprep.subr.mxu0 0.0
    %7857 = vmatpush1.msra.mxu0 0.0
    %7858 = vmatprep.subr.mxu0 0.0
    %7859 = vmatpush1.msra.mxu0 0.0
    %7860 = vmatprep.subr.mxu0 0.0
    %7861 = vmatpush1.msra.mxu0 0.0
    %7862 = vmatprep.subr.mxu0 0.0
    %7863 = vmatpush1.msra.mxu0 0.0
    %7864 = vmatprep.subr.mxu0 0.0
    %7865 = vmatpush1.msra.mxu0 0.0
    %7866 = vmatprep.subr.mxu0 0.0
    %7867 = vmatpush1.msra.mxu0 0.0
    %7868 = vmatprep.subr.mxu0 0.0
    %7869 = vmatpush1.msra.mxu0 0.0
    %7870 = vmatprep.subr.mxu0 0.0
    %7871 = vmatpush1.msra.mxu0 0.0
    %7872 = vmatprep.subr.mxu0 0.0
    %7873 = vmatpush1.msra.mxu0 0.0
    %7874 = vmatprep.subr.mxu0 0.0
    %7875 = vmatpush1.msra.mxu0 0.0
    %7876 = vmatprep.subr.mxu0 0.0
    %7877 = vmatpush1.msra.mxu0 0.0
    %7878 = vmatprep.subr.mxu0 0.0
    %7879 = vmatpush1.msra.mxu0 0.0
    %7880 = vmatprep.subr.mxu0 0.0
    %7881 = vmatpush1.msra.mxu0 0.0
    %7882 = vmatprep.subr.mxu0 0.0
    %7883 = vmatpush1.msra.mxu0 0.0
    %7884 = vmatprep.subr.mxu0 0.0
    %7885 = vmatpush1.msra.mxu0 0.0
    %7886 = vmatprep.mubr.f32.mxu0 0.0
    %7887 = vmatmul.mubr.f32.gmra.mrb[0].mxu0 %v7817
    %v7888 = vpop.f32.mrb[0].mxu0
    %v7889 = vadd.f32 0.0, %v7888
    %v7890 = vpop.f32.mrb[0].mxu0
    %v7891 = vadd.f32 0.0, %v7890
    %7892 = vmatprep.mubr.f32.mxu0 0.0
    %7893 = vmatmul.mubr.f32.gmra.mrb[0].mxu0 %v7820
    %v7894 = vpop.f32.mrb[0].mxu0
    %v7895 = vadd.f32 0.0, %v7894
    %v7896 = vpop.f32.mrb[0].mxu0
    %v7897 = vadd.f32 0.0, %v7896
    %7898 = vdwg.mxu0
    %7899 = vmatprep.subr.mxu0 %v7803
    %7900 = vmatpush1.msra.mxu0 %v7802
    %7901 = vmatprep.subr.mxu0 %v7807
    %7902 = vmatpush1.msra.mxu0 %v7806
    %7903 = vmatprep.subr.mxu0 0.0
    %7904 = vmatpush1.msra.mxu0 0.0
    %7905 = vmatprep.subr.mxu0 0.0
    %7906 = vmatpush1.msra.mxu0 0.0
    %7907 = vmatprep.subr.mxu0 0.0
    %7908 = vmatpush1.msra.mxu0 0.0
    %7909 = vmatprep.subr.mxu0 0.0
    %7910 = vmatpush1.msra.mxu0 0.0
    %7911 = vmatprep.subr.mxu0 0.0
    %7912 = vmatpush1.msra.mxu0 0.0
    %7913 = vmatprep.subr.mxu0 0.0
    %7914 = vmatpush1.msra.mxu0 0.0
    %7915 = vmatprep.subr.mxu0 0.0
    %7916 = vmatpush1.msra.mxu0 0.0
    %7917 = vmatprep.subr.mxu0 0.0
    %7918 = vmatpush1.msra.mxu0 0.0
    %7919 = vmatprep.subr.mxu0 0.0
    %7920 = vmatpush1.msra.mxu0 0.0
    %7921 = vmatprep.subr.mxu0 0.0
    %7922 = vmatpush1.msra.mxu0 0.0
    %7923 = vmatprep.subr.mxu0 0.0
    %7924 = vmatpush1.msra.mxu0 0.0
    %7925 = vmatprep.subr.mxu0 0.0
    %7926 = vmatpush1.msra.mxu0 0.0
    %7927 = vmatprep.subr.mxu0 0.0
    %7928 = vmatpush1.msra.mxu0 0.0
    %7929 = vmatprep.subr.mxu0 0.0
    %7930 = vmatpush1.msra.mxu0 0.0
    %7931 = vmatprep.subr.mxu0 0.0
    %7932 = vmatpush1.msra.mxu0 0.0
    %7933 = vmatprep.subr.mxu0 0.0
    %7934 = vmatpush1.msra.mxu0 0.0
    %7935 = vmatprep.subr.mxu0 0.0
    %7936 = vmatpush1.msra.mxu0 0.0
    %7937 = vmatprep.subr.mxu0 0.0
    %7938 = vmatpush1.msra.mxu0 0.0
    %7939 = vmatprep.subr.mxu0 0.0
    %7940 = vmatpush1.msra.mxu0 0.0
    %7941 = vmatprep.subr.mxu0 0.0
    %7942 = vmatpush1.msra.mxu0 0.0
    %7943 = vmatprep.subr.mxu0 0.0
    %7944 = vmatpush1.msra.mxu0 0.0
    %7945 = vmatprep.subr.mxu0 0.0
    %7946 = vmatpush1.msra.mxu0 0.0
    %7947 = vmatprep.subr.mxu0 0.0
    %7948 = vmatpush1.msra.mxu0 0.0
    %7949 = vmatprep.subr.mxu0 0.0
    %7950 = vmatpush1.msra.mxu0 0.0
    %7951 = vmatprep.subr.mxu0 0.0
    %7952 = vmatpush1.msra.mxu0 0.0
    %7953 = vmatprep.subr.mxu0 0.0
    %7954 = vmatpush1.msra.mxu0 0.0
    %7955 = vmatprep.subr.mxu0 0.0
    %7956 = vmatpush1.msra.mxu0 0.0
    %7957 = vmatprep.subr.mxu0 0.0
    %7958 = vmatpush1.msra.mxu0 0.0
    %7959 = vmatprep.subr.mxu0 0.0
    %7960 = vmatpush1.msra.mxu0 0.0
    %7961 = vmatprep.subr.mxu0 0.0
    %7962 = vmatpush1.msra.mxu0 0.0
    %7963 = vmatprep.mubr.f32.mxu0 0.0
    %7964 = vmatmul.mubr.f32.gmra.mrb[0].mxu0 %v7817
    %v7965 = vpop.f32.mrb[0].mxu0
    %v7966 = vadd.f32 0.0, %v7965
    %v7967 = vpop.f32.mrb[0].mxu0
    %v7968 = vadd.f32 0.0, %v7967
    %7969 = vmatprep.mubr.f32.mxu0 0.0
    %7970 = vmatmul.mubr.f32.gmra.mrb[0].mxu0 %v7820
    %v7971 = vpop.f32.mrb[0].mxu0
    %v7972 = vadd.f32 0.0, %v7971
    %v7973 = vpop.f32.mrb[0].mxu0
    %v7974 = vadd.f32 0.0, %v7973
    %7975 = vdwg.mxu0
    %v7976 = vadd.f32 %v7690, %v7889
    %v7977 = vadd.f32 %v7692, %v7891
    %v7978 = vadd.f32 %v7767, %v7966
    %v7979 = vadd.f32 %v7769, %v7968
    %v7980 = vadd.f32 %v7696, %v7895
    %v7981 = vadd.f32 %v7698, %v7897
    %v7982 = vadd.f32 %v7773, %v7972
    %v7983 = vadd.f32 %v7775, %v7974
    %s7984 = scalar_lea.vmem [#allocation11], 48
    %v7985 = vld [vmem:[%s7984] sm:$0xff]
    %v7986 = vld [vmem:[%s7984 + $0x8] sm:$0xff]
    %7987 = vrot.lane.b32.xlu0 %v7362, 125
    %v7988 = vpop.permute.xlu0 %7987
    %7989 = vrot.lane.b32.xlu0 %v7363, 125
    %v7990 = vpop.permute.xlu0 %7989
    %7991 = vrot.lane.b32.xlu0 %v7364, 125
    %v7992 = vpop.permute.xlu0 %7991
    %7993 = vrot.lane.b32.xlu0 %v7365, 125
    %v7994 = vpop.permute.xlu0 %7993
    %7995 = vrot.lane.b32.xlu0 %v7366, 125
    %v7996 = vpop.permute.xlu0 %7995
    %7997 = vrot.lane.b32.xlu0 %v7367, 125
    %v7998 = vpop.permute.xlu0 %7997
    %7999 = vrot.lane.b32.xlu0 %v7368, 125
    %v8000 = vpop.permute.xlu0 %7999
    %8001 = vrot.lane.b32.xlu0 %v7369, 125
    %v8002 = vpop.permute.xlu0 %8001
    %8003 = vrot.lane.b32.xlu0 %v7370, 125
    %v8004 = vpop.permute.xlu0 %8003
    %8005 = vrot.lane.b32.xlu0 %v7371, 125
    %v8006 = vpop.permute.xlu0 %8005
    %v8007 = vsel %vm3725, %v7988, %v7990
    %v8008 = vsel %vm3725, %v7990, %v7992
    %v8009 = vsel %vm3725, %v7992, %v7994
    %v8010 = vsel %vm3725, %v7994, %v7996
    %v8011 = vsel %vm3725, %v7998, %v8000
    %v8012 = vsel %vm3725, %v8000, %v8002
    %v8013 = vsel %vm3725, %v8002, %v8004
    %v8014 = vsel %vm3725, %v8004, %v8006
    %v8024 = vsel %vm2269, %v7985, 0
    %v8027 = vsel %vm2269, %v7986, 0
    %8029 = vmatprep.subr.mxu0 %v8008
    %8030 = vmatpush1.msra.mxu0 %v8007
    %8031 = vmatprep.subr.mxu0 %v8012
    %8032 = vmatpush1.msra.mxu0 %v8011
    %8033 = vmatprep.subr.mxu0 0.0
    %8034 = vmatpush1.msra.mxu0 0.0
    %8035 = vmatprep.subr.mxu0 0.0
    %8036 = vmatpush1.msra.mxu0 0.0
    %8037 = vmatprep.subr.mxu0 0.0
    %8038 = vmatpush1.msra.mxu0 0.0
    %8039 = vmatprep.subr.mxu0 0.0
    %8040 = vmatpush1.msra.mxu0 0.0
    %8041 = vmatprep.subr.mxu0 0.0
    %8042 = vmatpush1.msra.mxu0 0.0
    %8043 = vmatprep.subr.mxu0 0.0
    %8044 = vmatpush1.msra.mxu0 0.0
    %8045 = vmatprep.subr.mxu0 0.0
    %8046 = vmatpush1.msra.mxu0 0.0
    %8047 = vmatprep.subr.mxu0 0.0
    %8048 = vmatpush1.msra.mxu0 0.0
    %8049 = vmatprep.subr.mxu0 0.0
    %8050 = vmatpush1.msra.mxu0 0.0
    %8051 = vmatprep.subr.mxu0 0.0
    %8052 = vmatpush1.msra.mxu0 0.0
    %8053 = vmatprep.subr.mxu0 0.0
    %8054 = vmatpush1.msra.mxu0 0.0
    %8055 = vmatprep.subr.mxu0 0.0
    %8056 = vmatpush1.msra.mxu0 0.0
    %8057 = vmatprep.subr.mxu0 0.0
    %8058 = vmatpush1.msra.mxu0 0.0
    %8059 = vmatprep.subr.mxu0 0.0
    %8060 = vmatpush1.msra.mxu0 0.0
    %8061 = vmatprep.subr.mxu0 0.0
    %8062 = vmatpush1.msra.mxu0 0.0
    %8063 = vmatprep.subr.mxu0 0.0
    %8064 = vmatpush1.msra.mxu0 0.0
    %8065 = vmatprep.subr.mxu0 0.0
    %8066 = vmatpush1.msra.mxu0 0.0
    %8067 = vmatprep.subr.mxu0 0.0
    %8068 = vmatpush1.msra.mxu0 0.0
    %8069 = vmatprep.subr.mxu0 0.0
    %8070 = vmatpush1.msra.mxu0 0.0
    %8071 = vmatprep.subr.mxu0 0.0
    %8072 = vmatpush1.msra.mxu0 0.0
    %8073 = vmatprep.subr.mxu0 0.0
    %8074 = vmatpush1.msra.mxu0 0.0
    %8075 = vmatprep.subr.mxu0 0.0
    %8076 = vmatpush1.msra.mxu0 0.0
    %8077 = vmatprep.subr.mxu0 0.0
    %8078 = vmatpush1.msra.mxu0 0.0
    %8079 = vmatprep.subr.mxu0 0.0
    %8080 = vmatpush1.msra.mxu0 0.0
    %8081 = vmatprep.subr.mxu0 0.0
    %8082 = vmatpush1.msra.mxu0 0.0
    %8083 = vmatprep.subr.mxu0 0.0
    %8084 = vmatpush1.msra.mxu0 0.0
    %8085 = vmatprep.subr.mxu0 0.0
    %8086 = vmatpush1.msra.mxu0 0.0
    %8087 = vmatprep.subr.mxu0 0.0
    %8088 = vmatpush1.msra.mxu0 0.0
    %8089 = vmatprep.subr.mxu0 0.0
    %8090 = vmatpush1.msra.mxu0 0.0
    %8091 = vmatprep.subr.mxu0 0.0
    %8092 = vmatpush1.msra.mxu0 0.0
    %8093 = vmatprep.mubr.f32.mxu0 0.0
    %8094 = vmatmul.mubr.f32.gmra.mrb[0].mxu0 %v8024
    %v8095 = vpop.f32.mrb[0].mxu0
    %v8096 = vadd.f32 0.0, %v8095
    %v8097 = vpop.f32.mrb[0].mxu0
    %v8098 = vadd.f32 0.0, %v8097
    %8099 = vmatprep.mubr.f32.mxu0 0.0
    %8100 = vmatmul.mubr.f32.gmra.mrb[0].mxu0 %v8027
    %v8101 = vpop.f32.mrb[0].mxu0
    %v8102 = vadd.f32 0.0, %v8101
    %v8103 = vpop.f32.mrb[0].mxu0
    %v8104 = vadd.f32 0.0, %v8103
    %8105 = vdwg.mxu0
    %8106 = vmatprep.subr.mxu0 %v8010
    %8107 = vmatpush1.msra.mxu0 %v8009
    %8108 = vmatprep.subr.mxu0 %v8014
    %8109 = vmatpush1.msra.mxu0 %v8013
    %8110 = vmatprep.subr.mxu0 0.0
    %8111 = vmatpush1.msra.mxu0 0.0
    %8112 = vmatprep.subr.mxu0 0.0
    %8113 = vmatpush1.msra.mxu0 0.0
    %8114 = vmatprep.subr.mxu0 0.0
    %8115 = vmatpush1.msra.mxu0 0.0
    %8116 = vmatprep.subr.mxu0 0.0
    %8117 = vmatpush1.msra.mxu0 0.0
    %8118 = vmatprep.subr.mxu0 0.0
    %8119 = vmatpush1.msra.mxu0 0.0
    %8120 = vmatprep.subr.mxu0 0.0
    %8121 = vmatpush1.msra.mxu0 0.0
    %8122 = vmatprep.subr.mxu0 0.0
    %8123 = vmatpush1.msra.mxu0 0.0
    %8124 = vmatprep.subr.mxu0 0.0
    %8125 = vmatpush1.msra.mxu0 0.0
    %8126 = vmatprep.subr.mxu0 0.0
    %8127 = vmatpush1.msra.mxu0 0.0
    %8128 = vmatprep.subr.mxu0 0.0
    %8129 = vmatpush1.msra.mxu0 0.0
    %8130 = vmatprep.subr.mxu0 0.0
    %8131 = vmatpush1.msra.mxu0 0.0
    %8132 = vmatprep.subr.mxu0 0.0
    %8133 = vmatpush1.msra.mxu0 0.0
    %8134 = vmatprep.subr.mxu0 0.0
    %8135 = vmatpush1.msra.mxu0 0.0
    %8136 = vmatprep.subr.mxu0 0.0
    %8137 = vmatpush1.msra.mxu0 0.0
    %8138 = vmatprep.subr.mxu0 0.0
    %8139 = vmatpush1.msra.mxu0 0.0
    %8140 = vmatprep.subr.mxu0 0.0
    %8141 = vmatpush1.msra.mxu0 0.0
    %8142 = vmatprep.subr.mxu0 0.0
    %8143 = vmatpush1.msra.mxu0 0.0
    %8144 = vmatprep.subr.mxu0 0.0
    %8145 = vmatpush1.msra.mxu0 0.0
    %8146 = vmatprep.subr.mxu0 0.0
    %8147 = vmatpush1.msra.mxu0 0.0
    %8148 = vmatprep.subr.mxu0 0.0
    %8149 = vmatpush1.msra.mxu0 0.0
    %8150 = vmatprep.subr.mxu0 0.0
    %8151 = vmatpush1.msra.mxu0 0.0
    %8152 = vmatprep.subr.mxu0 0.0
    %8153 = vmatpush1.msra.mxu0 0.0
    %8154 = vmatprep.subr.mxu0 0.0
    %8155 = vmatpush1.msra.mxu0 0.0
    %8156 = vmatprep.subr.mxu0 0.0
    %8157 = vmatpush1.msra.mxu0 0.0
    %8158 = vmatprep.subr.mxu0 0.0
    %8159 = vmatpush1.msra.mxu0 0.0
    %8160 = vmatprep.subr.mxu0 0.0
    %8161 = vmatpush1.msra.mxu0 0.0
    %8162 = vmatprep.subr.mxu0 0.0
    %8163 = vmatpush1.msra.mxu0 0.0
    %8164 = vmatprep.subr.mxu0 0.0
    %8165 = vmatpush1.msra.mxu0 0.0
    %8166 = vmatprep.subr.mxu0 0.0
    %8167 = vmatpush1.msra.mxu0 0.0
    %8168 = vmatprep.subr.mxu0 0.0
    %8169 = vmatpush1.msra.mxu0 0.0
    %8170 = vmatprep.mubr.f32.mxu0 0.0
    %8171 = vmatmul.mubr.f32.gmra.mrb[0].mxu0 %v8024
    %v8172 = vpop.f32.mrb[0].mxu0
    %v8173 = vadd.f32 0.0, %v8172
    %v8174 = vpop.f32.mrb[0].mxu0
    %v8175 = vadd.f32 0.0, %v8174
    %8176 = vmatprep.mubr.f32.mxu0 0.0
    %8177 = vmatmul.mubr.f32.gmra.mrb[0].mxu0 %v8027
    %v8178 = vpop.f32.mrb[0].mxu0
    %v8179 = vadd.f32 0.0, %v8178
    %v8180 = vpop.f32.mrb[0].mxu0
    %v8181 = vadd.f32 0.0, %v8180
    %8182 = vdwg.mxu0
    %v8183 = vadd.f32 %v7976, %v8096
    %v8184 = vadd.f32 %v7977, %v8098
    %v8185 = vadd.f32 %v7978, %v8173
    %v8186 = vadd.f32 %v7979, %v8175
    %v8187 = vadd.f32 %v7980, %v8102
    %v8188 = vadd.f32 %v7981, %v8104
    %v8189 = vadd.f32 %v7982, %v8179
    %v8190 = vadd.f32 %v7983, %v8181
    %s8191 = scalar_lea.vmem [#allocation11], 64
    %v8192 = vld [vmem:[%s8191] sm:$0xff]
    %v8193 = vld [vmem:[%s8191 + $0x8] sm:$0xff]
    %8194 = vrot.lane.b32.xlu0 %v7362, 126
    %v8195 = vpop.permute.xlu0 %8194
    %8196 = vrot.lane.b32.xlu0 %v7363, 126
    %v8197 = vpop.permute.xlu0 %8196
    %8198 = vrot.lane.b32.xlu0 %v7364, 126
    %v8199 = vpop.permute.xlu0 %8198
    %8200 = vrot.lane.b32.xlu0 %v7365, 126
    %v8201 = vpop.permute.xlu0 %8200
    %8202 = vrot.lane.b32.xlu0 %v7366, 126
    %v8203 = vpop.permute.xlu0 %8202
    %8204 = vrot.lane.b32.xlu0 %v7367, 126
    %v8205 = vpop.permute.xlu0 %8204
    %8206 = vrot.lane.b32.xlu0 %v7368, 126
    %v8207 = vpop.permute.xlu0 %8206
    %8208 = vrot.lane.b32.xlu0 %v7369, 126
    %v8209 = vpop.permute.xlu0 %8208
    %8210 = vrot.lane.b32.xlu0 %v7370, 126
    %v8211 = vpop.permute.xlu0 %8210
    %8212 = vrot.lane.b32.xlu0 %v7371, 126
    %v8213 = vpop.permute.xlu0 %8212
    %v8214 = vsel %vm3860, %v8195, %v8197
    %v8215 = vsel %vm3860, %v8197, %v8199
    %v8216 = vsel %vm3860, %v8199, %v8201
    %v8217 = vsel %vm3860, %v8201, %v8203
    %v8218 = vsel %vm3860, %v8205, %v8207
    %v8219 = vsel %vm3860, %v8207, %v8209
    %v8220 = vsel %vm3860, %v8209, %v8211
    %v8221 = vsel %vm3860, %v8211, %v8213
    %v8231 = vsel %vm2269, %v8192, 0
    %v8234 = vsel %vm2269, %v8193, 0
    %8236 = vmatprep.subr.mxu0 %v8215
    %8237 = vmatpush1.msra.mxu0 %v8214
    %8238 = vmatprep.subr.mxu0 %v8219
    %8239 = vmatpush1.msra.mxu0 %v8218
    %8240 = vmatprep.subr.mxu0 0.0
    %8241 = vmatpush1.msra.mxu0 0.0
    %8242 = vmatprep.subr.mxu0 0.0
    %8243 = vmatpush1.msra.mxu0 0.0
    %8244 = vmatprep.subr.mxu0 0.0
    %8245 = vmatpush1.msra.mxu0 0.0
    %8246 = vmatprep.subr.mxu0 0.0
    %8247 = vmatpush1.msra.mxu0 0.0
    %8248 = vmatprep.subr.mxu0 0.0
    %8249 = vmatpush1.msra.mxu0 0.0
    %8250 = vmatprep.subr.mxu0 0.0
    %8251 = vmatpush1.msra.mxu0 0.0
    %8252 = vmatprep.subr.mxu0 0.0
    %8253 = vmatpush1.msra.mxu0 0.0
    %8254 = vmatprep.subr.mxu0 0.0
    %8255 = vmatpush1.msra.mxu0 0.0
    %8256 = vmatprep.subr.mxu0 0.0
    %8257 = vmatpush1.msra.mxu0 0.0
    %8258 = vmatprep.subr.mxu0 0.0
    %8259 = vmatpush1.msra.mxu0 0.0
    %8260 = vmatprep.subr.mxu0 0.0
    %8261 = vmatpush1.msra.mxu0 0.0
    %8262 = vmatprep.subr.mxu0 0.0
    %8263 = vmatpush1.msra.mxu0 0.0
    %8264 = vmatprep.subr.mxu0 0.0
    %8265 = vmatpush1.msra.mxu0 0.0
    %8266 = vmatprep.subr.mxu0 0.0
    %8267 = vmatpush1.msra.mxu0 0.0
    %8268 = vmatprep.subr.mxu0 0.0
    %8269 = vmatpush1.msra.mxu0 0.0
    %8270 = vmatprep.subr.mxu0 0.0
    %8271 = vmatpush1.msra.mxu0 0.0
    %8272 = vmatprep.subr.mxu0 0.0
    %8273 = vmatpush1.msra.mxu0 0.0
    %8274 = vmatprep.subr.mxu0 0.0
    %8275 = vmatpush1.msra.mxu0 0.0
    %8276 = vmatprep.subr.mxu0 0.0
    %8277 = vmatpush1.msra.mxu0 0.0
    %8278 = vmatprep.subr.mxu0 0.0
    %8279 = vmatpush1.msra.mxu0 0.0
    %8280 = vmatprep.subr.mxu0 0.0
    %8281 = vmatpush1.msra.mxu0 0.0
    %8282 = vmatprep.subr.mxu0 0.0
    %8283 = vmatpush1.msra.mxu0 0.0
    %8284 = vmatprep.subr.mxu0 0.0
    %8285 = vmatpush1.msra.mxu0 0.0
    %8286 = vmatprep.subr.mxu0 0.0
    %8287 = vmatpush1.msra.mxu0 0.0
    %8288 = vmatprep.subr.mxu0 0.0
    %8289 = vmatpush1.msra.mxu0 0.0
    %8290 = vmatprep.subr.mxu0 0.0
    %8291 = vmatpush1.msra.mxu0 0.0
    %8292 = vmatprep.subr.mxu0 0.0
    %8293 = vmatpush1.msra.mxu0 0.0
    %8294 = vmatprep.subr.mxu0 0.0
    %8295 = vmatpush1.msra.mxu0 0.0
    %8296 = vmatprep.subr.mxu0 0.0
    %8297 = vmatpush1.msra.mxu0 0.0
    %8298 = vmatprep.subr.mxu0 0.0
    %8299 = vmatpush1.msra.mxu0 0.0
    %8300 = vmatprep.mubr.f32.mxu0 0.0
    %8301 = vmatmul.mubr.f32.gmra.mrb[0].mxu0 %v8231
    %v8302 = vpop.f32.mrb[0].mxu0
    %v8303 = vadd.f32 0.0, %v8302
    %v8304 = vpop.f32.mrb[0].mxu0
    %v8305 = vadd.f32 0.0, %v8304
    %8306 = vmatprep.mubr.f32.mxu0 0.0
    %8307 = vmatmul.mubr.f32.gmra.mrb[0].mxu0 %v8234
    %v8308 = vpop.f32.mrb[0].mxu0
    %v8309 = vadd.f32 0.0, %v8308
    %v8310 = vpop.f32.mrb[0].mxu0
    %v8311 = vadd.f32 0.0, %v8310
    %8312 = vdwg.mxu0
    %8313 = vmatprep.subr.mxu0 %v8217
    %8314 = vmatpush1.msra.mxu0 %v8216
    %8315 = vmatprep.subr.mxu0 %v8221
    %8316 = vmatpush1.msra.mxu0 %v8220
    %8317 = vmatprep.subr.mxu0 0.0
    %8318 = vmatpush1.msra.mxu0 0.0
    %8319 = vmatprep.subr.mxu0 0.0
    %8320 = vmatpush1.msra.mxu0 0.0
    %8321 = vmatprep.subr.mxu0 0.0
    %8322 = vmatpush1.msra.mxu0 0.0
    %8323 = vmatprep.subr.mxu0 0.0
    %8324 = vmatpush1.msra.mxu0 0.0
    %8325 = vmatprep.subr.mxu0 0.0
    %8326 = vmatpush1.msra.mxu0 0.0
    %8327 = vmatprep.subr.mxu0 0.0
    %8328 = vmatpush1.msra.mxu0 0.0
    %8329 = vmatprep.subr.mxu0 0.0
    %8330 = vmatpush1.msra.mxu0 0.0
    %8331 = vmatprep.subr.mxu0 0.0
    %8332 = vmatpush1.msra.mxu0 0.0
    %8333 = vmatprep.subr.mxu0 0.0
    %8334 = vmatpush1.msra.mxu0 0.0
    %8335 = vmatprep.subr.mxu0 0.0
    %8336 = vmatpush1.msra.mxu0 0.0
    %8337 = vmatprep.subr.mxu0 0.0
    %8338 = vmatpush1.msra.mxu0 0.0
    %8339 = vmatprep.subr.mxu0 0.0
    %8340 = vmatpush1.msra.mxu0 0.0
    %8341 = vmatprep.subr.mxu0 0.0
    %8342 = vmatpush1.msra.mxu0 0.0
    %8343 = vmatprep.subr.mxu0 0.0
    %8344 = vmatpush1.msra.mxu0 0.0
    %8345 = vmatprep.subr.mxu0 0.0
    %8346 = vmatpush1.msra.mxu0 0.0
    %8347 = vmatprep.subr.mxu0 0.0
    %8348 = vmatpush1.msra.mxu0 0.0
    %8349 = vmatprep.subr.mxu0 0.0
    %8350 = vmatpush1.msra.mxu0 0.0
    %8351 = vmatprep.subr.mxu0 0.0
    %8352 = vmatpush1.msra.mxu0 0.0
    %8353 = vmatprep.subr.mxu0 0.0
    %8354 = vmatpush1.msra.mxu0 0.0
    %8355 = vmatprep.subr.mxu0 0.0
    %8356 = vmatpush1.msra.mxu0 0.0
    %8357 = vmatprep.subr.mxu0 0.0
    %8358 = vmatpush1.msra.mxu0 0.0
    %8359 = vmatprep.subr.mxu0 0.0
    %8360 = vmatpush1.msra.mxu0 0.0
    %8361 = vmatprep.subr.mxu0 0.0
    %8362 = vmatpush1.msra.mxu0 0.0
    %8363 = vmatprep.subr.mxu0 0.0
    %8364 = vmatpush1.msra.mxu0 0.0
    %8365 = vmatprep.subr.mxu0 0.0
    %8366 = vmatpush1.msra.mxu0 0.0
    %8367 = vmatprep.subr.mxu0 0.0
    %8368 = vmatpush1.msra.mxu0 0.0
    %8369 = vmatprep.subr.mxu0 0.0
    %8370 = vmatpush1.msra.mxu0 0.0
    %8371 = vmatprep.subr.mxu0 0.0
    %8372 = vmatpush1.msra.mxu0 0.0
    %8373 = vmatprep.subr.mxu0 0.0
    %8374 = vmatpush1.msra.mxu0 0.0
    %8375 = vmatprep.subr.mxu0 0.0
    %8376 = vmatpush1.msra.mxu0 0.0
    %8377 = vmatprep.mubr.f32.mxu0 0.0
    %8378 = vmatmul.mubr.f32.gmra.mrb[0].mxu0 %v8231
    %v8379 = vpop.f32.mrb[0].mxu0
    %v8380 = vadd.f32 0.0, %v8379
    %v8381 = vpop.f32.mrb[0].mxu0
    %v8382 = vadd.f32 0.0, %v8381
    %8383 = vmatprep.mubr.f32.mxu0 0.0
    %8384 = vmatmul.mubr.f32.gmra.mrb[0].mxu0 %v8234
    %v8385 = vpop.f32.mrb[0].mxu0
    %v8386 = vadd.f32 0.0, %v8385
    %v8387 = vpop.f32.mrb[0].mxu0
    %v8388 = vadd.f32 0.0, %v8387
    %8389 = vdwg.mxu0
    %v8390 = vadd.f32 %v8183, %v8303
    %v8391 = vadd.f32 %v8184, %v8305
    %v8392 = vadd.f32 %v8185, %v8380
    %v8393 = vadd.f32 %v8186, %v8382
    %v8394 = vadd.f32 %v8187, %v8309
    %v8395 = vadd.f32 %v8188, %v8311
    %v8396 = vadd.f32 %v8189, %v8386
    %v8397 = vadd.f32 %v8190, %v8388
    %s8398 = scalar_lea.vmem [#allocation11], 80
    %v8399 = vld [vmem:[%s8398] sm:$0xff]
    %v8400 = vld [vmem:[%s8398 + $0x8] sm:$0xff]
    %8401 = vrot.lane.b32.xlu0 %v7362, 127
    %v8402 = vpop.permute.xlu0 %8401
    %8403 = vrot.lane.b32.xlu0 %v7363, 127
    %v8404 = vpop.permute.xlu0 %8403
    %8405 = vrot.lane.b32.xlu0 %v7364, 127
    %v8406 = vpop.permute.xlu0 %8405
    %8407 = vrot.lane.b32.xlu0 %v7365, 127
    %v8408 = vpop.permute.xlu0 %8407
    %8409 = vrot.lane.b32.xlu0 %v7366, 127
    %v8410 = vpop.permute.xlu0 %8409
    %8411 = vrot.lane.b32.xlu0 %v7367, 127
    %v8412 = vpop.permute.xlu0 %8411
    %8413 = vrot.lane.b32.xlu0 %v7368, 127
    %v8414 = vpop.permute.xlu0 %8413
    %8415 = vrot.lane.b32.xlu0 %v7369, 127
    %v8416 = vpop.permute.xlu0 %8415
    %8417 = vrot.lane.b32.xlu0 %v7370, 127
    %v8418 = vpop.permute.xlu0 %8417
    %8419 = vrot.lane.b32.xlu0 %v7371, 127
    %v8420 = vpop.permute.xlu0 %8419
    %v8421 = vsel %vm3995, %v8402, %v8404
    %v8422 = vsel %vm3995, %v8404, %v8406
    %v8423 = vsel %vm3995, %v8406, %v8408
    %v8424 = vsel %vm3995, %v8408, %v8410
    %v8425 = vsel %vm3995, %v8412, %v8414
    %v8426 = vsel %vm3995, %v8414, %v8416
    %v8427 = vsel %vm3995, %v8416, %v8418
    %v8428 = vsel %vm3995, %v8418, %v8420
    %v8438 = vsel %vm2269, %v8399, 0
    %v8441 = vsel %vm2269, %v8400, 0
    %8443 = vmatprep.subr.mxu0 %v8422
    %8444 = vmatpush1.msra.mxu0 %v8421
    %8445 = vmatprep.subr.mxu0 %v8426
    %8446 = vmatpush1.msra.mxu0 %v8425
    %8447 = vmatprep.subr.mxu0 0.0
    %8448 = vmatpush1.msra.mxu0 0.0
    %8449 = vmatprep.subr.mxu0 0.0
    %8450 = vmatpush1.msra.mxu0 0.0
    %8451 = vmatprep.subr.mxu0 0.0
    %8452 = vmatpush1.msra.mxu0 0.0
    %8453 = vmatprep.subr.mxu0 0.0
    %8454 = vmatpush1.msra.mxu0 0.0
    %8455 = vmatprep.subr.mxu0 0.0
    %8456 = vmatpush1.msra.mxu0 0.0
    %8457 = vmatprep.subr.mxu0 0.0
    %8458 = vmatpush1.msra.mxu0 0.0
    %8459 = vmatprep.subr.mxu0 0.0
    %8460 = vmatpush1.msra.mxu0 0.0
    %8461 = vmatprep.subr.mxu0 0.0
    %8462 = vmatpush1.msra.mxu0 0.0
    %8463 = vmatprep.subr.mxu0 0.0
    %8464 = vmatpush1.msra.mxu0 0.0
    %8465 = vmatprep.subr.mxu0 0.0
    %8466 = vmatpush1.msra.mxu0 0.0
    %8467 = vmatprep.subr.mxu0 0.0
    %8468 = vmatpush1.msra.mxu0 0.0
    %8469 = vmatprep.subr.mxu0 0.0
    %8470 = vmatpush1.msra.mxu0 0.0
    %8471 = vmatprep.subr.mxu0 0.0
    %8472 = vmatpush1.msra.mxu0 0.0
    %8473 = vmatprep.subr.mxu0 0.0
    %8474 = vmatpush1.msra.mxu0 0.0
    %8475 = vmatprep.subr.mxu0 0.0
    %8476 = vmatpush1.msra.mxu0 0.0
    %8477 = vmatprep.subr.mxu0 0.0
    %8478 = vmatpush1.msra.mxu0 0.0
    %8479 = vmatprep.subr.mxu0 0.0
    %8480 = vmatpush1.msra.mxu0 0.0
    %8481 = vmatprep.subr.mxu0 0.0
    %8482 = vmatpush1.msra.mxu0 0.0
    %8483 = vmatprep.subr.mxu0 0.0
    %8484 = vmatpush1.msra.mxu0 0.0
    %8485 = vmatprep.subr.mxu0 0.0
    %8486 = vmatpush1.msra.mxu0 0.0
    %8487 = vmatprep.subr.mxu0 0.0
    %8488 = vmatpush1.msra.mxu0 0.0
    %8489 = vmatprep.subr.mxu0 0.0
    %8490 = vmatpush1.msra.mxu0 0.0
    %8491 = vmatprep.subr.mxu0 0.0
    %8492 = vmatpush1.msra.mxu0 0.0
    %8493 = vmatprep.subr.mxu0 0.0
    %8494 = vmatpush1.msra.mxu0 0.0
    %8495 = vmatprep.subr.mxu0 0.0
    %8496 = vmatpush1.msra.mxu0 0.0
    %8497 = vmatprep.subr.mxu0 0.0
    %8498 = vmatpush1.msra.mxu0 0.0
    %8499 = vmatprep.subr.mxu0 0.0
    %8500 = vmatpush1.msra.mxu0 0.0
    %8501 = vmatprep.subr.mxu0 0.0
    %8502 = vmatpush1.msra.mxu0 0.0
    %8503 = vmatprep.subr.mxu0 0.0
    %8504 = vmatpush1.msra.mxu0 0.0
    %8505 = vmatprep.subr.mxu0 0.0
    %8506 = vmatpush1.msra.mxu0 0.0
    %8507 = vmatprep.mubr.f32.mxu0 0.0
    %8508 = vmatmul.mubr.f32.gmra.mrb[0].mxu0 %v8438
    %v8509 = vpop.f32.mrb[0].mxu0
    %v8510 = vadd.f32 0.0, %v8509
    %v8511 = vpop.f32.mrb[0].mxu0
    %v8512 = vadd.f32 0.0, %v8511
    %8513 = vmatprep.mubr.f32.mxu0 0.0
    %8514 = vmatmul.mubr.f32.gmra.mrb[0].mxu0 %v8441
    %v8515 = vpop.f32.mrb[0].mxu0
    %v8516 = vadd.f32 0.0, %v8515
    %v8517 = vpop.f32.mrb[0].mxu0
    %v8518 = vadd.f32 0.0, %v8517
    %8519 = vdwg.mxu0
    %8520 = vmatprep.subr.mxu0 %v8424
    %8521 = vmatpush1.msra.mxu0 %v8423
    %8522 = vmatprep.subr.mxu0 %v8428
    %8523 = vmatpush1.msra.mxu0 %v8427
    %8524 = vmatprep.subr.mxu0 0.0
    %8525 = vmatpush1.msra.mxu0 0.0
    %8526 = vmatprep.subr.mxu0 0.0
    %8527 = vmatpush1.msra.mxu0 0.0
    %8528 = vmatprep.subr.mxu0 0.0
    %8529 = vmatpush1.msra.mxu0 0.0
    %8530 = vmatprep.subr.mxu0 0.0
    %8531 = vmatpush1.msra.mxu0 0.0
    %8532 = vmatprep.subr.mxu0 0.0
    %8533 = vmatpush1.msra.mxu0 0.0
    %8534 = vmatprep.subr.mxu0 0.0
    %8535 = vmatpush1.msra.mxu0 0.0
    %8536 = vmatprep.subr.mxu0 0.0
    %8537 = vmatpush1.msra.mxu0 0.0
    %8538 = vmatprep.subr.mxu0 0.0
    %8539 = vmatpush1.msra.mxu0 0.0
    %8540 = vmatprep.subr.mxu0 0.0
    %8541 = vmatpush1.msra.mxu0 0.0
    %8542 = vmatprep.subr.mxu0 0.0
    %8543 = vmatpush1.msra.mxu0 0.0
    %8544 = vmatprep.subr.mxu0 0.0
    %8545 = vmatpush1.msra.mxu0 0.0
    %8546 = vmatprep.subr.mxu0 0.0
    %8547 = vmatpush1.msra.mxu0 0.0
    %8548 = vmatprep.subr.mxu0 0.0
    %8549 = vmatpush1.msra.mxu0 0.0
    %8550 = vmatprep.subr.mxu0 0.0
    %8551 = vmatpush1.msra.mxu0 0.0
    %8552 = vmatprep.subr.mxu0 0.0
    %8553 = vmatpush1.msra.mxu0 0.0
    %8554 = vmatprep.subr.mxu0 0.0
    %8555 = vmatpush1.msra.mxu0 0.0
    %8556 = vmatprep.subr.mxu0 0.0
    %8557 = vmatpush1.msra.mxu0 0.0
    %8558 = vmatprep.subr.mxu0 0.0
    %8559 = vmatpush1.msra.mxu0 0.0
    %8560 = vmatprep.subr.mxu0 0.0
    %8561 = vmatpush1.msra.mxu0 0.0
    %8562 = vmatprep.subr.mxu0 0.0
    %8563 = vmatpush1.msra.mxu0 0.0
    %8564 = vmatprep.subr.mxu0 0.0
    %8565 = vmatpush1.msra.mxu0 0.0
    %8566 = vmatprep.subr.mxu0 0.0
    %8567 = vmatpush1.msra.mxu0 0.0
    %8568 = vmatprep.subr.mxu0 0.0
    %8569 = vmatpush1.msra.mxu0 0.0
    %8570 = vmatprep.subr.mxu0 0.0
    %8571 = vmatpush1.msra.mxu0 0.0
    %8572 = vmatprep.subr.mxu0 0.0
    %8573 = vmatpush1.msra.mxu0 0.0
    %8574 = vmatprep.subr.mxu0 0.0
    %8575 = vmatpush1.msra.mxu0 0.0
    %8576 = vmatprep.subr.mxu0 0.0
    %8577 = vmatpush1.msra.mxu0 0.0
    %8578 = vmatprep.subr.mxu0 0.0
    %8579 = vmatpush1.msra.mxu0 0.0
    %8580 = vmatprep.subr.mxu0 0.0
    %8581 = vmatpush1.msra.mxu0 0.0
    %8582 = vmatprep.subr.mxu0 0.0
    %8583 = vmatpush1.msra.mxu0 0.0
    %8584 = vmatprep.mubr.f32.mxu0 0.0
    %8585 = vmatmul.mubr.f32.gmra.mrb[0].mxu0 %v8438
    %v8586 = vpop.f32.mrb[0].mxu0
    %v8587 = vadd.f32 0.0, %v8586
    %v8588 = vpop.f32.mrb[0].mxu0
    %v8589 = vadd.f32 0.0, %v8588
    %8590 = vmatprep.mubr.f32.mxu0 0.0
    %8591 = vmatmul.mubr.f32.gmra.mrb[0].mxu0 %v8441
    %v8592 = vpop.f32.mrb[0].mxu0
    %v8593 = vadd.f32 0.0, %v8592
    %v8594 = vpop.f32.mrb[0].mxu0
    %v8595 = vadd.f32 0.0, %v8594
    %8596 = vdwg.mxu0
    %v8597 = vadd.f32 %v8390, %v8510
    %v8598 = vadd.f32 %v8391, %v8512
    %v8599 = vadd.f32 %v8392, %v8587
    %v8600 = vadd.f32 %v8393, %v8589
    %v8601 = vadd.f32 %v8394, %v8516
    %v8602 = vadd.f32 %v8395, %v8518
    %v8603 = vadd.f32 %v8396, %v8593
    %v8604 = vadd.f32 %v8397, %v8595
    %s8605 = scalar_lea.vmem [#allocation11], 96
    %v8606 = vld [vmem:[%s8605] sm:$0xff]
    %v8607 = vld [vmem:[%s8605 + $0x8] sm:$0xff]
    %v8608 = vld [vmem:[#allocation4] sm:$0xff]
    %v8609 = vld [vmem:[#allocation4 + $0x8] sm:$0xff]
    %v8610 = vld [vmem:[#allocation4 + $0x10] sm:$0xff]
    %v8611 = vld [vmem:[#allocation4 + $0x18] sm:$0xff]
    %v8612 = vld [vmem:[#allocation4 + $0x28] sm:$0xff]
    %v8613 = vld [vmem:[#allocation4 + $0x30] sm:$0xff]
    %v8614 = vld [vmem:[#allocation4 + $0x38] sm:$0xff]
    %v8615 = vld [vmem:[#allocation4 + $0x40] sm:$0xff]
    %v8617 = vsel %vm2269, %v8606, 0
    %v8620 = vsel %vm2269, %v8607, 0
    %8622 = vmatprep.subr.mxu0 %v8609
    %8623 = vmatpush1.msra.mxu0 %v8608
    %8624 = vmatprep.subr.mxu0 %v8613
    %8625 = vmatpush1.msra.mxu0 %v8612
    %8626 = vmatprep.subr.mxu0 0.0
    %8627 = vmatpush1.msra.mxu0 0.0
    %8628 = vmatprep.subr.mxu0 0.0
    %8629 = vmatpush1.msra.mxu0 0.0
    %8630 = vmatprep.subr.mxu0 0.0
    %8631 = vmatpush1.msra.mxu0 0.0
    %8632 = vmatprep.subr.mxu0 0.0
    %8633 = vmatpush1.msra.mxu0 0.0
    %8634 = vmatprep.subr.mxu0 0.0
    %8635 = vmatpush1.msra.mxu0 0.0
    %8636 = vmatprep.subr.mxu0 0.0
    %8637 = vmatpush1.msra.mxu0 0.0
    %8638 = vmatprep.subr.mxu0 0.0
    %8639 = vmatpush1.msra.mxu0 0.0
    %8640 = vmatprep.subr.mxu0 0.0
    %8641 = vmatpush1.msra.mxu0 0.0
    %8642 = vmatprep.subr.mxu0 0.0
    %8643 = vmatpush1.msra.mxu0 0.0
    %8644 = vmatprep.subr.mxu0 0.0
    %8645 = vmatpush1.msra.mxu0 0.0
    %8646 = vmatprep.subr.mxu0 0.0
    %8647 = vmatpush1.msra.mxu0 0.0
    %8648 = vmatprep.subr.mxu0 0.0
    %8649 = vmatpush1.msra.mxu0 0.0
    %8650 = vmatprep.subr.mxu0 0.0
    %8651 = vmatpush1.msra.mxu0 0.0
    %8652 = vmatprep.subr.mxu0 0.0
    %8653 = vmatpush1.msra.mxu0 0.0
    %8654 = vmatprep.subr.mxu0 0.0
    %8655 = vmatpush1.msra.mxu0 0.0
    %8656 = vmatprep.subr.mxu0 0.0
    %8657 = vmatpush1.msra.mxu0 0.0
    %8658 = vmatprep.subr.mxu0 0.0
    %8659 = vmatpush1.msra.mxu0 0.0
    %8660 = vmatprep.subr.mxu0 0.0
    %8661 = vmatpush1.msra.mxu0 0.0
    %8662 = vmatprep.subr.mxu0 0.0
    %8663 = vmatpush1.msra.mxu0 0.0
    %8664 = vmatprep.subr.mxu0 0.0
    %8665 = vmatpush1.msra.mxu0 0.0
    %8666 = vmatprep.subr.mxu0 0.0
    %8667 = vmatpush1.msra.mxu0 0.0
    %8668 = vmatprep.subr.mxu0 0.0
    %8669 = vmatpush1.msra.mxu0 0.0
    %8670 = vmatprep.subr.mxu0 0.0
    %8671 = vmatpush1.msra.mxu0 0.0
    %8672 = vmatprep.subr.mxu0 0.0
    %8673 = vmatpush1.msra.mxu0 0.0
    %8674 = vmatprep.subr.mxu0 0.0
    %8675 = vmatpush1.msra.mxu0 0.0
    %8676 = vmatprep.subr.mxu0 0.0
    %8677 = vmatpush1.msra.mxu0 0.0
    %8678 = vmatprep.subr.mxu0 0.0
    %8679 = vmatpush1.msra.mxu0 0.0
    %8680 = vmatprep.subr.mxu0 0.0
    %8681 = vmatpush1.msra.mxu0 0.0
    %8682 = vmatprep.subr.mxu0 0.0
    %8683 = vmatpush1.msra.mxu0 0.0
    %8684 = vmatprep.subr.mxu0 0.0
    %8685 = vmatpush1.msra.mxu0 0.0
    %8686 = vmatprep.mubr.f32.mxu0 0.0
    %8687 = vmatmul.mubr.f32.gmra.mrb[0].mxu0 %v8617
    %v8688 = vpop.f32.mrb[0].mxu0
    %v8689 = vadd.f32 0.0, %v8688
    %v8690 = vpop.f32.mrb[0].mxu0
    %v8691 = vadd.f32 0.0, %v8690
    %8692 = vmatprep.mubr.f32.mxu0 0.0
    %8693 = vmatmul.mubr.f32.gmra.mrb[0].mxu0 %v8620
    %v8694 = vpop.f32.mrb[0].mxu0
    %v8695 = vadd.f32 0.0, %v8694
    %v8696 = vpop.f32.mrb[0].mxu0
    %v8697 = vadd.f32 0.0, %v8696
    %8698 = vdwg.mxu0
    %8699 = vmatprep.subr.mxu0 %v8611
    %8700 = vmatpush1.msra.mxu0 %v8610
    %8701 = vmatprep.subr.mxu0 %v8615
    %8702 = vmatpush1.msra.mxu0 %v8614
    %8703 = vmatprep.subr.mxu0 0.0
    %8704 = vmatpush1.msra.mxu0 0.0
    %8705 = vmatprep.subr.mxu0 0.0
    %8706 = vmatpush1.msra.mxu0 0.0
    %8707 = vmatprep.subr.mxu0 0.0
    %8708 = vmatpush1.msra.mxu0 0.0
    %8709 = vmatprep.subr.mxu0 0.0
    %8710 = vmatpush1.msra.mxu0 0.0
    %8711 = vmatprep.subr.mxu0 0.0
    %8712 = vmatpush1.msra.mxu0 0.0
    %8713 = vmatprep.subr.mxu0 0.0
    %8714 = vmatpush1.msra.mxu0 0.0
    %8715 = vmatprep.subr.mxu0 0.0
    %8716 = vmatpush1.msra.mxu0 0.0
    %8717 = vmatprep.subr.mxu0 0.0
    %8718 = vmatpush1.msra.mxu0 0.0
    %8719 = vmatprep.subr.mxu0 0.0
    %8720 = vmatpush1.msra.mxu0 0.0
    %8721 = vmatprep.subr.mxu0 0.0
    %8722 = vmatpush1.msra.mxu0 0.0
    %8723 = vmatprep.subr.mxu0 0.0
    %8724 = vmatpush1.msra.mxu0 0.0
    %8725 = vmatprep.subr.mxu0 0.0
    %8726 = vmatpush1.msra.mxu0 0.0
    %8727 = vmatprep.subr.mxu0 0.0
    %8728 = vmatpush1.msra.mxu0 0.0
    %8729 = vmatprep.subr.mxu0 0.0
    %8730 = vmatpush1.msra.mxu0 0.0
    %8731 = vmatprep.subr.mxu0 0.0
    %8732 = vmatpush1.msra.mxu0 0.0
    %8733 = vmatprep.subr.mxu0 0.0
    %8734 = vmatpush1.msra.mxu0 0.0
    %8735 = vmatprep.subr.mxu0 0.0
    %8736 = vmatpush1.msra.mxu0 0.0
    %8737 = vmatprep.subr.mxu0 0.0
    %8738 = vmatpush1.msra.mxu0 0.0
    %8739 = vmatprep.subr.mxu0 0.0
    %8740 = vmatpush1.msra.mxu0 0.0
    %8741 = vmatprep.subr.mxu0 0.0
    %8742 = vmatpush1.msra.mxu0 0.0
    %8743 = vmatprep.subr.mxu0 0.0
    %8744 = vmatpush1.msra.mxu0 0.0
    %8745 = vmatprep.subr.mxu0 0.0
    %8746 = vmatpush1.msra.mxu0 0.0
    %8747 = vmatprep.subr.mxu0 0.0
    %8748 = vmatpush1.msra.mxu0 0.0
    %8749 = vmatprep.subr.mxu0 0.0
    %8750 = vmatpush1.msra.mxu0 0.0
    %8751 = vmatprep.subr.mxu0 0.0
    %8752 = vmatpush1.msra.mxu0 0.0
    %8753 = vmatprep.subr.mxu0 0.0
    %8754 = vmatpush1.msra.mxu0 0.0
    %8755 = vmatprep.subr.mxu0 0.0
    %8756 = vmatpush1.msra.mxu0 0.0
    %8757 = vmatprep.subr.mxu0 0.0
    %8758 = vmatpush1.msra.mxu0 0.0
    %8759 = vmatprep.subr.mxu0 0.0
    %8760 = vmatpush1.msra.mxu0 0.0
    %8761 = vmatprep.subr.mxu0 0.0
    %8762 = vmatpush1.msra.mxu0 0.0
    %8763 = vmatprep.mubr.f32.mxu0 0.0
    %8764 = vmatmul.mubr.f32.gmra.mrb[0].mxu0 %v8617
    %v8765 = vpop.f32.mrb[0].mxu0
    %v8766 = vadd.f32 0.0, %v8765
    %v8767 = vpop.f32.mrb[0].mxu0
    %v8768 = vadd.f32 0.0, %v8767
    %8769 = vmatprep.mubr.f32.mxu0 0.0
    %8770 = vmatmul.mubr.f32.gmra.mrb[0].mxu0 %v8620
    %v8771 = vpop.f32.mrb[0].mxu0
    %v8772 = vadd.f32 0.0, %v8771
    %v8773 = vpop.f32.mrb[0].mxu0
    %v8774 = vadd.f32 0.0, %v8773
    %8775 = vdwg.mxu0
    %v8776 = vadd.f32 %v8597, %v8689
    %v8777 = vadd.f32 %v8598, %v8691
    %v8778 = vadd.f32 %v8599, %v8766
    %v8779 = vadd.f32 %v8600, %v8768
    %v8780 = vadd.f32 %v8601, %v8695
    %v8781 = vadd.f32 %v8602, %v8697
    %v8782 = vadd.f32 %v8603, %v8772
    %v8783 = vadd.f32 %v8604, %v8774
    %v8784 = vld [vmem:[%s9] sm:$0xff]
    %v8785 = vld [vmem:[%s9 + $0x8] sm:$0xff]
    %8787 = vset.pattern.permute.xlu0 0
    %8788 = vperm.xlu0 %8787, %v8784
    %v8789 = vpop.permute.xlu0 %8788
    %8792 = vset.pattern.permute.xlu0 0
    %8793 = vperm.xlu0 %8792, %v8785
    %v8794 = vpop.permute.xlu0 %8793
    %v8796 = vadd.f32 %v8776, %v8789
    %v8797 = vadd.f32 %v8777, %v8789
    %v8798 = vadd.f32 %v8778, %v8789
    %v8799 = vadd.f32 %v8779, %v8789
    %v8800 = vadd.f32 %v8780, %v8794
    %v8801 = vadd.f32 %v8781, %v8794
    %v8802 = vadd.f32 %v8782, %v8794
    %v8803 = vadd.f32 %v8783, %v8794
    %v8804 = vxor.u32 %v8796, 2147483648
    %v8805 = vxor.u32 %v8797, 2147483648
    %v8806 = vxor.u32 %v8798, 2147483648
    %v8807 = vxor.u32 %v8799, 2147483648
    %v8808 = vxor.u32 %v8800, 2147483648
    %v8809 = vxor.u32 %v8801, 2147483648
    %v8810 = vxor.u32 %v8802, 2147483648
    %v8811 = vxor.u32 %v8803, 2147483648
    %v8812 = vmul.f32 %v8804, 1.442695
    %v8813 = vpow.pop %v8812
    %v8814 = vmul.f32 %v8805, 1.442695
    %v8815 = vpow.pop %v8814
    %v8816 = vmul.f32 %v8806, 1.442695
    %v8817 = vpow.pop %v8816
    %v8818 = vmul.f32 %v8807, 1.442695
    %v8819 = vpow.pop %v8818
    %v8820 = vmul.f32 %v8808, 1.442695
    %v8821 = vpow.pop %v8820
    %v8822 = vmul.f32 %v8809, 1.442695
    %v8823 = vpow.pop %v8822
    %v8824 = vmul.f32 %v8810, 1.442695
    %v8825 = vpow.pop %v8824
    %v8826 = vmul.f32 %v8811, 1.442695
    %v8827 = vpow.pop %v8826
    %v8828 = vadd.f32 %v8813, 1.0
    %v8829 = vadd.f32 %v8815, 1.0
    %v8830 = vadd.f32 %v8817, 1.0
    %v8831 = vadd.f32 %v8819, 1.0
    %v8832 = vadd.f32 %v8821, 1.0
    %v8833 = vadd.f32 %v8823, 1.0
    %v8834 = vadd.f32 %v8825, 1.0
    %v8835 = vadd.f32 %v8827, 1.0
    %v8836 = vrcp.pop %v8828
    %v8837 = vmul.f32 1.0, %v8836
    %v8838 = vrcp.pop %v8829
    %v8839 = vmul.f32 1.0, %v8838
    %v8840 = vrcp.pop %v8830
    %v8841 = vmul.f32 1.0, %v8840
    %v8842 = vrcp.pop %v8831
    %v8843 = vmul.f32 1.0, %v8842
    %v8844 = vrcp.pop %v8832
    %v8845 = vmul.f32 1.0, %v8844
    %v8846 = vrcp.pop %v8833
    %v8847 = vmul.f32 1.0, %v8846
    %v8848 = vrcp.pop %v8834
    %v8849 = vmul.f32 1.0, %v8848
    %v8850 = vrcp.pop %v8835
    %v8851 = vmul.f32 1.0, %v8850
    %v8852 = vadd.s32 %v4292, 128
    %v8853 = vadd.s32 %v4292, 136
    %v8854 = vadd.s32 %v4292, 144
    %v8855 = vadd.s32 %v4292, 152
    %v8856 = vadd.s32 %v4292, 160
    %v8857 = vadd.s32 %v4292, 168
    %v8858 = vadd.s32 %v4292, 176
    %v8859 = vadd.s32 %v4292, 184
    %v8860 = vadd.s32 %v4292, 192
    %v8861 = vadd.s32 %v4292, 200
    %v8862 = vadd.s32 %v4292, 208
    %v8863 = vadd.s32 %v4292, 216
    %v8864 = vadd.s32 %v4292, 224
    %v8865 = vadd.s32 %v4292, 232
    %v8866 = vadd.s32 %v4292, 240
    %v8867 = vadd.s32 %v4292, 248
    %v8868 = vadd.s32 %v4300, 256
    %v8869 = vadd.s32 %v4300, 384
    %v8870 = vmul.u32 %v8852, 2
    %v8871 = vmul.u32 %v8853, 2
    %v8872 = vmul.u32 %v8854, 2
    %v8873 = vmul.u32 %v8855, 2
    %v8874 = vmul.u32 %v8856, 2
    %v8875 = vmul.u32 %v8857, 2
    %v8876 = vmul.u32 %v8858, 2
    %v8877 = vmul.u32 %v8859, 2
    %v8878 = vmul.u32 %v8860, 2
    %v8879 = vmul.u32 %v8861, 2
    %v8880 = vmul.u32 %v8862, 2
    %v8881 = vmul.u32 %v8863, 2
    %v8882 = vmul.u32 %v8864, 2
    %v8883 = vmul.u32 %v8865, 2
    %v8884 = vmul.u32 %v8866, 2
    %v8885 = vmul.u32 %v8867, 2
    %v8886 = vsub.s32 %v8868, %v4301
    %v8887 = vsub.s32 %v8869, %v4301
    %v8888 = vsub.s32 %v8868, %v4302
    %v8889 = vsub.s32 %v8869, %v4302
    %v8890 = vsub.s32 %v8868, %v4303
    %v8891 = vsub.s32 %v8869, %v4303
    %v8892 = vsub.s32 %v8868, %v4304
    %v8893 = vsub.s32 %v8869, %v4304
    %v8894 = vsub.s32 %v8868, %v4305
    %v8895 = vsub.s32 %v8869, %v4305
    %v8896 = vsub.s32 %v8868, %v4306
    %v8897 = vsub.s32 %v8869, %v4306
    %v8898 = vsub.s32 %v8868, %v4307
    %v8899 = vsub.s32 %v8869, %v4307
    %v8900 = vsub.s32 %v8868, %v6775
    %v8901 = vsub.s32 %v8869, %v6775
    %v8902 = vsub.s32 %v8868, %v6776
    %v8903 = vsub.s32 %v8869, %v6776
    %v8904 = vsub.s32 %v8868, %v6777
    %v8905 = vsub.s32 %v8869, %v6777
    %v8906 = vsub.s32 %v8868, %v6778
    %v8907 = vsub.s32 %v8869, %v6778
    %v8908 = vsub.s32 %v8868, %v6779
    %v8909 = vsub.s32 %v8869, %v6779
    %v8910 = vsub.s32 %v8868, %v6780
    %v8911 = vsub.s32 %v8869, %v6780
    %v8912 = vsub.s32 %v8868, %v6781
    %v8913 = vsub.s32 %v8869, %v6781
    %v8914 = vsub.s32 %v8868, %v6782
    %v8915 = vsub.s32 %v8869, %v6782
    %v8916 = vsub.s32 %v8868, %v6783
    %v8917 = vsub.s32 %v8869, %v6783
    %v8918 = vsub.s32 %v4300, %v8870
    %v8919 = vsub.s32 %v6774, %v8870
    %v8920 = vsub.s32 %v8868, %v8870
    %v8921 = vsub.s32 %v8869, %v8870
    %v8922 = vsub.s32 %v4300, %v8871
    %v8923 = vsub.s32 %v6774, %v8871
    %v8924 = vsub.s32 %v8868, %v8871
    %v8925 = vsub.s32 %v8869, %v8871
    %v8926 = vsub.s32 %v4300, %v8872
    %v8927 = vsub.s32 %v6774, %v8872
    %v8928 = vsub.s32 %v8868, %v8872
    %v8929 = vsub.s32 %v8869, %v8872
    %v8930 = vsub.s32 %v4300, %v8873
    %v8931 = vsub.s32 %v6774, %v8873
    %v8932 = vsub.s32 %v8868, %v8873
    %v8933 = vsub.s32 %v8869, %v8873
    %v8934 = vsub.s32 %v4300, %v8874
    %v8935 = vsub.s32 %v6774, %v8874
    %v8936 = vsub.s32 %v8868, %v8874
    %v8937 = vsub.s32 %v8869, %v8874
    %v8938 = vsub.s32 %v4300, %v8875
    %v8939 = vsub.s32 %v6774, %v8875
    %v8940 = vsub.s32 %v8868, %v8875
    %v8941 = vsub.s32 %v8869, %v8875
    %v8942 = vsub.s32 %v4300, %v8876
    %v8943 = vsub.s32 %v6774, %v8876
    %v8944 = vsub.s32 %v8868, %v8876
    %v8945 = vsub.s32 %v8869, %v8876
    %v8946 = vsub.s32 %v4300, %v8877
    %v8947 = vsub.s32 %v6774, %v8877
    %v8948 = vsub.s32 %v8868, %v8877
    %v8949 = vsub.s32 %v8869, %v8877
    %v8950 = vsub.s32 %v4300, %v8878
    %v8951 = vsub.s32 %v6774, %v8878
    %v8952 = vsub.s32 %v8868, %v8878
    %v8953 = vsub.s32 %v8869, %v8878
    %v8954 = vsub.s32 %v4300, %v8879
    %v8955 = vsub.s32 %v6774, %v8879
    %v8956 = vsub.s32 %v8868, %v8879
    %v8957 = vsub.s32 %v8869, %v8879
    %v8958 = vsub.s32 %v4300, %v8880
    %v8959 = vsub.s32 %v6774, %v8880
    %v8960 = vsub.s32 %v8868, %v8880
    %v8961 = vsub.s32 %v8869, %v8880
    %v8962 = vsub.s32 %v4300, %v8881
    %v8963 = vsub.s32 %v6774, %v8881
    %v8964 = vsub.s32 %v8868, %v8881
    %v8965 = vsub.s32 %v8869, %v8881
    %v8966 = vsub.s32 %v4300, %v8882
    %v8967 = vsub.s32 %v6774, %v8882
    %v8968 = vsub.s32 %v8868, %v8882
    %v8969 = vsub.s32 %v8869, %v8882
    %v8970 = vsub.s32 %v4300, %v8883
    %v8971 = vsub.s32 %v6774, %v8883
    %v8972 = vsub.s32 %v8868, %v8883
    %v8973 = vsub.s32 %v8869, %v8883
    %v8974 = vsub.s32 %v4300, %v8884
    %v8975 = vsub.s32 %v6774, %v8884
    %v8976 = vsub.s32 %v8868, %v8884
    %v8977 = vsub.s32 %v8869, %v8884
    %v8978 = vsub.s32 %v4300, %v8885
    %v8979 = vsub.s32 %v6774, %v8885
    %v8980 = vsub.s32 %v8868, %v8885
    %v8981 = vsub.s32 %v8869, %v8885
    %vm8982 = vcmp.eq.s32.totalorder %v8886, 0
    %vm8983 = vcmp.eq.s32.totalorder %v8887, 0
    %vm8984 = vcmp.eq.s32.totalorder %v8888, 0
    %vm8985 = vcmp.eq.s32.totalorder %v8889, 0
    %vm8986 = vcmp.eq.s32.totalorder %v8890, 0
    %vm8987 = vcmp.eq.s32.totalorder %v8891, 0
    %vm8988 = vcmp.eq.s32.totalorder %v8892, 0
    %vm8989 = vcmp.eq.s32.totalorder %v8893, 0
    %vm8990 = vcmp.eq.s32.totalorder %v8894, 0
    %vm8991 = vcmp.eq.s32.totalorder %v8895, 0
    %vm8992 = vcmp.eq.s32.totalorder %v8896, 0
    %vm8993 = vcmp.eq.s32.totalorder %v8897, 0
    %vm8994 = vcmp.eq.s32.totalorder %v8898, 0
    %vm8995 = vcmp.eq.s32.totalorder %v8899, 0
    %vm8996 = vcmp.eq.s32.totalorder %v8900, 0
    %vm8997 = vcmp.eq.s32.totalorder %v8901, 0
    %vm8998 = vcmp.eq.s32.totalorder %v8902, 0
    %vm8999 = vcmp.eq.s32.totalorder %v8903, 0
    %vm9000 = vcmp.eq.s32.totalorder %v8904, 0
    %vm9001 = vcmp.eq.s32.totalorder %v8905, 0
    %vm9002 = vcmp.eq.s32.totalorder %v8906, 0
    %vm9003 = vcmp.eq.s32.totalorder %v8907, 0
    %vm9004 = vcmp.eq.s32.totalorder %v8908, 0
    %vm9005 = vcmp.eq.s32.totalorder %v8909, 0
    %vm9006 = vcmp.eq.s32.totalorder %v8910, 0
    %vm9007 = vcmp.eq.s32.totalorder %v8911, 0
    %vm9008 = vcmp.eq.s32.totalorder %v8912, 0
    %vm9009 = vcmp.eq.s32.totalorder %v8913, 0
    %vm9010 = vcmp.eq.s32.totalorder %v8914, 0
    %vm9011 = vcmp.eq.s32.totalorder %v8915, 0
    %vm9012 = vcmp.eq.s32.totalorder %v8916, 0
    %vm9013 = vcmp.eq.s32.totalorder %v8917, 0
    %vm9014 = vcmp.eq.s32.totalorder %v8918, 0
    %vm9015 = vcmp.eq.s32.totalorder %v8919, 0
    %vm9016 = vcmp.eq.s32.totalorder %v8920, 0
    %vm9017 = vcmp.eq.s32.totalorder %v8921, 0
    %vm9018 = vcmp.eq.s32.totalorder %v8922, 0
    %vm9019 = vcmp.eq.s32.totalorder %v8923, 0
    %vm9020 = vcmp.eq.s32.totalorder %v8924, 0
    %vm9021 = vcmp.eq.s32.totalorder %v8925, 0
    %vm9022 = vcmp.eq.s32.totalorder %v8926, 0
    %vm9023 = vcmp.eq.s32.totalorder %v8927, 0
    %vm9024 = vcmp.eq.s32.totalorder %v8928, 0
    %vm9025 = vcmp.eq.s32.totalorder %v8929, 0
    %vm9026 = vcmp.eq.s32.totalorder %v8930, 0
    %vm9027 = vcmp.eq.s32.totalorder %v8931, 0
    %vm9028 = vcmp.eq.s32.totalorder %v8932, 0
    %vm9029 = vcmp.eq.s32.totalorder %v8933, 0
    %vm9030 = vcmp.eq.s32.totalorder %v8934, 0
    %vm9031 = vcmp.eq.s32.totalorder %v8935, 0
    %vm9032 = vcmp.eq.s32.totalorder %v8936, 0
    %vm9033 = vcmp.eq.s32.totalorder %v8937, 0
    %vm9034 = vcmp.eq.s32.totalorder %v8938, 0
    %vm9035 = vcmp.eq.s32.totalorder %v8939, 0
    %vm9036 = vcmp.eq.s32.totalorder %v8940, 0
    %vm9037 = vcmp.eq.s32.totalorder %v8941, 0
    %vm9038 = vcmp.eq.s32.totalorder %v8942, 0
    %vm9039 = vcmp.eq.s32.totalorder %v8943, 0
    %vm9040 = vcmp.eq.s32.totalorder %v8944, 0
    %vm9041 = vcmp.eq.s32.totalorder %v8945, 0
    %vm9042 = vcmp.eq.s32.totalorder %v8946, 0
    %vm9043 = vcmp.eq.s32.totalorder %v8947, 0
    %vm9044 = vcmp.eq.s32.totalorder %v8948, 0
    %vm9045 = vcmp.eq.s32.totalorder %v8949, 0
    %vm9046 = vcmp.eq.s32.totalorder %v8950, 0
    %vm9047 = vcmp.eq.s32.totalorder %v8951, 0
    %vm9048 = vcmp.eq.s32.totalorder %v8952, 0
    %vm9049 = vcmp.eq.s32.totalorder %v8953, 0
    %vm9050 = vcmp.eq.s32.totalorder %v8954, 0
    %vm9051 = vcmp.eq.s32.totalorder %v8955, 0
    %vm9052 = vcmp.eq.s32.totalorder %v8956, 0
    %vm9053 = vcmp.eq.s32.totalorder %v8957, 0
    %vm9054 = vcmp.eq.s32.totalorder %v8958, 0
    %vm9055 = vcmp.eq.s32.totalorder %v8959, 0
    %vm9056 = vcmp.eq.s32.totalorder %v8960, 0
    %vm9057 = vcmp.eq.s32.totalorder %v8961, 0
    %vm9058 = vcmp.eq.s32.totalorder %v8962, 0
    %vm9059 = vcmp.eq.s32.totalorder %v8963, 0
    %vm9060 = vcmp.eq.s32.totalorder %v8964, 0
    %vm9061 = vcmp.eq.s32.totalorder %v8965, 0
    %vm9062 = vcmp.eq.s32.totalorder %v8966, 0
    %vm9063 = vcmp.eq.s32.totalorder %v8967, 0
    %vm9064 = vcmp.eq.s32.totalorder %v8968, 0
    %vm9065 = vcmp.eq.s32.totalorder %v8969, 0
    %vm9066 = vcmp.eq.s32.totalorder %v8970, 0
    %vm9067 = vcmp.eq.s32.totalorder %v8971, 0
    %vm9068 = vcmp.eq.s32.totalorder %v8972, 0
    %vm9069 = vcmp.eq.s32.totalorder %v8973, 0
    %vm9070 = vcmp.eq.s32.totalorder %v8974, 0
    %vm9071 = vcmp.eq.s32.totalorder %v8975, 0
    %vm9072 = vcmp.eq.s32.totalorder %v8976, 0
    %vm9073 = vcmp.eq.s32.totalorder %v8977, 0
    %vm9074 = vcmp.eq.s32.totalorder %v8978, 0
    %vm9075 = vcmp.eq.s32.totalorder %v8979, 0
    %vm9076 = vcmp.eq.s32.totalorder %v8980, 0
    %vm9077 = vcmp.eq.s32.totalorder %v8981, 0
    %v9078 = vsel %vm8982, 1, 0
    %v9079 = vsel %vm8983, 1, 0
    %v9080 = vsel %vm8984, 1, 0
    %v9081 = vsel %vm8985, 1, 0
    %v9082 = vsel %vm8986, 1, 0
    %v9083 = vsel %vm8987, 1, 0
    %v9084 = vsel %vm8988, 1, 0
    %v9085 = vsel %vm8989, 1, 0
    %v9086 = vsel %vm8990, 1, 0
    %v9087 = vsel %vm8991, 1, 0
    %v9088 = vsel %vm8992, 1, 0
    %v9089 = vsel %vm8993, 1, 0
    %v9090 = vsel %vm8994, 1, 0
    %v9091 = vsel %vm8995, 1, 0
    %v9092 = vsel %vm8996, 1, 0
    %v9093 = vsel %vm8997, 1, 0
    %v9094 = vsel %vm8998, 1, 0
    %v9095 = vsel %vm8999, 1, 0
    %v9096 = vsel %vm9000, 1, 0
    %v9097 = vsel %vm9001, 1, 0
    %v9098 = vsel %vm9002, 1, 0
    %v9099 = vsel %vm9003, 1, 0
    %v9100 = vsel %vm9004, 1, 0
    %v9101 = vsel %vm9005, 1, 0
    %v9102 = vsel %vm9006, 1, 0
    %v9103 = vsel %vm9007, 1, 0
    %v9104 = vsel %vm9008, 1, 0
    %v9105 = vsel %vm9009, 1, 0
    %v9106 = vsel %vm9010, 1, 0
    %v9107 = vsel %vm9011, 1, 0
    %v9108 = vsel %vm9012, 1, 0
    %v9109 = vsel %vm9013, 1, 0
    %v9110 = vsel %vm9014, 1, 0
    %v9111 = vsel %vm9015, 1, 0
    %v9112 = vsel %vm9016, 1, 0
    %v9113 = vsel %vm9017, 1, 0
    %v9114 = vsel %vm9018, 1, 0
    %v9115 = vsel %vm9019, 1, 0
    %v9116 = vsel %vm9020, 1, 0
    %v9117 = vsel %vm9021, 1, 0
    %v9118 = vsel %vm9022, 1, 0
    %v9119 = vsel %vm9023, 1, 0
    %v9120 = vsel %vm9024, 1, 0
    %v9121 = vsel %vm9025, 1, 0
    %v9122 = vsel %vm9026, 1, 0
    %v9123 = vsel %vm9027, 1, 0
    %v9124 = vsel %vm9028, 1, 0
    %v9125 = vsel %vm9029, 1, 0
    %v9126 = vsel %vm9030, 1, 0
    %v9127 = vsel %vm9031, 1, 0
    %v9128 = vsel %vm9032, 1, 0
    %v9129 = vsel %vm9033, 1, 0
    %v9130 = vsel %vm9034, 1, 0
    %v9131 = vsel %vm9035, 1, 0
    %v9132 = vsel %vm9036, 1, 0
    %v9133 = vsel %vm9037, 1, 0
    %v9134 = vsel %vm9038, 1, 0
    %v9135 = vsel %vm9039, 1, 0
    %v9136 = vsel %vm9040, 1, 0
    %v9137 = vsel %vm9041, 1, 0
    %v9138 = vsel %vm9042, 1, 0
    %v9139 = vsel %vm9043, 1, 0
    %v9140 = vsel %vm9044, 1, 0
    %v9141 = vsel %vm9045, 1, 0
    %v9142 = vsel %vm9046, 1, 0
    %v9143 = vsel %vm9047, 1, 0
    %v9144 = vsel %vm9048, 1, 0
    %v9145 = vsel %vm9049, 1, 0
    %v9146 = vsel %vm9050, 1, 0
    %v9147 = vsel %vm9051, 1, 0
    %v9148 = vsel %vm9052, 1, 0
    %v9149 = vsel %vm9053, 1, 0
    %v9150 = vsel %vm9054, 1, 0
    %v9151 = vsel %vm9055, 1, 0
    %v9152 = vsel %vm9056, 1, 0
    %v9153 = vsel %vm9057, 1, 0
    %v9154 = vsel %vm9058, 1, 0
    %v9155 = vsel %vm9059, 1, 0
    %v9156 = vsel %vm9060, 1, 0
    %v9157 = vsel %vm9061, 1, 0
    %v9158 = vsel %vm9062, 1, 0
    %v9159 = vsel %vm9063, 1, 0
    %v9160 = vsel %vm9064, 1, 0
    %v9161 = vsel %vm9065, 1, 0
    %v9162 = vsel %vm9066, 1, 0
    %v9163 = vsel %vm9067, 1, 0
    %v9164 = vsel %vm9068, 1, 0
    %v9165 = vsel %vm9069, 1, 0
    %v9166 = vsel %vm9070, 1, 0
    %v9167 = vsel %vm9071, 1, 0
    %v9168 = vsel %vm9072, 1, 0
    %v9169 = vsel %vm9073, 1, 0
    %v9170 = vsel %vm9074, 1, 0
    %v9171 = vsel %vm9075, 1, 0
    %v9172 = vsel %vm9076, 1, 0
    %v9173 = vsel %vm9077, 1, 0
    %v9174 = vcvt.s32.f32 %v9078
    %v9175 = vcvt.s32.f32 %v9079
    %v9176 = vcvt.s32.f32 %v9080
    %v9177 = vcvt.s32.f32 %v9081
    %v9178 = vcvt.s32.f32 %v9082
    %v9179 = vcvt.s32.f32 %v9083
    %v9180 = vcvt.s32.f32 %v9084
    %v9181 = vcvt.s32.f32 %v9085
    %v9182 = vcvt.s32.f32 %v9086
    %v9183 = vcvt.s32.f32 %v9087
    %v9184 = vcvt.s32.f32 %v9088
    %v9185 = vcvt.s32.f32 %v9089
    %v9186 = vcvt.s32.f32 %v9090
    %v9187 = vcvt.s32.f32 %v9091
    %v9188 = vcvt.s32.f32 %v9092
    %v9189 = vcvt.s32.f32 %v9093
    %v9190 = vcvt.s32.f32 %v9094
    %v9191 = vcvt.s32.f32 %v9095
    %v9192 = vcvt.s32.f32 %v9096
    %v9193 = vcvt.s32.f32 %v9097
    %v9194 = vcvt.s32.f32 %v9098
    %v9195 = vcvt.s32.f32 %v9099
    %v9196 = vcvt.s32.f32 %v9100
    %v9197 = vcvt.s32.f32 %v9101
    %v9198 = vcvt.s32.f32 %v9102
    %v9199 = vcvt.s32.f32 %v9103
    %v9200 = vcvt.s32.f32 %v9104
    %v9201 = vcvt.s32.f32 %v9105
    %v9202 = vcvt.s32.f32 %v9106
    %v9203 = vcvt.s32.f32 %v9107
    %v9204 = vcvt.s32.f32 %v9108
    %v9205 = vcvt.s32.f32 %v9109
    %v9206 = vcvt.s32.f32 %v9110
    %v9207 = vcvt.s32.f32 %v9111
    %v9208 = vcvt.s32.f32 %v9112
    %v9209 = vcvt.s32.f32 %v9113
    %v9210 = vcvt.s32.f32 %v9114
    %v9211 = vcvt.s32.f32 %v9115
    %v9212 = vcvt.s32.f32 %v9116
    %v9213 = vcvt.s32.f32 %v9117
    %v9214 = vcvt.s32.f32 %v9118
    %v9215 = vcvt.s32.f32 %v9119
    %v9216 = vcvt.s32.f32 %v9120
    %v9217 = vcvt.s32.f32 %v9121
    %v9218 = vcvt.s32.f32 %v9122
    %v9219 = vcvt.s32.f32 %v9123
    %v9220 = vcvt.s32.f32 %v9124
    %v9221 = vcvt.s32.f32 %v9125
    %v9222 = vcvt.s32.f32 %v9126
    %v9223 = vcvt.s32.f32 %v9127
    %v9224 = vcvt.s32.f32 %v9128
    %v9225 = vcvt.s32.f32 %v9129
    %v9226 = vcvt.s32.f32 %v9130
    %v9227 = vcvt.s32.f32 %v9131
    %v9228 = vcvt.s32.f32 %v9132
    %v9229 = vcvt.s32.f32 %v9133
    %v9230 = vcvt.s32.f32 %v9134
    %v9231 = vcvt.s32.f32 %v9135
    %v9232 = vcvt.s32.f32 %v9136
    %v9233 = vcvt.s32.f32 %v9137
    %v9234 = vcvt.s32.f32 %v9138
    %v9235 = vcvt.s32.f32 %v9139
    %v9236 = vcvt.s32.f32 %v9140
    %v9237 = vcvt.s32.f32 %v9141
    %v9238 = vcvt.s32.f32 %v9142
    %v9239 = vcvt.s32.f32 %v9143
    %v9240 = vcvt.s32.f32 %v9144
    %v9241 = vcvt.s32.f32 %v9145
    %v9242 = vcvt.s32.f32 %v9146
    %v9243 = vcvt.s32.f32 %v9147
    %v9244 = vcvt.s32.f32 %v9148
    %v9245 = vcvt.s32.f32 %v9149
    %v9246 = vcvt.s32.f32 %v9150
    %v9247 = vcvt.s32.f32 %v9151
    %v9248 = vcvt.s32.f32 %v9152
    %v9249 = vcvt.s32.f32 %v9153
    %v9250 = vcvt.s32.f32 %v9154
    %v9251 = vcvt.s32.f32 %v9155
    %v9252 = vcvt.s32.f32 %v9156
    %v9253 = vcvt.s32.f32 %v9157
    %v9254 = vcvt.s32.f32 %v9158
    %v9255 = vcvt.s32.f32 %v9159
    %v9256 = vcvt.s32.f32 %v9160
    %v9257 = vcvt.s32.f32 %v9161
    %v9258 = vcvt.s32.f32 %v9162
    %v9259 = vcvt.s32.f32 %v9163
    %v9260 = vcvt.s32.f32 %v9164
    %v9261 = vcvt.s32.f32 %v9165
    %v9262 = vcvt.s32.f32 %v9166
    %v9263 = vcvt.s32.f32 %v9167
    %v9264 = vcvt.s32.f32 %v9168
    %v9265 = vcvt.s32.f32 %v9169
    %v9266 = vcvt.s32.f32 %v9170
    %v9267 = vcvt.s32.f32 %v9171
    %v9268 = vcvt.s32.f32 %v9172
    %v9269 = vcvt.s32.f32 %v9173
    %vm9270 = vcmp.eq.s32.totalorder %v8886, 1
    %vm9271 = vcmp.eq.s32.totalorder %v8887, 1
    %vm9272 = vcmp.eq.s32.totalorder %v8888, 1
    %vm9273 = vcmp.eq.s32.totalorder %v8889, 1
    %vm9274 = vcmp.eq.s32.totalorder %v8890, 1
    %vm9275 = vcmp.eq.s32.totalorder %v8891, 1
    %vm9276 = vcmp.eq.s32.totalorder %v8892, 1
    %vm9277 = vcmp.eq.s32.totalorder %v8893, 1
    %vm9278 = vcmp.eq.s32.totalorder %v8894, 1
    %vm9279 = vcmp.eq.s32.totalorder %v8895, 1
    %vm9280 = vcmp.eq.s32.totalorder %v8896, 1
    %vm9281 = vcmp.eq.s32.totalorder %v8897, 1
    %vm9282 = vcmp.eq.s32.totalorder %v8898, 1
    %vm9283 = vcmp.eq.s32.totalorder %v8899, 1
    %vm9284 = vcmp.eq.s32.totalorder %v8900, 1
    %vm9285 = vcmp.eq.s32.totalorder %v8901, 1
    %vm9286 = vcmp.eq.s32.totalorder %v8902, 1
    %vm9287 = vcmp.eq.s32.totalorder %v8903, 1
    %vm9288 = vcmp.eq.s32.totalorder %v8904, 1
    %vm9289 = vcmp.eq.s32.totalorder %v8905, 1
    %vm9290 = vcmp.eq.s32.totalorder %v8906, 1
    %vm9291 = vcmp.eq.s32.totalorder %v8907, 1
    %vm9292 = vcmp.eq.s32.totalorder %v8908, 1
    %vm9293 = vcmp.eq.s32.totalorder %v8909, 1
    %vm9294 = vcmp.eq.s32.totalorder %v8910, 1
    %vm9295 = vcmp.eq.s32.totalorder %v8911, 1
    %vm9296 = vcmp.eq.s32.totalorder %v8912, 1
    %vm9297 = vcmp.eq.s32.totalorder %v8913, 1
    %vm9298 = vcmp.eq.s32.totalorder %v8914, 1
    %vm9299 = vcmp.eq.s32.totalorder %v8915, 1
    %vm9300 = vcmp.eq.s32.totalorder %v8916, 1
    %vm9301 = vcmp.eq.s32.totalorder %v8917, 1
    %vm9302 = vcmp.eq.s32.totalorder %v8918, 1
    %vm9303 = vcmp.eq.s32.totalorder %v8919, 1
    %vm9304 = vcmp.eq.s32.totalorder %v8920, 1
    %vm9305 = vcmp.eq.s32.totalorder %v8921, 1
    %vm9306 = vcmp.eq.s32.totalorder %v8922, 1
    %vm9307 = vcmp.eq.s32.totalorder %v8923, 1
    %vm9308 = vcmp.eq.s32.totalorder %v8924, 1
    %vm9309 = vcmp.eq.s32.totalorder %v8925, 1
    %vm9310 = vcmp.eq.s32.totalorder %v8926, 1
    %vm9311 = vcmp.eq.s32.totalorder %v8927, 1
    %vm9312 = vcmp.eq.s32.totalorder %v8928, 1
    %vm9313 = vcmp.eq.s32.totalorder %v8929, 1
    %vm9314 = vcmp.eq.s32.totalorder %v8930, 1
    %vm9315 = vcmp.eq.s32.totalorder %v8931, 1
    %vm9316 = vcmp.eq.s32.totalorder %v8932, 1
    %vm9317 = vcmp.eq.s32.totalorder %v8933, 1
    %vm9318 = vcmp.eq.s32.totalorder %v8934, 1
    %vm9319 = vcmp.eq.s32.totalorder %v8935, 1
    %vm9320 = vcmp.eq.s32.totalorder %v8936, 1
    %vm9321 = vcmp.eq.s32.totalorder %v8937, 1
    %vm9322 = vcmp.eq.s32.totalorder %v8938, 1
    %vm9323 = vcmp.eq.s32.totalorder %v8939, 1
    %vm9324 = vcmp.eq.s32.totalorder %v8940, 1
    %vm9325 = vcmp.eq.s32.totalorder %v8941, 1
    %vm9326 = vcmp.eq.s32.totalorder %v8942, 1
    %vm9327 = vcmp.eq.s32.totalorder %v8943, 1
    %vm9328 = vcmp.eq.s32.totalorder %v8944, 1
    %vm9329 = vcmp.eq.s32.totalorder %v8945, 1
    %vm9330 = vcmp.eq.s32.totalorder %v8946, 1
    %vm9331 = vcmp.eq.s32.totalorder %v8947, 1
    %vm9332 = vcmp.eq.s32.totalorder %v8948, 1
    %vm9333 = vcmp.eq.s32.totalorder %v8949, 1
    %vm9334 = vcmp.eq.s32.totalorder %v8950, 1
    %vm9335 = vcmp.eq.s32.totalorder %v8951, 1
    %vm9336 = vcmp.eq.s32.totalorder %v8952, 1
    %vm9337 = vcmp.eq.s32.totalorder %v8953, 1
    %vm9338 = vcmp.eq.s32.totalorder %v8954, 1
    %vm9339 = vcmp.eq.s32.totalorder %v8955, 1
    %vm9340 = vcmp.eq.s32.totalorder %v8956, 1
    %vm9341 = vcmp.eq.s32.totalorder %v8957, 1
    %vm9342 = vcmp.eq.s32.totalorder %v8958, 1
    %vm9343 = vcmp.eq.s32.totalorder %v8959, 1
    %vm9344 = vcmp.eq.s32.totalorder %v8960, 1
    %vm9345 = vcmp.eq.s32.totalorder %v8961, 1
    %vm9346 = vcmp.eq.s32.totalorder %v8962, 1
    %vm9347 = vcmp.eq.s32.totalorder %v8963, 1
    %vm9348 = vcmp.eq.s32.totalorder %v8964, 1
    %vm9349 = vcmp.eq.s32.totalorder %v8965, 1
    %vm9350 = vcmp.eq.s32.totalorder %v8966, 1
    %vm9351 = vcmp.eq.s32.totalorder %v8967, 1
    %vm9352 = vcmp.eq.s32.totalorder %v8968, 1
    %vm9353 = vcmp.eq.s32.totalorder %v8969, 1
    %vm9354 = vcmp.eq.s32.totalorder %v8970, 1
    %vm9355 = vcmp.eq.s32.totalorder %v8971, 1
    %vm9356 = vcmp.eq.s32.totalorder %v8972, 1
    %vm9357 = vcmp.eq.s32.totalorder %v8973, 1
    %vm9358 = vcmp.eq.s32.totalorder %v8974, 1
    %vm9359 = vcmp.eq.s32.totalorder %v8975, 1
    %vm9360 = vcmp.eq.s32.totalorder %v8976, 1
    %vm9361 = vcmp.eq.s32.totalorder %v8977, 1
    %vm9362 = vcmp.eq.s32.totalorder %v8978, 1
    %vm9363 = vcmp.eq.s32.totalorder %v8979, 1
    %vm9364 = vcmp.eq.s32.totalorder %v8980, 1
    %vm9365 = vcmp.eq.s32.totalorder %v8981, 1
    %v9366 = vsel %vm9270, 1, 0
    %v9367 = vsel %vm9271, 1, 0
    %v9368 = vsel %vm9272, 1, 0
    %v9369 = vsel %vm9273, 1, 0
    %v9370 = vsel %vm9274, 1, 0
    %v9371 = vsel %vm9275, 1, 0
    %v9372 = vsel %vm9276, 1, 0
    %v9373 = vsel %vm9277, 1, 0
    %v9374 = vsel %vm9278, 1, 0
    %v9375 = vsel %vm9279, 1, 0
    %v9376 = vsel %vm9280, 1, 0
    %v9377 = vsel %vm9281, 1, 0
    %v9378 = vsel %vm9282, 1, 0
    %v9379 = vsel %vm9283, 1, 0
    %v9380 = vsel %vm9284, 1, 0
    %v9381 = vsel %vm9285, 1, 0
    %v9382 = vsel %vm9286, 1, 0
    %v9383 = vsel %vm9287, 1, 0
    %v9384 = vsel %vm9288, 1, 0
    %v9385 = vsel %vm9289, 1, 0
    %v9386 = vsel %vm9290, 1, 0
    %v9387 = vsel %vm9291, 1, 0
    %v9388 = vsel %vm9292, 1, 0
    %v9389 = vsel %vm9293, 1, 0
    %v9390 = vsel %vm9294, 1, 0
    %v9391 = vsel %vm9295, 1, 0
    %v9392 = vsel %vm9296, 1, 0
    %v9393 = vsel %vm9297, 1, 0
    %v9394 = vsel %vm9298, 1, 0
    %v9395 = vsel %vm9299, 1, 0
    %v9396 = vsel %vm9300, 1, 0
    %v9397 = vsel %vm9301, 1, 0
    %v9398 = vsel %vm9302, 1, 0
    %v9399 = vsel %vm9303, 1, 0
    %v9400 = vsel %vm9304, 1, 0
    %v9401 = vsel %vm9305, 1, 0
    %v9402 = vsel %vm9306, 1, 0
    %v9403 = vsel %vm9307, 1, 0
    %v9404 = vsel %vm9308, 1, 0
    %v9405 = vsel %vm9309, 1, 0
    %v9406 = vsel %vm9310, 1, 0
    %v9407 = vsel %vm9311, 1, 0
    %v9408 = vsel %vm9312, 1, 0
    %v9409 = vsel %vm9313, 1, 0
    %v9410 = vsel %vm9314, 1, 0
    %v9411 = vsel %vm9315, 1, 0
    %v9412 = vsel %vm9316, 1, 0
    %v9413 = vsel %vm9317, 1, 0
    %v9414 = vsel %vm9318, 1, 0
    %v9415 = vsel %vm9319, 1, 0
    %v9416 = vsel %vm9320, 1, 0
    %v9417 = vsel %vm9321, 1, 0
    %v9418 = vsel %vm9322, 1, 0
    %v9419 = vsel %vm9323, 1, 0
    %v9420 = vsel %vm9324, 1, 0
    %v9421 = vsel %vm9325, 1, 0
    %v9422 = vsel %vm9326, 1, 0
    %v9423 = vsel %vm9327, 1, 0
    %v9424 = vsel %vm9328, 1, 0
    %v9425 = vsel %vm9329, 1, 0
    %v9426 = vsel %vm9330, 1, 0
    %v9427 = vsel %vm9331, 1, 0
    %v9428 = vsel %vm9332, 1, 0
    %v9429 = vsel %vm9333, 1, 0
    %v9430 = vsel %vm9334, 1, 0
    %v9431 = vsel %vm9335, 1, 0
    %v9432 = vsel %vm9336, 1, 0
    %v9433 = vsel %vm9337, 1, 0
    %v9434 = vsel %vm9338, 1, 0
    %v9435 = vsel %vm9339, 1, 0
    %v9436 = vsel %vm9340, 1, 0
    %v9437 = vsel %vm9341, 1, 0
    %v9438 = vsel %vm9342, 1, 0
    %v9439 = vsel %vm9343, 1, 0
    %v9440 = vsel %vm9344, 1, 0
    %v9441 = vsel %vm9345, 1, 0
    %v9442 = vsel %vm9346, 1, 0
    %v9443 = vsel %vm9347, 1, 0
    %v9444 = vsel %vm9348, 1, 0
    %v9445 = vsel %vm9349, 1, 0
    %v9446 = vsel %vm9350, 1, 0
    %v9447 = vsel %vm9351, 1, 0
    %v9448 = vsel %vm9352, 1, 0
    %v9449 = vsel %vm9353, 1, 0
    %v9450 = vsel %vm9354, 1, 0
    %v9451 = vsel %vm9355, 1, 0
    %v9452 = vsel %vm9356, 1, 0
    %v9453 = vsel %vm9357, 1, 0
    %v9454 = vsel %vm9358, 1, 0
    %v9455 = vsel %vm9359, 1, 0
    %v9456 = vsel %vm9360, 1, 0
    %v9457 = vsel %vm9361, 1, 0
    %v9458 = vsel %vm9362, 1, 0
    %v9459 = vsel %vm9363, 1, 0
    %v9460 = vsel %vm9364, 1, 0
    %v9461 = vsel %vm9365, 1, 0
    %v9462 = vcvt.s32.f32 %v9366
    %v9463 = vcvt.s32.f32 %v9367
    %v9464 = vcvt.s32.f32 %v9368
    %v9465 = vcvt.s32.f32 %v9369
    %v9466 = vcvt.s32.f32 %v9370
    %v9467 = vcvt.s32.f32 %v9371
    %v9468 = vcvt.s32.f32 %v9372
    %v9469 = vcvt.s32.f32 %v9373
    %v9470 = vcvt.s32.f32 %v9374
    %v9471 = vcvt.s32.f32 %v9375
    %v9472 = vcvt.s32.f32 %v9376
    %v9473 = vcvt.s32.f32 %v9377
    %v9474 = vcvt.s32.f32 %v9378
    %v9475 = vcvt.s32.f32 %v9379
    %v9476 = vcvt.s32.f32 %v9380
    %v9477 = vcvt.s32.f32 %v9381
    %v9478 = vcvt.s32.f32 %v9382
    %v9479 = vcvt.s32.f32 %v9383
    %v9480 = vcvt.s32.f32 %v9384
    %v9481 = vcvt.s32.f32 %v9385
    %v9482 = vcvt.s32.f32 %v9386
    %v9483 = vcvt.s32.f32 %v9387
    %v9484 = vcvt.s32.f32 %v9388
    %v9485 = vcvt.s32.f32 %v9389
    %v9486 = vcvt.s32.f32 %v9390
    %v9487 = vcvt.s32.f32 %v9391
    %v9488 = vcvt.s32.f32 %v9392
    %v9489 = vcvt.s32.f32 %v9393
    %v9490 = vcvt.s32.f32 %v9394
    %v9491 = vcvt.s32.f32 %v9395
    %v9492 = vcvt.s32.f32 %v9396
    %v9493 = vcvt.s32.f32 %v9397
    %v9494 = vcvt.s32.f32 %v9398
    %v9495 = vcvt.s32.f32 %v9399
    %v9496 = vcvt.s32.f32 %v9400
    %v9497 = vcvt.s32.f32 %v9401
    %v9498 = vcvt.s32.f32 %v9402
    %v9499 = vcvt.s32.f32 %v9403
    %v9500 = vcvt.s32.f32 %v9404
    %v9501 = vcvt.s32.f32 %v9405
    %v9502 = vcvt.s32.f32 %v9406
    %v9503 = vcvt.s32.f32 %v9407
    %v9504 = vcvt.s32.f32 %v9408
    %v9505 = vcvt.s32.f32 %v9409
    %v9506 = vcvt.s32.f32 %v9410
    %v9507 = vcvt.s32.f32 %v9411
    %v9508 = vcvt.s32.f32 %v9412
    %v9509 = vcvt.s32.f32 %v9413
    %v9510 = vcvt.s32.f32 %v9414
    %v9511 = vcvt.s32.f32 %v9415
    %v9512 = vcvt.s32.f32 %v9416
    %v9513 = vcvt.s32.f32 %v9417
    %v9514 = vcvt.s32.f32 %v9418
    %v9515 = vcvt.s32.f32 %v9419
    %v9516 = vcvt.s32.f32 %v9420
    %v9517 = vcvt.s32.f32 %v9421
    %v9518 = vcvt.s32.f32 %v9422
    %v9519 = vcvt.s32.f32 %v9423
    %v9520 = vcvt.s32.f32 %v9424
    %v9521 = vcvt.s32.f32 %v9425
    %v9522 = vcvt.s32.f32 %v9426
    %v9523 = vcvt.s32.f32 %v9427
    %v9524 = vcvt.s32.f32 %v9428
    %v9525 = vcvt.s32.f32 %v9429
    %v9526 = vcvt.s32.f32 %v9430
    %v9527 = vcvt.s32.f32 %v9431
    %v9528 = vcvt.s32.f32 %v9432
    %v9529 = vcvt.s32.f32 %v9433
    %v9530 = vcvt.s32.f32 %v9434
    %v9531 = vcvt.s32.f32 %v9435
    %v9532 = vcvt.s32.f32 %v9436
    %v9533 = vcvt.s32.f32 %v9437
    %v9534 = vcvt.s32.f32 %v9438
    %v9535 = vcvt.s32.f32 %v9439
    %v9536 = vcvt.s32.f32 %v9440
    %v9537 = vcvt.s32.f32 %v9441
    %v9538 = vcvt.s32.f32 %v9442
    %v9539 = vcvt.s32.f32 %v9443
    %v9540 = vcvt.s32.f32 %v9444
    %v9541 = vcvt.s32.f32 %v9445
    %v9542 = vcvt.s32.f32 %v9446
    %v9543 = vcvt.s32.f32 %v9447
    %v9544 = vcvt.s32.f32 %v9448
    %v9545 = vcvt.s32.f32 %v9449
    %v9546 = vcvt.s32.f32 %v9450
    %v9547 = vcvt.s32.f32 %v9451
    %v9548 = vcvt.s32.f32 %v9452
    %v9549 = vcvt.s32.f32 %v9453
    %v9550 = vcvt.s32.f32 %v9454
    %v9551 = vcvt.s32.f32 %v9455
    %v9552 = vcvt.s32.f32 %v9456
    %v9553 = vcvt.s32.f32 %v9457
    %v9554 = vcvt.s32.f32 %v9458
    %v9555 = vcvt.s32.f32 %v9459
    %v9556 = vcvt.s32.f32 %v9460
    %v9557 = vcvt.s32.f32 %v9461
    %v9559 = vsel %vm3320, %v8847, 0
    %v9562 = vsel %vm6975, %v9554, 0
    %v9565 = vsel %vm6975, %v9555, 0
    %v9568 = vsel %vm6975, %v9556, 0
    %v9571 = vsel %vm6975, %v9557, 0
    %9573 = vmatprep.subr.mxu0 %v6934
    %9574 = vmatpush1.msra.mxu0 %v4350
    %9575 = vmatprep.subr.mxu0 %v6935
    %9576 = vmatpush1.msra.mxu0 %v4351
    %9577 = vmatprep.subr.mxu0 %v6936
    %9578 = vmatpush1.msra.mxu0 %v4352
    %9579 = vmatprep.subr.mxu0 %v6937
    %9580 = vmatpush1.msra.mxu0 %v4353
    %9581 = vmatprep.subr.mxu0 %v6938
    %9582 = vmatpush1.msra.mxu0 %v4354
    %9583 = vmatprep.subr.mxu0 %v6939
    %9584 = vmatpush1.msra.mxu0 %v4355
    %9585 = vmatprep.subr.mxu0 %v6940
    %9586 = vmatpush1.msra.mxu0 %v4356
    %9587 = vmatprep.subr.mxu0 %v6942
    %9588 = vmatpush1.msra.mxu0 %v6941
    %9589 = vmatprep.subr.mxu0 %v6944
    %9590 = vmatpush1.msra.mxu0 %v6943
    %9591 = vmatprep.subr.mxu0 %v6946
    %9592 = vmatpush1.msra.mxu0 %v6945
    %9593 = vmatprep.subr.mxu0 %v6948
    %9594 = vmatpush1.msra.mxu0 %v6947
    %9595 = vmatprep.subr.mxu0 %v6950
    %9596 = vmatpush1.msra.mxu0 %v6949
    %9597 = vmatprep.subr.mxu0 %v6952
    %9598 = vmatpush1.msra.mxu0 %v6951
    %9599 = vmatprep.subr.mxu0 %v6954
    %9600 = vmatpush1.msra.mxu0 %v6953
    %9601 = vmatprep.subr.mxu0 %v6956
    %9602 = vmatpush1.msra.mxu0 %v6955
    %9603 = vmatprep.subr.mxu0 %v6958
    %9604 = vmatpush1.msra.mxu0 %v6957
    %9605 = vmatprep.subr.mxu0 %v9495
    %9606 = vmatpush1.msra.mxu0 %v9494
    %9607 = vmatprep.subr.mxu0 %v9499
    %9608 = vmatpush1.msra.mxu0 %v9498
    %9609 = vmatprep.subr.mxu0 %v9503
    %9610 = vmatpush1.msra.mxu0 %v9502
    %9611 = vmatprep.subr.mxu0 %v9507
    %9612 = vmatpush1.msra.mxu0 %v9506
    %9613 = vmatprep.subr.mxu0 %v9511
    %9614 = vmatpush1.msra.mxu0 %v9510
    %9615 = vmatprep.subr.mxu0 %v9515
    %9616 = vmatpush1.msra.mxu0 %v9514
    %9617 = vmatprep.subr.mxu0 %v9519
    %9618 = vmatpush1.msra.mxu0 %v9518
    %9619 = vmatprep.subr.mxu0 %v9523
    %9620 = vmatpush1.msra.mxu0 %v9522
    %9621 = vmatprep.subr.mxu0 %v9527
    %9622 = vmatpush1.msra.mxu0 %v9526
    %9623 = vmatprep.subr.mxu0 %v9531
    %9624 = vmatpush1.msra.mxu0 %v9530
    %9625 = vmatprep.subr.mxu0 %v9535
    %9626 = vmatpush1.msra.mxu0 %v9534
    %9627 = vmatprep.subr.mxu0 %v9539
    %9628 = vmatpush1.msra.mxu0 %v9538
    %9629 = vmatprep.subr.mxu0 %v9543
    %9630 = vmatpush1.msra.mxu0 %v9542
    %9631 = vmatprep.subr.mxu0 %v9547
    %9632 = vmatpush1.msra.mxu0 %v9546
    %9633 = vmatprep.subr.mxu0 %v9551
    %9634 = vmatpush1.msra.mxu0 %v9550
    %9635 = vmatprep.subr.mxu0 %v9565
    %9636 = vmatpush1.msra.mxu0 %v9562
    %9637 = vmatprep.mubr.f32.mxu0 %v9559
    %9638 = vmatmul.mubr.f32.gmra.mrb[0].mxu0 %v8845
    %v9639 = vpop.f32.mrb[0].mxu0
    %v9640 = vadd.f32 0.0, %v9639
    %v9641 = vpop.f32.mrb[0].mxu0
    %v9642 = vadd.f32 0.0, %v9641
    %9643 = vdwg.mxu0
    %9644 = vmatprep.subr.mxu0 %v9463
    %9645 = vmatpush1.msra.mxu0 %v9462
    %9646 = vmatprep.subr.mxu0 %v9465
    %9647 = vmatpush1.msra.mxu0 %v9464
    %9648 = vmatprep.subr.mxu0 %v9467
    %9649 = vmatpush1.msra.mxu0 %v9466
    %9650 = vmatprep.subr.mxu0 %v9469
    %9651 = vmatpush1.msra.mxu0 %v9468
    %9652 = vmatprep.subr.mxu0 %v9471
    %9653 = vmatpush1.msra.mxu0 %v9470
    %9654 = vmatprep.subr.mxu0 %v9473
    %9655 = vmatpush1.msra.mxu0 %v9472
    %9656 = vmatprep.subr.mxu0 %v9475
    %9657 = vmatpush1.msra.mxu0 %v9474
    %9658 = vmatprep.subr.mxu0 %v9477
    %9659 = vmatpush1.msra.mxu0 %v9476
    %9660 = vmatprep.subr.mxu0 %v9479
    %9661 = vmatpush1.msra.mxu0 %v9478
    %9662 = vmatprep.subr.mxu0 %v9481
    %9663 = vmatpush1.msra.mxu0 %v9480
    %9664 = vmatprep.subr.mxu0 %v9483
    %9665 = vmatpush1.msra.mxu0 %v9482
    %9666 = vmatprep.subr.mxu0 %v9485
    %9667 = vmatpush1.msra.mxu0 %v9484
    %9668 = vmatprep.subr.mxu0 %v9487
    %9669 = vmatpush1.msra.mxu0 %v9486
    %9670 = vmatprep.subr.mxu0 %v9489
    %9671 = vmatpush1.msra.mxu0 %v9488
    %9672 = vmatprep.subr.mxu0 %v9491
    %9673 = vmatpush1.msra.mxu0 %v9490
    %9674 = vmatprep.subr.mxu0 %v9493
    %9675 = vmatpush1.msra.mxu0 %v9492
    %9676 = vmatprep.subr.mxu0 %v9497
    %9677 = vmatpush1.msra.mxu0 %v9496
    %9678 = vmatprep.subr.mxu0 %v9501
    %9679 = vmatpush1.msra.mxu0 %v9500
    %9680 = vmatprep.subr.mxu0 %v9505
    %9681 = vmatpush1.msra.mxu0 %v9504
    %9682 = vmatprep.subr.mxu0 %v9509
    %9683 = vmatpush1.msra.mxu0 %v9508
    %9684 = vmatprep.subr.mxu0 %v9513
    %9685 = vmatpush1.msra.mxu0 %v9512
    %9686 = vmatprep.subr.mxu0 %v9517
    %9687 = vmatpush1.msra.mxu0 %v9516
    %9688 = vmatprep.subr.mxu0 %v9521
    %9689 = vmatpush1.msra.mxu0 %v9520
    %9690 = vmatprep.subr.mxu0 %v9525
    %9691 = vmatpush1.msra.mxu0 %v9524
    %9692 = vmatprep.subr.mxu0 %v9529
    %9693 = vmatpush1.msra.mxu0 %v9528
    %9694 = vmatprep.subr.mxu0 %v9533
    %9695 = vmatpush1.msra.mxu0 %v9532
    %9696 = vmatprep.subr.mxu0 %v9537
    %9697 = vmatpush1.msra.mxu0 %v9536
    %9698 = vmatprep.subr.mxu0 %v9541
    %9699 = vmatpush1.msra.mxu0 %v9540
    %9700 = vmatprep.subr.mxu0 %v9545
    %9701 = vmatpush1.msra.mxu0 %v9544
    %9702 = vmatprep.subr.mxu0 %v9549
    %9703 = vmatpush1.msra.mxu0 %v9548
    %9704 = vmatprep.subr.mxu0 %v9553
    %9705 = vmatpush1.msra.mxu0 %v9552
    %9706 = vmatprep.subr.mxu0 %v9571
    %9707 = vmatpush1.msra.mxu0 %v9568
    %9708 = vmatprep.mubr.f32.mxu0 %v9559
    %9709 = vmatmul.mubr.f32.gmra.mrb[0].mxu0 %v8845
    %v9710 = vpop.f32.mrb[0].mxu0
    %v9711 = vadd.f32 0.0, %v9710
    %v9712 = vpop.f32.mrb[0].mxu0
    %v9713 = vadd.f32 0.0, %v9712
    %9714 = vdwg.mxu0
    %v9716 = vsel %vm3320, %v8839, 0
    %v9719 = vsel %vm6975, %v9266, 0
    %v9722 = vsel %vm6975, %v9267, 0
    %v9725 = vsel %vm6975, %v9268, 0
    %v9728 = vsel %vm6975, %v9269, 0
    %9730 = vmatprep.subr.mxu0 %v6859
    %9731 = vmatpush1.msra.mxu0 %v4329
    %9732 = vmatprep.subr.mxu0 %v6860
    %9733 = vmatpush1.msra.mxu0 %v4330
    %9734 = vmatprep.subr.mxu0 %v6861
    %9735 = vmatpush1.msra.mxu0 %v4331
    %9736 = vmatprep.subr.mxu0 %v6862
    %9737 = vmatpush1.msra.mxu0 %v4332
    %9738 = vmatprep.subr.mxu0 %v6863
    %9739 = vmatpush1.msra.mxu0 %v4333
    %9740 = vmatprep.subr.mxu0 %v6864
    %9741 = vmatpush1.msra.mxu0 %v4334
    %9742 = vmatprep.subr.mxu0 %v6865
    %9743 = vmatpush1.msra.mxu0 %v4335
    %9744 = vmatprep.subr.mxu0 %v6867
    %9745 = vmatpush1.msra.mxu0 %v6866
    %9746 = vmatprep.subr.mxu0 %v6869
    %9747 = vmatpush1.msra.mxu0 %v6868
    %9748 = vmatprep.subr.mxu0 %v6871
    %9749 = vmatpush1.msra.mxu0 %v6870
    %9750 = vmatprep.subr.mxu0 %v6873
    %9751 = vmatpush1.msra.mxu0 %v6872
    %9752 = vmatprep.subr.mxu0 %v6875
    %9753 = vmatpush1.msra.mxu0 %v6874
    %9754 = vmatprep.subr.mxu0 %v6877
    %9755 = vmatpush1.msra.mxu0 %v6876
    %9756 = vmatprep.subr.mxu0 %v6879
    %9757 = vmatpush1.msra.mxu0 %v6878
    %9758 = vmatprep.subr.mxu0 %v6881
    %9759 = vmatpush1.msra.mxu0 %v6880
    %9760 = vmatprep.subr.mxu0 %v6883
    %9761 = vmatpush1.msra.mxu0 %v6882
    %9762 = vmatprep.subr.mxu0 %v9207
    %9763 = vmatpush1.msra.mxu0 %v9206
    %9764 = vmatprep.subr.mxu0 %v9211
    %9765 = vmatpush1.msra.mxu0 %v9210
    %9766 = vmatprep.subr.mxu0 %v9215
    %9767 = vmatpush1.msra.mxu0 %v9214
    %9768 = vmatprep.subr.mxu0 %v9219
    %9769 = vmatpush1.msra.mxu0 %v9218
    %9770 = vmatprep.subr.mxu0 %v9223
    %9771 = vmatpush1.msra.mxu0 %v9222
    %9772 = vmatprep.subr.mxu0 %v9227
    %9773 = vmatpush1.msra.mxu0 %v9226
    %9774 = vmatprep.subr.mxu0 %v9231
    %9775 = vmatpush1.msra.mxu0 %v9230
    %9776 = vmatprep.subr.mxu0 %v9235
    %9777 = vmatpush1.msra.mxu0 %v9234
    %9778 = vmatprep.subr.mxu0 %v9239
    %9779 = vmatpush1.msra.mxu0 %v9238
    %9780 = vmatprep.subr.mxu0 %v9243
    %9781 = vmatpush1.msra.mxu0 %v9242
    %9782 = vmatprep.subr.mxu0 %v9247
    %9783 = vmatpush1.msra.mxu0 %v9246
    %9784 = vmatprep.subr.mxu0 %v9251
    %9785 = vmatpush1.msra.mxu0 %v9250
    %9786 = vmatprep.subr.mxu0 %v9255
    %9787 = vmatpush1.msra.mxu0 %v9254
    %9788 = vmatprep.subr.mxu0 %v9259
    %9789 = vmatpush1.msra.mxu0 %v9258
    %9790 = vmatprep.subr.mxu0 %v9263
    %9791 = vmatpush1.msra.mxu0 %v9262
    %9792 = vmatprep.subr.mxu0 %v9722
    %9793 = vmatpush1.msra.mxu0 %v9719
    %9794 = vmatprep.mubr.f32.mxu0 %v9716
    %9795 = vmatmul.mubr.f32.gmra.mrb[0].mxu0 %v8837
    %v9796 = vpop.f32.mrb[0].mxu0
    %v9797 = vadd.f32 %v9640, %v9796
    %v9798 = vpop.f32.mrb[0].mxu0
    %v9799 = vadd.f32 %v9642, %v9798
    %9800 = vdwg.mxu0
    %9801 = vmatprep.subr.mxu0 %v9175
    %9802 = vmatpush1.msra.mxu0 %v9174
    %9803 = vmatprep.subr.mxu0 %v9177
    %9804 = vmatpush1.msra.mxu0 %v9176
    %9805 = vmatprep.subr.mxu0 %v9179
    %9806 = vmatpush1.msra.mxu0 %v9178
    %9807 = vmatprep.subr.mxu0 %v9181
    %9808 = vmatpush1.msra.mxu0 %v9180
    %9809 = vmatprep.subr.mxu0 %v9183
    %9810 = vmatpush1.msra.mxu0 %v9182
    %9811 = vmatprep.subr.mxu0 %v9185
    %9812 = vmatpush1.msra.mxu0 %v9184
    %9813 = vmatprep.subr.mxu0 %v9187
    %9814 = vmatpush1.msra.mxu0 %v9186
    %9815 = vmatprep.subr.mxu0 %v9189
    %9816 = vmatpush1.msra.mxu0 %v9188
    %9817 = vmatprep.subr.mxu0 %v9191
    %9818 = vmatpush1.msra.mxu0 %v9190
    %9819 = vmatprep.subr.mxu0 %v9193
    %9820 = vmatpush1.msra.mxu0 %v9192
    %9821 = vmatprep.subr.mxu0 %v9195
    %9822 = vmatpush1.msra.mxu0 %v9194
    %9823 = vmatprep.subr.mxu0 %v9197
    %9824 = vmatpush1.msra.mxu0 %v9196
    %9825 = vmatprep.subr.mxu0 %v9199
    %9826 = vmatpush1.msra.mxu0 %v9198
    %9827 = vmatprep.subr.mxu0 %v9201
    %9828 = vmatpush1.msra.mxu0 %v9200
    %9829 = vmatprep.subr.mxu0 %v9203
    %9830 = vmatpush1.msra.mxu0 %v9202
    %9831 = vmatprep.subr.mxu0 %v9205
    %9832 = vmatpush1.msra.mxu0 %v9204
    %9833 = vmatprep.subr.mxu0 %v9209
    %9834 = vmatpush1.msra.mxu0 %v9208
    %9835 = vmatprep.subr.mxu0 %v9213
    %9836 = vmatpush1.msra.mxu0 %v9212
    %9837 = vmatprep.subr.mxu0 %v9217
    %9838 = vmatpush1.msra.mxu0 %v9216
    %9839 = vmatprep.subr.mxu0 %v9221
    %9840 = vmatpush1.msra.mxu0 %v9220
    %9841 = vmatprep.subr.mxu0 %v9225
    %9842 = vmatpush1.msra.mxu0 %v9224
    %9843 = vmatprep.subr.mxu0 %v9229
    %9844 = vmatpush1.msra.mxu0 %v9228
    %9845 = vmatprep.subr.mxu0 %v9233
    %9846 = vmatpush1.msra.mxu0 %v9232
    %9847 = vmatprep.subr.mxu0 %v9237
    %9848 = vmatpush1.msra.mxu0 %v9236
    %9849 = vmatprep.subr.mxu0 %v9241
    %9850 = vmatpush1.msra.mxu0 %v9240
    %9851 = vmatprep.subr.mxu0 %v9245
    %9852 = vmatpush1.msra.mxu0 %v9244
    %9853 = vmatprep.subr.mxu0 %v9249
    %9854 = vmatpush1.msra.mxu0 %v9248
    %9855 = vmatprep.subr.mxu0 %v9253
    %9856 = vmatpush1.msra.mxu0 %v9252
    %9857 = vmatprep.subr.mxu0 %v9257
    %9858 = vmatpush1.msra.mxu0 %v9256
    %9859 = vmatprep.subr.mxu0 %v9261
    %9860 = vmatpush1.msra.mxu0 %v9260
    %9861 = vmatprep.subr.mxu0 %v9265
    %9862 = vmatpush1.msra.mxu0 %v9264
    %9863 = vmatprep.subr.mxu0 %v9728
    %9864 = vmatpush1.msra.mxu0 %v9725
    %9865 = vmatprep.mubr.f32.mxu0 %v9716
    %9866 = vmatmul.mubr.f32.gmra.mrb[0].mxu0 %v8837
    %v9867 = vpop.f32.mrb[0].mxu0
    %v9868 = vadd.f32 %v9711, %v9867
    %v9869 = vpop.f32.mrb[0].mxu0
    %v9870 = vadd.f32 %v9713, %v9869
    %9871 = vdwg.mxu0
    %v9876 = vcombine.low %v9797, %v9799
    %v9877 = vcombine.low %v9868, %v9870
    %v9879 = vunpack.c.l.s4 1983009808
    %v9880 = vunpack.c.0.s8 %v9879
    %v9881 = vlaneseq
    %v9882 = vshrl.u32 %v9881, 7
    %v9883 = vsub.s32 %v9880, %v9882
    %v9884 = vrot.slane %v9876, %v9883
    %v9886 = vunpack.c.l.s4 1983009808
    %v9887 = vunpack.c.0.s8 %v9886
    %v9888 = vlaneseq
    %v9889 = vshrl.u32 %v9888, 7
    %v9890 = vsub.s32 %v9887, %v9889
    %v9891 = vrot.slane %v9877, %v9890
    %v9892 = vcombine.low %v9884, %v9891
    %vm9894 = vcmask 1043458
    %vm9895 = vmor %vm9894, %vm6975
    %vm9896 = vcmask 1045508
    %vm9897 = vmor %vm9896, %vm9895
    %vm9898 = vcmask 949254
    %vm9899 = vmor %vm9898, %vm9897
    %9900 = vst.msk [vmem:[#allocation13] sm:$0xff] %vm9899, %v9892
    %v9902 = vsel %vm3320, %v8851, 0
    %9904 = vmatprep.subr.mxu0 %v6934
    %9905 = vmatpush1.msra.mxu0 %v4350
    %9906 = vmatprep.subr.mxu0 %v6935
    %9907 = vmatpush1.msra.mxu0 %v4351
    %9908 = vmatprep.subr.mxu0 %v6936
    %9909 = vmatpush1.msra.mxu0 %v4352
    %9910 = vmatprep.subr.mxu0 %v6937
    %9911 = vmatpush1.msra.mxu0 %v4353
    %9912 = vmatprep.subr.mxu0 %v6938
    %9913 = vmatpush1.msra.mxu0 %v4354
    %9914 = vmatprep.subr.mxu0 %v6939
    %9915 = vmatpush1.msra.mxu0 %v4355
    %9916 = vmatprep.subr.mxu0 %v6940
    %9917 = vmatpush1.msra.mxu0 %v4356
    %9918 = vmatprep.subr.mxu0 %v6942
    %9919 = vmatpush1.msra.mxu0 %v6941
    %9920 = vmatprep.subr.mxu0 %v6944
    %9921 = vmatpush1.msra.mxu0 %v6943
    %9922 = vmatprep.subr.mxu0 %v6946
    %9923 = vmatpush1.msra.mxu0 %v6945
    %9924 = vmatprep.subr.mxu0 %v6948
    %9925 = vmatpush1.msra.mxu0 %v6947
    %9926 = vmatprep.subr.mxu0 %v6950
    %9927 = vmatpush1.msra.mxu0 %v6949
    %9928 = vmatprep.subr.mxu0 %v6952
    %9929 = vmatpush1.msra.mxu0 %v6951
    %9930 = vmatprep.subr.mxu0 %v6954
    %9931 = vmatpush1.msra.mxu0 %v6953
    %9932 = vmatprep.subr.mxu0 %v6956
    %9933 = vmatpush1.msra.mxu0 %v6955
    %9934 = vmatprep.subr.mxu0 %v6958
    %9935 = vmatpush1.msra.mxu0 %v6957
    %9936 = vmatprep.subr.mxu0 %v9495
    %9937 = vmatpush1.msra.mxu0 %v9494
    %9938 = vmatprep.subr.mxu0 %v9499
    %9939 = vmatpush1.msra.mxu0 %v9498
    %9940 = vmatprep.subr.mxu0 %v9503
    %9941 = vmatpush1.msra.mxu0 %v9502
    %9942 = vmatprep.subr.mxu0 %v9507
    %9943 = vmatpush1.msra.mxu0 %v9506
    %9944 = vmatprep.subr.mxu0 %v9511
    %9945 = vmatpush1.msra.mxu0 %v9510
    %9946 = vmatprep.subr.mxu0 %v9515
    %9947 = vmatpush1.msra.mxu0 %v9514
    %9948 = vmatprep.subr.mxu0 %v9519
    %9949 = vmatpush1.msra.mxu0 %v9518
    %9950 = vmatprep.subr.mxu0 %v9523
    %9951 = vmatpush1.msra.mxu0 %v9522
    %9952 = vmatprep.subr.mxu0 %v9527
    %9953 = vmatpush1.msra.mxu0 %v9526
    %9954 = vmatprep.subr.mxu0 %v9531
    %9955 = vmatpush1.msra.mxu0 %v9530
    %9956 = vmatprep.subr.mxu0 %v9535
    %9957 = vmatpush1.msra.mxu0 %v9534
    %9958 = vmatprep.subr.mxu0 %v9539
    %9959 = vmatpush1.msra.mxu0 %v9538
    %9960 = vmatprep.subr.mxu0 %v9543
    %9961 = vmatpush1.msra.mxu0 %v9542
    %9962 = vmatprep.subr.mxu0 %v9547
    %9963 = vmatpush1.msra.mxu0 %v9546
    %9964 = vmatprep.subr.mxu0 %v9551
    %9965 = vmatpush1.msra.mxu0 %v9550
    %9966 = vmatprep.subr.mxu0 %v9565
    %9967 = vmatpush1.msra.mxu0 %v9562
    %9968 = vmatprep.mubr.f32.mxu0 %v9902
    %9969 = vmatmul.mubr.f32.gmra.mrb[0].mxu0 %v8849
    %v9970 = vpop.f32.mrb[0].mxu0
    %v9971 = vadd.f32 0.0, %v9970
    %v9972 = vpop.f32.mrb[0].mxu0
    %v9973 = vadd.f32 0.0, %v9972
    %9974 = vdwg.mxu0
    %9975 = vmatprep.subr.mxu0 %v9463
    %9976 = vmatpush1.msra.mxu0 %v9462
    %9977 = vmatprep.subr.mxu0 %v9465
    %9978 = vmatpush1.msra.mxu0 %v9464
    %9979 = vmatprep.subr.mxu0 %v9467
    %9980 = vmatpush1.msra.mxu0 %v9466
    %9981 = vmatprep.subr.mxu0 %v9469
    %9982 = vmatpush1.msra.mxu0 %v9468
    %9983 = vmatprep.subr.mxu0 %v9471
    %9984 = vmatpush1.msra.mxu0 %v9470
    %9985 = vmatprep.subr.mxu0 %v9473
    %9986 = vmatpush1.msra.mxu0 %v9472
    %9987 = vmatprep.subr.mxu0 %v9475
    %9988 = vmatpush1.msra.mxu0 %v9474
    %9989 = vmatprep.subr.mxu0 %v9477
    %9990 = vmatpush1.msra.mxu0 %v9476
    %9991 = vmatprep.subr.mxu0 %v9479
    %9992 = vmatpush1.msra.mxu0 %v9478
    %9993 = vmatprep.subr.mxu0 %v9481
    %9994 = vmatpush1.msra.mxu0 %v9480
    %9995 = vmatprep.subr.mxu0 %v9483
    %9996 = vmatpush1.msra.mxu0 %v9482
    %9997 = vmatprep.subr.mxu0 %v9485
    %9998 = vmatpush1.msra.mxu0 %v9484
    %9999 = vmatprep.subr.mxu0 %v9487
    %10000 = vmatpush1.msra.mxu0 %v9486
    %10001 = vmatprep.subr.mxu0 %v9489
    %10002 = vmatpush1.msra.mxu0 %v9488
    %10003 = vmatprep.subr.mxu0 %v9491
    %10004 = vmatpush1.msra.mxu0 %v9490
    %10005 = vmatprep.subr.mxu0 %v9493
    %10006 = vmatpush1.msra.mxu0 %v9492
    %10007 = vmatprep.subr.mxu0 %v9497
    %10008 = vmatpush1.msra.mxu0 %v9496
    %10009 = vmatprep.subr.mxu0 %v9501
    %10010 = vmatpush1.msra.mxu0 %v9500
    %10011 = vmatprep.subr.mxu0 %v9505
    %10012 = vmatpush1.msra.mxu0 %v9504
    %10013 = vmatprep.subr.mxu0 %v9509
    %10014 = vmatpush1.msra.mxu0 %v9508
    %10015 = vmatprep.subr.mxu0 %v9513
    %10016 = vmatpush1.msra.mxu0 %v9512
    %10017 = vmatprep.subr.mxu0 %v9517
    %10018 = vmatpush1.msra.mxu0 %v9516
    %10019 = vmatprep.subr.mxu0 %v9521
    %10020 = vmatpush1.msra.mxu0 %v9520
    %10021 = vmatprep.subr.mxu0 %v9525
    %10022 = vmatpush1.msra.mxu0 %v9524
    %10023 = vmatprep.subr.mxu0 %v9529
    %10024 = vmatpush1.msra.mxu0 %v9528
    %10025 = vmatprep.subr.mxu0 %v9533
    %10026 = vmatpush1.msra.mxu0 %v9532
    %10027 = vmatprep.subr.mxu0 %v9537
    %10028 = vmatpush1.msra.mxu0 %v9536
    %10029 = vmatprep.subr.mxu0 %v9541
    %10030 = vmatpush1.msra.mxu0 %v9540
    %10031 = vmatprep.subr.mxu0 %v9545
    %10032 = vmatpush1.msra.mxu0 %v9544
    %10033 = vmatprep.subr.mxu0 %v9549
    %10034 = vmatpush1.msra.mxu0 %v9548
    %10035 = vmatprep.subr.mxu0 %v9553
    %10036 = vmatpush1.msra.mxu0 %v9552
    %10037 = vmatprep.subr.mxu0 %v9571
    %10038 = vmatpush1.msra.mxu0 %v9568
    %10039 = vmatprep.mubr.f32.mxu0 %v9902
    %10040 = vmatmul.mubr.f32.gmra.mrb[0].mxu0 %v8849
    %v10041 = vpop.f32.mrb[0].mxu0
    %v10042 = vadd.f32 0.0, %v10041
    %v10043 = vpop.f32.mrb[0].mxu0
    %v10044 = vadd.f32 0.0, %v10043
    %10045 = vdwg.mxu0
    %v10047 = vsel %vm3320, %v8843, 0
    %10049 = vmatprep.subr.mxu0 %v6859
    %10050 = vmatpush1.msra.mxu0 %v4329
    %10051 = vmatprep.subr.mxu0 %v6860
    %10052 = vmatpush1.msra.mxu0 %v4330
    %10053 = vmatprep.subr.mxu0 %v6861
    %10054 = vmatpush1.msra.mxu0 %v4331
    %10055 = vmatprep.subr.mxu0 %v6862
    %10056 = vmatpush1.msra.mxu0 %v4332
    %10057 = vmatprep.subr.mxu0 %v6863
    %10058 = vmatpush1.msra.mxu0 %v4333
    %10059 = vmatprep.subr.mxu0 %v6864
    %10060 = vmatpush1.msra.mxu0 %v4334
    %10061 = vmatprep.subr.mxu0 %v6865
    %10062 = vmatpush1.msra.mxu0 %v4335
    %10063 = vmatprep.subr.mxu0 %v6867
    %10064 = vmatpush1.msra.mxu0 %v6866
    %10065 = vmatprep.subr.mxu0 %v6869
    %10066 = vmatpush1.msra.mxu0 %v6868
    %10067 = vmatprep.subr.mxu0 %v6871
    %10068 = vmatpush1.msra.mxu0 %v6870
    %10069 = vmatprep.subr.mxu0 %v6873
    %10070 = vmatpush1.msra.mxu0 %v6872
    %10071 = vmatprep.subr.mxu0 %v6875
    %10072 = vmatpush1.msra.mxu0 %v6874
    %10073 = vmatprep.subr.mxu0 %v6877
    %10074 = vmatpush1.msra.mxu0 %v6876
    %10075 = vmatprep.subr.mxu0 %v6879
    %10076 = vmatpush1.msra.mxu0 %v6878
    %10077 = vmatprep.subr.mxu0 %v6881
    %10078 = vmatpush1.msra.mxu0 %v6880
    %10079 = vmatprep.subr.mxu0 %v6883
    %10080 = vmatpush1.msra.mxu0 %v6882
    %10081 = vmatprep.subr.mxu0 %v9207
    %10082 = vmatpush1.msra.mxu0 %v9206
    %10083 = vmatprep.subr.mxu0 %v9211
    %10084 = vmatpush1.msra.mxu0 %v9210
    %10085 = vmatprep.subr.mxu0 %v9215
    %10086 = vmatpush1.msra.mxu0 %v9214
    %10087 = vmatprep.subr.mxu0 %v9219
    %10088 = vmatpush1.msra.mxu0 %v9218
    %10089 = vmatprep.subr.mxu0 %v9223
    %10090 = vmatpush1.msra.mxu0 %v9222
    %10091 = vmatprep.subr.mxu0 %v9227
    %10092 = vmatpush1.msra.mxu0 %v9226
    %10093 = vmatprep.subr.mxu0 %v9231
    %10094 = vmatpush1.msra.mxu0 %v9230
    %10095 = vmatprep.subr.mxu0 %v9235
    %10096 = vmatpush1.msra.mxu0 %v9234
    %10097 = vmatprep.subr.mxu0 %v9239
    %10098 = vmatpush1.msra.mxu0 %v9238
    %10099 = vmatprep.subr.mxu0 %v9243
    %10100 = vmatpush1.msra.mxu0 %v9242
    %10101 = vmatprep.subr.mxu0 %v9247
    %10102 = vmatpush1.msra.mxu0 %v9246
    %10103 = vmatprep.subr.mxu0 %v9251
    %10104 = vmatpush1.msra.mxu0 %v9250
    %10105 = vmatprep.subr.mxu0 %v9255
    %10106 = vmatpush1.msra.mxu0 %v9254
    %10107 = vmatprep.subr.mxu0 %v9259
    %10108 = vmatpush1.msra.mxu0 %v9258
    %10109 = vmatprep.subr.mxu0 %v9263
    %10110 = vmatpush1.msra.mxu0 %v9262
    %10111 = vmatprep.subr.mxu0 %v9722
    %10112 = vmatpush1.msra.mxu0 %v9719
    %10113 = vmatprep.mubr.f32.mxu0 %v10047
    %10114 = vmatmul.mubr.f32.gmra.mrb[0].mxu0 %v8841
    %v10115 = vpop.f32.mrb[0].mxu0
    %v10116 = vadd.f32 %v9971, %v10115
    %v10117 = vpop.f32.mrb[0].mxu0
    %v10118 = vadd.f32 %v9973, %v10117
    %10119 = vdwg.mxu0
    %10120 = vmatprep.subr.mxu0 %v9175
    %10121 = vmatpush1.msra.mxu0 %v9174
    %10122 = vmatprep.subr.mxu0 %v9177
    %10123 = vmatpush1.msra.mxu0 %v9176
    %10124 = vmatprep.subr.mxu0 %v9179
    %10125 = vmatpush1.msra.mxu0 %v9178
    %10126 = vmatprep.subr.mxu0 %v9181
    %10127 = vmatpush1.msra.mxu0 %v9180
    %10128 = vmatprep.subr.mxu0 %v9183
    %10129 = vmatpush1.msra.mxu0 %v9182
    %10130 = vmatprep.subr.mxu0 %v9185
    %10131 = vmatpush1.msra.mxu0 %v9184
    %10132 = vmatprep.subr.mxu0 %v9187
    %10133 = vmatpush1.msra.mxu0 %v9186
    %10134 = vmatprep.subr.mxu0 %v9189
    %10135 = vmatpush1.msra.mxu0 %v9188
    %10136 = vmatprep.subr.mxu0 %v9191
    %10137 = vmatpush1.msra.mxu0 %v9190
    %10138 = vmatprep.subr.mxu0 %v9193
    %10139 = vmatpush1.msra.mxu0 %v9192
    %10140 = vmatprep.subr.mxu0 %v9195
    %10141 = vmatpush1.msra.mxu0 %v9194
    %10142 = vmatprep.subr.mxu0 %v9197
    %10143 = vmatpush1.msra.mxu0 %v9196
    %10144 = vmatprep.subr.mxu0 %v9199
    %10145 = vmatpush1.msra.mxu0 %v9198
    %10146 = vmatprep.subr.mxu0 %v9201
    %10147 = vmatpush1.msra.mxu0 %v9200
    %10148 = vmatprep.subr.mxu0 %v9203
    %10149 = vmatpush1.msra.mxu0 %v9202
    %10150 = vmatprep.subr.mxu0 %v9205
    %10151 = vmatpush1.msra.mxu0 %v9204
    %10152 = vmatprep.subr.mxu0 %v9209
    %10153 = vmatpush1.msra.mxu0 %v9208
    %10154 = vmatprep.subr.mxu0 %v9213
    %10155 = vmatpush1.msra.mxu0 %v9212
    %10156 = vmatprep.subr.mxu0 %v9217
    %10157 = vmatpush1.msra.mxu0 %v9216
    %10158 = vmatprep.subr.mxu0 %v9221
    %10159 = vmatpush1.msra.mxu0 %v9220
    %10160 = vmatprep.subr.mxu0 %v9225
    %10161 = vmatpush1.msra.mxu0 %v9224
    %10162 = vmatprep.subr.mxu0 %v9229
    %10163 = vmatpush1.msra.mxu0 %v9228
    %10164 = vmatprep.subr.mxu0 %v9233
    %10165 = vmatpush1.msra.mxu0 %v9232
    %10166 = vmatprep.subr.mxu0 %v9237
    %10167 = vmatpush1.msra.mxu0 %v9236
    %10168 = vmatprep.subr.mxu0 %v9241
    %10169 = vmatpush1.msra.mxu0 %v9240
    %10170 = vmatprep.subr.mxu0 %v9245
    %10171 = vmatpush1.msra.mxu0 %v9244
    %10172 = vmatprep.subr.mxu0 %v9249
    %10173 = vmatpush1.msra.mxu0 %v9248
    %10174 = vmatprep.subr.mxu0 %v9253
    %10175 = vmatpush1.msra.mxu0 %v9252
    %10176 = vmatprep.subr.mxu0 %v9257
    %10177 = vmatpush1.msra.mxu0 %v9256
    %10178 = vmatprep.subr.mxu0 %v9261
    %10179 = vmatpush1.msra.mxu0 %v9260
    %10180 = vmatprep.subr.mxu0 %v9265
    %10181 = vmatpush1.msra.mxu0 %v9264
    %10182 = vmatprep.subr.mxu0 %v9728
    %10183 = vmatpush1.msra.mxu0 %v9725
    %10184 = vmatprep.mubr.f32.mxu0 %v10047
    %10185 = vmatmul.mubr.f32.gmra.mrb[0].mxu0 %v8841
    %v10186 = vpop.f32.mrb[0].mxu0
    %v10187 = vadd.f32 %v10042, %v10186
    %v10188 = vpop.f32.mrb[0].mxu0
    %v10189 = vadd.f32 %v10044, %v10188
    %10190 = vdwg.mxu0
    %v10195 = vcombine.low %v10116, %v10118
    %v10196 = vcombine.low %v10187, %v10189
    %v10198 = vunpack.c.l.s4 1983009808
    %v10199 = vunpack.c.0.s8 %v10198
    %v10200 = vlaneseq
    %v10201 = vshrl.u32 %v10200, 7
    %v10202 = vsub.s32 %v10199, %v10201
    %v10203 = vrot.slane %v10195, %v10202
    %v10205 = vunpack.c.l.s4 1983009808
    %v10206 = vunpack.c.0.s8 %v10205
    %v10207 = vlaneseq
    %v10208 = vshrl.u32 %v10207, 7
    %v10209 = vsub.s32 %v10206, %v10208
    %v10210 = vrot.slane %v10196, %v10209
    %v10211 = vcombine.low %v10203, %v10210
    %s10213 = scalar_lea.vmem [#allocation13], 8
    %10214 = vst.msk [vmem:[%s10213] sm:$0xff] %vm9899, %v10211
    // Predicated region
    $region58: #{generator_forward.1} parent=1 // pred_check
      _
    $region59: #{generator_forward.1} parent=1 // pred_check_branch
      %10216 = sbr.rel (0) target = $region61
    $region60: #{generator_forward.1} parent=1 // pred_region
      %s10218 = ssub.s32 256, 256
      %10219 = vsyncadd [#allocation7], %s10218
      %s10220 = sshll.u32 [#allocation13], 4
      %s10221 = int_to_ptr.vmem [resolvable:$true] %s10220
      %10226 = dma.vmem_to_hbm [thread:$0]  %s10221, 256, %s10, [#allocation7], 128, 128, 8
    $region61: #{generator_forward.1} parent=1 // pred_fallthru
      _
    // Predicated region
    $region62: #{generator_forward.1} parent=1 // pred_check
      _
    $region63: #{generator_forward.1} parent=1 // pred_check_branch
      %10228 = sbr.rel (0) target = $region65
    $region64: #{generator_forward.1} parent=1 // pred_region
      %10229 = dma.done [#allocation7], 256
    $region65: #{generator_forward.1} parent=1 // pred_fallthru
      _
    %10230 = vsyncpa [#allocation6], 1
    %10231 = vsyncpa [#allocation9], 1
    %10232 = vsyncpa [#allocation12], 1
    %10233 = vsyncpa [#allocation7], 1

</llo_original>
